<compile_context>
chip_gen: v5e
topology: v5e:2x2
jax: 0.10.0
libtpu: 0.0.40
codegen_flags: <defaults>
</compile_context>

<pallas_src>
import functools

import jax
import jax.numpy as jnp
from jax import lax
from jax.experimental import pallas as pl
from jax.experimental.pallas import tpu as pltpu

K = 7          # depthwise kernel size
PAD = 3        # padding for 7x7 conv
LN_EPS = 1e-5  # nn.LayerNorm default eps
LANE = 128     # TPU lane width
SUBLANE = 8    # TPU sublane width


def _round_up(x, m):
    return (x + m - 1) // m * m


def _erf(x):
    # erf via the Eigen/XLA rational approximation, dtype-generic (f32 or bf16).
    # Division uses an EUP approximate reciprocal (separate VLIW slot).
    dt = x.dtype
    def c(v):
        return jnp.asarray(v, dt)
    x = jnp.clip(x, c(-3.832506856900711), c(3.832506856900711))
    x2 = x * x
    a = c(-2.72614225801306e-10)
    a = a * x2 + c(2.77068142495902e-08)
    a = a * x2 + c(-2.10102402082508e-06)
    a = a * x2 + c(-5.69250639462346e-05)
    a = a * x2 + c(-7.34990630326855e-04)
    a = a * x2 + c(-2.95459980854025e-03)
    a = a * x2 + c(-1.60960333262415e-02)
    a = a * x
    b = c(-1.45660718464996e-05)
    b = b * x2 + c(-2.13374055278905e-04)
    b = b * x2 + c(-1.68282697438203e-03)
    b = b * x2 + c(-7.37332916720468e-03)
    b = b * x2 + c(-1.42647390514189e-02)
    return a * pl.reciprocal(b, approx=True)


def _gelu_exact(x):
    # nn.GELU() default (approximate='none'): 0.5*x*(1+erf(x/sqrt(2)))
    dt = x.dtype
    return jnp.asarray(0.5, dt) * x * (
        jnp.asarray(1.0, dt) + _erf(x * jnp.asarray(0.7071067811865476, dt)))


def convnext_block_kernel(xp_hbm, wdw_ref, bdw_ref, g_ref, beta_ref,
                          w1_ref, b1_ref, w2_ref, b2_ref, o_ref,
                          xbuf, sem,
                          *, c_real, th, w8, chunk_th, gelu_bf16):
    # xp_hbm : (B, Hpad+6, Wpp, Cp) padded NHWC activation, left in HBM (pl.ANY)
    # wdw_ref: (49, Cp) depthwise weights; bdw/g/beta: (1, Cp)
    # w1_ref : (Cp, Chp) bf16; b1_ref: (1, Chp) f32
    # w2_ref : (Chp, Cop) bf16; b2_ref: (1, Cop) f32
    # o_ref  : (1, TH, W8, Cop)
    # xbuf   : (2, TH+6, Wpp, Cp) f32 VMEM double buffer; sem: DMA sems (2,)
    b = pl.program_id(0)
    t = pl.program_id(1)
    n_t = pl.num_programs(1)
    thp = th + 2 * PAD
    cp = xbuf.shape[-1]
    cop = o_ref.shape[-1]

    def row_copy(tt, slot):
        # Row window [tt*TH, tt*TH + TH + 6) of image b -> VMEM slot.
        return pltpu.make_async_copy(
            xp_hbm.at[b, pl.ds(tt * th, thp)], xbuf.at[slot], sem.at[slot])

    cur = lax.rem(t, 2)

    @pl.when(t == 0)                      # prime the pipeline for this image
    def _():
        row_copy(0, cur).start()

    @pl.when(t + 1 < n_t)                 # prefetch the next row tile
    def _():
        row_copy(t + 1, 1 - cur).start()

    row_copy(t, cur).wait()
    xt = xbuf[cur]                        # (TH+6, Wpp, Cp), f32

    # ---- depthwise 7x7 conv: 7 W-shifted slabs, cheap kh slices inside ----
    wdw = wdw_ref[...]                    # (49, Cp) hoisted out of the loop
    acc = jnp.broadcast_to(bdw_ref[0], (th, w8, cp)).astype(jnp.float32)
    resid = None
    for kw in range(K):
        slab = xt[:, kw:kw + w8, :]       # one sublane-misaligned slice per kw
        if kw == PAD:
            resid = slab[PAD:PAD + th]    # residual reuses the centre slab
        for kh in range(K):               # leading-dim slices (cheap)
            acc = acc + slab[kh:kh + th] * wdw[kh * K + kw]

    # ---- LayerNorm over the *real* channel count (padded lanes are 0) ----
    inv_c = jnp.float32(1.0 / c_real)
    mean = jnp.sum(acc, axis=-1, keepdims=True) * inv_c
    diff = acc - mean
    if cp == c_real:
        diff_m = diff
    else:
        ch = lax.broadcasted_iota(jnp.int32, (1, 1, cp), 2)
        diff_m = jnp.where(ch < c_real, diff, 0.0)   # mask padded lanes for var
    var = jnp.sum(diff_m * diff_m, axis=-1, keepdims=True) * inv_c
    xn = diff * lax.rsqrt(var + LN_EPS)
    xn = xn * g_ref[0] + beta_ref[0]                  # padded lanes -> 0

    # ---- pointwise conv1 -> GELU -> conv2 -> +residual, chunked over rows ----
    w1 = w1_ref[...]
    w2 = w2_ref[...]
    b1 = b1_ref[0]
    b2 = b2_ref[0]
    for ci in range(th // chunk_th):      # caps the live f32 hidden activation
        r0 = ci * chunk_th
        xc = xn[r0:r0 + chunk_th].reshape(chunk_th * w8, cp).astype(jnp.bfloat16)
        h = jnp.dot(xc, w1, preferred_element_type=jnp.float32) + b1
        if gelu_bf16:                     # bf16 VALU path (v6e / v7x)
            h = _gelu_exact(h.astype(jnp.bfloat16))
        else:                             # f32 path (default, and for v5e)
            h = _gelu_exact(h)
        y = jnp.dot(h.astype(jnp.bfloat16), w2,
                    preferred_element_type=jnp.float32) + b2
        y = y.reshape(chunk_th, w8, cop) + resid[r0:r0 + chunk_th]
        o_ref[0, pl.ds(r0, chunk_th)] = y.astype(o_ref.dtype)


def convnext_block(x_nchw, params, *, row_tile=32, gelu_bf16=False):
    """ConvNeXtBlock forward. x_nchw: (B, C, H, W) float32. Returns (B, Co, H, W).

    row_tile: rows processed per grid step. 32-64 recommended on v5e/v6e
    (128 MiB VMEM); 8-16 on v7x (64 MiB) at large C, where the built-in hidden
    chunking also keeps the f32 4C activation bounded.
    gelu_bf16: evaluate the GELU erf rational in bf16 (v6e/v7x only; keep False
    on v5e, which has no bf16 VPU/EUP).
    """
    wdw, bdw, g, beta, w1, b1, w2, b2 = params
    B, C, H, W = x_nchw.shape
    Chid = w1.shape[-1]
    Co = w2.shape[-1]
    assert Co == C, "residual add requires out_channels == in_channels"
    assert Chid == 4 * Co

    # Lane-dense channel padding (multiple of 128); sublane-dense W padding.
    Cp = _round_up(C, LANE)
    Chp = _round_up(Chid, LANE)
    Cop = _round_up(Co, LANE)          # == Cp since Co == C
    W8 = _round_up(W, SUBLANE)
    Wpp = _round_up(W8 + 2 * PAD, SUBLANE)

    TH = max(1, min(row_tile, H))
    Hpad = _round_up(H, TH)
    nT = Hpad // TH
    THP = TH + 2 * PAD

    # Chunk the conv1->GELU->conv2 chain so the f32 hidden stays <= ~8 MiB.
    chunk_th = TH
    while chunk_th % 2 == 0 and chunk_th * W8 * Chp * 4 > (8 << 20):
        chunk_th //= 2

    # NCHW -> NHWC, single pad pass: halo rows/cols + row/col/channel padding.
    # (All padded regions are exact zeros, which the in-kernel LN masking and
    #  the zero-padded weights below rely on.)
    x = jnp.transpose(x_nchw, (0, 2, 3, 1))                            # NHWC
    xp = jnp.pad(x, ((0, 0),
                     (PAD, Hpad + PAD - H),
                     (PAD, Wpp - W - PAD),
                     (0, Cp - C)))            # (B, Hpad+6, Wpp, Cp), stays in HBM

    # Parameters in kernel-friendly, channel-padded layouts (zero padded).
    wdw_p = jnp.pad(wdw, ((0, 0), (0, 0), (0, Cp - C))).reshape(K * K, Cp)
    bdw_p = jnp.pad(bdw, ((0, 0), (0, Cp - C)))
    g_p = jnp.pad(g, ((0, 0), (0, Cp - C)))
    beta_p = jnp.pad(beta, ((0, 0), (0, Cp - C)))
    w1_p = jnp.pad(w1, ((0, Cp - C), (0, Chp - Chid))).astype(jnp.bfloat16)
    b1_p = jnp.pad(b1, ((0, 0), (0, Chp - Chid)))
    w2_p = jnp.pad(w2, ((0, Chp - Chid), (0, Cop - Co))).astype(jnp.bfloat16)
    b2_p = jnp.pad(b2, ((0, 0), (0, Cop - Co)))

    def wspec(arr):
        nd = arr.ndim
        return pl.BlockSpec(arr.shape, lambda b_, t_, _nd=nd: (0,) * _nd)

    kernel = functools.partial(convnext_block_kernel, c_real=C, th=TH, w8=W8,
                               chunk_th=chunk_th, gelu_bf16=gelu_bf16)

    flops = 2 * B * Hpad * W8 * (K * K * Cp + Cp * Chp + Chp * Cop)
    bytes_accessed = (xp.size * 4 + B * Hpad * W8 * Cop * 4
                      + (w1_p.size + w2_p.size) * 2
                      + (wdw_p.size + bdw_p.size + g_p.size + beta_p.size
                         + b1_p.size + b2_p.size) * 4)
    cost = pl.CostEstimate(flops=int(flops),
                           transcendentals=int(B * Hpad * W8 * Chp),
                           bytes_accessed=int(bytes_accessed))

    # Size the VMEM budget from the actual buffers (double-buffered input DMA,
    # double-buffered output, single-copy weights, live intermediates).
    vmem_est = (2 * THP * Wpp * Cp * 4
                + 2 * TH * W8 * Cop * 4
                + (w1_p.size + w2_p.size) * 2 * 2
                + (wdw_p.size + bdw_p.size + g_p.size + beta_p.size
                   + b1_p.size + b2_p.size) * 4 * 2
                + 3 * TH * W8 * Cp * 4
                + 3 * chunk_th * W8 * Chp * 4)
    vmem_limit = int(min(max(2 * vmem_est + (8 << 20), 32 << 20), 100 << 20))

    out = pl.pallas_call(
        kernel,
        out_shape=jax.ShapeDtypeStruct((B, Hpad, W8, Cop), x_nchw.dtype),
        grid=(B, nT),
        in_specs=[
            pl.BlockSpec(memory_space=pl.ANY),        # activation stays in HBM
            wspec(wdw_p), wspec(bdw_p), wspec(g_p), wspec(beta_p),
            wspec(w1_p), wspec(b1_p), wspec(w2_p), wspec(b2_p),
        ],
        out_specs=pl.BlockSpec((1, TH, W8, Cop), lambda b_, t_: (b_, t_, 0, 0)),
        scratch_shapes=[
            pltpu.VMEM((2, THP, Wpp, Cp), jnp.float32),   # input double buffer
            pltpu.SemaphoreType.DMA((2,)),
        ],
        compiler_params=pltpu.CompilerParams(
            dimension_semantics=("parallel", "arbitrary"),
            vmem_limit_bytes=vmem_limit),
        cost_estimate=cost,
    )(xp, wdw_p, bdw_p, g_p, beta_p, w1_p, b1_p, w2_p, b2_p)

    out = out[:, :H, :W, :Co]
    return jnp.transpose(out, (0, 3, 1, 2))                            # NCHW


def ref_forward(x_nchw, params):
    """Pure-JAX reference of the PyTorch forward (NHWC math, true erf GELU)."""
    wdw, bdw, g, beta, w1, b1, w2, b2 = params
    B, C, H, W = x_nchw.shape
    x = jnp.transpose(x_nchw, (0, 2, 3, 1))
    xp = jnp.pad(x, ((0, 0), (PAD, PAD), (PAD, PAD), (0, 0)))
    acc = jnp.zeros_like(x)
    for kh in range(K):
        for kw in range(K):
            acc = acc + xp[:, kh:kh + H, kw:kw + W, :] * wdw[kh, kw]
    acc = acc + bdw[0]
    mean = acc.mean(-1, keepdims=True)
    var = ((acc - mean) ** 2).mean(-1, keepdims=True)
    xn = (acc - mean) / jnp.sqrt(var + LN_EPS)
    xn = xn * g[0] + beta[0]
    h = jnp.einsum('bhwc,cf->bhwf', xn, w1,
                   precision=lax.Precision.HIGHEST) + b1[0]
    h = 0.5 * h * (1.0 + lax.erf(h / jnp.sqrt(2.0)))
    y = jnp.einsum('bhwf,fo->bhwo', h, w2,
                   precision=lax.Precision.HIGHEST) + b2[0]
    y = y + x
    return jnp.transpose(y, (0, 3, 1, 2))


if __name__ == "__main__":
    key = jax.random.PRNGKey(0)
    B, C, H, W = 2, 4, 16, 16
    Cout = C            # residual requires out_channels == in_channels
    Chid = 4 * Cout

    ks = jax.random.split(key, 8)
    x = jax.random.normal(ks[0], (B, C, H, W), jnp.float32)

    # Parameters in natural layouts:
    #   depthwise_conv.weight (C,1,7,7) -> (7,7,C);  .bias (C,) -> (1,C)
    #   norm.weight/.bias (C,)          -> (1,C)
    #   pointwise_conv1.weight (4Co,C,1,1) -> (C,4Co); .bias -> (1,4Co)
    #   pointwise_conv2.weight (Co,4Co,1,1) -> (4Co,Co); .bias -> (1,Co)
    wdw = 0.1 * jax.random.normal(ks[1], (K, K, C), jnp.float32)
    bdw = 0.1 * jax.random.normal(ks[2], (1, C), jnp.float32)
    g = jnp.ones((1, C), jnp.float32)
    beta = jnp.zeros((1, C), jnp.float32)
    w1 = 0.1 * jax.random.normal(ks[3], (C, Chid), jnp.float32)
    b1 = 0.1 * jax.random.normal(ks[4], (1, Chid), jnp.float32)
    w2 = 0.1 * jax.random.normal(ks[5], (Chid, Cout), jnp.float32)
    b2 = 0.1 * jax.random.normal(ks[6], (1, Cout), jnp.float32)
    params = (wdw, bdw, g, beta, w1, b1, w2, b2)

    out = jax.block_until_ready(convnext_block(x, params))
    ref = ref_forward(x, params)

    assert out.shape == (B, Cout, H, W), out.shape
    max_err = float(jnp.max(jnp.abs(out - ref)))
    assert jnp.allclose(out, ref, rtol=2e-2, atol=2e-2), f"max_err={max_err}"
    print("KERNEL_OK")
</pallas_src>

<mosaic_0001>
module attributes {stable_mosaic.version = 11 : i64} {
  func.func @convnext_block_kernel(%arg0: i32, %arg1: i32, %arg2: memref<2x22x24x128xf32, #tpu.memory_space<any>>, %arg3: memref<49x128xf32, #tpu.memory_space<vmem>>, %arg4: memref<1x128xf32, #tpu.memory_space<vmem>>, %arg5: memref<1x128xf32, #tpu.memory_space<vmem>>, %arg6: memref<1x128xf32, #tpu.memory_space<vmem>>, %arg7: memref<128x128xbf16, #tpu.memory_space<vmem>>, %arg8: memref<1x128xf32, #tpu.memory_space<vmem>>, %arg9: memref<128x128xbf16, #tpu.memory_space<vmem>>, %arg10: memref<1x128xf32, #tpu.memory_space<vmem>>, %arg11: memref<1x16x16x128xf32, #tpu.memory_space<vmem>>, %arg12: memref<2x22x24x128xf32, #tpu.memory_space<vmem>>, %arg13: memref<2x!tpu.dma_semaphore, #tpu.memory_space<semaphore_mem>>) attributes {dimension_semantics = [#tpu.dimension_semantics<parallel>, #tpu.dimension_semantics<arbitrary>], iteration_bounds = array<i64: 2, 1>, scalar_prefetch = 0 : i64, scratch_operands = 2 : i64, tpu.core_type = #tpu.core_type<tc>, window_params = [{}, {pipeline_mode = #tpu.pipeline_mode<synchronous>, transform_indices = @transform_1, window_bounds = array<i64: 49, 128>}, {pipeline_mode = #tpu.pipeline_mode<synchronous>, transform_indices = @transform_2, window_bounds = array<i64: 1, 128>}, {pipeline_mode = #tpu.pipeline_mode<synchronous>, transform_indices = @transform_3, window_bounds = array<i64: 1, 128>}, {pipeline_mode = #tpu.pipeline_mode<synchronous>, transform_indices = @transform_4, window_bounds = array<i64: 1, 128>}, {pipeline_mode = #tpu.pipeline_mode<synchronous>, transform_indices = @transform_5, window_bounds = array<i64: 128, 128>}, {pipeline_mode = #tpu.pipeline_mode<synchronous>, transform_indices = @transform_6, window_bounds = array<i64: 1, 128>}, {pipeline_mode = #tpu.pipeline_mode<synchronous>, transform_indices = @transform_7, window_bounds = array<i64: 128, 128>}, {pipeline_mode = #tpu.pipeline_mode<synchronous>, transform_indices = @transform_8, window_bounds = array<i64: 1, 128>}, {transform_indices = @transform_9, window_bounds = array<i64: 1, 16, 16, 128>}]} {
    %c2_i32 = arith.constant 2 : i32
    %0 = arith.remsi %arg1, %c2_i32 : i32
    %c0_i32 = arith.constant 0 : i32
    %1 = arith.cmpi eq, %arg1, %c0_i32 : i32
    %2 = arith.extui %1 : i1 to i32
    %c0_i32_0 = arith.constant 0 : i32
    %3 = arith.cmpi ne, %2, %c0_i32_0 : i32
    scf.if %3 {
      %c0_i32_54 = arith.constant 0 : i32
      %c0_i32_55 = arith.constant 0 : i32
      %c0_i32_56 = arith.constant 0 : i32
      %476 = tpu.memref_slice %arg2[%arg0, %c0_i32_54, %c0_i32_55, %c0_i32_56] : memref<2x22x24x128xf32, #tpu.memory_space<any>> -> memref<1x22x24x128xf32, #tpu.memory_space<any>>
      %477 = tpu.memref_squeeze %476 : memref<1x22x24x128xf32, #tpu.memory_space<any>> -> memref<22x24x128xf32, #tpu.memory_space<any>>
      %c0_i32_57 = arith.constant 0 : i32
      %c0_i32_58 = arith.constant 0 : i32
      %c0_i32_59 = arith.constant 0 : i32
      %478 = tpu.memref_slice %arg12[%0, %c0_i32_57, %c0_i32_58, %c0_i32_59] : memref<2x22x24x128xf32, #tpu.memory_space<vmem>> -> memref<1x22x24x128xf32, #tpu.memory_space<vmem>>
      %479 = tpu.memref_squeeze %478 : memref<1x22x24x128xf32, #tpu.memory_space<vmem>> -> memref<22x24x128xf32, #tpu.memory_space<vmem>>
      %480 = tpu.memref_slice %arg13[%0] : memref<2x!tpu.dma_semaphore, #tpu.memory_space<semaphore_mem>> -> memref<1x!tpu.dma_semaphore, #tpu.memory_space<semaphore_mem>>
      %481 = tpu.memref_squeeze %480 : memref<1x!tpu.dma_semaphore, #tpu.memory_space<semaphore_mem>> -> memref<!tpu.dma_semaphore, #tpu.memory_space<semaphore_mem>>
      tpu.enqueue_dma source(%477 : memref<22x24x128xf32, #tpu.memory_space<any>>) target(%479 : memref<22x24x128xf32, #tpu.memory_space<vmem>>) target_semaphore(%481 : memref<!tpu.dma_semaphore, #tpu.memory_space<semaphore_mem>>)
    } else {
    }
    %c1_i32 = arith.constant 1 : i32
    %4 = arith.addi %arg1, %c1_i32 : i32
    %c1_i32_1 = arith.constant 1 : i32
    %5 = arith.cmpi slt, %4, %c1_i32_1 : i32
    %6 = arith.extui %5 : i1 to i32
    %c0_i32_2 = arith.constant 0 : i32
    %7 = arith.cmpi ne, %6, %c0_i32_2 : i32
    scf.if %7 {
      %c1_i32_54 = arith.constant 1 : i32
      %476 = arith.addi %arg1, %c1_i32_54 : i32
      %c1_i32_55 = arith.constant 1 : i32
      %477 = arith.subi %c1_i32_55, %0 : i32
      %c16_i32_56 = arith.constant 16 : i32
      %478 = arith.muli %476, %c16_i32_56 : i32
      %c0_i32_57 = arith.constant 0 : i32
      %c0_i32_58 = arith.constant 0 : i32
      %479 = tpu.memref_slice %arg2[%arg0, %478, %c0_i32_57, %c0_i32_58] : memref<2x22x24x128xf32, #tpu.memory_space<any>> -> memref<1x22x24x128xf32, #tpu.memory_space<any>>
      %480 = tpu.memref_squeeze %479 : memref<1x22x24x128xf32, #tpu.memory_space<any>> -> memref<22x24x128xf32, #tpu.memory_space<any>>
      %c0_i32_59 = arith.constant 0 : i32
      %c0_i32_60 = arith.constant 0 : i32
      %c0_i32_61 = arith.constant 0 : i32
      %481 = tpu.memref_slice %arg12[%477, %c0_i32_59, %c0_i32_60, %c0_i32_61] : memref<2x22x24x128xf32, #tpu.memory_space<vmem>> -> memref<1x22x24x128xf32, #tpu.memory_space<vmem>>
      %482 = tpu.memref_squeeze %481 : memref<1x22x24x128xf32, #tpu.memory_space<vmem>> -> memref<22x24x128xf32, #tpu.memory_space<vmem>>
      %483 = tpu.memref_slice %arg13[%477] : memref<2x!tpu.dma_semaphore, #tpu.memory_space<semaphore_mem>> -> memref<1x!tpu.dma_semaphore, #tpu.memory_space<semaphore_mem>>
      %484 = tpu.memref_squeeze %483 : memref<1x!tpu.dma_semaphore, #tpu.memory_space<semaphore_mem>> -> memref<!tpu.dma_semaphore, #tpu.memory_space<semaphore_mem>>
      tpu.enqueue_dma source(%480 : memref<22x24x128xf32, #tpu.memory_space<any>>) target(%482 : memref<22x24x128xf32, #tpu.memory_space<vmem>>) target_semaphore(%484 : memref<!tpu.dma_semaphore, #tpu.memory_space<semaphore_mem>>)
    } else {
    }
    %c16_i32 = arith.constant 16 : i32
    %8 = arith.muli %arg1, %c16_i32 : i32
    %c0_i32_3 = arith.constant 0 : i32
    %c0_i32_4 = arith.constant 0 : i32
    %9 = tpu.memref_slice %arg2[%arg0, %8, %c0_i32_3, %c0_i32_4] : memref<2x22x24x128xf32, #tpu.memory_space<any>> -> memref<1x22x24x128xf32, #tpu.memory_space<any>>
    %10 = tpu.memref_squeeze %9 : memref<1x22x24x128xf32, #tpu.memory_space<any>> -> memref<22x24x128xf32, #tpu.memory_space<any>>
    %c0_i32_5 = arith.constant 0 : i32
    %c0_i32_6 = arith.constant 0 : i32
    %c0_i32_7 = arith.constant 0 : i32
    %11 = tpu.memref_slice %arg12[%0, %c0_i32_5, %c0_i32_6, %c0_i32_7] : memref<2x22x24x128xf32, #tpu.memory_space<vmem>> -> memref<1x22x24x128xf32, #tpu.memory_space<vmem>>
    %12 = tpu.memref_squeeze %11 : memref<1x22x24x128xf32, #tpu.memory_space<vmem>> -> memref<22x24x128xf32, #tpu.memory_space<vmem>>
    %13 = tpu.memref_slice %arg13[%0] : memref<2x!tpu.dma_semaphore, #tpu.memory_space<semaphore_mem>> -> memref<1x!tpu.dma_semaphore, #tpu.memory_space<semaphore_mem>>
    %14 = tpu.memref_squeeze %13 : memref<1x!tpu.dma_semaphore, #tpu.memory_space<semaphore_mem>> -> memref<!tpu.dma_semaphore, #tpu.memory_space<semaphore_mem>>
    tpu.wait_dma2 semaphore(%14 : memref<!tpu.dma_semaphore, #tpu.memory_space<semaphore_mem>>) src(%10 : memref<22x24x128xf32, #tpu.memory_space<any>>) dst(%12 : memref<22x24x128xf32, #tpu.memory_space<vmem>>)
    %15 = arith.index_cast %0 : i32 to index
    %c0 = arith.constant 0 : index
    %c0_8 = arith.constant 0 : index
    %c0_9 = arith.constant 0 : index
    %16 = vector.load %arg12[%15, %c0, %c0_8, %c0_9] : memref<2x22x24x128xf32, #tpu.memory_space<vmem>>, vector<1x22x24x128xf32>
    %17 = vector.shape_cast %16 : vector<1x22x24x128xf32> to vector<22x24x128xf32>
    %c0_10 = arith.constant 0 : index
    %c0_11 = arith.constant 0 : index
    %18 = vector.load %arg3[%c0_10, %c0_11] : memref<49x128xf32, #tpu.memory_space<vmem>>, vector<49x128xf32>
    %c0_12 = arith.constant 0 : index
    %c0_13 = arith.constant 0 : index
    %19 = vector.load %arg4[%c0_12, %c0_13] : memref<1x128xf32, #tpu.memory_space<vmem>>, vector<1x128xf32>
    %20 = vector.shape_cast %19 : vector<1x128xf32> to vector<128xf32>
    %21 = vector.shape_cast %20 : vector<128xf32> to vector<1x1x128xf32>
    %22 = vector.broadcast %21 : vector<1x1x128xf32> to vector<16x16x128xf32>
    %23 = vector.extract_strided_slice %17 {offsets = [0, 0, 0], sizes = [22, 16, 128], strides = [1, 1, 1]} : vector<22x24x128xf32> to vector<22x16x128xf32>
    %24 = vector.extract_strided_slice %23 {offsets = [0, 0, 0], sizes = [16, 16, 128], strides = [1, 1, 1]} : vector<22x16x128xf32> to vector<16x16x128xf32>
    %25 = vector.extract_strided_slice %18 {offsets = [0, 0], sizes = [1, 128], strides = [1, 1]} : vector<49x128xf32> to vector<1x128xf32>
    %26 = vector.shape_cast %25 : vector<1x128xf32> to vector<128xf32>
    %27 = vector.shape_cast %26 : vector<128xf32> to vector<1x1x128xf32>
    %28 = vector.broadcast %27 : vector<1x1x128xf32> to vector<16x16x128xf32>
    %29 = arith.mulf %24, %28 : vector<16x16x128xf32>
    %30 = arith.addf %22, %29 : vector<16x16x128xf32>
    %31 = vector.extract_strided_slice %23 {offsets = [1, 0, 0], sizes = [16, 16, 128], strides = [1, 1, 1]} : vector<22x16x128xf32> to vector<16x16x128xf32>
    %32 = vector.extract_strided_slice %18 {offsets = [7, 0], sizes = [1, 128], strides = [1, 1]} : vector<49x128xf32> to vector<1x128xf32>
    %33 = vector.shape_cast %32 : vector<1x128xf32> to vector<128xf32>
    %34 = vector.shape_cast %33 : vector<128xf32> to vector<1x1x128xf32>
    %35 = vector.broadcast %34 : vector<1x1x128xf32> to vector<16x16x128xf32>
    %36 = arith.mulf %31, %35 : vector<16x16x128xf32>
    %37 = arith.addf %30, %36 : vector<16x16x128xf32>
    %38 = vector.extract_strided_slice %23 {offsets = [2, 0, 0], sizes = [16, 16, 128], strides = [1, 1, 1]} : vector<22x16x128xf32> to vector<16x16x128xf32>
    %39 = vector.extract_strided_slice %18 {offsets = [14, 0], sizes = [1, 128], strides = [1, 1]} : vector<49x128xf32> to vector<1x128xf32>
    %40 = vector.shape_cast %39 : vector<1x128xf32> to vector<128xf32>
    %41 = vector.shape_cast %40 : vector<128xf32> to vector<1x1x128xf32>
    %42 = vector.broadcast %41 : vector<1x1x128xf32> to vector<16x16x128xf32>
    %43 = arith.mulf %38, %42 : vector<16x16x128xf32>
    %44 = arith.addf %37, %43 : vector<16x16x128xf32>
    %45 = vector.extract_strided_slice %23 {offsets = [3, 0, 0], sizes = [16, 16, 128], strides = [1, 1, 1]} : vector<22x16x128xf32> to vector<16x16x128xf32>
    %46 = vector.extract_strided_slice %18 {offsets = [21, 0], sizes = [1, 128], strides = [1, 1]} : vector<49x128xf32> to vector<1x128xf32>
    %47 = vector.shape_cast %46 : vector<1x128xf32> to vector<128xf32>
    %48 = vector.shape_cast %47 : vector<128xf32> to vector<1x1x128xf32>
    %49 = vector.broadcast %48 : vector<1x1x128xf32> to vector<16x16x128xf32>
    %50 = arith.mulf %45, %49 : vector<16x16x128xf32>
    %51 = arith.addf %44, %50 : vector<16x16x128xf32>
    %52 = vector.extract_strided_slice %23 {offsets = [4, 0, 0], sizes = [16, 16, 128], strides = [1, 1, 1]} : vector<22x16x128xf32> to vector<16x16x128xf32>
    %53 = vector.extract_strided_slice %18 {offsets = [28, 0], sizes = [1, 128], strides = [1, 1]} : vector<49x128xf32> to vector<1x128xf32>
    %54 = vector.shape_cast %53 : vector<1x128xf32> to vector<128xf32>
    %55 = vector.shape_cast %54 : vector<128xf32> to vector<1x1x128xf32>
    %56 = vector.broadcast %55 : vector<1x1x128xf32> to vector<16x16x128xf32>
    %57 = arith.mulf %52, %56 : vector<16x16x128xf32>
    %58 = arith.addf %51, %57 : vector<16x16x128xf32>
    %59 = vector.extract_strided_slice %23 {offsets = [5, 0, 0], sizes = [16, 16, 128], strides = [1, 1, 1]} : vector<22x16x128xf32> to vector<16x16x128xf32>
    %60 = vector.extract_strided_slice %18 {offsets = [35, 0], sizes = [1, 128], strides = [1, 1]} : vector<49x128xf32> to vector<1x128xf32>
    %61 = vector.shape_cast %60 : vector<1x128xf32> to vector<128xf32>
    %62 = vector.shape_cast %61 : vector<128xf32> to vector<1x1x128xf32>
    %63 = vector.broadcast %62 : vector<1x1x128xf32> to vector<16x16x128xf32>
    %64 = arith.mulf %59, %63 : vector<16x16x128xf32>
    %65 = arith.addf %58, %64 : vector<16x16x128xf32>
    %66 = vector.extract_strided_slice %23 {offsets = [6, 0, 0], sizes = [16, 16, 128], strides = [1, 1, 1]} : vector<22x16x128xf32> to vector<16x16x128xf32>
    %67 = vector.extract_strided_slice %18 {offsets = [42, 0], sizes = [1, 128], strides = [1, 1]} : vector<49x128xf32> to vector<1x128xf32>
    %68 = vector.shape_cast %67 : vector<1x128xf32> to vector<128xf32>
    %69 = vector.shape_cast %68 : vector<128xf32> to vector<1x1x128xf32>
    %70 = vector.broadcast %69 : vector<1x1x128xf32> to vector<16x16x128xf32>
    %71 = arith.mulf %66, %70 : vector<16x16x128xf32>
    %72 = arith.addf %65, %71 : vector<16x16x128xf32>
    %73 = vector.extract_strided_slice %17 {offsets = [0, 1, 0], sizes = [22, 16, 128], strides = [1, 1, 1]} : vector<22x24x128xf32> to vector<22x16x128xf32>
    %74 = vector.extract_strided_slice %73 {offsets = [0, 0, 0], sizes = [16, 16, 128], strides = [1, 1, 1]} : vector<22x16x128xf32> to vector<16x16x128xf32>
    %75 = vector.extract_strided_slice %18 {offsets = [1, 0], sizes = [1, 128], strides = [1, 1]} : vector<49x128xf32> to vector<1x128xf32>
    %76 = vector.shape_cast %75 : vector<1x128xf32> to vector<128xf32>
    %77 = vector.shape_cast %76 : vector<128xf32> to vector<1x1x128xf32>
    %78 = vector.broadcast %77 : vector<1x1x128xf32> to vector<16x16x128xf32>
    %79 = arith.mulf %74, %78 : vector<16x16x128xf32>
    %80 = arith.addf %72, %79 : vector<16x16x128xf32>
    %81 = vector.extract_strided_slice %73 {offsets = [1, 0, 0], sizes = [16, 16, 128], strides = [1, 1, 1]} : vector<22x16x128xf32> to vector<16x16x128xf32>
    %82 = vector.extract_strided_slice %18 {offsets = [8, 0], sizes = [1, 128], strides = [1, 1]} : vector<49x128xf32> to vector<1x128xf32>
    %83 = vector.shape_cast %82 : vector<1x128xf32> to vector<128xf32>
    %84 = vector.shape_cast %83 : vector<128xf32> to vector<1x1x128xf32>
    %85 = vector.broadcast %84 : vector<1x1x128xf32> to vector<16x16x128xf32>
    %86 = arith.mulf %81, %85 : vector<16x16x128xf32>
    %87 = arith.addf %80, %86 : vector<16x16x128xf32>
    %88 = vector.extract_strided_slice %73 {offsets = [2, 0, 0], sizes = [16, 16, 128], strides = [1, 1, 1]} : vector<22x16x128xf32> to vector<16x16x128xf32>
    %89 = vector.extract_strided_slice %18 {offsets = [15, 0], sizes = [1, 128], strides = [1, 1]} : vector<49x128xf32> to vector<1x128xf32>
    %90 = vector.shape_cast %89 : vector<1x128xf32> to vector<128xf32>
    %91 = vector.shape_cast %90 : vector<128xf32> to vector<1x1x128xf32>
    %92 = vector.broadcast %91 : vector<1x1x128xf32> to vector<16x16x128xf32>
    %93 = arith.mulf %88, %92 : vector<16x16x128xf32>
    %94 = arith.addf %87, %93 : vector<16x16x128xf32>
    %95 = vector.extract_strided_slice %73 {offsets = [3, 0, 0], sizes = [16, 16, 128], strides = [1, 1, 1]} : vector<22x16x128xf32> to vector<16x16x128xf32>
    %96 = vector.extract_strided_slice %18 {offsets = [22, 0], sizes = [1, 128], strides = [1, 1]} : vector<49x128xf32> to vector<1x128xf32>
    %97 = vector.shape_cast %96 : vector<1x128xf32> to vector<128xf32>
    %98 = vector.shape_cast %97 : vector<128xf32> to vector<1x1x128xf32>
    %99 = vector.broadcast %98 : vector<1x1x128xf32> to vector<16x16x128xf32>
    %100 = arith.mulf %95, %99 : vector<16x16x128xf32>
    %101 = arith.addf %94, %100 : vector<16x16x128xf32>
    %102 = vector.extract_strided_slice %73 {offsets = [4, 0, 0], sizes = [16, 16, 128], strides = [1, 1, 1]} : vector<22x16x128xf32> to vector<16x16x128xf32>
    %103 = vector.extract_strided_slice %18 {offsets = [29, 0], sizes = [1, 128], strides = [1, 1]} : vector<49x128xf32> to vector<1x128xf32>
    %104 = vector.shape_cast %103 : vector<1x128xf32> to vector<128xf32>
    %105 = vector.shape_cast %104 : vector<128xf32> to vector<1x1x128xf32>
    %106 = vector.broadcast %105 : vector<1x1x128xf32> to vector<16x16x128xf32>
    %107 = arith.mulf %102, %106 : vector<16x16x128xf32>
    %108 = arith.addf %101, %107 : vector<16x16x128xf32>
    %109 = vector.extract_strided_slice %73 {offsets = [5, 0, 0], sizes = [16, 16, 128], strides = [1, 1, 1]} : vector<22x16x128xf32> to vector<16x16x128xf32>
    %110 = vector.extract_strided_slice %18 {offsets = [36, 0], sizes = [1, 128], strides = [1, 1]} : vector<49x128xf32> to vector<1x128xf32>
    %111 = vector.shape_cast %110 : vector<1x128xf32> to vector<128xf32>
    %112 = vector.shape_cast %111 : vector<128xf32> to vector<1x1x128xf32>
    %113 = vector.broadcast %112 : vector<1x1x128xf32> to vector<16x16x128xf32>
    %114 = arith.mulf %109, %113 : vector<16x16x128xf32>
    %115 = arith.addf %108, %114 : vector<16x16x128xf32>
    %116 = vector.extract_strided_slice %73 {offsets = [6, 0, 0], sizes = [16, 16, 128], strides = [1, 1, 1]} : vector<22x16x128xf32> to vector<16x16x128xf32>
    %117 = vector.extract_strided_slice %18 {offsets = [43, 0], sizes = [1, 128], strides = [1, 1]} : vector<49x128xf32> to vector<1x128xf32>
    %118 = vector.shape_cast %117 : vector<1x128xf32> to vector<128xf32>
    %119 = vector.shape_cast %118 : vector<128xf32> to vector<1x1x128xf32>
    %120 = vector.broadcast %119 : vector<1x1x128xf32> to vector<16x16x128xf32>
    %121 = arith.mulf %116, %120 : vector<16x16x128xf32>
    %122 = arith.addf %115, %121 : vector<16x16x128xf32>
    %123 = vector.extract_strided_slice %17 {offsets = [0, 2, 0], sizes = [22, 16, 128], strides = [1, 1, 1]} : vector<22x24x128xf32> to vector<22x16x128xf32>
    %124 = vector.extract_strided_slice %123 {offsets = [0, 0, 0], sizes = [16, 16, 128], strides = [1, 1, 1]} : vector<22x16x128xf32> to vector<16x16x128xf32>
    %125 = vector.extract_strided_slice %18 {offsets = [2, 0], sizes = [1, 128], strides = [1, 1]} : vector<49x128xf32> to vector<1x128xf32>
    %126 = vector.shape_cast %125 : vector<1x128xf32> to vector<128xf32>
    %127 = vector.shape_cast %126 : vector<128xf32> to vector<1x1x128xf32>
    %128 = vector.broadcast %127 : vector<1x1x128xf32> to vector<16x16x128xf32>
    %129 = arith.mulf %124, %128 : vector<16x16x128xf32>
    %130 = arith.addf %122, %129 : vector<16x16x128xf32>
    %131 = vector.extract_strided_slice %123 {offsets = [1, 0, 0], sizes = [16, 16, 128], strides = [1, 1, 1]} : vector<22x16x128xf32> to vector<16x16x128xf32>
    %132 = vector.extract_strided_slice %18 {offsets = [9, 0], sizes = [1, 128], strides = [1, 1]} : vector<49x128xf32> to vector<1x128xf32>
    %133 = vector.shape_cast %132 : vector<1x128xf32> to vector<128xf32>
    %134 = vector.shape_cast %133 : vector<128xf32> to vector<1x1x128xf32>
    %135 = vector.broadcast %134 : vector<1x1x128xf32> to vector<16x16x128xf32>
    %136 = arith.mulf %131, %135 : vector<16x16x128xf32>
    %137 = arith.addf %130, %136 : vector<16x16x128xf32>
    %138 = vector.extract_strided_slice %123 {offsets = [2, 0, 0], sizes = [16, 16, 128], strides = [1, 1, 1]} : vector<22x16x128xf32> to vector<16x16x128xf32>
    %139 = vector.extract_strided_slice %18 {offsets = [16, 0], sizes = [1, 128], strides = [1, 1]} : vector<49x128xf32> to vector<1x128xf32>
    %140 = vector.shape_cast %139 : vector<1x128xf32> to vector<128xf32>
    %141 = vector.shape_cast %140 : vector<128xf32> to vector<1x1x128xf32>
    %142 = vector.broadcast %141 : vector<1x1x128xf32> to vector<16x16x128xf32>
    %143 = arith.mulf %138, %142 : vector<16x16x128xf32>
    %144 = arith.addf %137, %143 : vector<16x16x128xf32>
    %145 = vector.extract_strided_slice %123 {offsets = [3, 0, 0], sizes = [16, 16, 128], strides = [1, 1, 1]} : vector<22x16x128xf32> to vector<16x16x128xf32>
    %146 = vector.extract_strided_slice %18 {offsets = [23, 0], sizes = [1, 128], strides = [1, 1]} : vector<49x128xf32> to vector<1x128xf32>
    %147 = vector.shape_cast %146 : vector<1x128xf32> to vector<128xf32>
    %148 = vector.shape_cast %147 : vector<128xf32> to vector<1x1x128xf32>
    %149 = vector.broadcast %148 : vector<1x1x128xf32> to vector<16x16x128xf32>
    %150 = arith.mulf %145, %149 : vector<16x16x128xf32>
    %151 = arith.addf %144, %150 : vector<16x16x128xf32>
    %152 = vector.extract_strided_slice %123 {offsets = [4, 0, 0], sizes = [16, 16, 128], strides = [1, 1, 1]} : vector<22x16x128xf32> to vector<16x16x128xf32>
    %153 = vector.extract_strided_slice %18 {offsets = [30, 0], sizes = [1, 128], strides = [1, 1]} : vector<49x128xf32> to vector<1x128xf32>
    %154 = vector.shape_cast %153 : vector<1x128xf32> to vector<128xf32>
    %155 = vector.shape_cast %154 : vector<128xf32> to vector<1x1x128xf32>
    %156 = vector.broadcast %155 : vector<1x1x128xf32> to vector<16x16x128xf32>
    %157 = arith.mulf %152, %156 : vector<16x16x128xf32>
    %158 = arith.addf %151, %157 : vector<16x16x128xf32>
    %159 = vector.extract_strided_slice %123 {offsets = [5, 0, 0], sizes = [16, 16, 128], strides = [1, 1, 1]} : vector<22x16x128xf32> to vector<16x16x128xf32>
    %160 = vector.extract_strided_slice %18 {offsets = [37, 0], sizes = [1, 128], strides = [1, 1]} : vector<49x128xf32> to vector<1x128xf32>
    %161 = vector.shape_cast %160 : vector<1x128xf32> to vector<128xf32>
    %162 = vector.shape_cast %161 : vector<128xf32> to vector<1x1x128xf32>
    %163 = vector.broadcast %162 : vector<1x1x128xf32> to vector<16x16x128xf32>
    %164 = arith.mulf %159, %163 : vector<16x16x128xf32>
    %165 = arith.addf %158, %164 : vector<16x16x128xf32>
    %166 = vector.extract_strided_slice %123 {offsets = [6, 0, 0], sizes = [16, 16, 128], strides = [1, 1, 1]} : vector<22x16x128xf32> to vector<16x16x128xf32>
    %167 = vector.extract_strided_slice %18 {offsets = [44, 0], sizes = [1, 128], strides = [1, 1]} : vector<49x128xf32> to vector<1x128xf32>
    %168 = vector.shape_cast %167 : vector<1x128xf32> to vector<128xf32>
    %169 = vector.shape_cast %168 : vector<128xf32> to vector<1x1x128xf32>
    %170 = vector.broadcast %169 : vector<1x1x128xf32> to vector<16x16x128xf32>
    %171 = arith.mulf %166, %170 : vector<16x16x128xf32>
    %172 = arith.addf %165, %171 : vector<16x16x128xf32>
    %173 = vector.extract_strided_slice %17 {offsets = [0, 3, 0], sizes = [22, 16, 128], strides = [1, 1, 1]} : vector<22x24x128xf32> to vector<22x16x128xf32>
    %174 = vector.extract_strided_slice %173 {offsets = [3, 0, 0], sizes = [16, 16, 128], strides = [1, 1, 1]} : vector<22x16x128xf32> to vector<16x16x128xf32>
    %175 = vector.extract_strided_slice %173 {offsets = [0, 0, 0], sizes = [16, 16, 128], strides = [1, 1, 1]} : vector<22x16x128xf32> to vector<16x16x128xf32>
    %176 = vector.extract_strided_slice %18 {offsets = [3, 0], sizes = [1, 128], strides = [1, 1]} : vector<49x128xf32> to vector<1x128xf32>
    %177 = vector.shape_cast %176 : vector<1x128xf32> to vector<128xf32>
    %178 = vector.shape_cast %177 : vector<128xf32> to vector<1x1x128xf32>
    %179 = vector.broadcast %178 : vector<1x1x128xf32> to vector<16x16x128xf32>
    %180 = arith.mulf %175, %179 : vector<16x16x128xf32>
    %181 = arith.addf %172, %180 : vector<16x16x128xf32>
    %182 = vector.extract_strided_slice %173 {offsets = [1, 0, 0], sizes = [16, 16, 128], strides = [1, 1, 1]} : vector<22x16x128xf32> to vector<16x16x128xf32>
    %183 = vector.extract_strided_slice %18 {offsets = [10, 0], sizes = [1, 128], strides = [1, 1]} : vector<49x128xf32> to vector<1x128xf32>
    %184 = vector.shape_cast %183 : vector<1x128xf32> to vector<128xf32>
    %185 = vector.shape_cast %184 : vector<128xf32> to vector<1x1x128xf32>
    %186 = vector.broadcast %185 : vector<1x1x128xf32> to vector<16x16x128xf32>
    %187 = arith.mulf %182, %186 : vector<16x16x128xf32>
    %188 = arith.addf %181, %187 : vector<16x16x128xf32>
    %189 = vector.extract_strided_slice %173 {offsets = [2, 0, 0], sizes = [16, 16, 128], strides = [1, 1, 1]} : vector<22x16x128xf32> to vector<16x16x128xf32>
    %190 = vector.extract_strided_slice %18 {offsets = [17, 0], sizes = [1, 128], strides = [1, 1]} : vector<49x128xf32> to vector<1x128xf32>
    %191 = vector.shape_cast %190 : vector<1x128xf32> to vector<128xf32>
    %192 = vector.shape_cast %191 : vector<128xf32> to vector<1x1x128xf32>
    %193 = vector.broadcast %192 : vector<1x1x128xf32> to vector<16x16x128xf32>
    %194 = arith.mulf %189, %193 : vector<16x16x128xf32>
    %195 = arith.addf %188, %194 : vector<16x16x128xf32>
    %196 = vector.extract_strided_slice %173 {offsets = [3, 0, 0], sizes = [16, 16, 128], strides = [1, 1, 1]} : vector<22x16x128xf32> to vector<16x16x128xf32>
    %197 = vector.extract_strided_slice %18 {offsets = [24, 0], sizes = [1, 128], strides = [1, 1]} : vector<49x128xf32> to vector<1x128xf32>
    %198 = vector.shape_cast %197 : vector<1x128xf32> to vector<128xf32>
    %199 = vector.shape_cast %198 : vector<128xf32> to vector<1x1x128xf32>
    %200 = vector.broadcast %199 : vector<1x1x128xf32> to vector<16x16x128xf32>
    %201 = arith.mulf %196, %200 : vector<16x16x128xf32>
    %202 = arith.addf %195, %201 : vector<16x16x128xf32>
    %203 = vector.extract_strided_slice %173 {offsets = [4, 0, 0], sizes = [16, 16, 128], strides = [1, 1, 1]} : vector<22x16x128xf32> to vector<16x16x128xf32>
    %204 = vector.extract_strided_slice %18 {offsets = [31, 0], sizes = [1, 128], strides = [1, 1]} : vector<49x128xf32> to vector<1x128xf32>
    %205 = vector.shape_cast %204 : vector<1x128xf32> to vector<128xf32>
    %206 = vector.shape_cast %205 : vector<128xf32> to vector<1x1x128xf32>
    %207 = vector.broadcast %206 : vector<1x1x128xf32> to vector<16x16x128xf32>
    %208 = arith.mulf %203, %207 : vector<16x16x128xf32>
    %209 = arith.addf %202, %208 : vector<16x16x128xf32>
    %210 = vector.extract_strided_slice %173 {offsets = [5, 0, 0], sizes = [16, 16, 128], strides = [1, 1, 1]} : vector<22x16x128xf32> to vector<16x16x128xf32>
    %211 = vector.extract_strided_slice %18 {offsets = [38, 0], sizes = [1, 128], strides = [1, 1]} : vector<49x128xf32> to vector<1x128xf32>
    %212 = vector.shape_cast %211 : vector<1x128xf32> to vector<128xf32>
    %213 = vector.shape_cast %212 : vector<128xf32> to vector<1x1x128xf32>
    %214 = vector.broadcast %213 : vector<1x1x128xf32> to vector<16x16x128xf32>
    %215 = arith.mulf %210, %214 : vector<16x16x128xf32>
    %216 = arith.addf %209, %215 : vector<16x16x128xf32>
    %217 = vector.extract_strided_slice %173 {offsets = [6, 0, 0], sizes = [16, 16, 128], strides = [1, 1, 1]} : vector<22x16x128xf32> to vector<16x16x128xf32>
    %218 = vector.extract_strided_slice %18 {offsets = [45, 0], sizes = [1, 128], strides = [1, 1]} : vector<49x128xf32> to vector<1x128xf32>
    %219 = vector.shape_cast %218 : vector<1x128xf32> to vector<128xf32>
    %220 = vector.shape_cast %219 : vector<128xf32> to vector<1x1x128xf32>
    %221 = vector.broadcast %220 : vector<1x1x128xf32> to vector<16x16x128xf32>
    %222 = arith.mulf %217, %221 : vector<16x16x128xf32>
    %223 = arith.addf %216, %222 : vector<16x16x128xf32>
    %224 = vector.extract_strided_slice %17 {offsets = [0, 4, 0], sizes = [22, 16, 128], strides = [1, 1, 1]} : vector<22x24x128xf32> to vector<22x16x128xf32>
    %225 = vector.extract_strided_slice %224 {offsets = [0, 0, 0], sizes = [16, 16, 128], strides = [1, 1, 1]} : vector<22x16x128xf32> to vector<16x16x128xf32>
    %226 = vector.extract_strided_slice %18 {offsets = [4, 0], sizes = [1, 128], strides = [1, 1]} : vector<49x128xf32> to vector<1x128xf32>
    %227 = vector.shape_cast %226 : vector<1x128xf32> to vector<128xf32>
    %228 = vector.shape_cast %227 : vector<128xf32> to vector<1x1x128xf32>
    %229 = vector.broadcast %228 : vector<1x1x128xf32> to vector<16x16x128xf32>
    %230 = arith.mulf %225, %229 : vector<16x16x128xf32>
    %231 = arith.addf %223, %230 : vector<16x16x128xf32>
    %232 = vector.extract_strided_slice %224 {offsets = [1, 0, 0], sizes = [16, 16, 128], strides = [1, 1, 1]} : vector<22x16x128xf32> to vector<16x16x128xf32>
    %233 = vector.extract_strided_slice %18 {offsets = [11, 0], sizes = [1, 128], strides = [1, 1]} : vector<49x128xf32> to vector<1x128xf32>
    %234 = vector.shape_cast %233 : vector<1x128xf32> to vector<128xf32>
    %235 = vector.shape_cast %234 : vector<128xf32> to vector<1x1x128xf32>
    %236 = vector.broadcast %235 : vector<1x1x128xf32> to vector<16x16x128xf32>
    %237 = arith.mulf %232, %236 : vector<16x16x128xf32>
    %238 = arith.addf %231, %237 : vector<16x16x128xf32>
    %239 = vector.extract_strided_slice %224 {offsets = [2, 0, 0], sizes = [16, 16, 128], strides = [1, 1, 1]} : vector<22x16x128xf32> to vector<16x16x128xf32>
    %240 = vector.extract_strided_slice %18 {offsets = [18, 0], sizes = [1, 128], strides = [1, 1]} : vector<49x128xf32> to vector<1x128xf32>
    %241 = vector.shape_cast %240 : vector<1x128xf32> to vector<128xf32>
    %242 = vector.shape_cast %241 : vector<128xf32> to vector<1x1x128xf32>
    %243 = vector.broadcast %242 : vector<1x1x128xf32> to vector<16x16x128xf32>
    %244 = arith.mulf %239, %243 : vector<16x16x128xf32>
    %245 = arith.addf %238, %244 : vector<16x16x128xf32>
    %246 = vector.extract_strided_slice %224 {offsets = [3, 0, 0], sizes = [16, 16, 128], strides = [1, 1, 1]} : vector<22x16x128xf32> to vector<16x16x128xf32>
    %247 = vector.extract_strided_slice %18 {offsets = [25, 0], sizes = [1, 128], strides = [1, 1]} : vector<49x128xf32> to vector<1x128xf32>
    %248 = vector.shape_cast %247 : vector<1x128xf32> to vector<128xf32>
    %249 = vector.shape_cast %248 : vector<128xf32> to vector<1x1x128xf32>
    %250 = vector.broadcast %249 : vector<1x1x128xf32> to vector<16x16x128xf32>
    %251 = arith.mulf %246, %250 : vector<16x16x128xf32>
    %252 = arith.addf %245, %251 : vector<16x16x128xf32>
    %253 = vector.extract_strided_slice %224 {offsets = [4, 0, 0], sizes = [16, 16, 128], strides = [1, 1, 1]} : vector<22x16x128xf32> to vector<16x16x128xf32>
    %254 = vector.extract_strided_slice %18 {offsets = [32, 0], sizes = [1, 128], strides = [1, 1]} : vector<49x128xf32> to vector<1x128xf32>
    %255 = vector.shape_cast %254 : vector<1x128xf32> to vector<128xf32>
    %256 = vector.shape_cast %255 : vector<128xf32> to vector<1x1x128xf32>
    %257 = vector.broadcast %256 : vector<1x1x128xf32> to vector<16x16x128xf32>
    %258 = arith.mulf %253, %257 : vector<16x16x128xf32>
    %259 = arith.addf %252, %258 : vector<16x16x128xf32>
    %260 = vector.extract_strided_slice %224 {offsets = [5, 0, 0], sizes = [16, 16, 128], strides = [1, 1, 1]} : vector<22x16x128xf32> to vector<16x16x128xf32>
    %261 = vector.extract_strided_slice %18 {offsets = [39, 0], sizes = [1, 128], strides = [1, 1]} : vector<49x128xf32> to vector<1x128xf32>
    %262 = vector.shape_cast %261 : vector<1x128xf32> to vector<128xf32>
    %263 = vector.shape_cast %262 : vector<128xf32> to vector<1x1x128xf32>
    %264 = vector.broadcast %263 : vector<1x1x128xf32> to vector<16x16x128xf32>
    %265 = arith.mulf %260, %264 : vector<16x16x128xf32>
    %266 = arith.addf %259, %265 : vector<16x16x128xf32>
    %267 = vector.extract_strided_slice %224 {offsets = [6, 0, 0], sizes = [16, 16, 128], strides = [1, 1, 1]} : vector<22x16x128xf32> to vector<16x16x128xf32>
    %268 = vector.extract_strided_slice %18 {offsets = [46, 0], sizes = [1, 128], strides = [1, 1]} : vector<49x128xf32> to vector<1x128xf32>
    %269 = vector.shape_cast %268 : vector<1x128xf32> to vector<128xf32>
    %270 = vector.shape_cast %269 : vector<128xf32> to vector<1x1x128xf32>
    %271 = vector.broadcast %270 : vector<1x1x128xf32> to vector<16x16x128xf32>
    %272 = arith.mulf %267, %271 : vector<16x16x128xf32>
    %273 = arith.addf %266, %272 : vector<16x16x128xf32>
    %274 = vector.extract_strided_slice %17 {offsets = [0, 5, 0], sizes = [22, 16, 128], strides = [1, 1, 1]} : vector<22x24x128xf32> to vector<22x16x128xf32>
    %275 = vector.extract_strided_slice %274 {offsets = [0, 0, 0], sizes = [16, 16, 128], strides = [1, 1, 1]} : vector<22x16x128xf32> to vector<16x16x128xf32>
    %276 = vector.extract_strided_slice %18 {offsets = [5, 0], sizes = [1, 128], strides = [1, 1]} : vector<49x128xf32> to vector<1x128xf32>
    %277 = vector.shape_cast %276 : vector<1x128xf32> to vector<128xf32>
    %278 = vector.shape_cast %277 : vector<128xf32> to vector<1x1x128xf32>
    %279 = vector.broadcast %278 : vector<1x1x128xf32> to vector<16x16x128xf32>
    %280 = arith.mulf %275, %279 : vector<16x16x128xf32>
    %281 = arith.addf %273, %280 : vector<16x16x128xf32>
    %282 = vector.extract_strided_slice %274 {offsets = [1, 0, 0], sizes = [16, 16, 128], strides = [1, 1, 1]} : vector<22x16x128xf32> to vector<16x16x128xf32>
    %283 = vector.extract_strided_slice %18 {offsets = [12, 0], sizes = [1, 128], strides = [1, 1]} : vector<49x128xf32> to vector<1x128xf32>
    %284 = vector.shape_cast %283 : vector<1x128xf32> to vector<128xf32>
    %285 = vector.shape_cast %284 : vector<128xf32> to vector<1x1x128xf32>
    %286 = vector.broadcast %285 : vector<1x1x128xf32> to vector<16x16x128xf32>
    %287 = arith.mulf %282, %286 : vector<16x16x128xf32>
    %288 = arith.addf %281, %287 : vector<16x16x128xf32>
    %289 = vector.extract_strided_slice %274 {offsets = [2, 0, 0], sizes = [16, 16, 128], strides = [1, 1, 1]} : vector<22x16x128xf32> to vector<16x16x128xf32>
    %290 = vector.extract_strided_slice %18 {offsets = [19, 0], sizes = [1, 128], strides = [1, 1]} : vector<49x128xf32> to vector<1x128xf32>
    %291 = vector.shape_cast %290 : vector<1x128xf32> to vector<128xf32>
    %292 = vector.shape_cast %291 : vector<128xf32> to vector<1x1x128xf32>
    %293 = vector.broadcast %292 : vector<1x1x128xf32> to vector<16x16x128xf32>
    %294 = arith.mulf %289, %293 : vector<16x16x128xf32>
    %295 = arith.addf %288, %294 : vector<16x16x128xf32>
    %296 = vector.extract_strided_slice %274 {offsets = [3, 0, 0], sizes = [16, 16, 128], strides = [1, 1, 1]} : vector<22x16x128xf32> to vector<16x16x128xf32>
    %297 = vector.extract_strided_slice %18 {offsets = [26, 0], sizes = [1, 128], strides = [1, 1]} : vector<49x128xf32> to vector<1x128xf32>
    %298 = vector.shape_cast %297 : vector<1x128xf32> to vector<128xf32>
    %299 = vector.shape_cast %298 : vector<128xf32> to vector<1x1x128xf32>
    %300 = vector.broadcast %299 : vector<1x1x128xf32> to vector<16x16x128xf32>
    %301 = arith.mulf %296, %300 : vector<16x16x128xf32>
    %302 = arith.addf %295, %301 : vector<16x16x128xf32>
    %303 = vector.extract_strided_slice %274 {offsets = [4, 0, 0], sizes = [16, 16, 128], strides = [1, 1, 1]} : vector<22x16x128xf32> to vector<16x16x128xf32>
    %304 = vector.extract_strided_slice %18 {offsets = [33, 0], sizes = [1, 128], strides = [1, 1]} : vector<49x128xf32> to vector<1x128xf32>
    %305 = vector.shape_cast %304 : vector<1x128xf32> to vector<128xf32>
    %306 = vector.shape_cast %305 : vector<128xf32> to vector<1x1x128xf32>
    %307 = vector.broadcast %306 : vector<1x1x128xf32> to vector<16x16x128xf32>
    %308 = arith.mulf %303, %307 : vector<16x16x128xf32>
    %309 = arith.addf %302, %308 : vector<16x16x128xf32>
    %310 = vector.extract_strided_slice %274 {offsets = [5, 0, 0], sizes = [16, 16, 128], strides = [1, 1, 1]} : vector<22x16x128xf32> to vector<16x16x128xf32>
    %311 = vector.extract_strided_slice %18 {offsets = [40, 0], sizes = [1, 128], strides = [1, 1]} : vector<49x128xf32> to vector<1x128xf32>
    %312 = vector.shape_cast %311 : vector<1x128xf32> to vector<128xf32>
    %313 = vector.shape_cast %312 : vector<128xf32> to vector<1x1x128xf32>
    %314 = vector.broadcast %313 : vector<1x1x128xf32> to vector<16x16x128xf32>
    %315 = arith.mulf %310, %314 : vector<16x16x128xf32>
    %316 = arith.addf %309, %315 : vector<16x16x128xf32>
    %317 = vector.extract_strided_slice %274 {offsets = [6, 0, 0], sizes = [16, 16, 128], strides = [1, 1, 1]} : vector<22x16x128xf32> to vector<16x16x128xf32>
    %318 = vector.extract_strided_slice %18 {offsets = [47, 0], sizes = [1, 128], strides = [1, 1]} : vector<49x128xf32> to vector<1x128xf32>
    %319 = vector.shape_cast %318 : vector<1x128xf32> to vector<128xf32>
    %320 = vector.shape_cast %319 : vector<128xf32> to vector<1x1x128xf32>
    %321 = vector.broadcast %320 : vector<1x1x128xf32> to vector<16x16x128xf32>
    %322 = arith.mulf %317, %321 : vector<16x16x128xf32>
    %323 = arith.addf %316, %322 : vector<16x16x128xf32>
    %324 = vector.extract_strided_slice %17 {offsets = [0, 6, 0], sizes = [22, 16, 128], strides = [1, 1, 1]} : vector<22x24x128xf32> to vector<22x16x128xf32>
    %325 = vector.extract_strided_slice %324 {offsets = [0, 0, 0], sizes = [16, 16, 128], strides = [1, 1, 1]} : vector<22x16x128xf32> to vector<16x16x128xf32>
    %326 = vector.extract_strided_slice %18 {offsets = [6, 0], sizes = [1, 128], strides = [1, 1]} : vector<49x128xf32> to vector<1x128xf32>
    %327 = vector.shape_cast %326 : vector<1x128xf32> to vector<128xf32>
    %328 = vector.shape_cast %327 : vector<128xf32> to vector<1x1x128xf32>
    %329 = vector.broadcast %328 : vector<1x1x128xf32> to vector<16x16x128xf32>
    %330 = arith.mulf %325, %329 : vector<16x16x128xf32>
    %331 = arith.addf %323, %330 : vector<16x16x128xf32>
    %332 = vector.extract_strided_slice %324 {offsets = [1, 0, 0], sizes = [16, 16, 128], strides = [1, 1, 1]} : vector<22x16x128xf32> to vector<16x16x128xf32>
    %333 = vector.extract_strided_slice %18 {offsets = [13, 0], sizes = [1, 128], strides = [1, 1]} : vector<49x128xf32> to vector<1x128xf32>
    %334 = vector.shape_cast %333 : vector<1x128xf32> to vector<128xf32>
    %335 = vector.shape_cast %334 : vector<128xf32> to vector<1x1x128xf32>
    %336 = vector.broadcast %335 : vector<1x1x128xf32> to vector<16x16x128xf32>
    %337 = arith.mulf %332, %336 : vector<16x16x128xf32>
    %338 = arith.addf %331, %337 : vector<16x16x128xf32>
    %339 = vector.extract_strided_slice %324 {offsets = [2, 0, 0], sizes = [16, 16, 128], strides = [1, 1, 1]} : vector<22x16x128xf32> to vector<16x16x128xf32>
    %340 = vector.extract_strided_slice %18 {offsets = [20, 0], sizes = [1, 128], strides = [1, 1]} : vector<49x128xf32> to vector<1x128xf32>
    %341 = vector.shape_cast %340 : vector<1x128xf32> to vector<128xf32>
    %342 = vector.shape_cast %341 : vector<128xf32> to vector<1x1x128xf32>
    %343 = vector.broadcast %342 : vector<1x1x128xf32> to vector<16x16x128xf32>
    %344 = arith.mulf %339, %343 : vector<16x16x128xf32>
    %345 = arith.addf %338, %344 : vector<16x16x128xf32>
    %346 = vector.extract_strided_slice %324 {offsets = [3, 0, 0], sizes = [16, 16, 128], strides = [1, 1, 1]} : vector<22x16x128xf32> to vector<16x16x128xf32>
    %347 = vector.extract_strided_slice %18 {offsets = [27, 0], sizes = [1, 128], strides = [1, 1]} : vector<49x128xf32> to vector<1x128xf32>
    %348 = vector.shape_cast %347 : vector<1x128xf32> to vector<128xf32>
    %349 = vector.shape_cast %348 : vector<128xf32> to vector<1x1x128xf32>
    %350 = vector.broadcast %349 : vector<1x1x128xf32> to vector<16x16x128xf32>
    %351 = arith.mulf %346, %350 : vector<16x16x128xf32>
    %352 = arith.addf %345, %351 : vector<16x16x128xf32>
    %353 = vector.extract_strided_slice %324 {offsets = [4, 0, 0], sizes = [16, 16, 128], strides = [1, 1, 1]} : vector<22x16x128xf32> to vector<16x16x128xf32>
    %354 = vector.extract_strided_slice %18 {offsets = [34, 0], sizes = [1, 128], strides = [1, 1]} : vector<49x128xf32> to vector<1x128xf32>
    %355 = vector.shape_cast %354 : vector<1x128xf32> to vector<128xf32>
    %356 = vector.shape_cast %355 : vector<128xf32> to vector<1x1x128xf32>
    %357 = vector.broadcast %356 : vector<1x1x128xf32> to vector<16x16x128xf32>
    %358 = arith.mulf %353, %357 : vector<16x16x128xf32>
    %359 = arith.addf %352, %358 : vector<16x16x128xf32>
    %360 = vector.extract_strided_slice %324 {offsets = [5, 0, 0], sizes = [16, 16, 128], strides = [1, 1, 1]} : vector<22x16x128xf32> to vector<16x16x128xf32>
    %361 = vector.extract_strided_slice %18 {offsets = [41, 0], sizes = [1, 128], strides = [1, 1]} : vector<49x128xf32> to vector<1x128xf32>
    %362 = vector.shape_cast %361 : vector<1x128xf32> to vector<128xf32>
    %363 = vector.shape_cast %362 : vector<128xf32> to vector<1x1x128xf32>
    %364 = vector.broadcast %363 : vector<1x1x128xf32> to vector<16x16x128xf32>
    %365 = arith.mulf %360, %364 : vector<16x16x128xf32>
    %366 = arith.addf %359, %365 : vector<16x16x128xf32>
    %367 = vector.extract_strided_slice %324 {offsets = [6, 0, 0], sizes = [16, 16, 128], strides = [1, 1, 1]} : vector<22x16x128xf32> to vector<16x16x128xf32>
    %368 = vector.extract_strided_slice %18 {offsets = [48, 0], sizes = [1, 128], strides = [1, 1]} : vector<49x128xf32> to vector<1x128xf32>
    %369 = vector.shape_cast %368 : vector<1x128xf32> to vector<128xf32>
    %370 = vector.shape_cast %369 : vector<128xf32> to vector<1x1x128xf32>
    %371 = vector.broadcast %370 : vector<1x1x128xf32> to vector<16x16x128xf32>
    %372 = arith.mulf %367, %371 : vector<16x16x128xf32>
    %373 = arith.addf %366, %372 : vector<16x16x128xf32>
    %cst = arith.constant dense<0.000000e+00> : vector<16x16xf32>
    %374 = vector.multi_reduction <add>, %373, %cst [2] : vector<16x16x128xf32> to vector<16x16xf32>
    %375 = vector.shape_cast %374 : vector<16x16xf32> to vector<16x16x1xf32>
    %cst_14 = arith.constant 2.500000e-01 : f32
    %376 = vector.broadcast %cst_14 : f32 to vector<16x16x1xf32>
    %377 = arith.mulf %375, %376 : vector<16x16x1xf32>
    %378 = vector.broadcast %377 : vector<16x16x1xf32> to vector<16x16x128xf32>
    %379 = arith.subf %373, %378 : vector<16x16x128xf32>
    %380 = tpu.iota {dimensions = array<i32: 2>} : vector<1x1x128xi32>
    %c4_i32 = arith.constant 4 : i32
    %381 = vector.broadcast %c4_i32 : i32 to vector<1x1x128xi32>
    %382 = arith.cmpi slt, %380, %381 : vector<1x1x128xi32>
    %cst_15 = arith.constant 0.000000e+00 : f32
    %383 = vector.shape_cast %382 : vector<1x1x128xi1> to vector<1x1x128xi1>
    %384 = vector.broadcast %383 : vector<1x1x128xi1> to vector<16x16x128xi1>
    %385 = vector.broadcast %cst_15 : f32 to vector<16x16x128xf32>
    %386 = arith.select %384, %379, %385 : vector<16x16x128xi1>, vector<16x16x128xf32>
    %387 = arith.mulf %386, %386 : vector<16x16x128xf32>
    %cst_16 = arith.constant dense<0.000000e+00> : vector<16x16xf32>
    %388 = vector.multi_reduction <add>, %387, %cst_16 [2] : vector<16x16x128xf32> to vector<16x16xf32>
    %389 = vector.shape_cast %388 : vector<16x16xf32> to vector<16x16x1xf32>
    %cst_17 = arith.constant 2.500000e-01 : f32
    %390 = vector.broadcast %cst_17 : f32 to vector<16x16x1xf32>
    %391 = arith.mulf %389, %390 : vector<16x16x1xf32>
    %cst_18 = arith.constant 9.99999974E-6 : f32
    %392 = vector.broadcast %cst_18 : f32 to vector<16x16x1xf32>
    %393 = arith.addf %391, %392 : vector<16x16x1xf32>
    %394 = math.rsqrt %393 : vector<16x16x1xf32>
    %395 = vector.broadcast %394 : vector<16x16x1xf32> to vector<16x16x128xf32>
    %396 = arith.mulf %379, %395 : vector<16x16x128xf32>
    %c0_19 = arith.constant 0 : index
    %c0_20 = arith.constant 0 : index
    %397 = vector.load %arg5[%c0_19, %c0_20] : memref<1x128xf32, #tpu.memory_space<vmem>>, vector<1x128xf32>
    %398 = vector.shape_cast %397 : vector<1x128xf32> to vector<128xf32>
    %399 = vector.shape_cast %398 : vector<128xf32> to vector<1x1x128xf32>
    %400 = vector.broadcast %399 : vector<1x1x128xf32> to vector<16x16x128xf32>
    %401 = arith.mulf %396, %400 : vector<16x16x128xf32>
    %c0_21 = arith.constant 0 : index
    %c0_22 = arith.constant 0 : index
    %402 = vector.load %arg6[%c0_21, %c0_22] : memref<1x128xf32, #tpu.memory_space<vmem>>, vector<1x128xf32>
    %403 = vector.shape_cast %402 : vector<1x128xf32> to vector<128xf32>
    %404 = vector.shape_cast %403 : vector<128xf32> to vector<1x1x128xf32>
    %405 = vector.broadcast %404 : vector<1x1x128xf32> to vector<16x16x128xf32>
    %406 = arith.addf %401, %405 : vector<16x16x128xf32>
    %c0_23 = arith.constant 0 : index
    %c0_24 = arith.constant 0 : index
    %407 = vector.load %arg7[%c0_23, %c0_24] : memref<128x128xbf16, #tpu.memory_space<vmem>>, vector<128x128xbf16>
    %c0_25 = arith.constant 0 : index
    %c0_26 = arith.constant 0 : index
    %408 = vector.load %arg9[%c0_25, %c0_26] : memref<128x128xbf16, #tpu.memory_space<vmem>>, vector<128x128xbf16>
    %c0_27 = arith.constant 0 : index
    %c0_28 = arith.constant 0 : index
    %409 = vector.load %arg8[%c0_27, %c0_28] : memref<1x128xf32, #tpu.memory_space<vmem>>, vector<1x128xf32>
    %410 = vector.shape_cast %409 : vector<1x128xf32> to vector<128xf32>
    %c0_29 = arith.constant 0 : index
    %c0_30 = arith.constant 0 : index
    %411 = vector.load %arg10[%c0_29, %c0_30] : memref<1x128xf32, #tpu.memory_space<vmem>>, vector<1x128xf32>
    %412 = vector.shape_cast %411 : vector<1x128xf32> to vector<128xf32>
    %413 = vector.shape_cast %406 : vector<16x16x128xf32> to vector<256x128xf32>
    %414 = arith.truncf %413 : vector<256x128xf32> to vector<256x128xbf16>
    %cst_31 = arith.constant dense<0.000000e+00> : vector<256x128xf32>
    %415 = tpu.matmul %414, %407, %cst_31 {dimension_numbers = #tpu.dot_dimension_numbers<[1], [0], [0], [1], [0, 0, 1, 1], [], []>} : vector<256x128xbf16>, vector<128x128xbf16>, vector<256x128xf32> -> vector<256x128xf32>
    %416 = vector.shape_cast %410 : vector<128xf32> to vector<1x128xf32>
    %417 = vector.broadcast %416 : vector<1x128xf32> to vector<256x128xf32>
    %418 = arith.addf %415, %417 : vector<256x128xf32>
    %cst_32 = arith.constant 5.000000e-01 : f32
    %419 = vector.broadcast %cst_32 : f32 to vector<256x128xf32>
    %420 = arith.mulf %419, %418 : vector<256x128xf32>
    %cst_33 = arith.constant 0.707106769 : f32
    %421 = vector.broadcast %cst_33 : f32 to vector<256x128xf32>
    %422 = arith.mulf %418, %421 : vector<256x128xf32>
    %cst_34 = arith.constant -3.8325069 : f32
    %cst_35 = arith.constant 3.8325069 : f32
    %423 = vector.broadcast %cst_34 : f32 to vector<256x128xf32>
    %424 = arith.maximumf %423, %422 : vector<256x128xf32>
    %425 = vector.broadcast %cst_35 : f32 to vector<256x128xf32>
    %426 = arith.minimumf %425, %424 : vector<256x128xf32>
    %427 = arith.mulf %426, %426 : vector<256x128xf32>
    %cst_36 = arith.constant -2.72614237E-10 : f32
    %428 = vector.broadcast %cst_36 : f32 to vector<256x128xf32>
    %429 = arith.mulf %428, %427 : vector<256x128xf32>
    %cst_37 = arith.constant 2.77068146E-8 : f32
    %430 = vector.broadcast %cst_37 : f32 to vector<256x128xf32>
    %431 = arith.addf %429, %430 : vector<256x128xf32>
    %432 = arith.mulf %431, %427 : vector<256x128xf32>
    %cst_38 = arith.constant -2.10102394E-6 : f32
    %433 = vector.broadcast %cst_38 : f32 to vector<256x128xf32>
    %434 = arith.addf %432, %433 : vector<256x128xf32>
    %435 = arith.mulf %434, %427 : vector<256x128xf32>
    %cst_39 = arith.constant -5.69250624E-5 : f32
    %436 = vector.broadcast %cst_39 : f32 to vector<256x128xf32>
    %437 = arith.addf %435, %436 : vector<256x128xf32>
    %438 = arith.mulf %437, %427 : vector<256x128xf32>
    %cst_40 = arith.constant -7.34990637E-4 : f32
    %439 = vector.broadcast %cst_40 : f32 to vector<256x128xf32>
    %440 = arith.addf %438, %439 : vector<256x128xf32>
    %441 = arith.mulf %440, %427 : vector<256x128xf32>
    %cst_41 = arith.constant -2.954600e-03 : f32
    %442 = vector.broadcast %cst_41 : f32 to vector<256x128xf32>
    %443 = arith.addf %441, %442 : vector<256x128xf32>
    %444 = arith.mulf %443, %427 : vector<256x128xf32>
    %cst_42 = arith.constant -0.0160960332 : f32
    %445 = vector.broadcast %cst_42 : f32 to vector<256x128xf32>
    %446 = arith.addf %444, %445 : vector<256x128xf32>
    %447 = arith.mulf %446, %426 : vector<256x128xf32>
    %cst_43 = arith.constant -1.45660715E-5 : f32
    %448 = vector.broadcast %cst_43 : f32 to vector<256x128xf32>
    %449 = arith.mulf %448, %427 : vector<256x128xf32>
    %cst_44 = arith.constant -2.13374049E-4 : f32
    %450 = vector.broadcast %cst_44 : f32 to vector<256x128xf32>
    %451 = arith.addf %449, %450 : vector<256x128xf32>
    %452 = arith.mulf %451, %427 : vector<256x128xf32>
    %cst_45 = arith.constant -0.00168282702 : f32
    %453 = vector.broadcast %cst_45 : f32 to vector<256x128xf32>
    %454 = arith.addf %452, %453 : vector<256x128xf32>
    %455 = arith.mulf %454, %427 : vector<256x128xf32>
    %cst_46 = arith.constant -0.00737332925 : f32
    %456 = vector.broadcast %cst_46 : f32 to vector<256x128xf32>
    %457 = arith.addf %455, %456 : vector<256x128xf32>
    %458 = arith.mulf %457, %427 : vector<256x128xf32>
    %cst_47 = arith.constant -0.0142647391 : f32
    %459 = vector.broadcast %cst_47 : f32 to vector<256x128xf32>
    %460 = arith.addf %458, %459 : vector<256x128xf32>
    %461 = tpu.reciprocal %460 {approx = true} : vector<256x128xf32> -> vector<256x128xf32>
    %462 = arith.mulf %447, %461 : vector<256x128xf32>
    %cst_48 = arith.constant 1.000000e+00 : f32
    %463 = vector.broadcast %cst_48 : f32 to vector<256x128xf32>
    %464 = arith.addf %463, %462 : vector<256x128xf32>
    %465 = arith.mulf %420, %464 : vector<256x128xf32>
    %466 = arith.truncf %465 : vector<256x128xf32> to vector<256x128xbf16>
    %cst_49 = arith.constant dense<0.000000e+00> : vector<256x128xf32>
    %467 = tpu.matmul %466, %408, %cst_49 {dimension_numbers = #tpu.dot_dimension_numbers<[1], [0], [0], [1], [0, 0, 1, 1], [], []>} : vector<256x128xbf16>, vector<128x128xbf16>, vector<256x128xf32> -> vector<256x128xf32>
    %468 = vector.shape_cast %412 : vector<128xf32> to vector<1x128xf32>
    %469 = vector.broadcast %468 : vector<1x128xf32> to vector<256x128xf32>
    %470 = arith.addf %467, %469 : vector<256x128xf32>
    %471 = vector.shape_cast %470 : vector<256x128xf32> to vector<16x16x128xf32>
    %472 = arith.addf %471, %174 : vector<16x16x128xf32>
    %c0_50 = arith.constant 0 : index
    %c0_51 = arith.constant 0 : index
    %c0_52 = arith.constant 0 : index
    %c0_53 = arith.constant 0 : index
    %473 = vector.load %arg11[%c0_50, %c0_51, %c0_52, %c0_53] : memref<1x16x16x128xf32, #tpu.memory_space<vmem>>, vector<1x16x16x128xf32>
    %474 = vector.shape_cast %473 : vector<1x16x16x128xf32> to vector<16x16x128xf32>
    %475 = vector.shape_cast %472 : vector<16x16x128xf32> to vector<1x16x16x128xf32>
    tpu.vector_store %arg11[%c0_50, %c0_51, %c0_52, %c0_53], %475 {strides = array<i32>} : memref<1x16x16x128xf32, #tpu.memory_space<vmem>>, vector<1x16x16x128xf32>,
    return
  }
  func.func @transform_1(%arg0: i32, %arg1: i32) -> (i32, i32) {
    %c0_i32 = arith.constant 0 : i32
    %c0_i32_0 = arith.constant 0 : i32
    %c0_i32_1 = arith.constant 0 : i32
    return %c0_i32, %c0_i32_0 : i32, i32
  }
  func.func @transform_2(%arg0: i32, %arg1: i32) -> (i32, i32) {
    %c0_i32 = arith.constant 0 : i32
    %c0_i32_0 = arith.constant 0 : i32
    %c0_i32_1 = arith.constant 0 : i32
    return %c0_i32, %c0_i32_0 : i32, i32
  }
  func.func @transform_3(%arg0: i32, %arg1: i32) -> (i32, i32) {
    %c0_i32 = arith.constant 0 : i32
    %c0_i32_0 = arith.constant 0 : i32
    %c0_i32_1 = arith.constant 0 : i32
    return %c0_i32, %c0_i32_0 : i32, i32
  }
  func.func @transform_4(%arg0: i32, %arg1: i32) -> (i32, i32) {
    %c0_i32 = arith.constant 0 : i32
    %c0_i32_0 = arith.constant 0 : i32
    %c0_i32_1 = arith.constant 0 : i32
    return %c0_i32, %c0_i32_0 : i32, i32
  }
  func.func @transform_5(%arg0: i32, %arg1: i32) -> (i32, i32) {
    %c0_i32 = arith.constant 0 : i32
    %c0_i32_0 = arith.constant 0 : i32
    %c0_i32_1 = arith.constant 0 : i32
    return %c0_i32, %c0_i32_0 : i32, i32
  }
  func.func @transform_6(%arg0: i32, %arg1: i32) -> (i32, i32) {
    %c0_i32 = arith.constant 0 : i32
    %c0_i32_0 = arith.constant 0 : i32
    %c0_i32_1 = arith.constant 0 : i32
    return %c0_i32, %c0_i32_0 : i32, i32
  }
  func.func @transform_7(%arg0: i32, %arg1: i32) -> (i32, i32) {
    %c0_i32 = arith.constant 0 : i32
    %c0_i32_0 = arith.constant 0 : i32
    %c0_i32_1 = arith.constant 0 : i32
    return %c0_i32, %c0_i32_0 : i32, i32
  }
  func.func @transform_8(%arg0: i32, %arg1: i32) -> (i32, i32) {
    %c0_i32 = arith.constant 0 : i32
    %c0_i32_0 = arith.constant 0 : i32
    %c0_i32_1 = arith.constant 0 : i32
    return %c0_i32, %c0_i32_0 : i32, i32
  }
  func.func @transform_9(%arg0: i32, %arg1: i32) -> (i32, i32, i32, i32) {
    %c0_i32 = arith.constant 0 : i32
    %c0_i32_0 = arith.constant 0 : i32
    %c0_i32_1 = arith.constant 0 : i32
    return %arg0, %arg1, %c0_i32, %c0_i32_0 : i32, i32, i32, i32
  }
}

</mosaic_0001>

<llo_original>
// kernel: tpu_custom_call.1
$region0: #{tpu_custom_call.1}
  #allocation0 [shape = 'u32[]', space=smem, size = 0x4, offset = 0x4, fixed_abs, tag = 'smem constant byte address 0x4 - core index']
  #allocation1 [shape = 'u32[72,128]{1,0:T(1,128)}', space=vmem, size = 0x9000, scoped, tag = 'internal scratch']
  #allocation2 [shape = 'f32[2,22,24,128]{3,2,1,0:T(8,128)}', space=vmem, size = 0x84000, scoped, tag = 'scratch operand']
  #allocation3 [shape = 's32[2]{0}', space=sflag, size = 0x8, scoped, tag = 'scratch operand']
  #allocation11 [shape = 's32[]', space=sflag, size = 0x4, offset = 0, fixed_abs, tag = 'sflag constant byte address 0x0 - dummy sync flag']
  #allocation12 [shape = 's32[]', space=sflag, size = 0x4, offset = 0, fixed_abs, tag = 'sflag constant byte address 0x0 - dummy sync flag']
  #allocation13 [shape = 'u32[]', space=smem, size = 0x4, offset = 0x44, fixed_abs, tag = 'smem constant byte address 0x44 - assertion arg 0']
  #allocation14 [shape = 'u32[]', space=smem, size = 0x4, offset = 0x48, fixed_abs, tag = 'smem constant byte address 0x48 - assertion arg 1']
  #allocation15 [shape = 's32[]', space=sflag, size = 0x4, offset = 0, fixed_abs, tag = 'sflag constant byte address 0x0 - dummy sync flag']
  #allocation16 [shape = 's32[]', space=sflag, size = 0x4, offset = 0, fixed_abs, tag = 'sflag constant byte address 0x0 - dummy sync flag']
  %s0 = inlined_call_operand.hbm [shape: f32[2,22,24,128], index: 0, kind: input, shape index: {}]
  %s1 = inlined_call_operand.hbm [shape: f32[49,128], index: 1, kind: input, shape index: {}]
  %s2 = inlined_call_operand.vmem [shape: f32[1,128], index: 2, kind: input, shape index: {}]
  %s3 = inlined_call_operand.vmem [shape: f32[1,128], index: 3, kind: input, shape index: {}]
  %s4 = inlined_call_operand.vmem [shape: f32[1,128], index: 4, kind: input, shape index: {}]
  %s5 = inlined_call_operand.hbm [shape: bf16[128,128], index: 5, kind: input, shape index: {}]
  %s6 = inlined_call_operand.vmem [shape: f32[1,128], index: 6, kind: input, shape index: {}]
  %s7 = inlined_call_operand.hbm [shape: bf16[128,128], index: 7, kind: input, shape index: {}]
  %s8 = inlined_call_operand.vmem [shape: f32[1,128], index: 8, kind: input, shape index: {}]
  %s9 = inlined_call_operand.hbm [shape: f32[2,16,16,128], index: 9, kind: output, shape index: {}]
  %s10 = sld [smem:[#allocation0]]
  $region93: #{tpu_custom_call.1} parent=0
    _
  %s12 = ssub.s32 1, %s10
  %s13 = scalar_select 0, %s12, %s10
  $region1: #{tpu_custom_call.1} parent=0
    #allocation4 [shape = 'u8[28672]{0}', space=vmem, size = 0x7000, scoped, tag = 'input window, operand 1, single buffered']
    #allocation5 [shape = 's32[2]{0}', space=sflag, size = 0x8, scoped, tag = 'scoped memory for tpu_custom_call.1']
    #allocation6 [shape = 's32[2]{0}', space=sflag, size = 0x8, scoped, tag = 'scoped memory for tpu_custom_call.1']
    #allocation7 [shape = 'u8[32768]{0}', space=vmem, size = 0x8000, scoped, tag = 'input window, operand 5, single buffered']
    #allocation8 [shape = 's32[1]{0}', space=sflag, size = 0x4, scoped, tag = 'scoped memory for tpu_custom_call.1']
    #allocation9 [shape = 'u8[32768]{0}', space=vmem, size = 0x8000, scoped, tag = 'input window, operand 7, single buffered']
    #allocation10 [shape = 'u8[262144]{0}', space=vmem, size = 0x40000, scoped, tag = 'output window, operand 0']
    %14 = vsyncpa [#allocation5], 0
    %15 = vsyncpa [#allocation8], 0
    %16 = vsyncpa [#allocation6], 0
    %s17 = scalar_lea.sflag [#allocation6], 1
    %18 = vsyncpa %s17, 0
    loop: start=0, step=1, limit=4
    $region2: #{tpu_custom_call.1} parent=1 // loop_pre_header
      _
    $region3: #{tpu_custom_call.1} parent=1 // loop_header
      %s20 = sphi 0, %s24
      %p21 = scmp.ge.s32.totalorder %s20, 4
      %s27 = sphi 0, %s39
      %s28 = sphi 0, %s35
      %s29 = sphi 0, %s27
      %s30 = sphi 0, %s28
      %s31 = sphi 0, %s29
      %s32 = sphi 0, %s30
      %s40 = sphi 0, %s40
      %s42 = sphi 0, %s40
      %s43 = sphi 0, %s42
      %s57 = sphi 0, %s43
      %s61 = sphi 0, %s61
      %s63 = sphi 0, %s61
      %s64 = sphi 0, %s63
      %s78 = sphi 0, %s64
      %s82 = sphi 0, %s82
      %s84 = sphi 0, %s82
      %s85 = sphi 0, %s84
      %s99 = sphi 0, %s85
      %s103 = sphi 0, %s103
      %s105 = sphi 0, %s103
      %s106 = sphi 0, %s105
      %s120 = sphi 0, %s106
      %s124 = sphi 0, %s124
      %s126 = sphi 0, %s124
      %s127 = sphi 0, %s126
      %s141 = sphi 0, %s127
      %s145 = sphi 0, %s145
      %s147 = sphi 0, %s145
      %s148 = sphi 0, %s147
      %s162 = sphi 0, %s148
      %s166 = sphi 0, %s166
      %s168 = sphi 0, %s166
      %s169 = sphi 0, %s168
      %s183 = sphi 0, %s169
      %s187 = sphi 0, %s187
      %s189 = sphi 0, %s187
      %s190 = sphi 0, %s189
      %s204 = sphi 0, %s190
      %s212 = sphi 0, %s214
      %s215 = sphi 0, %s212
      %s216 = sphi 0, %s215
      %s232 = sphi 0, %s216
    $region4: #{tpu_custom_call.1} parent=1 // loop_header_branch
      %23 = sbr.rel (%p21) target = $region8
    $region5: #{tpu_custom_call.1} parent=1 // loop_body
      %s25 = ssub.s32 %s20, 1
      %s26 = ssub.s32 %s20, 2
      %s33 = sadd.s32 1, %s28
      %p34 = scmp.ge.s32.totalorder %s33, 1
      %s35 = scalar_select %p34, 0, %s33
      %s36 = sadd.s32 1, %s27
      %s37 = scalar_select %p34, %s36, %s27
      %p38 = scmp.ge.s32.totalorder %s37, 2
      %s39 = scalar_select %p38, 0, %s37
      %s41 = sadd.s32 %s40, 1
      %p44 = scmp.eq.s32.totalorder %s20, 1
      %p45 = scmp.ne.s32.totalorder %s40, %s42
      %p46 = scmp.eq.s32.totalorder %s20, 0
      %p47 = por %p45, %p46
      %p48 = scmp.ne.s32.totalorder %s40, %s42
      %p49 = scmp.eq.s32.totalorder %s25, 1
      %p50 = por %p48, %p49
      %p51 = scmp.ne.s32.totalorder %s42, %s43
      %p52 = scmp.eq.s32.totalorder %s25, 0
      %p53 = por %p51, %p52
      %p54 = scmp.ne.s32.totalorder %s42, %s43
      %p55 = scmp.eq.s32.totalorder %s26, 1
      %p56 = por %p54, %p55
      %p58 = scmp.ne.s32.totalorder %s43, %s57
      %p59 = scmp.eq.s32.totalorder %s26, 0
      %p60 = por %p58, %p59
      %s62 = sadd.s32 %s61, 1
      %p65 = scmp.eq.s32.totalorder %s20, 1
      %p66 = scmp.ne.s32.totalorder %s61, %s63
      %p67 = scmp.eq.s32.totalorder %s20, 0
      %p68 = por %p66, %p67
      %p69 = scmp.ne.s32.totalorder %s61, %s63
      %p70 = scmp.eq.s32.totalorder %s25, 1
      %p71 = por %p69, %p70
      %p72 = scmp.ne.s32.totalorder %s63, %s64
      %p73 = scmp.eq.s32.totalorder %s25, 0
      %p74 = por %p72, %p73
      %p75 = scmp.ne.s32.totalorder %s63, %s64
      %p76 = scmp.eq.s32.totalorder %s26, 1
      %p77 = por %p75, %p76
      %p79 = scmp.ne.s32.totalorder %s64, %s78
      %p80 = scmp.eq.s32.totalorder %s26, 0
      %p81 = por %p79, %p80
      %s83 = sadd.s32 %s82, 1
      %p86 = scmp.eq.s32.totalorder %s20, 1
      %p87 = scmp.ne.s32.totalorder %s82, %s84
      %p88 = scmp.eq.s32.totalorder %s20, 0
      %p89 = por %p87, %p88
      %p90 = scmp.ne.s32.totalorder %s82, %s84
      %p91 = scmp.eq.s32.totalorder %s25, 1
      %p92 = por %p90, %p91
      %p93 = scmp.ne.s32.totalorder %s84, %s85
      %p94 = scmp.eq.s32.totalorder %s25, 0
      %p95 = por %p93, %p94
      %p96 = scmp.ne.s32.totalorder %s84, %s85
      %p97 = scmp.eq.s32.totalorder %s26, 1
      %p98 = por %p96, %p97
      %p100 = scmp.ne.s32.totalorder %s85, %s99
      %p101 = scmp.eq.s32.totalorder %s26, 0
      %p102 = por %p100, %p101
      %s104 = sadd.s32 %s103, 1
      %p107 = scmp.eq.s32.totalorder %s20, 1
      %p108 = scmp.ne.s32.totalorder %s103, %s105
      %p109 = scmp.eq.s32.totalorder %s20, 0
      %p110 = por %p108, %p109
      %p111 = scmp.ne.s32.totalorder %s103, %s105
      %p112 = scmp.eq.s32.totalorder %s25, 1
      %p113 = por %p111, %p112
      %p114 = scmp.ne.s32.totalorder %s105, %s106
      %p115 = scmp.eq.s32.totalorder %s25, 0
      %p116 = por %p114, %p115
      %p117 = scmp.ne.s32.totalorder %s105, %s106
      %p118 = scmp.eq.s32.totalorder %s26, 1
      %p119 = por %p117, %p118
      %p121 = scmp.ne.s32.totalorder %s106, %s120
      %p122 = scmp.eq.s32.totalorder %s26, 0
      %p123 = por %p121, %p122
      %s125 = sadd.s32 %s124, 1
      %p128 = scmp.eq.s32.totalorder %s20, 1
      %p129 = scmp.ne.s32.totalorder %s124, %s126
      %p130 = scmp.eq.s32.totalorder %s20, 0
      %p131 = por %p129, %p130
      %p132 = scmp.ne.s32.totalorder %s124, %s126
      %p133 = scmp.eq.s32.totalorder %s25, 1
      %p134 = por %p132, %p133
      %p135 = scmp.ne.s32.totalorder %s126, %s127
      %p136 = scmp.eq.s32.totalorder %s25, 0
      %p137 = por %p135, %p136
      %p138 = scmp.ne.s32.totalorder %s126, %s127
      %p139 = scmp.eq.s32.totalorder %s26, 1
      %p140 = por %p138, %p139
      %p142 = scmp.ne.s32.totalorder %s127, %s141
      %p143 = scmp.eq.s32.totalorder %s26, 0
      %p144 = por %p142, %p143
      %s146 = sadd.s32 %s145, 1
      %p149 = scmp.eq.s32.totalorder %s20, 1
      %p150 = scmp.ne.s32.totalorder %s145, %s147
      %p151 = scmp.eq.s32.totalorder %s20, 0
      %p152 = por %p150, %p151
      %p153 = scmp.ne.s32.totalorder %s145, %s147
      %p154 = scmp.eq.s32.totalorder %s25, 1
      %p155 = por %p153, %p154
      %p156 = scmp.ne.s32.totalorder %s147, %s148
      %p157 = scmp.eq.s32.totalorder %s25, 0
      %p158 = por %p156, %p157
      %p159 = scmp.ne.s32.totalorder %s147, %s148
      %p160 = scmp.eq.s32.totalorder %s26, 1
      %p161 = por %p159, %p160
      %p163 = scmp.ne.s32.totalorder %s148, %s162
      %p164 = scmp.eq.s32.totalorder %s26, 0
      %p165 = por %p163, %p164
      %s167 = sadd.s32 %s166, 1
      %p170 = scmp.eq.s32.totalorder %s20, 1
      %p171 = scmp.ne.s32.totalorder %s166, %s168
      %p172 = scmp.eq.s32.totalorder %s20, 0
      %p173 = por %p171, %p172
      %p174 = scmp.ne.s32.totalorder %s166, %s168
      %p175 = scmp.eq.s32.totalorder %s25, 1
      %p176 = por %p174, %p175
      %p177 = scmp.ne.s32.totalorder %s168, %s169
      %p178 = scmp.eq.s32.totalorder %s25, 0
      %p179 = por %p177, %p178
      %p180 = scmp.ne.s32.totalorder %s168, %s169
      %p181 = scmp.eq.s32.totalorder %s26, 1
      %p182 = por %p180, %p181
      %p184 = scmp.ne.s32.totalorder %s169, %s183
      %p185 = scmp.eq.s32.totalorder %s26, 0
      %p186 = por %p184, %p185
      %s188 = sadd.s32 %s187, 1
      %p191 = scmp.eq.s32.totalorder %s20, 1
      %p192 = scmp.ne.s32.totalorder %s187, %s189
      %p193 = scmp.eq.s32.totalorder %s20, 0
      %p194 = por %p192, %p193
      %p195 = scmp.ne.s32.totalorder %s187, %s189
      %p196 = scmp.eq.s32.totalorder %s25, 1
      %p197 = por %p195, %p196
      %p198 = scmp.ne.s32.totalorder %s189, %s190
      %p199 = scmp.eq.s32.totalorder %s25, 0
      %p200 = por %p198, %p199
      %p201 = scmp.ne.s32.totalorder %s189, %s190
      %p202 = scmp.eq.s32.totalorder %s26, 1
      %p203 = por %p201, %p202
      %p205 = scmp.ne.s32.totalorder %s190, %s204
      %p206 = scmp.eq.s32.totalorder %s26, 0
      %p207 = por %p205, %p206
      %s208 = ssub.s32 %s27, %s39
      %s209 = ssub.s32 %s28, %s35
      %s210 = sor.u32 %s208, %s209
      %p211 = scmp.eq.s32.totalorder %s210, 0
      %s213 = sadd.s32 %s212, 1
      %s214 = scalar_select %p211, %s212, %s213
      %p217 = pneg %p211
      %p218 = scmp.eq.s32.totalorder %s20, 1
      %p219 = por %p217, %p218
      %p220 = scmp.ne.s32.totalorder %s212, %s215
      %p221 = scmp.eq.s32.totalorder %s20, 0
      %p222 = por %p220, %p221
      %p223 = scmp.ne.s32.totalorder %s212, %s215
      %p224 = scmp.eq.s32.totalorder %s25, 1
      %p225 = por %p223, %p224
      %p226 = scmp.ne.s32.totalorder %s215, %s216
      %p227 = scmp.eq.s32.totalorder %s25, 0
      %p228 = por %p226, %p227
      %p229 = scmp.ne.s32.totalorder %s215, %s216
      %p230 = scmp.eq.s32.totalorder %s26, 1
      %p231 = por %p229, %p230
      %p233 = scmp.ne.s32.totalorder %s216, %s232
      %p234 = scmp.eq.s32.totalorder %s26, 0
      %p235 = por %p233, %p234
      %p236 = scmp.le.s32.totalorder 1, %s20
      %p237 = scmp.lt.s32.totalorder %s20, 3
      %p238 = pnand %p236, %p237
      %p239 = pneg %p238
      // Predicated region
      $region9: #{tpu_custom_call.1} parent=5 // pred_check
        _
      $region10: #{tpu_custom_call.1} parent=5 // pred_check_branch
        %241 = sbr.rel (%p238) target = $region12
      $region11: #{tpu_custom_call.1} parent=5 // pred_region
        %s242 = ssub.s32 %s20, 1
        // Predicated region
        $region13: #{tpu_custom_call.1} parent=11 // pred_check
          %p243 = pneg %p53
        $region14: #{tpu_custom_call.1} parent=11 // pred_check_branch
          %245 = sbr.rel (%p243) target = $region16
        $region15: #{tpu_custom_call.1} parent=11 // pred_region
          %247 = vsyncadd [#allocation5], 0
          %s248 = sshll.u32 %s1, 4
          %s249 = int_to_ptr.hbm [resolvable:$true] %s248
          %s250 = sshll.u32 [#allocation4], 4
          %s251 = int_to_ptr.vmem [resolvable:$true] %s250
          %256 = dma.hbm_to_vmem [thread:$0]  %s249, 896, %s251, [#allocation5], 128, 128, 8
        $region16: #{tpu_custom_call.1} parent=11 // pred_fallthru
          _
        // Predicated region
        $region17: #{tpu_custom_call.1} parent=11 // pred_check
          %p257 = pneg %p74
        $region18: #{tpu_custom_call.1} parent=11 // pred_check_branch
          %259 = sbr.rel (%p257) target = $region20
        $region19: #{tpu_custom_call.1} parent=11 // pred_region
          _
        $region20: #{tpu_custom_call.1} parent=11 // pred_fallthru
          _
        // Predicated region
        $region21: #{tpu_custom_call.1} parent=11 // pred_check
          %p260 = pneg %p95
        $region22: #{tpu_custom_call.1} parent=11 // pred_check_branch
          %262 = sbr.rel (%p260) target = $region24
        $region23: #{tpu_custom_call.1} parent=11 // pred_region
          _
        $region24: #{tpu_custom_call.1} parent=11 // pred_fallthru
          _
        // Predicated region
        $region25: #{tpu_custom_call.1} parent=11 // pred_check
          %p263 = pneg %p116
        $region26: #{tpu_custom_call.1} parent=11 // pred_check_branch
          %265 = sbr.rel (%p263) target = $region28
        $region27: #{tpu_custom_call.1} parent=11 // pred_region
          _
        $region28: #{tpu_custom_call.1} parent=11 // pred_fallthru
          _
        // Predicated region
        $region29: #{tpu_custom_call.1} parent=11 // pred_check
          %p266 = pneg %p137
        $region30: #{tpu_custom_call.1} parent=11 // pred_check_branch
          %268 = sbr.rel (%p266) target = $region32
        $region31: #{tpu_custom_call.1} parent=11 // pred_region
          %270 = vsyncadd [#allocation8], 0
          %s271 = sshll.u32 %s5, 4
          %s272 = int_to_ptr.hbm [resolvable:$true] %s271
          %s273 = sshll.u32 [#allocation7], 4
          %s274 = int_to_ptr.vmem [resolvable:$true] %s273
          %279 = dma.hbm_to_vmem [thread:$0]  %s272, 1024, %s274, [#allocation8], 64, 64, 4
        $region32: #{tpu_custom_call.1} parent=11 // pred_fallthru
          _
        // Predicated region
        $region33: #{tpu_custom_call.1} parent=11 // pred_check
          %p280 = pneg %p158
        $region34: #{tpu_custom_call.1} parent=11 // pred_check_branch
          %282 = sbr.rel (%p280) target = $region36
        $region35: #{tpu_custom_call.1} parent=11 // pred_region
          _
        $region36: #{tpu_custom_call.1} parent=11 // pred_fallthru
          _
        // Predicated region
        $region37: #{tpu_custom_call.1} parent=11 // pred_check
          %p283 = pneg %p179
        $region38: #{tpu_custom_call.1} parent=11 // pred_check_branch
          %285 = sbr.rel (%p283) target = $region40
        $region39: #{tpu_custom_call.1} parent=11 // pred_region
          %287 = vsyncadd [#allocation8], 0
          %s288 = sshll.u32 %s7, 4
          %s289 = int_to_ptr.hbm [resolvable:$true] %s288
          %s290 = sshll.u32 [#allocation9], 4
          %s291 = int_to_ptr.vmem [resolvable:$true] %s290
          %296 = dma.hbm_to_vmem [thread:$0]  %s289, 1024, %s291, [#allocation8], 64, 64, 4
        $region40: #{tpu_custom_call.1} parent=11 // pred_fallthru
          _
        // Predicated region
        $region41: #{tpu_custom_call.1} parent=11 // pred_check
          %p297 = pneg %p200
        $region42: #{tpu_custom_call.1} parent=11 // pred_check_branch
          %299 = sbr.rel (%p297) target = $region44
        $region43: #{tpu_custom_call.1} parent=11 // pred_region
          _
        $region44: #{tpu_custom_call.1} parent=11 // pred_fallthru
          _
      $region12: #{tpu_custom_call.1} parent=5 // pred_fallthru
        _
      %p300 = scmp.lt.s32.totalorder %s20, 2
      // Predicated region
      $region45: #{tpu_custom_call.1} parent=5 // pred_check
        %p301 = pneg %p300
      $region46: #{tpu_custom_call.1} parent=5 // pred_check_branch
        %303 = sbr.rel (%p301) target = $region48
      $region47: #{tpu_custom_call.1} parent=5 // pred_region
        _
      $region48: #{tpu_custom_call.1} parent=5 // pred_fallthru
        _
      %p304 = scmp.le.s32.totalorder 1, %s20
      %p305 = scmp.lt.s32.totalorder %s20, 3
      %p306 = pnand %p304, %p305
      %p307 = pneg %p306
      // Predicated region
      $region49: #{tpu_custom_call.1} parent=5 // pred_check
        _
      $region50: #{tpu_custom_call.1} parent=5 // pred_check_branch
        %309 = sbr.rel (%p306) target = $region52
      $region51: #{tpu_custom_call.1} parent=5 // pred_region
        %s310 = ssub.s32 %s20, 1
        // Predicated region
        $region53: #{tpu_custom_call.1} parent=51 // pred_check
          %p311 = pneg %p53
        $region54: #{tpu_custom_call.1} parent=51 // pred_check_branch
          %313 = sbr.rel (%p311) target = $region56
        $region55: #{tpu_custom_call.1} parent=51 // pred_region
          %315 = dma.done [#allocation5], 896
        $region56: #{tpu_custom_call.1} parent=51 // pred_fallthru
          _
        // Predicated region
        $region57: #{tpu_custom_call.1} parent=51 // pred_check
          %p316 = pneg %p137
        $region58: #{tpu_custom_call.1} parent=51 // pred_check_branch
          %318 = sbr.rel (%p316) target = $region60
        $region59: #{tpu_custom_call.1} parent=51 // pred_region
          %320 = dma.done [#allocation8], 1024
        $region60: #{tpu_custom_call.1} parent=51 // pred_fallthru
          _
        // Predicated region
        $region61: #{tpu_custom_call.1} parent=51 // pred_check
          %p321 = pneg %p179
        $region62: #{tpu_custom_call.1} parent=51 // pred_check_branch
          %323 = sbr.rel (%p321) target = $region64
        $region63: #{tpu_custom_call.1} parent=51 // pred_region
          %325 = dma.done [#allocation8], 1024
        $region64: #{tpu_custom_call.1} parent=51 // pred_fallthru
          _
        %p326 = pneg %p53
        %p327 = pneg %p50
        %p328 = pneg %p74
        %p329 = pneg %p71
        %p330 = pneg %p95
        %p331 = pneg %p92
        %p332 = pneg %p116
        %p333 = pneg %p113
        %p334 = pneg %p137
        %p335 = pneg %p134
        %p336 = pneg %p158
        %p337 = pneg %p155
        %p338 = pneg %p179
        %p339 = pneg %p176
        %p340 = pneg %p200
        %p341 = pneg %p197
        %p342 = pneg %p228
        %p343 = pneg %p225
        %s344 = sand.u32 %s215, 1
        %s345 = scalar_lea.sflag [#allocation6], %s344
        %s346 = sand.u32 %s215, 1
        %s347 = smul.addr %s346, 256
        %s348 = scalar_lea.vmem [#allocation10], %s347
        %s349 = smul.u32 16, %s30
        %p350 = scmp.lt.s32.totalorder %s30, 0
        %s351 = ssub.s32 0, %s30
        %s352 = scalar_select %p350, %s351, %s30
        %s353 = sand.u32 %s352, 1
        %s354 = ssub.s32 0, %s353
        %s355 = scalar_select %p350, %s354, %s353
        %p356 = scmp.eq.s32.totalorder %s30, 0
        // Predicated region
        $region65: #{tpu_custom_call.1} parent=51 // pred_check
          %p357 = pneg %p356
        $region66: #{tpu_custom_call.1} parent=51 // pred_check_branch
          %359 = sbr.rel (%p357) target = $region68
        $region67: #{tpu_custom_call.1} parent=51 // pred_region
          %s360 = smul.u32 %s29, 528
          %s361 = scalar_lea.hbm %s0, %s360
          %s362 = smul.u32 %s355, 528
          %s363 = scalar_lea.vmem [#allocation2], %s362
          %s364 = scalar_lea.sflag [#allocation3], %s355
          // Predicated region
          $region69: #{tpu_custom_call.1} parent=67 // pred_check
            _
          $region70: #{tpu_custom_call.1} parent=67 // pred_check_branch
            %366 = sbr.rel target = $region72
          $region71: #{tpu_custom_call.1} parent=67 // pred_region
            %367 = sst [smem:[#allocation13]] [#allocation12]
            %368 = sst [smem:[#allocation14]] [#allocation11]
          $region72: #{tpu_custom_call.1} parent=67 // pred_fallthru
            _
          %370 = shalt.err (0)
          %s372 = sshll.u32 %s361, 4
          %s373 = int_to_ptr.hbm [resolvable:$true] %s372
          %s374 = sshll.u32 %s363, 4
          %s375 = int_to_ptr.vmem [resolvable:$true] %s374
          %377 = dma.hbm_to_vmem [thread:$0]  %s373, 8448, %s375, %s364
        $region68: #{tpu_custom_call.1} parent=51 // pred_fallthru
          _
        %s378 = sadd.s32 %s30, 1
        %p379 = scmp.lt.s32.totalorder %s378, 1
        // Predicated region
        $region73: #{tpu_custom_call.1} parent=51 // pred_check
          %p380 = pneg %p379
        $region74: #{tpu_custom_call.1} parent=51 // pred_check_branch
          %382 = sbr.rel (%p380) target = $region76
        $region75: #{tpu_custom_call.1} parent=51 // pred_region
          %s383 = ssub.s32 1, %s355
          %s384 = smul.u32 %s378, 16
          %s385 = smul.u32 %s384, 24
          %s386 = smul.u32 %s29, 528
          %s387 = sadd.s32 %s385, %s386
          %s388 = scalar_lea.hbm %s0, %s387
          %s389 = smul.u32 %s383, 528
          %s390 = scalar_lea.vmem [#allocation2], %s389
          %s391 = scalar_lea.sflag [#allocation3], %s383
          // Predicated region
          $region77: #{tpu_custom_call.1} parent=75 // pred_check
            _
          $region78: #{tpu_custom_call.1} parent=75 // pred_check_branch
            %393 = sbr.rel target = $region80
          $region79: #{tpu_custom_call.1} parent=75 // pred_region
            %394 = sst [smem:[#allocation13]] [#allocation16]
            %395 = sst [smem:[#allocation14]] [#allocation15]
          $region80: #{tpu_custom_call.1} parent=75 // pred_fallthru
            _
          %397 = shalt.err (0)
          %s399 = sshll.u32 %s388, 4
          %s400 = int_to_ptr.hbm [resolvable:$true] %s399
          %s401 = sshll.u32 %s390, 4
          %s402 = int_to_ptr.vmem [resolvable:$true] %s401
          %404 = dma.hbm_to_vmem [thread:$0]  %s400, 8448, %s402, %s391
        $region76: #{tpu_custom_call.1} parent=51 // pred_fallthru
          _
        %s405 = smul.u32 %s355, 528
        %s406 = scalar_lea.vmem [#allocation2], %s405
        %s407 = scalar_lea.sflag [#allocation3], %s355
        %s408 = smul.u32 22, 24
        %s409 = smul.u32 %s408, 1
        %s410 = sshll.u32 %s409, 4
        %411 = dma.done %s407, %s410
        %v412 = vld [vmem:[%s406] sm:$0xff]
        %v413 = vld [vmem:[%s406 + $0x8] sm:$0xff]
        %v414 = vld [vmem:[%s406 + $0x10] sm:$0xff]
        %v415 = vld [vmem:[%s406 + $0x18] sm:$0xff]
        %v416 = vld [vmem:[%s406 + $0x20] sm:$0xff]
        %v417 = vld [vmem:[%s406 + $0x28] sm:$0xff]
        %v418 = vld [vmem:[%s406 + $0x30] sm:$0xff]
        %v419 = vld [vmem:[%s406 + $0x38] sm:$0xff]
        %v420 = vld [vmem:[%s406 + $0x40] sm:$0xff]
        %v421 = vld [vmem:[%s406 + $0x48] sm:$0xff]
        %v422 = vld [vmem:[%s406 + $0x50] sm:$0xff]
        %v423 = vld [vmem:[%s406 + $0x58] sm:$0xff]
        %v424 = vld [vmem:[%s406 + $0x60] sm:$0xff]
        %v425 = vld [vmem:[%s406 + $0x68] sm:$0xff]
        %v426 = vld [vmem:[%s406 + $0x70] sm:$0xff]
        %v427 = vld [vmem:[%s406 + $0x78] sm:$0xff]
        %v428 = vld [vmem:[%s406 + $0x80] sm:$0xff]
        %v429 = vld [vmem:[%s406 + $0x88] sm:$0xff]
        %v430 = vld [vmem:[%s406 + $0x90] sm:$0xff]
        %v431 = vld [vmem:[%s406 + $0x98] sm:$0xff]
        %v432 = vld [vmem:[%s406 + $0xa0] sm:$0xff]
        %v433 = vld [vmem:[%s406 + $0xa8] sm:$0xff]
        %v434 = vld [vmem:[%s406 + $0xb0] sm:$0xff]
        %v435 = vld [vmem:[%s406 + $0xb8] sm:$0xff]
        %v436 = vld [vmem:[%s406 + $0xc0] sm:$0xff]
        %v437 = vld [vmem:[%s406 + $0xc8] sm:$0xff]
        %v438 = vld [vmem:[%s406 + $0xd0] sm:$0xff]
        %v439 = vld [vmem:[%s406 + $0xd8] sm:$0xff]
        %v440 = vld [vmem:[%s406 + $0xe0] sm:$0xff]
        %v441 = vld [vmem:[%s406 + $0xe8] sm:$0xff]
        %v442 = vld [vmem:[%s406 + $0xf0] sm:$0xff]
        %v443 = vld [vmem:[%s406 + $0xf8] sm:$0xff]
        %v444 = vld [vmem:[%s406 + $0x100] sm:$0xff]
        %v445 = vld [vmem:[%s406 + $0x108] sm:$0xff]
        %v446 = vld [vmem:[%s406 + $0x110] sm:$0xff]
        %v447 = vld [vmem:[%s406 + $0x118] sm:$0xff]
        %v448 = vld [vmem:[%s406 + $0x120] sm:$0xff]
        %v449 = vld [vmem:[%s406 + $0x128] sm:$0xff]
        %v450 = vld [vmem:[%s406 + $0x130] sm:$0xff]
        %v451 = vld [vmem:[%s406 + $0x138] sm:$0xff]
        %v452 = vld [vmem:[%s406 + $0x140] sm:$0xff]
        %v453 = vld [vmem:[%s406 + $0x148] sm:$0xff]
        %v454 = vld [vmem:[%s406 + $0x150] sm:$0xff]
        %v455 = vld [vmem:[%s406 + $0x158] sm:$0xff]
        %v456 = vld [vmem:[%s406 + $0x160] sm:$0xff]
        %v457 = vld [vmem:[%s406 + $0x168] sm:$0xff]
        %v458 = vld [vmem:[%s406 + $0x170] sm:$0xff]
        %v459 = vld [vmem:[%s406 + $0x178] sm:$0xff]
        %v460 = vld [vmem:[%s406 + $0x180] sm:$0xff]
        %v461 = vld [vmem:[%s406 + $0x188] sm:$0xff]
        %v462 = vld [vmem:[%s406 + $0x190] sm:$0xff]
        %v463 = vld [vmem:[%s406 + $0x198] sm:$0xff]
        %v464 = vld [vmem:[%s406 + $0x1a0] sm:$0xff]
        %v465 = vld [vmem:[%s406 + $0x1a8] sm:$0xff]
        %v466 = vld [vmem:[%s406 + $0x1b0] sm:$0xff]
        %v467 = vld [vmem:[%s406 + $0x1b8] sm:$0xff]
        %v468 = vld [vmem:[%s406 + $0x1c0] sm:$0xff]
        %v469 = vld [vmem:[%s406 + $0x1c8] sm:$0xff]
        %v470 = vld [vmem:[%s406 + $0x1d0] sm:$0xff]
        %v471 = vld [vmem:[%s406 + $0x1d8] sm:$0xff]
        %v472 = vld [vmem:[%s406 + $0x1e0] sm:$0xff]
        %v473 = vld [vmem:[%s406 + $0x1e8] sm:$0xff]
        %v474 = vld [vmem:[%s406 + $0x1f0] sm:$0xff]
        %v475 = vld [vmem:[%s406 + $0x1f8] sm:$0xff]
        %v476 = vld [vmem:[%s406 + $0x200] sm:$0xff]
        %v477 = vld [vmem:[%s406 + $0x208] sm:$0xff]
        %v478 = vld [vmem:[#allocation4] sm:$0xff]
        %v479 = vld [vmem:[#allocation4 + $0x8] sm:$0xff]
        %v480 = vld [vmem:[#allocation4 + $0x10] sm:$0xff]
        %v481 = vld [vmem:[#allocation4 + $0x18] sm:$0xff]
        %v482 = vld [vmem:[#allocation4 + $0x20] sm:$0xff]
        %v483 = vld [vmem:[#allocation4 + $0x28] sm:$0xff]
        %v484 = vld [vmem:[#allocation4 + $0x30] sm:$0x1]
        %v485 = vld [vmem:[%s2] sm:$0x1]
        %v487 = vperm.slane %v485, 0
        %v489 = vperm.slane %v478, 0
        %v490 = vmul.f32 %v412, %v489
        %v491 = vmul.f32 %v413, %v489
        %v492 = vmul.f32 %v415, %v489
        %v493 = vmul.f32 %v416, %v489
        %v494 = vmul.f32 %v418, %v489
        %v495 = vmul.f32 %v419, %v489
        %v496 = vmul.f32 %v421, %v489
        %v497 = vmul.f32 %v422, %v489
        %v498 = vmul.f32 %v424, %v489
        %v499 = vmul.f32 %v425, %v489
        %v500 = vmul.f32 %v427, %v489
        %v501 = vmul.f32 %v428, %v489
        %v502 = vmul.f32 %v430, %v489
        %v503 = vmul.f32 %v431, %v489
        %v504 = vmul.f32 %v433, %v489
        %v505 = vmul.f32 %v434, %v489
        %v506 = vmul.f32 %v436, %v489
        %v507 = vmul.f32 %v437, %v489
        %v508 = vmul.f32 %v439, %v489
        %v509 = vmul.f32 %v440, %v489
        %v510 = vmul.f32 %v442, %v489
        %v511 = vmul.f32 %v443, %v489
        %v512 = vmul.f32 %v445, %v489
        %v513 = vmul.f32 %v446, %v489
        %v514 = vmul.f32 %v448, %v489
        %v515 = vmul.f32 %v449, %v489
        %v516 = vmul.f32 %v451, %v489
        %v517 = vmul.f32 %v452, %v489
        %v518 = vmul.f32 %v454, %v489
        %v519 = vmul.f32 %v455, %v489
        %v520 = vmul.f32 %v457, %v489
        %v521 = vmul.f32 %v458, %v489
        %v522 = vadd.f32 %v487, %v490
        %v523 = vadd.f32 %v487, %v491
        %v524 = vadd.f32 %v487, %v492
        %v525 = vadd.f32 %v487, %v493
        %v526 = vadd.f32 %v487, %v494
        %v527 = vadd.f32 %v487, %v495
        %v528 = vadd.f32 %v487, %v496
        %v529 = vadd.f32 %v487, %v497
        %v530 = vadd.f32 %v487, %v498
        %v531 = vadd.f32 %v487, %v499
        %v532 = vadd.f32 %v487, %v500
        %v533 = vadd.f32 %v487, %v501
        %v534 = vadd.f32 %v487, %v502
        %v535 = vadd.f32 %v487, %v503
        %v536 = vadd.f32 %v487, %v504
        %v537 = vadd.f32 %v487, %v505
        %v538 = vadd.f32 %v487, %v506
        %v539 = vadd.f32 %v487, %v507
        %v540 = vadd.f32 %v487, %v508
        %v541 = vadd.f32 %v487, %v509
        %v542 = vadd.f32 %v487, %v510
        %v543 = vadd.f32 %v487, %v511
        %v544 = vadd.f32 %v487, %v512
        %v545 = vadd.f32 %v487, %v513
        %v546 = vadd.f32 %v487, %v514
        %v547 = vadd.f32 %v487, %v515
        %v548 = vadd.f32 %v487, %v516
        %v549 = vadd.f32 %v487, %v517
        %v550 = vadd.f32 %v487, %v518
        %v551 = vadd.f32 %v487, %v519
        %v552 = vadd.f32 %v487, %v520
        %v553 = vadd.f32 %v487, %v521
        %v554 = vperm.slane %v478, 7
        %v555 = vmul.f32 %v415, %v554
        %v556 = vmul.f32 %v416, %v554
        %v557 = vmul.f32 %v418, %v554
        %v558 = vmul.f32 %v419, %v554
        %v559 = vmul.f32 %v421, %v554
        %v560 = vmul.f32 %v422, %v554
        %v561 = vmul.f32 %v424, %v554
        %v562 = vmul.f32 %v425, %v554
        %v563 = vmul.f32 %v427, %v554
        %v564 = vmul.f32 %v428, %v554
        %v565 = vmul.f32 %v430, %v554
        %v566 = vmul.f32 %v431, %v554
        %v567 = vmul.f32 %v433, %v554
        %v568 = vmul.f32 %v434, %v554
        %v569 = vmul.f32 %v436, %v554
        %v570 = vmul.f32 %v437, %v554
        %v571 = vmul.f32 %v439, %v554
        %v572 = vmul.f32 %v440, %v554
        %v573 = vmul.f32 %v442, %v554
        %v574 = vmul.f32 %v443, %v554
        %v575 = vmul.f32 %v445, %v554
        %v576 = vmul.f32 %v446, %v554
        %v577 = vmul.f32 %v448, %v554
        %v578 = vmul.f32 %v449, %v554
        %v579 = vmul.f32 %v451, %v554
        %v580 = vmul.f32 %v452, %v554
        %v581 = vmul.f32 %v454, %v554
        %v582 = vmul.f32 %v455, %v554
        %v583 = vmul.f32 %v457, %v554
        %v584 = vmul.f32 %v458, %v554
        %v585 = vmul.f32 %v460, %v554
        %v586 = vmul.f32 %v461, %v554
        %v587 = vadd.f32 %v522, %v555
        %v588 = vadd.f32 %v523, %v556
        %v589 = vadd.f32 %v524, %v557
        %v590 = vadd.f32 %v525, %v558
        %v591 = vadd.f32 %v526, %v559
        %v592 = vadd.f32 %v527, %v560
        %v593 = vadd.f32 %v528, %v561
        %v594 = vadd.f32 %v529, %v562
        %v595 = vadd.f32 %v530, %v563
        %v596 = vadd.f32 %v531, %v564
        %v597 = vadd.f32 %v532, %v565
        %v598 = vadd.f32 %v533, %v566
        %v599 = vadd.f32 %v534, %v567
        %v600 = vadd.f32 %v535, %v568
        %v601 = vadd.f32 %v536, %v569
        %v602 = vadd.f32 %v537, %v570
        %v603 = vadd.f32 %v538, %v571
        %v604 = vadd.f32 %v539, %v572
        %v605 = vadd.f32 %v540, %v573
        %v606 = vadd.f32 %v541, %v574
        %v607 = vadd.f32 %v542, %v575
        %v608 = vadd.f32 %v543, %v576
        %v609 = vadd.f32 %v544, %v577
        %v610 = vadd.f32 %v545, %v578
        %v611 = vadd.f32 %v546, %v579
        %v612 = vadd.f32 %v547, %v580
        %v613 = vadd.f32 %v548, %v581
        %v614 = vadd.f32 %v549, %v582
        %v615 = vadd.f32 %v550, %v583
        %v616 = vadd.f32 %v551, %v584
        %v617 = vadd.f32 %v552, %v585
        %v618 = vadd.f32 %v553, %v586
        %v619 = vperm.slane %v479, 6
        %v620 = vmul.f32 %v418, %v619
        %v621 = vmul.f32 %v419, %v619
        %v622 = vmul.f32 %v421, %v619
        %v623 = vmul.f32 %v422, %v619
        %v624 = vmul.f32 %v424, %v619
        %v625 = vmul.f32 %v425, %v619
        %v626 = vmul.f32 %v427, %v619
        %v627 = vmul.f32 %v428, %v619
        %v628 = vmul.f32 %v430, %v619
        %v629 = vmul.f32 %v431, %v619
        %v630 = vmul.f32 %v433, %v619
        %v631 = vmul.f32 %v434, %v619
        %v632 = vmul.f32 %v436, %v619
        %v633 = vmul.f32 %v437, %v619
        %v634 = vmul.f32 %v439, %v619
        %v635 = vmul.f32 %v440, %v619
        %v636 = vmul.f32 %v442, %v619
        %v637 = vmul.f32 %v443, %v619
        %v638 = vmul.f32 %v445, %v619
        %v639 = vmul.f32 %v446, %v619
        %v640 = vmul.f32 %v448, %v619
        %v641 = vmul.f32 %v449, %v619
        %v642 = vmul.f32 %v451, %v619
        %v643 = vmul.f32 %v452, %v619
        %v644 = vmul.f32 %v454, %v619
        %v645 = vmul.f32 %v455, %v619
        %v646 = vmul.f32 %v457, %v619
        %v647 = vmul.f32 %v458, %v619
        %v648 = vmul.f32 %v460, %v619
        %v649 = vmul.f32 %v461, %v619
        %v650 = vmul.f32 %v463, %v619
        %v651 = vmul.f32 %v464, %v619
        %v652 = vadd.f32 %v587, %v620
        %v653 = vadd.f32 %v588, %v621
        %v654 = vadd.f32 %v589, %v622
        %v655 = vadd.f32 %v590, %v623
        %v656 = vadd.f32 %v591, %v624
        %v657 = vadd.f32 %v592, %v625
        %v658 = vadd.f32 %v593, %v626
        %v659 = vadd.f32 %v594, %v627
        %v660 = vadd.f32 %v595, %v628
        %v661 = vadd.f32 %v596, %v629
        %v662 = vadd.f32 %v597, %v630
        %v663 = vadd.f32 %v598, %v631
        %v664 = vadd.f32 %v599, %v632
        %v665 = vadd.f32 %v600, %v633
        %v666 = vadd.f32 %v601, %v634
        %v667 = vadd.f32 %v602, %v635
        %v668 = vadd.f32 %v603, %v636
        %v669 = vadd.f32 %v604, %v637
        %v670 = vadd.f32 %v605, %v638
        %v671 = vadd.f32 %v606, %v639
        %v672 = vadd.f32 %v607, %v640
        %v673 = vadd.f32 %v608, %v641
        %v674 = vadd.f32 %v609, %v642
        %v675 = vadd.f32 %v610, %v643
        %v676 = vadd.f32 %v611, %v644
        %v677 = vadd.f32 %v612, %v645
        %v678 = vadd.f32 %v613, %v646
        %v679 = vadd.f32 %v614, %v647
        %v680 = vadd.f32 %v615, %v648
        %v681 = vadd.f32 %v616, %v649
        %v682 = vadd.f32 %v617, %v650
        %v683 = vadd.f32 %v618, %v651
        %v684 = vperm.slane %v480, 5
        %v685 = vmul.f32 %v421, %v684
        %v686 = vmul.f32 %v422, %v684
        %v687 = vmul.f32 %v424, %v684
        %v688 = vmul.f32 %v425, %v684
        %v689 = vmul.f32 %v427, %v684
        %v690 = vmul.f32 %v428, %v684
        %v691 = vmul.f32 %v430, %v684
        %v692 = vmul.f32 %v431, %v684
        %v693 = vmul.f32 %v433, %v684
        %v694 = vmul.f32 %v434, %v684
        %v695 = vmul.f32 %v436, %v684
        %v696 = vmul.f32 %v437, %v684
        %v697 = vmul.f32 %v439, %v684
        %v698 = vmul.f32 %v440, %v684
        %v699 = vmul.f32 %v442, %v684
        %v700 = vmul.f32 %v443, %v684
        %v701 = vmul.f32 %v445, %v684
        %v702 = vmul.f32 %v446, %v684
        %v703 = vmul.f32 %v448, %v684
        %v704 = vmul.f32 %v449, %v684
        %v705 = vmul.f32 %v451, %v684
        %v706 = vmul.f32 %v452, %v684
        %v707 = vmul.f32 %v454, %v684
        %v708 = vmul.f32 %v455, %v684
        %v709 = vmul.f32 %v457, %v684
        %v710 = vmul.f32 %v458, %v684
        %v711 = vmul.f32 %v460, %v684
        %v712 = vmul.f32 %v461, %v684
        %v713 = vmul.f32 %v463, %v684
        %v714 = vmul.f32 %v464, %v684
        %v715 = vmul.f32 %v466, %v684
        %v716 = vmul.f32 %v467, %v684
        %v717 = vadd.f32 %v652, %v685
        %v718 = vadd.f32 %v653, %v686
        %v719 = vadd.f32 %v654, %v687
        %v720 = vadd.f32 %v655, %v688
        %v721 = vadd.f32 %v656, %v689
        %v722 = vadd.f32 %v657, %v690
        %v723 = vadd.f32 %v658, %v691
        %v724 = vadd.f32 %v659, %v692
        %v725 = vadd.f32 %v660, %v693
        %v726 = vadd.f32 %v661, %v694
        %v727 = vadd.f32 %v662, %v695
        %v728 = vadd.f32 %v663, %v696
        %v729 = vadd.f32 %v664, %v697
        %v730 = vadd.f32 %v665, %v698
        %v731 = vadd.f32 %v666, %v699
        %v732 = vadd.f32 %v667, %v700
        %v733 = vadd.f32 %v668, %v701
        %v734 = vadd.f32 %v669, %v702
        %v735 = vadd.f32 %v670, %v703
        %v736 = vadd.f32 %v671, %v704
        %v737 = vadd.f32 %v672, %v705
        %v738 = vadd.f32 %v673, %v706
        %v739 = vadd.f32 %v674, %v707
        %v740 = vadd.f32 %v675, %v708
        %v741 = vadd.f32 %v676, %v709
        %v742 = vadd.f32 %v677, %v710
        %v743 = vadd.f32 %v678, %v711
        %v744 = vadd.f32 %v679, %v712
        %v745 = vadd.f32 %v680, %v713
        %v746 = vadd.f32 %v681, %v714
        %v747 = vadd.f32 %v682, %v715
        %v748 = vadd.f32 %v683, %v716
        %v749 = vperm.slane %v481, 4
        %v750 = vmul.f32 %v424, %v749
        %v751 = vmul.f32 %v425, %v749
        %v752 = vmul.f32 %v427, %v749
        %v753 = vmul.f32 %v428, %v749
        %v754 = vmul.f32 %v430, %v749
        %v755 = vmul.f32 %v431, %v749
        %v756 = vmul.f32 %v433, %v749
        %v757 = vmul.f32 %v434, %v749
        %v758 = vmul.f32 %v436, %v749
        %v759 = vmul.f32 %v437, %v749
        %v760 = vmul.f32 %v439, %v749
        %v761 = vmul.f32 %v440, %v749
        %v762 = vmul.f32 %v442, %v749
        %v763 = vmul.f32 %v443, %v749
        %v764 = vmul.f32 %v445, %v749
        %v765 = vmul.f32 %v446, %v749
        %v766 = vmul.f32 %v448, %v749
        %v767 = vmul.f32 %v449, %v749
        %v768 = vmul.f32 %v451, %v749
        %v769 = vmul.f32 %v452, %v749
        %v770 = vmul.f32 %v454, %v749
        %v771 = vmul.f32 %v455, %v749
        %v772 = vmul.f32 %v457, %v749
        %v773 = vmul.f32 %v458, %v749
        %v774 = vmul.f32 %v460, %v749
        %v775 = vmul.f32 %v461, %v749
        %v776 = vmul.f32 %v463, %v749
        %v777 = vmul.f32 %v464, %v749
        %v778 = vmul.f32 %v466, %v749
        %v779 = vmul.f32 %v467, %v749
        %v780 = vmul.f32 %v469, %v749
        %v781 = vmul.f32 %v470, %v749
        %v782 = vadd.f32 %v717, %v750
        %v783 = vadd.f32 %v718, %v751
        %v784 = vadd.f32 %v719, %v752
        %v785 = vadd.f32 %v720, %v753
        %v786 = vadd.f32 %v721, %v754
        %v787 = vadd.f32 %v722, %v755
        %v788 = vadd.f32 %v723, %v756
        %v789 = vadd.f32 %v724, %v757
        %v790 = vadd.f32 %v725, %v758
        %v791 = vadd.f32 %v726, %v759
        %v792 = vadd.f32 %v727, %v760
        %v793 = vadd.f32 %v728, %v761
        %v794 = vadd.f32 %v729, %v762
        %v795 = vadd.f32 %v730, %v763
        %v796 = vadd.f32 %v731, %v764
        %v797 = vadd.f32 %v732, %v765
        %v798 = vadd.f32 %v733, %v766
        %v799 = vadd.f32 %v734, %v767
        %v800 = vadd.f32 %v735, %v768
        %v801 = vadd.f32 %v736, %v769
        %v802 = vadd.f32 %v737, %v770
        %v803 = vadd.f32 %v738, %v771
        %v804 = vadd.f32 %v739, %v772
        %v805 = vadd.f32 %v740, %v773
        %v806 = vadd.f32 %v741, %v774
        %v807 = vadd.f32 %v742, %v775
        %v808 = vadd.f32 %v743, %v776
        %v809 = vadd.f32 %v744, %v777
        %v810 = vadd.f32 %v745, %v778
        %v811 = vadd.f32 %v746, %v779
        %v812 = vadd.f32 %v747, %v780
        %v813 = vadd.f32 %v748, %v781
        %v814 = vperm.slane %v482, 3
        %v815 = vmul.f32 %v427, %v814
        %v816 = vmul.f32 %v428, %v814
        %v817 = vmul.f32 %v430, %v814
        %v818 = vmul.f32 %v431, %v814
        %v819 = vmul.f32 %v433, %v814
        %v820 = vmul.f32 %v434, %v814
        %v821 = vmul.f32 %v436, %v814
        %v822 = vmul.f32 %v437, %v814
        %v823 = vmul.f32 %v439, %v814
        %v824 = vmul.f32 %v440, %v814
        %v825 = vmul.f32 %v442, %v814
        %v826 = vmul.f32 %v443, %v814
        %v827 = vmul.f32 %v445, %v814
        %v828 = vmul.f32 %v446, %v814
        %v829 = vmul.f32 %v448, %v814
        %v830 = vmul.f32 %v449, %v814
        %v831 = vmul.f32 %v451, %v814
        %v832 = vmul.f32 %v452, %v814
        %v833 = vmul.f32 %v454, %v814
        %v834 = vmul.f32 %v455, %v814
        %v835 = vmul.f32 %v457, %v814
        %v836 = vmul.f32 %v458, %v814
        %v837 = vmul.f32 %v460, %v814
        %v838 = vmul.f32 %v461, %v814
        %v839 = vmul.f32 %v463, %v814
        %v840 = vmul.f32 %v464, %v814
        %v841 = vmul.f32 %v466, %v814
        %v842 = vmul.f32 %v467, %v814
        %v843 = vmul.f32 %v469, %v814
        %v844 = vmul.f32 %v470, %v814
        %v845 = vmul.f32 %v472, %v814
        %v846 = vmul.f32 %v473, %v814
        %v847 = vadd.f32 %v782, %v815
        %v848 = vadd.f32 %v783, %v816
        %v849 = vadd.f32 %v784, %v817
        %v850 = vadd.f32 %v785, %v818
        %v851 = vadd.f32 %v786, %v819
        %v852 = vadd.f32 %v787, %v820
        %v853 = vadd.f32 %v788, %v821
        %v854 = vadd.f32 %v789, %v822
        %v855 = vadd.f32 %v790, %v823
        %v856 = vadd.f32 %v791, %v824
        %v857 = vadd.f32 %v792, %v825
        %v858 = vadd.f32 %v793, %v826
        %v859 = vadd.f32 %v794, %v827
        %v860 = vadd.f32 %v795, %v828
        %v861 = vadd.f32 %v796, %v829
        %v862 = vadd.f32 %v797, %v830
        %v863 = vadd.f32 %v798, %v831
        %v864 = vadd.f32 %v799, %v832
        %v865 = vadd.f32 %v800, %v833
        %v866 = vadd.f32 %v801, %v834
        %v867 = vadd.f32 %v802, %v835
        %v868 = vadd.f32 %v803, %v836
        %v869 = vadd.f32 %v804, %v837
        %v870 = vadd.f32 %v805, %v838
        %v871 = vadd.f32 %v806, %v839
        %v872 = vadd.f32 %v807, %v840
        %v873 = vadd.f32 %v808, %v841
        %v874 = vadd.f32 %v809, %v842
        %v875 = vadd.f32 %v810, %v843
        %v876 = vadd.f32 %v811, %v844
        %v877 = vadd.f32 %v812, %v845
        %v878 = vadd.f32 %v813, %v846
        %v879 = vperm.slane %v483, 2
        %v880 = vmul.f32 %v430, %v879
        %v881 = vmul.f32 %v431, %v879
        %v882 = vmul.f32 %v433, %v879
        %v883 = vmul.f32 %v434, %v879
        %v884 = vmul.f32 %v436, %v879
        %v885 = vmul.f32 %v437, %v879
        %v886 = vmul.f32 %v439, %v879
        %v887 = vmul.f32 %v440, %v879
        %v888 = vmul.f32 %v442, %v879
        %v889 = vmul.f32 %v443, %v879
        %v890 = vmul.f32 %v445, %v879
        %v891 = vmul.f32 %v446, %v879
        %v892 = vmul.f32 %v448, %v879
        %v893 = vmul.f32 %v449, %v879
        %v894 = vmul.f32 %v451, %v879
        %v895 = vmul.f32 %v452, %v879
        %v896 = vmul.f32 %v454, %v879
        %v897 = vmul.f32 %v455, %v879
        %v898 = vmul.f32 %v457, %v879
        %v899 = vmul.f32 %v458, %v879
        %v900 = vmul.f32 %v460, %v879
        %v901 = vmul.f32 %v461, %v879
        %v902 = vmul.f32 %v463, %v879
        %v903 = vmul.f32 %v464, %v879
        %v904 = vmul.f32 %v466, %v879
        %v905 = vmul.f32 %v467, %v879
        %v906 = vmul.f32 %v469, %v879
        %v907 = vmul.f32 %v470, %v879
        %v908 = vmul.f32 %v472, %v879
        %v909 = vmul.f32 %v473, %v879
        %v910 = vmul.f32 %v475, %v879
        %v911 = vmul.f32 %v476, %v879
        %v912 = vadd.f32 %v847, %v880
        %v913 = vadd.f32 %v848, %v881
        %v914 = vadd.f32 %v849, %v882
        %v915 = vadd.f32 %v850, %v883
        %v916 = vadd.f32 %v851, %v884
        %v917 = vadd.f32 %v852, %v885
        %v918 = vadd.f32 %v853, %v886
        %v919 = vadd.f32 %v854, %v887
        %v920 = vadd.f32 %v855, %v888
        %v921 = vadd.f32 %v856, %v889
        %v922 = vadd.f32 %v857, %v890
        %v923 = vadd.f32 %v858, %v891
        %v924 = vadd.f32 %v859, %v892
        %v925 = vadd.f32 %v860, %v893
        %v926 = vadd.f32 %v861, %v894
        %v927 = vadd.f32 %v862, %v895
        %v928 = vadd.f32 %v863, %v896
        %v929 = vadd.f32 %v864, %v897
        %v930 = vadd.f32 %v865, %v898
        %v931 = vadd.f32 %v866, %v899
        %v932 = vadd.f32 %v867, %v900
        %v933 = vadd.f32 %v868, %v901
        %v934 = vadd.f32 %v869, %v902
        %v935 = vadd.f32 %v870, %v903
        %v936 = vadd.f32 %v871, %v904
        %v937 = vadd.f32 %v872, %v905
        %v938 = vadd.f32 %v873, %v906
        %v939 = vadd.f32 %v874, %v907
        %v940 = vadd.f32 %v875, %v908
        %v941 = vadd.f32 %v876, %v909
        %v942 = vadd.f32 %v877, %v910
        %v943 = vadd.f32 %v878, %v911
        %v944 = vperm.slane %v478, 1
        %v945 = vmul.f32 %v412, %v944
        %v946 = vmul.f32 %v413, %v944
        %v947 = vmul.f32 %v414, %v944
        %v948 = vmul.f32 %v415, %v944
        %v949 = vmul.f32 %v416, %v944
        %v950 = vmul.f32 %v417, %v944
        %v951 = vmul.f32 %v418, %v944
        %v952 = vmul.f32 %v419, %v944
        %v953 = vmul.f32 %v420, %v944
        %v954 = vmul.f32 %v421, %v944
        %v955 = vmul.f32 %v422, %v944
        %v956 = vmul.f32 %v423, %v944
        %v957 = vmul.f32 %v424, %v944
        %v958 = vmul.f32 %v425, %v944
        %v959 = vmul.f32 %v426, %v944
        %v960 = vmul.f32 %v427, %v944
        %v961 = vmul.f32 %v428, %v944
        %v962 = vmul.f32 %v429, %v944
        %v963 = vmul.f32 %v430, %v944
        %v964 = vmul.f32 %v431, %v944
        %v965 = vmul.f32 %v432, %v944
        %v966 = vmul.f32 %v433, %v944
        %v967 = vmul.f32 %v434, %v944
        %v968 = vmul.f32 %v435, %v944
        %v969 = vmul.f32 %v436, %v944
        %v970 = vmul.f32 %v437, %v944
        %v971 = vmul.f32 %v438, %v944
        %v972 = vmul.f32 %v439, %v944
        %v973 = vmul.f32 %v440, %v944
        %v974 = vmul.f32 %v441, %v944
        %v975 = vmul.f32 %v442, %v944
        %v976 = vmul.f32 %v443, %v944
        %v977 = vmul.f32 %v444, %v944
        %v978 = vmul.f32 %v445, %v944
        %v979 = vmul.f32 %v446, %v944
        %v980 = vmul.f32 %v447, %v944
        %v981 = vmul.f32 %v448, %v944
        %v982 = vmul.f32 %v449, %v944
        %v983 = vmul.f32 %v450, %v944
        %v984 = vmul.f32 %v451, %v944
        %v985 = vmul.f32 %v452, %v944
        %v986 = vmul.f32 %v453, %v944
        %v987 = vmul.f32 %v454, %v944
        %v988 = vmul.f32 %v455, %v944
        %v989 = vmul.f32 %v456, %v944
        %v990 = vmul.f32 %v457, %v944
        %v991 = vmul.f32 %v458, %v944
        %v992 = vmul.f32 %v459, %v944
        %vm1041 = vcmask 1046528
        %v1042 = vrot.slane %v945, 1
        %v1043 = vrot.slane %v946, 1
        %v1044 = vsel %vm1041, %v1042, %v1043
        %v1045 = vrot.slane %v947, 1
        %v1046 = vsel %vm1041, %v1043, %v1045
        %v1047 = vrot.slane %v948, 1
        %v1048 = vrot.slane %v949, 1
        %v1049 = vsel %vm1041, %v1047, %v1048
        %v1050 = vrot.slane %v950, 1
        %v1051 = vsel %vm1041, %v1048, %v1050
        %v1052 = vrot.slane %v951, 1
        %v1053 = vrot.slane %v952, 1
        %v1054 = vsel %vm1041, %v1052, %v1053
        %v1055 = vrot.slane %v953, 1
        %v1056 = vsel %vm1041, %v1053, %v1055
        %v1057 = vrot.slane %v954, 1
        %v1058 = vrot.slane %v955, 1
        %v1059 = vsel %vm1041, %v1057, %v1058
        %v1060 = vrot.slane %v956, 1
        %v1061 = vsel %vm1041, %v1058, %v1060
        %v1062 = vrot.slane %v957, 1
        %v1063 = vrot.slane %v958, 1
        %v1064 = vsel %vm1041, %v1062, %v1063
        %v1065 = vrot.slane %v959, 1
        %v1066 = vsel %vm1041, %v1063, %v1065
        %v1067 = vrot.slane %v960, 1
        %v1068 = vrot.slane %v961, 1
        %v1069 = vsel %vm1041, %v1067, %v1068
        %v1070 = vrot.slane %v962, 1
        %v1071 = vsel %vm1041, %v1068, %v1070
        %v1072 = vrot.slane %v963, 1
        %v1073 = vrot.slane %v964, 1
        %v1074 = vsel %vm1041, %v1072, %v1073
        %v1075 = vrot.slane %v965, 1
        %v1076 = vsel %vm1041, %v1073, %v1075
        %v1077 = vrot.slane %v966, 1
        %v1078 = vrot.slane %v967, 1
        %v1079 = vsel %vm1041, %v1077, %v1078
        %v1080 = vrot.slane %v968, 1
        %v1081 = vsel %vm1041, %v1078, %v1080
        %v1082 = vrot.slane %v969, 1
        %v1083 = vrot.slane %v970, 1
        %v1084 = vsel %vm1041, %v1082, %v1083
        %v1085 = vrot.slane %v971, 1
        %v1086 = vsel %vm1041, %v1083, %v1085
        %v1087 = vrot.slane %v972, 1
        %v1088 = vrot.slane %v973, 1
        %v1089 = vsel %vm1041, %v1087, %v1088
        %v1090 = vrot.slane %v974, 1
        %v1091 = vsel %vm1041, %v1088, %v1090
        %v1092 = vrot.slane %v975, 1
        %v1093 = vrot.slane %v976, 1
        %v1094 = vsel %vm1041, %v1092, %v1093
        %v1095 = vrot.slane %v977, 1
        %v1096 = vsel %vm1041, %v1093, %v1095
        %v1097 = vrot.slane %v978, 1
        %v1098 = vrot.slane %v979, 1
        %v1099 = vsel %vm1041, %v1097, %v1098
        %v1100 = vrot.slane %v980, 1
        %v1101 = vsel %vm1041, %v1098, %v1100
        %v1102 = vrot.slane %v981, 1
        %v1103 = vrot.slane %v982, 1
        %v1104 = vsel %vm1041, %v1102, %v1103
        %v1105 = vrot.slane %v983, 1
        %v1106 = vsel %vm1041, %v1103, %v1105
        %v1107 = vrot.slane %v984, 1
        %v1108 = vrot.slane %v985, 1
        %v1109 = vsel %vm1041, %v1107, %v1108
        %v1110 = vrot.slane %v986, 1
        %v1111 = vsel %vm1041, %v1108, %v1110
        %v1112 = vrot.slane %v987, 1
        %v1113 = vrot.slane %v988, 1
        %v1114 = vsel %vm1041, %v1112, %v1113
        %v1115 = vrot.slane %v989, 1
        %v1116 = vsel %vm1041, %v1113, %v1115
        %v1117 = vrot.slane %v990, 1
        %v1118 = vrot.slane %v991, 1
        %v1119 = vsel %vm1041, %v1117, %v1118
        %v1120 = vrot.slane %v992, 1
        %v1121 = vsel %vm1041, %v1118, %v1120
        %v1154 = vadd.f32 %v912, %v1044
        %v1155 = vadd.f32 %v913, %v1046
        %v1156 = vadd.f32 %v914, %v1049
        %v1157 = vadd.f32 %v915, %v1051
        %v1158 = vadd.f32 %v916, %v1054
        %v1159 = vadd.f32 %v917, %v1056
        %v1160 = vadd.f32 %v918, %v1059
        %v1161 = vadd.f32 %v919, %v1061
        %v1162 = vadd.f32 %v920, %v1064
        %v1163 = vadd.f32 %v921, %v1066
        %v1164 = vadd.f32 %v922, %v1069
        %v1165 = vadd.f32 %v923, %v1071
        %v1166 = vadd.f32 %v924, %v1074
        %v1167 = vadd.f32 %v925, %v1076
        %v1168 = vadd.f32 %v926, %v1079
        %v1169 = vadd.f32 %v927, %v1081
        %v1170 = vadd.f32 %v928, %v1084
        %v1171 = vadd.f32 %v929, %v1086
        %v1172 = vadd.f32 %v930, %v1089
        %v1173 = vadd.f32 %v931, %v1091
        %v1174 = vadd.f32 %v932, %v1094
        %v1175 = vadd.f32 %v933, %v1096
        %v1176 = vadd.f32 %v934, %v1099
        %v1177 = vadd.f32 %v935, %v1101
        %v1178 = vadd.f32 %v936, %v1104
        %v1179 = vadd.f32 %v937, %v1106
        %v1180 = vadd.f32 %v938, %v1109
        %v1181 = vadd.f32 %v939, %v1111
        %v1182 = vadd.f32 %v940, %v1114
        %v1183 = vadd.f32 %v941, %v1116
        %v1184 = vadd.f32 %v942, %v1119
        %v1185 = vadd.f32 %v943, %v1121
        %v1186 = vperm.slane %v479, 0
        %v1187 = vmul.f32 %v415, %v1186
        %v1188 = vmul.f32 %v416, %v1186
        %v1189 = vmul.f32 %v417, %v1186
        %v1190 = vmul.f32 %v418, %v1186
        %v1191 = vmul.f32 %v419, %v1186
        %v1192 = vmul.f32 %v420, %v1186
        %v1193 = vmul.f32 %v421, %v1186
        %v1194 = vmul.f32 %v422, %v1186
        %v1195 = vmul.f32 %v423, %v1186
        %v1196 = vmul.f32 %v424, %v1186
        %v1197 = vmul.f32 %v425, %v1186
        %v1198 = vmul.f32 %v426, %v1186
        %v1199 = vmul.f32 %v427, %v1186
        %v1200 = vmul.f32 %v428, %v1186
        %v1201 = vmul.f32 %v429, %v1186
        %v1202 = vmul.f32 %v430, %v1186
        %v1203 = vmul.f32 %v431, %v1186
        %v1204 = vmul.f32 %v432, %v1186
        %v1205 = vmul.f32 %v433, %v1186
        %v1206 = vmul.f32 %v434, %v1186
        %v1207 = vmul.f32 %v435, %v1186
        %v1208 = vmul.f32 %v436, %v1186
        %v1209 = vmul.f32 %v437, %v1186
        %v1210 = vmul.f32 %v438, %v1186
        %v1211 = vmul.f32 %v439, %v1186
        %v1212 = vmul.f32 %v440, %v1186
        %v1213 = vmul.f32 %v441, %v1186
        %v1214 = vmul.f32 %v442, %v1186
        %v1215 = vmul.f32 %v443, %v1186
        %v1216 = vmul.f32 %v444, %v1186
        %v1217 = vmul.f32 %v445, %v1186
        %v1218 = vmul.f32 %v446, %v1186
        %v1219 = vmul.f32 %v447, %v1186
        %v1220 = vmul.f32 %v448, %v1186
        %v1221 = vmul.f32 %v449, %v1186
        %v1222 = vmul.f32 %v450, %v1186
        %v1223 = vmul.f32 %v451, %v1186
        %v1224 = vmul.f32 %v452, %v1186
        %v1225 = vmul.f32 %v453, %v1186
        %v1226 = vmul.f32 %v454, %v1186
        %v1227 = vmul.f32 %v455, %v1186
        %v1228 = vmul.f32 %v456, %v1186
        %v1229 = vmul.f32 %v457, %v1186
        %v1230 = vmul.f32 %v458, %v1186
        %v1231 = vmul.f32 %v459, %v1186
        %v1232 = vmul.f32 %v460, %v1186
        %v1233 = vmul.f32 %v461, %v1186
        %v1234 = vmul.f32 %v462, %v1186
        %v1283 = vrot.slane %v1187, 1
        %v1284 = vrot.slane %v1188, 1
        %v1285 = vsel %vm1041, %v1283, %v1284
        %v1286 = vrot.slane %v1189, 1
        %v1287 = vsel %vm1041, %v1284, %v1286
        %v1288 = vrot.slane %v1190, 1
        %v1289 = vrot.slane %v1191, 1
        %v1290 = vsel %vm1041, %v1288, %v1289
        %v1291 = vrot.slane %v1192, 1
        %v1292 = vsel %vm1041, %v1289, %v1291
        %v1293 = vrot.slane %v1193, 1
        %v1294 = vrot.slane %v1194, 1
        %v1295 = vsel %vm1041, %v1293, %v1294
        %v1296 = vrot.slane %v1195, 1
        %v1297 = vsel %vm1041, %v1294, %v1296
        %v1298 = vrot.slane %v1196, 1
        %v1299 = vrot.slane %v1197, 1
        %v1300 = vsel %vm1041, %v1298, %v1299
        %v1301 = vrot.slane %v1198, 1
        %v1302 = vsel %vm1041, %v1299, %v1301
        %v1303 = vrot.slane %v1199, 1
        %v1304 = vrot.slane %v1200, 1
        %v1305 = vsel %vm1041, %v1303, %v1304
        %v1306 = vrot.slane %v1201, 1
        %v1307 = vsel %vm1041, %v1304, %v1306
        %v1308 = vrot.slane %v1202, 1
        %v1309 = vrot.slane %v1203, 1
        %v1310 = vsel %vm1041, %v1308, %v1309
        %v1311 = vrot.slane %v1204, 1
        %v1312 = vsel %vm1041, %v1309, %v1311
        %v1313 = vrot.slane %v1205, 1
        %v1314 = vrot.slane %v1206, 1
        %v1315 = vsel %vm1041, %v1313, %v1314
        %v1316 = vrot.slane %v1207, 1
        %v1317 = vsel %vm1041, %v1314, %v1316
        %v1318 = vrot.slane %v1208, 1
        %v1319 = vrot.slane %v1209, 1
        %v1320 = vsel %vm1041, %v1318, %v1319
        %v1321 = vrot.slane %v1210, 1
        %v1322 = vsel %vm1041, %v1319, %v1321
        %v1323 = vrot.slane %v1211, 1
        %v1324 = vrot.slane %v1212, 1
        %v1325 = vsel %vm1041, %v1323, %v1324
        %v1326 = vrot.slane %v1213, 1
        %v1327 = vsel %vm1041, %v1324, %v1326
        %v1328 = vrot.slane %v1214, 1
        %v1329 = vrot.slane %v1215, 1
        %v1330 = vsel %vm1041, %v1328, %v1329
        %v1331 = vrot.slane %v1216, 1
        %v1332 = vsel %vm1041, %v1329, %v1331
        %v1333 = vrot.slane %v1217, 1
        %v1334 = vrot.slane %v1218, 1
        %v1335 = vsel %vm1041, %v1333, %v1334
        %v1336 = vrot.slane %v1219, 1
        %v1337 = vsel %vm1041, %v1334, %v1336
        %v1338 = vrot.slane %v1220, 1
        %v1339 = vrot.slane %v1221, 1
        %v1340 = vsel %vm1041, %v1338, %v1339
        %v1341 = vrot.slane %v1222, 1
        %v1342 = vsel %vm1041, %v1339, %v1341
        %v1343 = vrot.slane %v1223, 1
        %v1344 = vrot.slane %v1224, 1
        %v1345 = vsel %vm1041, %v1343, %v1344
        %v1346 = vrot.slane %v1225, 1
        %v1347 = vsel %vm1041, %v1344, %v1346
        %v1348 = vrot.slane %v1226, 1
        %v1349 = vrot.slane %v1227, 1
        %v1350 = vsel %vm1041, %v1348, %v1349
        %v1351 = vrot.slane %v1228, 1
        %v1352 = vsel %vm1041, %v1349, %v1351
        %v1353 = vrot.slane %v1229, 1
        %v1354 = vrot.slane %v1230, 1
        %v1355 = vsel %vm1041, %v1353, %v1354
        %v1356 = vrot.slane %v1231, 1
        %v1357 = vsel %vm1041, %v1354, %v1356
        %v1358 = vrot.slane %v1232, 1
        %v1359 = vrot.slane %v1233, 1
        %v1360 = vsel %vm1041, %v1358, %v1359
        %v1361 = vrot.slane %v1234, 1
        %v1362 = vsel %vm1041, %v1359, %v1361
        %v1395 = vadd.f32 %v1154, %v1285
        %v1396 = vadd.f32 %v1155, %v1287
        %v1397 = vadd.f32 %v1156, %v1290
        %v1398 = vadd.f32 %v1157, %v1292
        %v1399 = vadd.f32 %v1158, %v1295
        %v1400 = vadd.f32 %v1159, %v1297
        %v1401 = vadd.f32 %v1160, %v1300
        %v1402 = vadd.f32 %v1161, %v1302
        %v1403 = vadd.f32 %v1162, %v1305
        %v1404 = vadd.f32 %v1163, %v1307
        %v1405 = vadd.f32 %v1164, %v1310
        %v1406 = vadd.f32 %v1165, %v1312
        %v1407 = vadd.f32 %v1166, %v1315
        %v1408 = vadd.f32 %v1167, %v1317
        %v1409 = vadd.f32 %v1168, %v1320
        %v1410 = vadd.f32 %v1169, %v1322
        %v1411 = vadd.f32 %v1170, %v1325
        %v1412 = vadd.f32 %v1171, %v1327
        %v1413 = vadd.f32 %v1172, %v1330
        %v1414 = vadd.f32 %v1173, %v1332
        %v1415 = vadd.f32 %v1174, %v1335
        %v1416 = vadd.f32 %v1175, %v1337
        %v1417 = vadd.f32 %v1176, %v1340
        %v1418 = vadd.f32 %v1177, %v1342
        %v1419 = vadd.f32 %v1178, %v1345
        %v1420 = vadd.f32 %v1179, %v1347
        %v1421 = vadd.f32 %v1180, %v1350
        %v1422 = vadd.f32 %v1181, %v1352
        %v1423 = vadd.f32 %v1182, %v1355
        %v1424 = vadd.f32 %v1183, %v1357
        %v1425 = vadd.f32 %v1184, %v1360
        %v1426 = vadd.f32 %v1185, %v1362
        %v1427 = vperm.slane %v479, 7
        %v1428 = vmul.f32 %v418, %v1427
        %v1429 = vmul.f32 %v419, %v1427
        %v1430 = vmul.f32 %v420, %v1427
        %v1431 = vmul.f32 %v421, %v1427
        %v1432 = vmul.f32 %v422, %v1427
        %v1433 = vmul.f32 %v423, %v1427
        %v1434 = vmul.f32 %v424, %v1427
        %v1435 = vmul.f32 %v425, %v1427
        %v1436 = vmul.f32 %v426, %v1427
        %v1437 = vmul.f32 %v427, %v1427
        %v1438 = vmul.f32 %v428, %v1427
        %v1439 = vmul.f32 %v429, %v1427
        %v1440 = vmul.f32 %v430, %v1427
        %v1441 = vmul.f32 %v431, %v1427
        %v1442 = vmul.f32 %v432, %v1427
        %v1443 = vmul.f32 %v433, %v1427
        %v1444 = vmul.f32 %v434, %v1427
        %v1445 = vmul.f32 %v435, %v1427
        %v1446 = vmul.f32 %v436, %v1427
        %v1447 = vmul.f32 %v437, %v1427
        %v1448 = vmul.f32 %v438, %v1427
        %v1449 = vmul.f32 %v439, %v1427
        %v1450 = vmul.f32 %v440, %v1427
        %v1451 = vmul.f32 %v441, %v1427
        %v1452 = vmul.f32 %v442, %v1427
        %v1453 = vmul.f32 %v443, %v1427
        %v1454 = vmul.f32 %v444, %v1427
        %v1455 = vmul.f32 %v445, %v1427
        %v1456 = vmul.f32 %v446, %v1427
        %v1457 = vmul.f32 %v447, %v1427
        %v1458 = vmul.f32 %v448, %v1427
        %v1459 = vmul.f32 %v449, %v1427
        %v1460 = vmul.f32 %v450, %v1427
        %v1461 = vmul.f32 %v451, %v1427
        %v1462 = vmul.f32 %v452, %v1427
        %v1463 = vmul.f32 %v453, %v1427
        %v1464 = vmul.f32 %v454, %v1427
        %v1465 = vmul.f32 %v455, %v1427
        %v1466 = vmul.f32 %v456, %v1427
        %v1467 = vmul.f32 %v457, %v1427
        %v1468 = vmul.f32 %v458, %v1427
        %v1469 = vmul.f32 %v459, %v1427
        %v1470 = vmul.f32 %v460, %v1427
        %v1471 = vmul.f32 %v461, %v1427
        %v1472 = vmul.f32 %v462, %v1427
        %v1473 = vmul.f32 %v463, %v1427
        %v1474 = vmul.f32 %v464, %v1427
        %v1475 = vmul.f32 %v465, %v1427
        %v1524 = vrot.slane %v1428, 1
        %v1525 = vrot.slane %v1429, 1
        %v1526 = vsel %vm1041, %v1524, %v1525
        %v1527 = vrot.slane %v1430, 1
        %v1528 = vsel %vm1041, %v1525, %v1527
        %v1529 = vrot.slane %v1431, 1
        %v1530 = vrot.slane %v1432, 1
        %v1531 = vsel %vm1041, %v1529, %v1530
        %v1532 = vrot.slane %v1433, 1
        %v1533 = vsel %vm1041, %v1530, %v1532
        %v1534 = vrot.slane %v1434, 1
        %v1535 = vrot.slane %v1435, 1
        %v1536 = vsel %vm1041, %v1534, %v1535
        %v1537 = vrot.slane %v1436, 1
        %v1538 = vsel %vm1041, %v1535, %v1537
        %v1539 = vrot.slane %v1437, 1
        %v1540 = vrot.slane %v1438, 1
        %v1541 = vsel %vm1041, %v1539, %v1540
        %v1542 = vrot.slane %v1439, 1
        %v1543 = vsel %vm1041, %v1540, %v1542
        %v1544 = vrot.slane %v1440, 1
        %v1545 = vrot.slane %v1441, 1
        %v1546 = vsel %vm1041, %v1544, %v1545
        %v1547 = vrot.slane %v1442, 1
        %v1548 = vsel %vm1041, %v1545, %v1547
        %v1549 = vrot.slane %v1443, 1
        %v1550 = vrot.slane %v1444, 1
        %v1551 = vsel %vm1041, %v1549, %v1550
        %v1552 = vrot.slane %v1445, 1
        %v1553 = vsel %vm1041, %v1550, %v1552
        %v1554 = vrot.slane %v1446, 1
        %v1555 = vrot.slane %v1447, 1
        %v1556 = vsel %vm1041, %v1554, %v1555
        %v1557 = vrot.slane %v1448, 1
        %v1558 = vsel %vm1041, %v1555, %v1557
        %v1559 = vrot.slane %v1449, 1
        %v1560 = vrot.slane %v1450, 1
        %v1561 = vsel %vm1041, %v1559, %v1560
        %v1562 = vrot.slane %v1451, 1
        %v1563 = vsel %vm1041, %v1560, %v1562
        %v1564 = vrot.slane %v1452, 1
        %v1565 = vrot.slane %v1453, 1
        %v1566 = vsel %vm1041, %v1564, %v1565
        %v1567 = vrot.slane %v1454, 1
        %v1568 = vsel %vm1041, %v1565, %v1567
        %v1569 = vrot.slane %v1455, 1
        %v1570 = vrot.slane %v1456, 1
        %v1571 = vsel %vm1041, %v1569, %v1570
        %v1572 = vrot.slane %v1457, 1
        %v1573 = vsel %vm1041, %v1570, %v1572
        %v1574 = vrot.slane %v1458, 1
        %v1575 = vrot.slane %v1459, 1
        %v1576 = vsel %vm1041, %v1574, %v1575
        %v1577 = vrot.slane %v1460, 1
        %v1578 = vsel %vm1041, %v1575, %v1577
        %v1579 = vrot.slane %v1461, 1
        %v1580 = vrot.slane %v1462, 1
        %v1581 = vsel %vm1041, %v1579, %v1580
        %v1582 = vrot.slane %v1463, 1
        %v1583 = vsel %vm1041, %v1580, %v1582
        %v1584 = vrot.slane %v1464, 1
        %v1585 = vrot.slane %v1465, 1
        %v1586 = vsel %vm1041, %v1584, %v1585
        %v1587 = vrot.slane %v1466, 1
        %v1588 = vsel %vm1041, %v1585, %v1587
        %v1589 = vrot.slane %v1467, 1
        %v1590 = vrot.slane %v1468, 1
        %v1591 = vsel %vm1041, %v1589, %v1590
        %v1592 = vrot.slane %v1469, 1
        %v1593 = vsel %vm1041, %v1590, %v1592
        %v1594 = vrot.slane %v1470, 1
        %v1595 = vrot.slane %v1471, 1
        %v1596 = vsel %vm1041, %v1594, %v1595
        %v1597 = vrot.slane %v1472, 1
        %v1598 = vsel %vm1041, %v1595, %v1597
        %v1599 = vrot.slane %v1473, 1
        %v1600 = vrot.slane %v1474, 1
        %v1601 = vsel %vm1041, %v1599, %v1600
        %v1602 = vrot.slane %v1475, 1
        %v1603 = vsel %vm1041, %v1600, %v1602
        %v1636 = vadd.f32 %v1395, %v1526
        %v1637 = vadd.f32 %v1396, %v1528
        %v1638 = vadd.f32 %v1397, %v1531
        %v1639 = vadd.f32 %v1398, %v1533
        %v1640 = vadd.f32 %v1399, %v1536
        %v1641 = vadd.f32 %v1400, %v1538
        %v1642 = vadd.f32 %v1401, %v1541
        %v1643 = vadd.f32 %v1402, %v1543
        %v1644 = vadd.f32 %v1403, %v1546
        %v1645 = vadd.f32 %v1404, %v1548
        %v1646 = vadd.f32 %v1405, %v1551
        %v1647 = vadd.f32 %v1406, %v1553
        %v1648 = vadd.f32 %v1407, %v1556
        %v1649 = vadd.f32 %v1408, %v1558
        %v1650 = vadd.f32 %v1409, %v1561
        %v1651 = vadd.f32 %v1410, %v1563
        %v1652 = vadd.f32 %v1411, %v1566
        %v1653 = vadd.f32 %v1412, %v1568
        %v1654 = vadd.f32 %v1413, %v1571
        %v1655 = vadd.f32 %v1414, %v1573
        %v1656 = vadd.f32 %v1415, %v1576
        %v1657 = vadd.f32 %v1416, %v1578
        %v1658 = vadd.f32 %v1417, %v1581
        %v1659 = vadd.f32 %v1418, %v1583
        %v1660 = vadd.f32 %v1419, %v1586
        %v1661 = vadd.f32 %v1420, %v1588
        %v1662 = vadd.f32 %v1421, %v1591
        %v1663 = vadd.f32 %v1422, %v1593
        %v1664 = vadd.f32 %v1423, %v1596
        %v1665 = vadd.f32 %v1424, %v1598
        %v1666 = vadd.f32 %v1425, %v1601
        %v1667 = vadd.f32 %v1426, %v1603
        %v1668 = vperm.slane %v480, 6
        %v1669 = vmul.f32 %v421, %v1668
        %v1670 = vmul.f32 %v422, %v1668
        %v1671 = vmul.f32 %v423, %v1668
        %v1672 = vmul.f32 %v424, %v1668
        %v1673 = vmul.f32 %v425, %v1668
        %v1674 = vmul.f32 %v426, %v1668
        %v1675 = vmul.f32 %v427, %v1668
        %v1676 = vmul.f32 %v428, %v1668
        %v1677 = vmul.f32 %v429, %v1668
        %v1678 = vmul.f32 %v430, %v1668
        %v1679 = vmul.f32 %v431, %v1668
        %v1680 = vmul.f32 %v432, %v1668
        %v1681 = vmul.f32 %v433, %v1668
        %v1682 = vmul.f32 %v434, %v1668
        %v1683 = vmul.f32 %v435, %v1668
        %v1684 = vmul.f32 %v436, %v1668
        %v1685 = vmul.f32 %v437, %v1668
        %v1686 = vmul.f32 %v438, %v1668
        %v1687 = vmul.f32 %v439, %v1668
        %v1688 = vmul.f32 %v440, %v1668
        %v1689 = vmul.f32 %v441, %v1668
        %v1690 = vmul.f32 %v442, %v1668
        %v1691 = vmul.f32 %v443, %v1668
        %v1692 = vmul.f32 %v444, %v1668
        %v1693 = vmul.f32 %v445, %v1668
        %v1694 = vmul.f32 %v446, %v1668
        %v1695 = vmul.f32 %v447, %v1668
        %v1696 = vmul.f32 %v448, %v1668
        %v1697 = vmul.f32 %v449, %v1668
        %v1698 = vmul.f32 %v450, %v1668
        %v1699 = vmul.f32 %v451, %v1668
        %v1700 = vmul.f32 %v452, %v1668
        %v1701 = vmul.f32 %v453, %v1668
        %v1702 = vmul.f32 %v454, %v1668
        %v1703 = vmul.f32 %v455, %v1668
        %v1704 = vmul.f32 %v456, %v1668
        %v1705 = vmul.f32 %v457, %v1668
        %v1706 = vmul.f32 %v458, %v1668
        %v1707 = vmul.f32 %v459, %v1668
        %v1708 = vmul.f32 %v460, %v1668
        %v1709 = vmul.f32 %v461, %v1668
        %v1710 = vmul.f32 %v462, %v1668
        %v1711 = vmul.f32 %v463, %v1668
        %v1712 = vmul.f32 %v464, %v1668
        %v1713 = vmul.f32 %v465, %v1668
        %v1714 = vmul.f32 %v466, %v1668
        %v1715 = vmul.f32 %v467, %v1668
        %v1716 = vmul.f32 %v468, %v1668
        %v1765 = vrot.slane %v1669, 1
        %v1766 = vrot.slane %v1670, 1
        %v1767 = vsel %vm1041, %v1765, %v1766
        %v1768 = vrot.slane %v1671, 1
        %v1769 = vsel %vm1041, %v1766, %v1768
        %v1770 = vrot.slane %v1672, 1
        %v1771 = vrot.slane %v1673, 1
        %v1772 = vsel %vm1041, %v1770, %v1771
        %v1773 = vrot.slane %v1674, 1
        %v1774 = vsel %vm1041, %v1771, %v1773
        %v1775 = vrot.slane %v1675, 1
        %v1776 = vrot.slane %v1676, 1
        %v1777 = vsel %vm1041, %v1775, %v1776
        %v1778 = vrot.slane %v1677, 1
        %v1779 = vsel %vm1041, %v1776, %v1778
        %v1780 = vrot.slane %v1678, 1
        %v1781 = vrot.slane %v1679, 1
        %v1782 = vsel %vm1041, %v1780, %v1781
        %v1783 = vrot.slane %v1680, 1
        %v1784 = vsel %vm1041, %v1781, %v1783
        %v1785 = vrot.slane %v1681, 1
        %v1786 = vrot.slane %v1682, 1
        %v1787 = vsel %vm1041, %v1785, %v1786
        %v1788 = vrot.slane %v1683, 1
        %v1789 = vsel %vm1041, %v1786, %v1788
        %v1790 = vrot.slane %v1684, 1
        %v1791 = vrot.slane %v1685, 1
        %v1792 = vsel %vm1041, %v1790, %v1791
        %v1793 = vrot.slane %v1686, 1
        %v1794 = vsel %vm1041, %v1791, %v1793
        %v1795 = vrot.slane %v1687, 1
        %v1796 = vrot.slane %v1688, 1
        %v1797 = vsel %vm1041, %v1795, %v1796
        %v1798 = vrot.slane %v1689, 1
        %v1799 = vsel %vm1041, %v1796, %v1798
        %v1800 = vrot.slane %v1690, 1
        %v1801 = vrot.slane %v1691, 1
        %v1802 = vsel %vm1041, %v1800, %v1801
        %v1803 = vrot.slane %v1692, 1
        %v1804 = vsel %vm1041, %v1801, %v1803
        %v1805 = vrot.slane %v1693, 1
        %v1806 = vrot.slane %v1694, 1
        %v1807 = vsel %vm1041, %v1805, %v1806
        %v1808 = vrot.slane %v1695, 1
        %v1809 = vsel %vm1041, %v1806, %v1808
        %v1810 = vrot.slane %v1696, 1
        %v1811 = vrot.slane %v1697, 1
        %v1812 = vsel %vm1041, %v1810, %v1811
        %v1813 = vrot.slane %v1698, 1
        %v1814 = vsel %vm1041, %v1811, %v1813
        %v1815 = vrot.slane %v1699, 1
        %v1816 = vrot.slane %v1700, 1
        %v1817 = vsel %vm1041, %v1815, %v1816
        %v1818 = vrot.slane %v1701, 1
        %v1819 = vsel %vm1041, %v1816, %v1818
        %v1820 = vrot.slane %v1702, 1
        %v1821 = vrot.slane %v1703, 1
        %v1822 = vsel %vm1041, %v1820, %v1821
        %v1823 = vrot.slane %v1704, 1
        %v1824 = vsel %vm1041, %v1821, %v1823
        %v1825 = vrot.slane %v1705, 1
        %v1826 = vrot.slane %v1706, 1
        %v1827 = vsel %vm1041, %v1825, %v1826
        %v1828 = vrot.slane %v1707, 1
        %v1829 = vsel %vm1041, %v1826, %v1828
        %v1830 = vrot.slane %v1708, 1
        %v1831 = vrot.slane %v1709, 1
        %v1832 = vsel %vm1041, %v1830, %v1831
        %v1833 = vrot.slane %v1710, 1
        %v1834 = vsel %vm1041, %v1831, %v1833
        %v1835 = vrot.slane %v1711, 1
        %v1836 = vrot.slane %v1712, 1
        %v1837 = vsel %vm1041, %v1835, %v1836
        %v1838 = vrot.slane %v1713, 1
        %v1839 = vsel %vm1041, %v1836, %v1838
        %v1840 = vrot.slane %v1714, 1
        %v1841 = vrot.slane %v1715, 1
        %v1842 = vsel %vm1041, %v1840, %v1841
        %v1843 = vrot.slane %v1716, 1
        %v1844 = vsel %vm1041, %v1841, %v1843
        %v1877 = vadd.f32 %v1636, %v1767
        %v1878 = vadd.f32 %v1637, %v1769
        %v1879 = vadd.f32 %v1638, %v1772
        %v1880 = vadd.f32 %v1639, %v1774
        %v1881 = vadd.f32 %v1640, %v1777
        %v1882 = vadd.f32 %v1641, %v1779
        %v1883 = vadd.f32 %v1642, %v1782
        %v1884 = vadd.f32 %v1643, %v1784
        %v1885 = vadd.f32 %v1644, %v1787
        %v1886 = vadd.f32 %v1645, %v1789
        %v1887 = vadd.f32 %v1646, %v1792
        %v1888 = vadd.f32 %v1647, %v1794
        %v1889 = vadd.f32 %v1648, %v1797
        %v1890 = vadd.f32 %v1649, %v1799
        %v1891 = vadd.f32 %v1650, %v1802
        %v1892 = vadd.f32 %v1651, %v1804
        %v1893 = vadd.f32 %v1652, %v1807
        %v1894 = vadd.f32 %v1653, %v1809
        %v1895 = vadd.f32 %v1654, %v1812
        %v1896 = vadd.f32 %v1655, %v1814
        %v1897 = vadd.f32 %v1656, %v1817
        %v1898 = vadd.f32 %v1657, %v1819
        %v1899 = vadd.f32 %v1658, %v1822
        %v1900 = vadd.f32 %v1659, %v1824
        %v1901 = vadd.f32 %v1660, %v1827
        %v1902 = vadd.f32 %v1661, %v1829
        %v1903 = vadd.f32 %v1662, %v1832
        %v1904 = vadd.f32 %v1663, %v1834
        %v1905 = vadd.f32 %v1664, %v1837
        %v1906 = vadd.f32 %v1665, %v1839
        %v1907 = vadd.f32 %v1666, %v1842
        %v1908 = vadd.f32 %v1667, %v1844
        %v1909 = vperm.slane %v481, 5
        %v1910 = vmul.f32 %v424, %v1909
        %v1911 = vmul.f32 %v425, %v1909
        %v1912 = vmul.f32 %v426, %v1909
        %v1913 = vmul.f32 %v427, %v1909
        %v1914 = vmul.f32 %v428, %v1909
        %v1915 = vmul.f32 %v429, %v1909
        %v1916 = vmul.f32 %v430, %v1909
        %v1917 = vmul.f32 %v431, %v1909
        %v1918 = vmul.f32 %v432, %v1909
        %v1919 = vmul.f32 %v433, %v1909
        %v1920 = vmul.f32 %v434, %v1909
        %v1921 = vmul.f32 %v435, %v1909
        %v1922 = vmul.f32 %v436, %v1909
        %v1923 = vmul.f32 %v437, %v1909
        %v1924 = vmul.f32 %v438, %v1909
        %v1925 = vmul.f32 %v439, %v1909
        %v1926 = vmul.f32 %v440, %v1909
        %v1927 = vmul.f32 %v441, %v1909
        %v1928 = vmul.f32 %v442, %v1909
        %v1929 = vmul.f32 %v443, %v1909
        %v1930 = vmul.f32 %v444, %v1909
        %v1931 = vmul.f32 %v445, %v1909
        %v1932 = vmul.f32 %v446, %v1909
        %v1933 = vmul.f32 %v447, %v1909
        %v1934 = vmul.f32 %v448, %v1909
        %v1935 = vmul.f32 %v449, %v1909
        %v1936 = vmul.f32 %v450, %v1909
        %v1937 = vmul.f32 %v451, %v1909
        %v1938 = vmul.f32 %v452, %v1909
        %v1939 = vmul.f32 %v453, %v1909
        %v1940 = vmul.f32 %v454, %v1909
        %v1941 = vmul.f32 %v455, %v1909
        %v1942 = vmul.f32 %v456, %v1909
        %v1943 = vmul.f32 %v457, %v1909
        %v1944 = vmul.f32 %v458, %v1909
        %v1945 = vmul.f32 %v459, %v1909
        %v1946 = vmul.f32 %v460, %v1909
        %v1947 = vmul.f32 %v461, %v1909
        %v1948 = vmul.f32 %v462, %v1909
        %v1949 = vmul.f32 %v463, %v1909
        %v1950 = vmul.f32 %v464, %v1909
        %v1951 = vmul.f32 %v465, %v1909
        %v1952 = vmul.f32 %v466, %v1909
        %v1953 = vmul.f32 %v467, %v1909
        %v1954 = vmul.f32 %v468, %v1909
        %v1955 = vmul.f32 %v469, %v1909
        %v1956 = vmul.f32 %v470, %v1909
        %v1957 = vmul.f32 %v471, %v1909
        %v2006 = vrot.slane %v1910, 1
        %v2007 = vrot.slane %v1911, 1
        %v2008 = vsel %vm1041, %v2006, %v2007
        %v2009 = vrot.slane %v1912, 1
        %v2010 = vsel %vm1041, %v2007, %v2009
        %v2011 = vrot.slane %v1913, 1
        %v2012 = vrot.slane %v1914, 1
        %v2013 = vsel %vm1041, %v2011, %v2012
        %v2014 = vrot.slane %v1915, 1
        %v2015 = vsel %vm1041, %v2012, %v2014
        %v2016 = vrot.slane %v1916, 1
        %v2017 = vrot.slane %v1917, 1
        %v2018 = vsel %vm1041, %v2016, %v2017
        %v2019 = vrot.slane %v1918, 1
        %v2020 = vsel %vm1041, %v2017, %v2019
        %v2021 = vrot.slane %v1919, 1
        %v2022 = vrot.slane %v1920, 1
        %v2023 = vsel %vm1041, %v2021, %v2022
        %v2024 = vrot.slane %v1921, 1
        %v2025 = vsel %vm1041, %v2022, %v2024
        %v2026 = vrot.slane %v1922, 1
        %v2027 = vrot.slane %v1923, 1
        %v2028 = vsel %vm1041, %v2026, %v2027
        %v2029 = vrot.slane %v1924, 1
        %v2030 = vsel %vm1041, %v2027, %v2029
        %v2031 = vrot.slane %v1925, 1
        %v2032 = vrot.slane %v1926, 1
        %v2033 = vsel %vm1041, %v2031, %v2032
        %v2034 = vrot.slane %v1927, 1
        %v2035 = vsel %vm1041, %v2032, %v2034
        %v2036 = vrot.slane %v1928, 1
        %v2037 = vrot.slane %v1929, 1
        %v2038 = vsel %vm1041, %v2036, %v2037
        %v2039 = vrot.slane %v1930, 1
        %v2040 = vsel %vm1041, %v2037, %v2039
        %v2041 = vrot.slane %v1931, 1
        %v2042 = vrot.slane %v1932, 1
        %v2043 = vsel %vm1041, %v2041, %v2042
        %v2044 = vrot.slane %v1933, 1
        %v2045 = vsel %vm1041, %v2042, %v2044
        %v2046 = vrot.slane %v1934, 1
        %v2047 = vrot.slane %v1935, 1
        %v2048 = vsel %vm1041, %v2046, %v2047
        %v2049 = vrot.slane %v1936, 1
        %v2050 = vsel %vm1041, %v2047, %v2049
        %v2051 = vrot.slane %v1937, 1
        %v2052 = vrot.slane %v1938, 1
        %v2053 = vsel %vm1041, %v2051, %v2052
        %v2054 = vrot.slane %v1939, 1
        %v2055 = vsel %vm1041, %v2052, %v2054
        %v2056 = vrot.slane %v1940, 1
        %v2057 = vrot.slane %v1941, 1
        %v2058 = vsel %vm1041, %v2056, %v2057
        %v2059 = vrot.slane %v1942, 1
        %v2060 = vsel %vm1041, %v2057, %v2059
        %v2061 = vrot.slane %v1943, 1
        %v2062 = vrot.slane %v1944, 1
        %v2063 = vsel %vm1041, %v2061, %v2062
        %v2064 = vrot.slane %v1945, 1
        %v2065 = vsel %vm1041, %v2062, %v2064
        %v2066 = vrot.slane %v1946, 1
        %v2067 = vrot.slane %v1947, 1
        %v2068 = vsel %vm1041, %v2066, %v2067
        %v2069 = vrot.slane %v1948, 1
        %v2070 = vsel %vm1041, %v2067, %v2069
        %v2071 = vrot.slane %v1949, 1
        %v2072 = vrot.slane %v1950, 1
        %v2073 = vsel %vm1041, %v2071, %v2072
        %v2074 = vrot.slane %v1951, 1
        %v2075 = vsel %vm1041, %v2072, %v2074
        %v2076 = vrot.slane %v1952, 1
        %v2077 = vrot.slane %v1953, 1
        %v2078 = vsel %vm1041, %v2076, %v2077
        %v2079 = vrot.slane %v1954, 1
        %v2080 = vsel %vm1041, %v2077, %v2079
        %v2081 = vrot.slane %v1955, 1
        %v2082 = vrot.slane %v1956, 1
        %v2083 = vsel %vm1041, %v2081, %v2082
        %v2084 = vrot.slane %v1957, 1
        %v2085 = vsel %vm1041, %v2082, %v2084
        %v2118 = vadd.f32 %v1877, %v2008
        %v2119 = vadd.f32 %v1878, %v2010
        %v2120 = vadd.f32 %v1879, %v2013
        %v2121 = vadd.f32 %v1880, %v2015
        %v2122 = vadd.f32 %v1881, %v2018
        %v2123 = vadd.f32 %v1882, %v2020
        %v2124 = vadd.f32 %v1883, %v2023
        %v2125 = vadd.f32 %v1884, %v2025
        %v2126 = vadd.f32 %v1885, %v2028
        %v2127 = vadd.f32 %v1886, %v2030
        %v2128 = vadd.f32 %v1887, %v2033
        %v2129 = vadd.f32 %v1888, %v2035
        %v2130 = vadd.f32 %v1889, %v2038
        %v2131 = vadd.f32 %v1890, %v2040
        %v2132 = vadd.f32 %v1891, %v2043
        %v2133 = vadd.f32 %v1892, %v2045
        %v2134 = vadd.f32 %v1893, %v2048
        %v2135 = vadd.f32 %v1894, %v2050
        %v2136 = vadd.f32 %v1895, %v2053
        %v2137 = vadd.f32 %v1896, %v2055
        %v2138 = vadd.f32 %v1897, %v2058
        %v2139 = vadd.f32 %v1898, %v2060
        %v2140 = vadd.f32 %v1899, %v2063
        %v2141 = vadd.f32 %v1900, %v2065
        %v2142 = vadd.f32 %v1901, %v2068
        %v2143 = vadd.f32 %v1902, %v2070
        %v2144 = vadd.f32 %v1903, %v2073
        %v2145 = vadd.f32 %v1904, %v2075
        %v2146 = vadd.f32 %v1905, %v2078
        %v2147 = vadd.f32 %v1906, %v2080
        %v2148 = vadd.f32 %v1907, %v2083
        %v2149 = vadd.f32 %v1908, %v2085
        %v2150 = vperm.slane %v482, 4
        %v2151 = vmul.f32 %v427, %v2150
        %v2152 = vmul.f32 %v428, %v2150
        %v2153 = vmul.f32 %v429, %v2150
        %v2154 = vmul.f32 %v430, %v2150
        %v2155 = vmul.f32 %v431, %v2150
        %v2156 = vmul.f32 %v432, %v2150
        %v2157 = vmul.f32 %v433, %v2150
        %v2158 = vmul.f32 %v434, %v2150
        %v2159 = vmul.f32 %v435, %v2150
        %v2160 = vmul.f32 %v436, %v2150
        %v2161 = vmul.f32 %v437, %v2150
        %v2162 = vmul.f32 %v438, %v2150
        %v2163 = vmul.f32 %v439, %v2150
        %v2164 = vmul.f32 %v440, %v2150
        %v2165 = vmul.f32 %v441, %v2150
        %v2166 = vmul.f32 %v442, %v2150
        %v2167 = vmul.f32 %v443, %v2150
        %v2168 = vmul.f32 %v444, %v2150
        %v2169 = vmul.f32 %v445, %v2150
        %v2170 = vmul.f32 %v446, %v2150
        %v2171 = vmul.f32 %v447, %v2150
        %v2172 = vmul.f32 %v448, %v2150
        %v2173 = vmul.f32 %v449, %v2150
        %v2174 = vmul.f32 %v450, %v2150
        %v2175 = vmul.f32 %v451, %v2150
        %v2176 = vmul.f32 %v452, %v2150
        %v2177 = vmul.f32 %v453, %v2150
        %v2178 = vmul.f32 %v454, %v2150
        %v2179 = vmul.f32 %v455, %v2150
        %v2180 = vmul.f32 %v456, %v2150
        %v2181 = vmul.f32 %v457, %v2150
        %v2182 = vmul.f32 %v458, %v2150
        %v2183 = vmul.f32 %v459, %v2150
        %v2184 = vmul.f32 %v460, %v2150
        %v2185 = vmul.f32 %v461, %v2150
        %v2186 = vmul.f32 %v462, %v2150
        %v2187 = vmul.f32 %v463, %v2150
        %v2188 = vmul.f32 %v464, %v2150
        %v2189 = vmul.f32 %v465, %v2150
        %v2190 = vmul.f32 %v466, %v2150
        %v2191 = vmul.f32 %v467, %v2150
        %v2192 = vmul.f32 %v468, %v2150
        %v2193 = vmul.f32 %v469, %v2150
        %v2194 = vmul.f32 %v470, %v2150
        %v2195 = vmul.f32 %v471, %v2150
        %v2196 = vmul.f32 %v472, %v2150
        %v2197 = vmul.f32 %v473, %v2150
        %v2198 = vmul.f32 %v474, %v2150
        %v2247 = vrot.slane %v2151, 1
        %v2248 = vrot.slane %v2152, 1
        %v2249 = vsel %vm1041, %v2247, %v2248
        %v2250 = vrot.slane %v2153, 1
        %v2251 = vsel %vm1041, %v2248, %v2250
        %v2252 = vrot.slane %v2154, 1
        %v2253 = vrot.slane %v2155, 1
        %v2254 = vsel %vm1041, %v2252, %v2253
        %v2255 = vrot.slane %v2156, 1
        %v2256 = vsel %vm1041, %v2253, %v2255
        %v2257 = vrot.slane %v2157, 1
        %v2258 = vrot.slane %v2158, 1
        %v2259 = vsel %vm1041, %v2257, %v2258
        %v2260 = vrot.slane %v2159, 1
        %v2261 = vsel %vm1041, %v2258, %v2260
        %v2262 = vrot.slane %v2160, 1
        %v2263 = vrot.slane %v2161, 1
        %v2264 = vsel %vm1041, %v2262, %v2263
        %v2265 = vrot.slane %v2162, 1
        %v2266 = vsel %vm1041, %v2263, %v2265
        %v2267 = vrot.slane %v2163, 1
        %v2268 = vrot.slane %v2164, 1
        %v2269 = vsel %vm1041, %v2267, %v2268
        %v2270 = vrot.slane %v2165, 1
        %v2271 = vsel %vm1041, %v2268, %v2270
        %v2272 = vrot.slane %v2166, 1
        %v2273 = vrot.slane %v2167, 1
        %v2274 = vsel %vm1041, %v2272, %v2273
        %v2275 = vrot.slane %v2168, 1
        %v2276 = vsel %vm1041, %v2273, %v2275
        %v2277 = vrot.slane %v2169, 1
        %v2278 = vrot.slane %v2170, 1
        %v2279 = vsel %vm1041, %v2277, %v2278
        %v2280 = vrot.slane %v2171, 1
        %v2281 = vsel %vm1041, %v2278, %v2280
        %v2282 = vrot.slane %v2172, 1
        %v2283 = vrot.slane %v2173, 1
        %v2284 = vsel %vm1041, %v2282, %v2283
        %v2285 = vrot.slane %v2174, 1
        %v2286 = vsel %vm1041, %v2283, %v2285
        %v2287 = vrot.slane %v2175, 1
        %v2288 = vrot.slane %v2176, 1
        %v2289 = vsel %vm1041, %v2287, %v2288
        %v2290 = vrot.slane %v2177, 1
        %v2291 = vsel %vm1041, %v2288, %v2290
        %v2292 = vrot.slane %v2178, 1
        %v2293 = vrot.slane %v2179, 1
        %v2294 = vsel %vm1041, %v2292, %v2293
        %v2295 = vrot.slane %v2180, 1
        %v2296 = vsel %vm1041, %v2293, %v2295
        %v2297 = vrot.slane %v2181, 1
        %v2298 = vrot.slane %v2182, 1
        %v2299 = vsel %vm1041, %v2297, %v2298
        %v2300 = vrot.slane %v2183, 1
        %v2301 = vsel %vm1041, %v2298, %v2300
        %v2302 = vrot.slane %v2184, 1
        %v2303 = vrot.slane %v2185, 1
        %v2304 = vsel %vm1041, %v2302, %v2303
        %v2305 = vrot.slane %v2186, 1
        %v2306 = vsel %vm1041, %v2303, %v2305
        %v2307 = vrot.slane %v2187, 1
        %v2308 = vrot.slane %v2188, 1
        %v2309 = vsel %vm1041, %v2307, %v2308
        %v2310 = vrot.slane %v2189, 1
        %v2311 = vsel %vm1041, %v2308, %v2310
        %v2312 = vrot.slane %v2190, 1
        %v2313 = vrot.slane %v2191, 1
        %v2314 = vsel %vm1041, %v2312, %v2313
        %v2315 = vrot.slane %v2192, 1
        %v2316 = vsel %vm1041, %v2313, %v2315
        %v2317 = vrot.slane %v2193, 1
        %v2318 = vrot.slane %v2194, 1
        %v2319 = vsel %vm1041, %v2317, %v2318
        %v2320 = vrot.slane %v2195, 1
        %v2321 = vsel %vm1041, %v2318, %v2320
        %v2322 = vrot.slane %v2196, 1
        %v2323 = vrot.slane %v2197, 1
        %v2324 = vsel %vm1041, %v2322, %v2323
        %v2325 = vrot.slane %v2198, 1
        %v2326 = vsel %vm1041, %v2323, %v2325
        %v2359 = vadd.f32 %v2118, %v2249
        %v2360 = vadd.f32 %v2119, %v2251
        %v2361 = vadd.f32 %v2120, %v2254
        %v2362 = vadd.f32 %v2121, %v2256
        %v2363 = vadd.f32 %v2122, %v2259
        %v2364 = vadd.f32 %v2123, %v2261
        %v2365 = vadd.f32 %v2124, %v2264
        %v2366 = vadd.f32 %v2125, %v2266
        %v2367 = vadd.f32 %v2126, %v2269
        %v2368 = vadd.f32 %v2127, %v2271
        %v2369 = vadd.f32 %v2128, %v2274
        %v2370 = vadd.f32 %v2129, %v2276
        %v2371 = vadd.f32 %v2130, %v2279
        %v2372 = vadd.f32 %v2131, %v2281
        %v2373 = vadd.f32 %v2132, %v2284
        %v2374 = vadd.f32 %v2133, %v2286
        %v2375 = vadd.f32 %v2134, %v2289
        %v2376 = vadd.f32 %v2135, %v2291
        %v2377 = vadd.f32 %v2136, %v2294
        %v2378 = vadd.f32 %v2137, %v2296
        %v2379 = vadd.f32 %v2138, %v2299
        %v2380 = vadd.f32 %v2139, %v2301
        %v2381 = vadd.f32 %v2140, %v2304
        %v2382 = vadd.f32 %v2141, %v2306
        %v2383 = vadd.f32 %v2142, %v2309
        %v2384 = vadd.f32 %v2143, %v2311
        %v2385 = vadd.f32 %v2144, %v2314
        %v2386 = vadd.f32 %v2145, %v2316
        %v2387 = vadd.f32 %v2146, %v2319
        %v2388 = vadd.f32 %v2147, %v2321
        %v2389 = vadd.f32 %v2148, %v2324
        %v2390 = vadd.f32 %v2149, %v2326
        %v2391 = vperm.slane %v483, 3
        %v2392 = vmul.f32 %v430, %v2391
        %v2393 = vmul.f32 %v431, %v2391
        %v2394 = vmul.f32 %v432, %v2391
        %v2395 = vmul.f32 %v433, %v2391
        %v2396 = vmul.f32 %v434, %v2391
        %v2397 = vmul.f32 %v435, %v2391
        %v2398 = vmul.f32 %v436, %v2391
        %v2399 = vmul.f32 %v437, %v2391
        %v2400 = vmul.f32 %v438, %v2391
        %v2401 = vmul.f32 %v439, %v2391
        %v2402 = vmul.f32 %v440, %v2391
        %v2403 = vmul.f32 %v441, %v2391
        %v2404 = vmul.f32 %v442, %v2391
        %v2405 = vmul.f32 %v443, %v2391
        %v2406 = vmul.f32 %v444, %v2391
        %v2407 = vmul.f32 %v445, %v2391
        %v2408 = vmul.f32 %v446, %v2391
        %v2409 = vmul.f32 %v447, %v2391
        %v2410 = vmul.f32 %v448, %v2391
        %v2411 = vmul.f32 %v449, %v2391
        %v2412 = vmul.f32 %v450, %v2391
        %v2413 = vmul.f32 %v451, %v2391
        %v2414 = vmul.f32 %v452, %v2391
        %v2415 = vmul.f32 %v453, %v2391
        %v2416 = vmul.f32 %v454, %v2391
        %v2417 = vmul.f32 %v455, %v2391
        %v2418 = vmul.f32 %v456, %v2391
        %v2419 = vmul.f32 %v457, %v2391
        %v2420 = vmul.f32 %v458, %v2391
        %v2421 = vmul.f32 %v459, %v2391
        %v2422 = vmul.f32 %v460, %v2391
        %v2423 = vmul.f32 %v461, %v2391
        %v2424 = vmul.f32 %v462, %v2391
        %v2425 = vmul.f32 %v463, %v2391
        %v2426 = vmul.f32 %v464, %v2391
        %v2427 = vmul.f32 %v465, %v2391
        %v2428 = vmul.f32 %v466, %v2391
        %v2429 = vmul.f32 %v467, %v2391
        %v2430 = vmul.f32 %v468, %v2391
        %v2431 = vmul.f32 %v469, %v2391
        %v2432 = vmul.f32 %v470, %v2391
        %v2433 = vmul.f32 %v471, %v2391
        %v2434 = vmul.f32 %v472, %v2391
        %v2435 = vmul.f32 %v473, %v2391
        %v2436 = vmul.f32 %v474, %v2391
        %v2437 = vmul.f32 %v475, %v2391
        %v2438 = vmul.f32 %v476, %v2391
        %v2439 = vmul.f32 %v477, %v2391
        %v2488 = vrot.slane %v2392, 1
        %v2489 = vrot.slane %v2393, 1
        %v2490 = vsel %vm1041, %v2488, %v2489
        %v2491 = vrot.slane %v2394, 1
        %v2492 = vsel %vm1041, %v2489, %v2491
        %v2493 = vrot.slane %v2395, 1
        %v2494 = vrot.slane %v2396, 1
        %v2495 = vsel %vm1041, %v2493, %v2494
        %v2496 = vrot.slane %v2397, 1
        %v2497 = vsel %vm1041, %v2494, %v2496
        %v2498 = vrot.slane %v2398, 1
        %v2499 = vrot.slane %v2399, 1
        %v2500 = vsel %vm1041, %v2498, %v2499
        %v2501 = vrot.slane %v2400, 1
        %v2502 = vsel %vm1041, %v2499, %v2501
        %v2503 = vrot.slane %v2401, 1
        %v2504 = vrot.slane %v2402, 1
        %v2505 = vsel %vm1041, %v2503, %v2504
        %v2506 = vrot.slane %v2403, 1
        %v2507 = vsel %vm1041, %v2504, %v2506
        %v2508 = vrot.slane %v2404, 1
        %v2509 = vrot.slane %v2405, 1
        %v2510 = vsel %vm1041, %v2508, %v2509
        %v2511 = vrot.slane %v2406, 1
        %v2512 = vsel %vm1041, %v2509, %v2511
        %v2513 = vrot.slane %v2407, 1
        %v2514 = vrot.slane %v2408, 1
        %v2515 = vsel %vm1041, %v2513, %v2514
        %v2516 = vrot.slane %v2409, 1
        %v2517 = vsel %vm1041, %v2514, %v2516
        %v2518 = vrot.slane %v2410, 1
        %v2519 = vrot.slane %v2411, 1
        %v2520 = vsel %vm1041, %v2518, %v2519
        %v2521 = vrot.slane %v2412, 1
        %v2522 = vsel %vm1041, %v2519, %v2521
        %v2523 = vrot.slane %v2413, 1
        %v2524 = vrot.slane %v2414, 1
        %v2525 = vsel %vm1041, %v2523, %v2524
        %v2526 = vrot.slane %v2415, 1
        %v2527 = vsel %vm1041, %v2524, %v2526
        %v2528 = vrot.slane %v2416, 1
        %v2529 = vrot.slane %v2417, 1
        %v2530 = vsel %vm1041, %v2528, %v2529
        %v2531 = vrot.slane %v2418, 1
        %v2532 = vsel %vm1041, %v2529, %v2531
        %v2533 = vrot.slane %v2419, 1
        %v2534 = vrot.slane %v2420, 1
        %v2535 = vsel %vm1041, %v2533, %v2534
        %v2536 = vrot.slane %v2421, 1
        %v2537 = vsel %vm1041, %v2534, %v2536
        %v2538 = vrot.slane %v2422, 1
        %v2539 = vrot.slane %v2423, 1
        %v2540 = vsel %vm1041, %v2538, %v2539
        %v2541 = vrot.slane %v2424, 1
        %v2542 = vsel %vm1041, %v2539, %v2541
        %v2543 = vrot.slane %v2425, 1
        %v2544 = vrot.slane %v2426, 1
        %v2545 = vsel %vm1041, %v2543, %v2544
        %v2546 = vrot.slane %v2427, 1
        %v2547 = vsel %vm1041, %v2544, %v2546
        %v2548 = vrot.slane %v2428, 1
        %v2549 = vrot.slane %v2429, 1
        %v2550 = vsel %vm1041, %v2548, %v2549
        %v2551 = vrot.slane %v2430, 1
        %v2552 = vsel %vm1041, %v2549, %v2551
        %v2553 = vrot.slane %v2431, 1
        %v2554 = vrot.slane %v2432, 1
        %v2555 = vsel %vm1041, %v2553, %v2554
        %v2556 = vrot.slane %v2433, 1
        %v2557 = vsel %vm1041, %v2554, %v2556
        %v2558 = vrot.slane %v2434, 1
        %v2559 = vrot.slane %v2435, 1
        %v2560 = vsel %vm1041, %v2558, %v2559
        %v2561 = vrot.slane %v2436, 1
        %v2562 = vsel %vm1041, %v2559, %v2561
        %v2563 = vrot.slane %v2437, 1
        %v2564 = vrot.slane %v2438, 1
        %v2565 = vsel %vm1041, %v2563, %v2564
        %v2566 = vrot.slane %v2439, 1
        %v2567 = vsel %vm1041, %v2564, %v2566
        %v2600 = vadd.f32 %v2359, %v2490
        %v2601 = vadd.f32 %v2360, %v2492
        %v2602 = vadd.f32 %v2361, %v2495
        %v2603 = vadd.f32 %v2362, %v2497
        %v2604 = vadd.f32 %v2363, %v2500
        %v2605 = vadd.f32 %v2364, %v2502
        %v2606 = vadd.f32 %v2365, %v2505
        %v2607 = vadd.f32 %v2366, %v2507
        %v2608 = vadd.f32 %v2367, %v2510
        %v2609 = vadd.f32 %v2368, %v2512
        %v2610 = vadd.f32 %v2369, %v2515
        %v2611 = vadd.f32 %v2370, %v2517
        %v2612 = vadd.f32 %v2371, %v2520
        %v2613 = vadd.f32 %v2372, %v2522
        %v2614 = vadd.f32 %v2373, %v2525
        %v2615 = vadd.f32 %v2374, %v2527
        %v2616 = vadd.f32 %v2375, %v2530
        %v2617 = vadd.f32 %v2376, %v2532
        %v2618 = vadd.f32 %v2377, %v2535
        %v2619 = vadd.f32 %v2378, %v2537
        %v2620 = vadd.f32 %v2379, %v2540
        %v2621 = vadd.f32 %v2380, %v2542
        %v2622 = vadd.f32 %v2381, %v2545
        %v2623 = vadd.f32 %v2382, %v2547
        %v2624 = vadd.f32 %v2383, %v2550
        %v2625 = vadd.f32 %v2384, %v2552
        %v2626 = vadd.f32 %v2385, %v2555
        %v2627 = vadd.f32 %v2386, %v2557
        %v2628 = vadd.f32 %v2387, %v2560
        %v2629 = vadd.f32 %v2388, %v2562
        %v2630 = vadd.f32 %v2389, %v2565
        %v2631 = vadd.f32 %v2390, %v2567
        %v2632 = vperm.slane %v478, 2
        %v2633 = vmul.f32 %v412, %v2632
        %v2634 = vmul.f32 %v413, %v2632
        %v2635 = vmul.f32 %v414, %v2632
        %v2636 = vmul.f32 %v415, %v2632
        %v2637 = vmul.f32 %v416, %v2632
        %v2638 = vmul.f32 %v417, %v2632
        %v2639 = vmul.f32 %v418, %v2632
        %v2640 = vmul.f32 %v419, %v2632
        %v2641 = vmul.f32 %v420, %v2632
        %v2642 = vmul.f32 %v421, %v2632
        %v2643 = vmul.f32 %v422, %v2632
        %v2644 = vmul.f32 %v423, %v2632
        %v2645 = vmul.f32 %v424, %v2632
        %v2646 = vmul.f32 %v425, %v2632
        %v2647 = vmul.f32 %v426, %v2632
        %v2648 = vmul.f32 %v427, %v2632
        %v2649 = vmul.f32 %v428, %v2632
        %v2650 = vmul.f32 %v429, %v2632
        %v2651 = vmul.f32 %v430, %v2632
        %v2652 = vmul.f32 %v431, %v2632
        %v2653 = vmul.f32 %v432, %v2632
        %v2654 = vmul.f32 %v433, %v2632
        %v2655 = vmul.f32 %v434, %v2632
        %v2656 = vmul.f32 %v435, %v2632
        %v2657 = vmul.f32 %v436, %v2632
        %v2658 = vmul.f32 %v437, %v2632
        %v2659 = vmul.f32 %v438, %v2632
        %v2660 = vmul.f32 %v439, %v2632
        %v2661 = vmul.f32 %v440, %v2632
        %v2662 = vmul.f32 %v441, %v2632
        %v2663 = vmul.f32 %v442, %v2632
        %v2664 = vmul.f32 %v443, %v2632
        %v2665 = vmul.f32 %v444, %v2632
        %v2666 = vmul.f32 %v445, %v2632
        %v2667 = vmul.f32 %v446, %v2632
        %v2668 = vmul.f32 %v447, %v2632
        %v2669 = vmul.f32 %v448, %v2632
        %v2670 = vmul.f32 %v449, %v2632
        %v2671 = vmul.f32 %v450, %v2632
        %v2672 = vmul.f32 %v451, %v2632
        %v2673 = vmul.f32 %v452, %v2632
        %v2674 = vmul.f32 %v453, %v2632
        %v2675 = vmul.f32 %v454, %v2632
        %v2676 = vmul.f32 %v455, %v2632
        %v2677 = vmul.f32 %v456, %v2632
        %v2678 = vmul.f32 %v457, %v2632
        %v2679 = vmul.f32 %v458, %v2632
        %v2680 = vmul.f32 %v459, %v2632
        %vm2729 = vcmask 1045504
        %v2730 = vrot.slane %v2633, 2
        %v2731 = vrot.slane %v2634, 2
        %v2732 = vsel %vm2729, %v2730, %v2731
        %v2733 = vrot.slane %v2635, 2
        %v2734 = vsel %vm2729, %v2731, %v2733
        %v2735 = vrot.slane %v2636, 2
        %v2736 = vrot.slane %v2637, 2
        %v2737 = vsel %vm2729, %v2735, %v2736
        %v2738 = vrot.slane %v2638, 2
        %v2739 = vsel %vm2729, %v2736, %v2738
        %v2740 = vrot.slane %v2639, 2
        %v2741 = vrot.slane %v2640, 2
        %v2742 = vsel %vm2729, %v2740, %v2741
        %v2743 = vrot.slane %v2641, 2
        %v2744 = vsel %vm2729, %v2741, %v2743
        %v2745 = vrot.slane %v2642, 2
        %v2746 = vrot.slane %v2643, 2
        %v2747 = vsel %vm2729, %v2745, %v2746
        %v2748 = vrot.slane %v2644, 2
        %v2749 = vsel %vm2729, %v2746, %v2748
        %v2750 = vrot.slane %v2645, 2
        %v2751 = vrot.slane %v2646, 2
        %v2752 = vsel %vm2729, %v2750, %v2751
        %v2753 = vrot.slane %v2647, 2
        %v2754 = vsel %vm2729, %v2751, %v2753
        %v2755 = vrot.slane %v2648, 2
        %v2756 = vrot.slane %v2649, 2
        %v2757 = vsel %vm2729, %v2755, %v2756
        %v2758 = vrot.slane %v2650, 2
        %v2759 = vsel %vm2729, %v2756, %v2758
        %v2760 = vrot.slane %v2651, 2
        %v2761 = vrot.slane %v2652, 2
        %v2762 = vsel %vm2729, %v2760, %v2761
        %v2763 = vrot.slane %v2653, 2
        %v2764 = vsel %vm2729, %v2761, %v2763
        %v2765 = vrot.slane %v2654, 2
        %v2766 = vrot.slane %v2655, 2
        %v2767 = vsel %vm2729, %v2765, %v2766
        %v2768 = vrot.slane %v2656, 2
        %v2769 = vsel %vm2729, %v2766, %v2768
        %v2770 = vrot.slane %v2657, 2
        %v2771 = vrot.slane %v2658, 2
        %v2772 = vsel %vm2729, %v2770, %v2771
        %v2773 = vrot.slane %v2659, 2
        %v2774 = vsel %vm2729, %v2771, %v2773
        %v2775 = vrot.slane %v2660, 2
        %v2776 = vrot.slane %v2661, 2
        %v2777 = vsel %vm2729, %v2775, %v2776
        %v2778 = vrot.slane %v2662, 2
        %v2779 = vsel %vm2729, %v2776, %v2778
        %v2780 = vrot.slane %v2663, 2
        %v2781 = vrot.slane %v2664, 2
        %v2782 = vsel %vm2729, %v2780, %v2781
        %v2783 = vrot.slane %v2665, 2
        %v2784 = vsel %vm2729, %v2781, %v2783
        %v2785 = vrot.slane %v2666, 2
        %v2786 = vrot.slane %v2667, 2
        %v2787 = vsel %vm2729, %v2785, %v2786
        %v2788 = vrot.slane %v2668, 2
        %v2789 = vsel %vm2729, %v2786, %v2788
        %v2790 = vrot.slane %v2669, 2
        %v2791 = vrot.slane %v2670, 2
        %v2792 = vsel %vm2729, %v2790, %v2791
        %v2793 = vrot.slane %v2671, 2
        %v2794 = vsel %vm2729, %v2791, %v2793
        %v2795 = vrot.slane %v2672, 2
        %v2796 = vrot.slane %v2673, 2
        %v2797 = vsel %vm2729, %v2795, %v2796
        %v2798 = vrot.slane %v2674, 2
        %v2799 = vsel %vm2729, %v2796, %v2798
        %v2800 = vrot.slane %v2675, 2
        %v2801 = vrot.slane %v2676, 2
        %v2802 = vsel %vm2729, %v2800, %v2801
        %v2803 = vrot.slane %v2677, 2
        %v2804 = vsel %vm2729, %v2801, %v2803
        %v2805 = vrot.slane %v2678, 2
        %v2806 = vrot.slane %v2679, 2
        %v2807 = vsel %vm2729, %v2805, %v2806
        %v2808 = vrot.slane %v2680, 2
        %v2809 = vsel %vm2729, %v2806, %v2808
        %v2842 = vadd.f32 %v2600, %v2732
        %v2843 = vadd.f32 %v2601, %v2734
        %v2844 = vadd.f32 %v2602, %v2737
        %v2845 = vadd.f32 %v2603, %v2739
        %v2846 = vadd.f32 %v2604, %v2742
        %v2847 = vadd.f32 %v2605, %v2744
        %v2848 = vadd.f32 %v2606, %v2747
        %v2849 = vadd.f32 %v2607, %v2749
        %v2850 = vadd.f32 %v2608, %v2752
        %v2851 = vadd.f32 %v2609, %v2754
        %v2852 = vadd.f32 %v2610, %v2757
        %v2853 = vadd.f32 %v2611, %v2759
        %v2854 = vadd.f32 %v2612, %v2762
        %v2855 = vadd.f32 %v2613, %v2764
        %v2856 = vadd.f32 %v2614, %v2767
        %v2857 = vadd.f32 %v2615, %v2769
        %v2858 = vadd.f32 %v2616, %v2772
        %v2859 = vadd.f32 %v2617, %v2774
        %v2860 = vadd.f32 %v2618, %v2777
        %v2861 = vadd.f32 %v2619, %v2779
        %v2862 = vadd.f32 %v2620, %v2782
        %v2863 = vadd.f32 %v2621, %v2784
        %v2864 = vadd.f32 %v2622, %v2787
        %v2865 = vadd.f32 %v2623, %v2789
        %v2866 = vadd.f32 %v2624, %v2792
        %v2867 = vadd.f32 %v2625, %v2794
        %v2868 = vadd.f32 %v2626, %v2797
        %v2869 = vadd.f32 %v2627, %v2799
        %v2870 = vadd.f32 %v2628, %v2802
        %v2871 = vadd.f32 %v2629, %v2804
        %v2872 = vadd.f32 %v2630, %v2807
        %v2873 = vadd.f32 %v2631, %v2809
        %v2874 = vperm.slane %v479, 1
        %v2875 = vmul.f32 %v415, %v2874
        %v2876 = vmul.f32 %v416, %v2874
        %v2877 = vmul.f32 %v417, %v2874
        %v2878 = vmul.f32 %v418, %v2874
        %v2879 = vmul.f32 %v419, %v2874
        %v2880 = vmul.f32 %v420, %v2874
        %v2881 = vmul.f32 %v421, %v2874
        %v2882 = vmul.f32 %v422, %v2874
        %v2883 = vmul.f32 %v423, %v2874
        %v2884 = vmul.f32 %v424, %v2874
        %v2885 = vmul.f32 %v425, %v2874
        %v2886 = vmul.f32 %v426, %v2874
        %v2887 = vmul.f32 %v427, %v2874
        %v2888 = vmul.f32 %v428, %v2874
        %v2889 = vmul.f32 %v429, %v2874
        %v2890 = vmul.f32 %v430, %v2874
        %v2891 = vmul.f32 %v431, %v2874
        %v2892 = vmul.f32 %v432, %v2874
        %v2893 = vmul.f32 %v433, %v2874
        %v2894 = vmul.f32 %v434, %v2874
        %v2895 = vmul.f32 %v435, %v2874
        %v2896 = vmul.f32 %v436, %v2874
        %v2897 = vmul.f32 %v437, %v2874
        %v2898 = vmul.f32 %v438, %v2874
        %v2899 = vmul.f32 %v439, %v2874
        %v2900 = vmul.f32 %v440, %v2874
        %v2901 = vmul.f32 %v441, %v2874
        %v2902 = vmul.f32 %v442, %v2874
        %v2903 = vmul.f32 %v443, %v2874
        %v2904 = vmul.f32 %v444, %v2874
        %v2905 = vmul.f32 %v445, %v2874
        %v2906 = vmul.f32 %v446, %v2874
        %v2907 = vmul.f32 %v447, %v2874
        %v2908 = vmul.f32 %v448, %v2874
        %v2909 = vmul.f32 %v449, %v2874
        %v2910 = vmul.f32 %v450, %v2874
        %v2911 = vmul.f32 %v451, %v2874
        %v2912 = vmul.f32 %v452, %v2874
        %v2913 = vmul.f32 %v453, %v2874
        %v2914 = vmul.f32 %v454, %v2874
        %v2915 = vmul.f32 %v455, %v2874
        %v2916 = vmul.f32 %v456, %v2874
        %v2917 = vmul.f32 %v457, %v2874
        %v2918 = vmul.f32 %v458, %v2874
        %v2919 = vmul.f32 %v459, %v2874
        %v2920 = vmul.f32 %v460, %v2874
        %v2921 = vmul.f32 %v461, %v2874
        %v2922 = vmul.f32 %v462, %v2874
        %v2971 = vrot.slane %v2875, 2
        %v2972 = vrot.slane %v2876, 2
        %v2973 = vsel %vm2729, %v2971, %v2972
        %v2974 = vrot.slane %v2877, 2
        %v2975 = vsel %vm2729, %v2972, %v2974
        %v2976 = vrot.slane %v2878, 2
        %v2977 = vrot.slane %v2879, 2
        %v2978 = vsel %vm2729, %v2976, %v2977
        %v2979 = vrot.slane %v2880, 2
        %v2980 = vsel %vm2729, %v2977, %v2979
        %v2981 = vrot.slane %v2881, 2
        %v2982 = vrot.slane %v2882, 2
        %v2983 = vsel %vm2729, %v2981, %v2982
        %v2984 = vrot.slane %v2883, 2
        %v2985 = vsel %vm2729, %v2982, %v2984
        %v2986 = vrot.slane %v2884, 2
        %v2987 = vrot.slane %v2885, 2
        %v2988 = vsel %vm2729, %v2986, %v2987
        %v2989 = vrot.slane %v2886, 2
        %v2990 = vsel %vm2729, %v2987, %v2989
        %v2991 = vrot.slane %v2887, 2
        %v2992 = vrot.slane %v2888, 2
        %v2993 = vsel %vm2729, %v2991, %v2992
        %v2994 = vrot.slane %v2889, 2
        %v2995 = vsel %vm2729, %v2992, %v2994
        %v2996 = vrot.slane %v2890, 2
        %v2997 = vrot.slane %v2891, 2
        %v2998 = vsel %vm2729, %v2996, %v2997
        %v2999 = vrot.slane %v2892, 2
        %v3000 = vsel %vm2729, %v2997, %v2999
        %v3001 = vrot.slane %v2893, 2
        %v3002 = vrot.slane %v2894, 2
        %v3003 = vsel %vm2729, %v3001, %v3002
        %v3004 = vrot.slane %v2895, 2
        %v3005 = vsel %vm2729, %v3002, %v3004
        %v3006 = vrot.slane %v2896, 2
        %v3007 = vrot.slane %v2897, 2
        %v3008 = vsel %vm2729, %v3006, %v3007
        %v3009 = vrot.slane %v2898, 2
        %v3010 = vsel %vm2729, %v3007, %v3009
        %v3011 = vrot.slane %v2899, 2
        %v3012 = vrot.slane %v2900, 2
        %v3013 = vsel %vm2729, %v3011, %v3012
        %v3014 = vrot.slane %v2901, 2
        %v3015 = vsel %vm2729, %v3012, %v3014
        %v3016 = vrot.slane %v2902, 2
        %v3017 = vrot.slane %v2903, 2
        %v3018 = vsel %vm2729, %v3016, %v3017
        %v3019 = vrot.slane %v2904, 2
        %v3020 = vsel %vm2729, %v3017, %v3019
        %v3021 = vrot.slane %v2905, 2
        %v3022 = vrot.slane %v2906, 2
        %v3023 = vsel %vm2729, %v3021, %v3022
        %v3024 = vrot.slane %v2907, 2
        %v3025 = vsel %vm2729, %v3022, %v3024
        %v3026 = vrot.slane %v2908, 2
        %v3027 = vrot.slane %v2909, 2
        %v3028 = vsel %vm2729, %v3026, %v3027
        %v3029 = vrot.slane %v2910, 2
        %v3030 = vsel %vm2729, %v3027, %v3029
        %v3031 = vrot.slane %v2911, 2
        %v3032 = vrot.slane %v2912, 2
        %v3033 = vsel %vm2729, %v3031, %v3032
        %v3034 = vrot.slane %v2913, 2
        %v3035 = vsel %vm2729, %v3032, %v3034
        %v3036 = vrot.slane %v2914, 2
        %v3037 = vrot.slane %v2915, 2
        %v3038 = vsel %vm2729, %v3036, %v3037
        %v3039 = vrot.slane %v2916, 2
        %v3040 = vsel %vm2729, %v3037, %v3039
        %v3041 = vrot.slane %v2917, 2
        %v3042 = vrot.slane %v2918, 2
        %v3043 = vsel %vm2729, %v3041, %v3042
        %v3044 = vrot.slane %v2919, 2
        %v3045 = vsel %vm2729, %v3042, %v3044
        %v3046 = vrot.slane %v2920, 2
        %v3047 = vrot.slane %v2921, 2
        %v3048 = vsel %vm2729, %v3046, %v3047
        %v3049 = vrot.slane %v2922, 2
        %v3050 = vsel %vm2729, %v3047, %v3049
        %v3083 = vadd.f32 %v2842, %v2973
        %v3084 = vadd.f32 %v2843, %v2975
        %v3085 = vadd.f32 %v2844, %v2978
        %v3086 = vadd.f32 %v2845, %v2980
        %v3087 = vadd.f32 %v2846, %v2983
        %v3088 = vadd.f32 %v2847, %v2985
        %v3089 = vadd.f32 %v2848, %v2988
        %v3090 = vadd.f32 %v2849, %v2990
        %v3091 = vadd.f32 %v2850, %v2993
        %v3092 = vadd.f32 %v2851, %v2995
        %v3093 = vadd.f32 %v2852, %v2998
        %v3094 = vadd.f32 %v2853, %v3000
        %v3095 = vadd.f32 %v2854, %v3003
        %v3096 = vadd.f32 %v2855, %v3005
        %v3097 = vadd.f32 %v2856, %v3008
        %v3098 = vadd.f32 %v2857, %v3010
        %v3099 = vadd.f32 %v2858, %v3013
        %v3100 = vadd.f32 %v2859, %v3015
        %v3101 = vadd.f32 %v2860, %v3018
        %v3102 = vadd.f32 %v2861, %v3020
        %v3103 = vadd.f32 %v2862, %v3023
        %v3104 = vadd.f32 %v2863, %v3025
        %v3105 = vadd.f32 %v2864, %v3028
        %v3106 = vadd.f32 %v2865, %v3030
        %v3107 = vadd.f32 %v2866, %v3033
        %v3108 = vadd.f32 %v2867, %v3035
        %v3109 = vadd.f32 %v2868, %v3038
        %v3110 = vadd.f32 %v2869, %v3040
        %v3111 = vadd.f32 %v2870, %v3043
        %v3112 = vadd.f32 %v2871, %v3045
        %v3113 = vadd.f32 %v2872, %v3048
        %v3114 = vadd.f32 %v2873, %v3050
        %v3115 = vperm.slane %v480, 0
        %v3116 = vmul.f32 %v418, %v3115
        %v3117 = vmul.f32 %v419, %v3115
        %v3118 = vmul.f32 %v420, %v3115
        %v3119 = vmul.f32 %v421, %v3115
        %v3120 = vmul.f32 %v422, %v3115
        %v3121 = vmul.f32 %v423, %v3115
        %v3122 = vmul.f32 %v424, %v3115
        %v3123 = vmul.f32 %v425, %v3115
        %v3124 = vmul.f32 %v426, %v3115
        %v3125 = vmul.f32 %v427, %v3115
        %v3126 = vmul.f32 %v428, %v3115
        %v3127 = vmul.f32 %v429, %v3115
        %v3128 = vmul.f32 %v430, %v3115
        %v3129 = vmul.f32 %v431, %v3115
        %v3130 = vmul.f32 %v432, %v3115
        %v3131 = vmul.f32 %v433, %v3115
        %v3132 = vmul.f32 %v434, %v3115
        %v3133 = vmul.f32 %v435, %v3115
        %v3134 = vmul.f32 %v436, %v3115
        %v3135 = vmul.f32 %v437, %v3115
        %v3136 = vmul.f32 %v438, %v3115
        %v3137 = vmul.f32 %v439, %v3115
        %v3138 = vmul.f32 %v440, %v3115
        %v3139 = vmul.f32 %v441, %v3115
        %v3140 = vmul.f32 %v442, %v3115
        %v3141 = vmul.f32 %v443, %v3115
        %v3142 = vmul.f32 %v444, %v3115
        %v3143 = vmul.f32 %v445, %v3115
        %v3144 = vmul.f32 %v446, %v3115
        %v3145 = vmul.f32 %v447, %v3115
        %v3146 = vmul.f32 %v448, %v3115
        %v3147 = vmul.f32 %v449, %v3115
        %v3148 = vmul.f32 %v450, %v3115
        %v3149 = vmul.f32 %v451, %v3115
        %v3150 = vmul.f32 %v452, %v3115
        %v3151 = vmul.f32 %v453, %v3115
        %v3152 = vmul.f32 %v454, %v3115
        %v3153 = vmul.f32 %v455, %v3115
        %v3154 = vmul.f32 %v456, %v3115
        %v3155 = vmul.f32 %v457, %v3115
        %v3156 = vmul.f32 %v458, %v3115
        %v3157 = vmul.f32 %v459, %v3115
        %v3158 = vmul.f32 %v460, %v3115
        %v3159 = vmul.f32 %v461, %v3115
        %v3160 = vmul.f32 %v462, %v3115
        %v3161 = vmul.f32 %v463, %v3115
        %v3162 = vmul.f32 %v464, %v3115
        %v3163 = vmul.f32 %v465, %v3115
        %v3212 = vrot.slane %v3116, 2
        %v3213 = vrot.slane %v3117, 2
        %v3214 = vsel %vm2729, %v3212, %v3213
        %v3215 = vrot.slane %v3118, 2
        %v3216 = vsel %vm2729, %v3213, %v3215
        %v3217 = vrot.slane %v3119, 2
        %v3218 = vrot.slane %v3120, 2
        %v3219 = vsel %vm2729, %v3217, %v3218
        %v3220 = vrot.slane %v3121, 2
        %v3221 = vsel %vm2729, %v3218, %v3220
        %v3222 = vrot.slane %v3122, 2
        %v3223 = vrot.slane %v3123, 2
        %v3224 = vsel %vm2729, %v3222, %v3223
        %v3225 = vrot.slane %v3124, 2
        %v3226 = vsel %vm2729, %v3223, %v3225
        %v3227 = vrot.slane %v3125, 2
        %v3228 = vrot.slane %v3126, 2
        %v3229 = vsel %vm2729, %v3227, %v3228
        %v3230 = vrot.slane %v3127, 2
        %v3231 = vsel %vm2729, %v3228, %v3230
        %v3232 = vrot.slane %v3128, 2
        %v3233 = vrot.slane %v3129, 2
        %v3234 = vsel %vm2729, %v3232, %v3233
        %v3235 = vrot.slane %v3130, 2
        %v3236 = vsel %vm2729, %v3233, %v3235
        %v3237 = vrot.slane %v3131, 2
        %v3238 = vrot.slane %v3132, 2
        %v3239 = vsel %vm2729, %v3237, %v3238
        %v3240 = vrot.slane %v3133, 2
        %v3241 = vsel %vm2729, %v3238, %v3240
        %v3242 = vrot.slane %v3134, 2
        %v3243 = vrot.slane %v3135, 2
        %v3244 = vsel %vm2729, %v3242, %v3243
        %v3245 = vrot.slane %v3136, 2
        %v3246 = vsel %vm2729, %v3243, %v3245
        %v3247 = vrot.slane %v3137, 2
        %v3248 = vrot.slane %v3138, 2
        %v3249 = vsel %vm2729, %v3247, %v3248
        %v3250 = vrot.slane %v3139, 2
        %v3251 = vsel %vm2729, %v3248, %v3250
        %v3252 = vrot.slane %v3140, 2
        %v3253 = vrot.slane %v3141, 2
        %v3254 = vsel %vm2729, %v3252, %v3253
        %v3255 = vrot.slane %v3142, 2
        %v3256 = vsel %vm2729, %v3253, %v3255
        %v3257 = vrot.slane %v3143, 2
        %v3258 = vrot.slane %v3144, 2
        %v3259 = vsel %vm2729, %v3257, %v3258
        %v3260 = vrot.slane %v3145, 2
        %v3261 = vsel %vm2729, %v3258, %v3260
        %v3262 = vrot.slane %v3146, 2
        %v3263 = vrot.slane %v3147, 2
        %v3264 = vsel %vm2729, %v3262, %v3263
        %v3265 = vrot.slane %v3148, 2
        %v3266 = vsel %vm2729, %v3263, %v3265
        %v3267 = vrot.slane %v3149, 2
        %v3268 = vrot.slane %v3150, 2
        %v3269 = vsel %vm2729, %v3267, %v3268
        %v3270 = vrot.slane %v3151, 2
        %v3271 = vsel %vm2729, %v3268, %v3270
        %v3272 = vrot.slane %v3152, 2
        %v3273 = vrot.slane %v3153, 2
        %v3274 = vsel %vm2729, %v3272, %v3273
        %v3275 = vrot.slane %v3154, 2
        %v3276 = vsel %vm2729, %v3273, %v3275
        %v3277 = vrot.slane %v3155, 2
        %v3278 = vrot.slane %v3156, 2
        %v3279 = vsel %vm2729, %v3277, %v3278
        %v3280 = vrot.slane %v3157, 2
        %v3281 = vsel %vm2729, %v3278, %v3280
        %v3282 = vrot.slane %v3158, 2
        %v3283 = vrot.slane %v3159, 2
        %v3284 = vsel %vm2729, %v3282, %v3283
        %v3285 = vrot.slane %v3160, 2
        %v3286 = vsel %vm2729, %v3283, %v3285
        %v3287 = vrot.slane %v3161, 2
        %v3288 = vrot.slane %v3162, 2
        %v3289 = vsel %vm2729, %v3287, %v3288
        %v3290 = vrot.slane %v3163, 2
        %v3291 = vsel %vm2729, %v3288, %v3290
        %v3324 = vadd.f32 %v3083, %v3214
        %v3325 = vadd.f32 %v3084, %v3216
        %v3326 = vadd.f32 %v3085, %v3219
        %v3327 = vadd.f32 %v3086, %v3221
        %v3328 = vadd.f32 %v3087, %v3224
        %v3329 = vadd.f32 %v3088, %v3226
        %v3330 = vadd.f32 %v3089, %v3229
        %v3331 = vadd.f32 %v3090, %v3231
        %v3332 = vadd.f32 %v3091, %v3234
        %v3333 = vadd.f32 %v3092, %v3236
        %v3334 = vadd.f32 %v3093, %v3239
        %v3335 = vadd.f32 %v3094, %v3241
        %v3336 = vadd.f32 %v3095, %v3244
        %v3337 = vadd.f32 %v3096, %v3246
        %v3338 = vadd.f32 %v3097, %v3249
        %v3339 = vadd.f32 %v3098, %v3251
        %v3340 = vadd.f32 %v3099, %v3254
        %v3341 = vadd.f32 %v3100, %v3256
        %v3342 = vadd.f32 %v3101, %v3259
        %v3343 = vadd.f32 %v3102, %v3261
        %v3344 = vadd.f32 %v3103, %v3264
        %v3345 = vadd.f32 %v3104, %v3266
        %v3346 = vadd.f32 %v3105, %v3269
        %v3347 = vadd.f32 %v3106, %v3271
        %v3348 = vadd.f32 %v3107, %v3274
        %v3349 = vadd.f32 %v3108, %v3276
        %v3350 = vadd.f32 %v3109, %v3279
        %v3351 = vadd.f32 %v3110, %v3281
        %v3352 = vadd.f32 %v3111, %v3284
        %v3353 = vadd.f32 %v3112, %v3286
        %v3354 = vadd.f32 %v3113, %v3289
        %v3355 = vadd.f32 %v3114, %v3291
        %v3356 = vperm.slane %v480, 7
        %v3357 = vmul.f32 %v421, %v3356
        %v3358 = vmul.f32 %v422, %v3356
        %v3359 = vmul.f32 %v423, %v3356
        %v3360 = vmul.f32 %v424, %v3356
        %v3361 = vmul.f32 %v425, %v3356
        %v3362 = vmul.f32 %v426, %v3356
        %v3363 = vmul.f32 %v427, %v3356
        %v3364 = vmul.f32 %v428, %v3356
        %v3365 = vmul.f32 %v429, %v3356
        %v3366 = vmul.f32 %v430, %v3356
        %v3367 = vmul.f32 %v431, %v3356
        %v3368 = vmul.f32 %v432, %v3356
        %v3369 = vmul.f32 %v433, %v3356
        %v3370 = vmul.f32 %v434, %v3356
        %v3371 = vmul.f32 %v435, %v3356
        %v3372 = vmul.f32 %v436, %v3356
        %v3373 = vmul.f32 %v437, %v3356
        %v3374 = vmul.f32 %v438, %v3356
        %v3375 = vmul.f32 %v439, %v3356
        %v3376 = vmul.f32 %v440, %v3356
        %v3377 = vmul.f32 %v441, %v3356
        %v3378 = vmul.f32 %v442, %v3356
        %v3379 = vmul.f32 %v443, %v3356
        %v3380 = vmul.f32 %v444, %v3356
        %v3381 = vmul.f32 %v445, %v3356
        %v3382 = vmul.f32 %v446, %v3356
        %v3383 = vmul.f32 %v447, %v3356
        %v3384 = vmul.f32 %v448, %v3356
        %v3385 = vmul.f32 %v449, %v3356
        %v3386 = vmul.f32 %v450, %v3356
        %v3387 = vmul.f32 %v451, %v3356
        %v3388 = vmul.f32 %v452, %v3356
        %v3389 = vmul.f32 %v453, %v3356
        %v3390 = vmul.f32 %v454, %v3356
        %v3391 = vmul.f32 %v455, %v3356
        %v3392 = vmul.f32 %v456, %v3356
        %v3393 = vmul.f32 %v457, %v3356
        %v3394 = vmul.f32 %v458, %v3356
        %v3395 = vmul.f32 %v459, %v3356
        %v3396 = vmul.f32 %v460, %v3356
        %v3397 = vmul.f32 %v461, %v3356
        %v3398 = vmul.f32 %v462, %v3356
        %v3399 = vmul.f32 %v463, %v3356
        %v3400 = vmul.f32 %v464, %v3356
        %v3401 = vmul.f32 %v465, %v3356
        %v3402 = vmul.f32 %v466, %v3356
        %v3403 = vmul.f32 %v467, %v3356
        %v3404 = vmul.f32 %v468, %v3356
        %v3453 = vrot.slane %v3357, 2
        %v3454 = vrot.slane %v3358, 2
        %v3455 = vsel %vm2729, %v3453, %v3454
        %v3456 = vrot.slane %v3359, 2
        %v3457 = vsel %vm2729, %v3454, %v3456
        %v3458 = vrot.slane %v3360, 2
        %v3459 = vrot.slane %v3361, 2
        %v3460 = vsel %vm2729, %v3458, %v3459
        %v3461 = vrot.slane %v3362, 2
        %v3462 = vsel %vm2729, %v3459, %v3461
        %v3463 = vrot.slane %v3363, 2
        %v3464 = vrot.slane %v3364, 2
        %v3465 = vsel %vm2729, %v3463, %v3464
        %v3466 = vrot.slane %v3365, 2
        %v3467 = vsel %vm2729, %v3464, %v3466
        %v3468 = vrot.slane %v3366, 2
        %v3469 = vrot.slane %v3367, 2
        %v3470 = vsel %vm2729, %v3468, %v3469
        %v3471 = vrot.slane %v3368, 2
        %v3472 = vsel %vm2729, %v3469, %v3471
        %v3473 = vrot.slane %v3369, 2
        %v3474 = vrot.slane %v3370, 2
        %v3475 = vsel %vm2729, %v3473, %v3474
        %v3476 = vrot.slane %v3371, 2
        %v3477 = vsel %vm2729, %v3474, %v3476
        %v3478 = vrot.slane %v3372, 2
        %v3479 = vrot.slane %v3373, 2
        %v3480 = vsel %vm2729, %v3478, %v3479
        %v3481 = vrot.slane %v3374, 2
        %v3482 = vsel %vm2729, %v3479, %v3481
        %v3483 = vrot.slane %v3375, 2
        %v3484 = vrot.slane %v3376, 2
        %v3485 = vsel %vm2729, %v3483, %v3484
        %v3486 = vrot.slane %v3377, 2
        %v3487 = vsel %vm2729, %v3484, %v3486
        %v3488 = vrot.slane %v3378, 2
        %v3489 = vrot.slane %v3379, 2
        %v3490 = vsel %vm2729, %v3488, %v3489
        %v3491 = vrot.slane %v3380, 2
        %v3492 = vsel %vm2729, %v3489, %v3491
        %v3493 = vrot.slane %v3381, 2
        %v3494 = vrot.slane %v3382, 2
        %v3495 = vsel %vm2729, %v3493, %v3494
        %v3496 = vrot.slane %v3383, 2
        %v3497 = vsel %vm2729, %v3494, %v3496
        %v3498 = vrot.slane %v3384, 2
        %v3499 = vrot.slane %v3385, 2
        %v3500 = vsel %vm2729, %v3498, %v3499
        %v3501 = vrot.slane %v3386, 2
        %v3502 = vsel %vm2729, %v3499, %v3501
        %v3503 = vrot.slane %v3387, 2
        %v3504 = vrot.slane %v3388, 2
        %v3505 = vsel %vm2729, %v3503, %v3504
        %v3506 = vrot.slane %v3389, 2
        %v3507 = vsel %vm2729, %v3504, %v3506
        %v3508 = vrot.slane %v3390, 2
        %v3509 = vrot.slane %v3391, 2
        %v3510 = vsel %vm2729, %v3508, %v3509
        %v3511 = vrot.slane %v3392, 2
        %v3512 = vsel %vm2729, %v3509, %v3511
        %v3513 = vrot.slane %v3393, 2
        %v3514 = vrot.slane %v3394, 2
        %v3515 = vsel %vm2729, %v3513, %v3514
        %v3516 = vrot.slane %v3395, 2
        %v3517 = vsel %vm2729, %v3514, %v3516
        %v3518 = vrot.slane %v3396, 2
        %v3519 = vrot.slane %v3397, 2
        %v3520 = vsel %vm2729, %v3518, %v3519
        %v3521 = vrot.slane %v3398, 2
        %v3522 = vsel %vm2729, %v3519, %v3521
        %v3523 = vrot.slane %v3399, 2
        %v3524 = vrot.slane %v3400, 2
        %v3525 = vsel %vm2729, %v3523, %v3524
        %v3526 = vrot.slane %v3401, 2
        %v3527 = vsel %vm2729, %v3524, %v3526
        %v3528 = vrot.slane %v3402, 2
        %v3529 = vrot.slane %v3403, 2
        %v3530 = vsel %vm2729, %v3528, %v3529
        %v3531 = vrot.slane %v3404, 2
        %v3532 = vsel %vm2729, %v3529, %v3531
        %v3565 = vadd.f32 %v3324, %v3455
        %v3566 = vadd.f32 %v3325, %v3457
        %v3567 = vadd.f32 %v3326, %v3460
        %v3568 = vadd.f32 %v3327, %v3462
        %v3569 = vadd.f32 %v3328, %v3465
        %v3570 = vadd.f32 %v3329, %v3467
        %v3571 = vadd.f32 %v3330, %v3470
        %v3572 = vadd.f32 %v3331, %v3472
        %v3573 = vadd.f32 %v3332, %v3475
        %v3574 = vadd.f32 %v3333, %v3477
        %v3575 = vadd.f32 %v3334, %v3480
        %v3576 = vadd.f32 %v3335, %v3482
        %v3577 = vadd.f32 %v3336, %v3485
        %v3578 = vadd.f32 %v3337, %v3487
        %v3579 = vadd.f32 %v3338, %v3490
        %v3580 = vadd.f32 %v3339, %v3492
        %v3581 = vadd.f32 %v3340, %v3495
        %v3582 = vadd.f32 %v3341, %v3497
        %v3583 = vadd.f32 %v3342, %v3500
        %v3584 = vadd.f32 %v3343, %v3502
        %v3585 = vadd.f32 %v3344, %v3505
        %v3586 = vadd.f32 %v3345, %v3507
        %v3587 = vadd.f32 %v3346, %v3510
        %v3588 = vadd.f32 %v3347, %v3512
        %v3589 = vadd.f32 %v3348, %v3515
        %v3590 = vadd.f32 %v3349, %v3517
        %v3591 = vadd.f32 %v3350, %v3520
        %v3592 = vadd.f32 %v3351, %v3522
        %v3593 = vadd.f32 %v3352, %v3525
        %v3594 = vadd.f32 %v3353, %v3527
        %v3595 = vadd.f32 %v3354, %v3530
        %v3596 = vadd.f32 %v3355, %v3532
        %v3597 = vperm.slane %v481, 6
        %v3598 = vmul.f32 %v424, %v3597
        %v3599 = vmul.f32 %v425, %v3597
        %v3600 = vmul.f32 %v426, %v3597
        %v3601 = vmul.f32 %v427, %v3597
        %v3602 = vmul.f32 %v428, %v3597
        %v3603 = vmul.f32 %v429, %v3597
        %v3604 = vmul.f32 %v430, %v3597
        %v3605 = vmul.f32 %v431, %v3597
        %v3606 = vmul.f32 %v432, %v3597
        %v3607 = vmul.f32 %v433, %v3597
        %v3608 = vmul.f32 %v434, %v3597
        %v3609 = vmul.f32 %v435, %v3597
        %v3610 = vmul.f32 %v436, %v3597
        %v3611 = vmul.f32 %v437, %v3597
        %v3612 = vmul.f32 %v438, %v3597
        %v3613 = vmul.f32 %v439, %v3597
        %v3614 = vmul.f32 %v440, %v3597
        %v3615 = vmul.f32 %v441, %v3597
        %v3616 = vmul.f32 %v442, %v3597
        %v3617 = vmul.f32 %v443, %v3597
        %v3618 = vmul.f32 %v444, %v3597
        %v3619 = vmul.f32 %v445, %v3597
        %v3620 = vmul.f32 %v446, %v3597
        %v3621 = vmul.f32 %v447, %v3597
        %v3622 = vmul.f32 %v448, %v3597
        %v3623 = vmul.f32 %v449, %v3597
        %v3624 = vmul.f32 %v450, %v3597
        %v3625 = vmul.f32 %v451, %v3597
        %v3626 = vmul.f32 %v452, %v3597
        %v3627 = vmul.f32 %v453, %v3597
        %v3628 = vmul.f32 %v454, %v3597
        %v3629 = vmul.f32 %v455, %v3597
        %v3630 = vmul.f32 %v456, %v3597
        %v3631 = vmul.f32 %v457, %v3597
        %v3632 = vmul.f32 %v458, %v3597
        %v3633 = vmul.f32 %v459, %v3597
        %v3634 = vmul.f32 %v460, %v3597
        %v3635 = vmul.f32 %v461, %v3597
        %v3636 = vmul.f32 %v462, %v3597
        %v3637 = vmul.f32 %v463, %v3597
        %v3638 = vmul.f32 %v464, %v3597
        %v3639 = vmul.f32 %v465, %v3597
        %v3640 = vmul.f32 %v466, %v3597
        %v3641 = vmul.f32 %v467, %v3597
        %v3642 = vmul.f32 %v468, %v3597
        %v3643 = vmul.f32 %v469, %v3597
        %v3644 = vmul.f32 %v470, %v3597
        %v3645 = vmul.f32 %v471, %v3597
        %v3694 = vrot.slane %v3598, 2
        %v3695 = vrot.slane %v3599, 2
        %v3696 = vsel %vm2729, %v3694, %v3695
        %v3697 = vrot.slane %v3600, 2
        %v3698 = vsel %vm2729, %v3695, %v3697
        %v3699 = vrot.slane %v3601, 2
        %v3700 = vrot.slane %v3602, 2
        %v3701 = vsel %vm2729, %v3699, %v3700
        %v3702 = vrot.slane %v3603, 2
        %v3703 = vsel %vm2729, %v3700, %v3702
        %v3704 = vrot.slane %v3604, 2
        %v3705 = vrot.slane %v3605, 2
        %v3706 = vsel %vm2729, %v3704, %v3705
        %v3707 = vrot.slane %v3606, 2
        %v3708 = vsel %vm2729, %v3705, %v3707
        %v3709 = vrot.slane %v3607, 2
        %v3710 = vrot.slane %v3608, 2
        %v3711 = vsel %vm2729, %v3709, %v3710
        %v3712 = vrot.slane %v3609, 2
        %v3713 = vsel %vm2729, %v3710, %v3712
        %v3714 = vrot.slane %v3610, 2
        %v3715 = vrot.slane %v3611, 2
        %v3716 = vsel %vm2729, %v3714, %v3715
        %v3717 = vrot.slane %v3612, 2
        %v3718 = vsel %vm2729, %v3715, %v3717
        %v3719 = vrot.slane %v3613, 2
        %v3720 = vrot.slane %v3614, 2
        %v3721 = vsel %vm2729, %v3719, %v3720
        %v3722 = vrot.slane %v3615, 2
        %v3723 = vsel %vm2729, %v3720, %v3722
        %v3724 = vrot.slane %v3616, 2
        %v3725 = vrot.slane %v3617, 2
        %v3726 = vsel %vm2729, %v3724, %v3725
        %v3727 = vrot.slane %v3618, 2
        %v3728 = vsel %vm2729, %v3725, %v3727
        %v3729 = vrot.slane %v3619, 2
        %v3730 = vrot.slane %v3620, 2
        %v3731 = vsel %vm2729, %v3729, %v3730
        %v3732 = vrot.slane %v3621, 2
        %v3733 = vsel %vm2729, %v3730, %v3732
        %v3734 = vrot.slane %v3622, 2
        %v3735 = vrot.slane %v3623, 2
        %v3736 = vsel %vm2729, %v3734, %v3735
        %v3737 = vrot.slane %v3624, 2
        %v3738 = vsel %vm2729, %v3735, %v3737
        %v3739 = vrot.slane %v3625, 2
        %v3740 = vrot.slane %v3626, 2
        %v3741 = vsel %vm2729, %v3739, %v3740
        %v3742 = vrot.slane %v3627, 2
        %v3743 = vsel %vm2729, %v3740, %v3742
        %v3744 = vrot.slane %v3628, 2
        %v3745 = vrot.slane %v3629, 2
        %v3746 = vsel %vm2729, %v3744, %v3745
        %v3747 = vrot.slane %v3630, 2
        %v3748 = vsel %vm2729, %v3745, %v3747
        %v3749 = vrot.slane %v3631, 2
        %v3750 = vrot.slane %v3632, 2
        %v3751 = vsel %vm2729, %v3749, %v3750
        %v3752 = vrot.slane %v3633, 2
        %v3753 = vsel %vm2729, %v3750, %v3752
        %v3754 = vrot.slane %v3634, 2
        %v3755 = vrot.slane %v3635, 2
        %v3756 = vsel %vm2729, %v3754, %v3755
        %v3757 = vrot.slane %v3636, 2
        %v3758 = vsel %vm2729, %v3755, %v3757
        %v3759 = vrot.slane %v3637, 2
        %v3760 = vrot.slane %v3638, 2
        %v3761 = vsel %vm2729, %v3759, %v3760
        %v3762 = vrot.slane %v3639, 2
        %v3763 = vsel %vm2729, %v3760, %v3762
        %v3764 = vrot.slane %v3640, 2
        %v3765 = vrot.slane %v3641, 2
        %v3766 = vsel %vm2729, %v3764, %v3765
        %v3767 = vrot.slane %v3642, 2
        %v3768 = vsel %vm2729, %v3765, %v3767
        %v3769 = vrot.slane %v3643, 2
        %v3770 = vrot.slane %v3644, 2
        %v3771 = vsel %vm2729, %v3769, %v3770
        %v3772 = vrot.slane %v3645, 2
        %v3773 = vsel %vm2729, %v3770, %v3772
        %v3806 = vadd.f32 %v3565, %v3696
        %v3807 = vadd.f32 %v3566, %v3698
        %v3808 = vadd.f32 %v3567, %v3701
        %v3809 = vadd.f32 %v3568, %v3703
        %v3810 = vadd.f32 %v3569, %v3706
        %v3811 = vadd.f32 %v3570, %v3708
        %v3812 = vadd.f32 %v3571, %v3711
        %v3813 = vadd.f32 %v3572, %v3713
        %v3814 = vadd.f32 %v3573, %v3716
        %v3815 = vadd.f32 %v3574, %v3718
        %v3816 = vadd.f32 %v3575, %v3721
        %v3817 = vadd.f32 %v3576, %v3723
        %v3818 = vadd.f32 %v3577, %v3726
        %v3819 = vadd.f32 %v3578, %v3728
        %v3820 = vadd.f32 %v3579, %v3731
        %v3821 = vadd.f32 %v3580, %v3733
        %v3822 = vadd.f32 %v3581, %v3736
        %v3823 = vadd.f32 %v3582, %v3738
        %v3824 = vadd.f32 %v3583, %v3741
        %v3825 = vadd.f32 %v3584, %v3743
        %v3826 = vadd.f32 %v3585, %v3746
        %v3827 = vadd.f32 %v3586, %v3748
        %v3828 = vadd.f32 %v3587, %v3751
        %v3829 = vadd.f32 %v3588, %v3753
        %v3830 = vadd.f32 %v3589, %v3756
        %v3831 = vadd.f32 %v3590, %v3758
        %v3832 = vadd.f32 %v3591, %v3761
        %v3833 = vadd.f32 %v3592, %v3763
        %v3834 = vadd.f32 %v3593, %v3766
        %v3835 = vadd.f32 %v3594, %v3768
        %v3836 = vadd.f32 %v3595, %v3771
        %v3837 = vadd.f32 %v3596, %v3773
        %v3838 = vperm.slane %v482, 5
        %v3839 = vmul.f32 %v427, %v3838
        %v3840 = vmul.f32 %v428, %v3838
        %v3841 = vmul.f32 %v429, %v3838
        %v3842 = vmul.f32 %v430, %v3838
        %v3843 = vmul.f32 %v431, %v3838
        %v3844 = vmul.f32 %v432, %v3838
        %v3845 = vmul.f32 %v433, %v3838
        %v3846 = vmul.f32 %v434, %v3838
        %v3847 = vmul.f32 %v435, %v3838
        %v3848 = vmul.f32 %v436, %v3838
        %v3849 = vmul.f32 %v437, %v3838
        %v3850 = vmul.f32 %v438, %v3838
        %v3851 = vmul.f32 %v439, %v3838
        %v3852 = vmul.f32 %v440, %v3838
        %v3853 = vmul.f32 %v441, %v3838
        %v3854 = vmul.f32 %v442, %v3838
        %v3855 = vmul.f32 %v443, %v3838
        %v3856 = vmul.f32 %v444, %v3838
        %v3857 = vmul.f32 %v445, %v3838
        %v3858 = vmul.f32 %v446, %v3838
        %v3859 = vmul.f32 %v447, %v3838
        %v3860 = vmul.f32 %v448, %v3838
        %v3861 = vmul.f32 %v449, %v3838
        %v3862 = vmul.f32 %v450, %v3838
        %v3863 = vmul.f32 %v451, %v3838
        %v3864 = vmul.f32 %v452, %v3838
        %v3865 = vmul.f32 %v453, %v3838
        %v3866 = vmul.f32 %v454, %v3838
        %v3867 = vmul.f32 %v455, %v3838
        %v3868 = vmul.f32 %v456, %v3838
        %v3869 = vmul.f32 %v457, %v3838
        %v3870 = vmul.f32 %v458, %v3838
        %v3871 = vmul.f32 %v459, %v3838
        %v3872 = vmul.f32 %v460, %v3838
        %v3873 = vmul.f32 %v461, %v3838
        %v3874 = vmul.f32 %v462, %v3838
        %v3875 = vmul.f32 %v463, %v3838
        %v3876 = vmul.f32 %v464, %v3838
        %v3877 = vmul.f32 %v465, %v3838
        %v3878 = vmul.f32 %v466, %v3838
        %v3879 = vmul.f32 %v467, %v3838
        %v3880 = vmul.f32 %v468, %v3838
        %v3881 = vmul.f32 %v469, %v3838
        %v3882 = vmul.f32 %v470, %v3838
        %v3883 = vmul.f32 %v471, %v3838
        %v3884 = vmul.f32 %v472, %v3838
        %v3885 = vmul.f32 %v473, %v3838
        %v3886 = vmul.f32 %v474, %v3838
        %v3935 = vrot.slane %v3839, 2
        %v3936 = vrot.slane %v3840, 2
        %v3937 = vsel %vm2729, %v3935, %v3936
        %v3938 = vrot.slane %v3841, 2
        %v3939 = vsel %vm2729, %v3936, %v3938
        %v3940 = vrot.slane %v3842, 2
        %v3941 = vrot.slane %v3843, 2
        %v3942 = vsel %vm2729, %v3940, %v3941
        %v3943 = vrot.slane %v3844, 2
        %v3944 = vsel %vm2729, %v3941, %v3943
        %v3945 = vrot.slane %v3845, 2
        %v3946 = vrot.slane %v3846, 2
        %v3947 = vsel %vm2729, %v3945, %v3946
        %v3948 = vrot.slane %v3847, 2
        %v3949 = vsel %vm2729, %v3946, %v3948
        %v3950 = vrot.slane %v3848, 2
        %v3951 = vrot.slane %v3849, 2
        %v3952 = vsel %vm2729, %v3950, %v3951
        %v3953 = vrot.slane %v3850, 2
        %v3954 = vsel %vm2729, %v3951, %v3953
        %v3955 = vrot.slane %v3851, 2
        %v3956 = vrot.slane %v3852, 2
        %v3957 = vsel %vm2729, %v3955, %v3956
        %v3958 = vrot.slane %v3853, 2
        %v3959 = vsel %vm2729, %v3956, %v3958
        %v3960 = vrot.slane %v3854, 2
        %v3961 = vrot.slane %v3855, 2
        %v3962 = vsel %vm2729, %v3960, %v3961
        %v3963 = vrot.slane %v3856, 2
        %v3964 = vsel %vm2729, %v3961, %v3963
        %v3965 = vrot.slane %v3857, 2
        %v3966 = vrot.slane %v3858, 2
        %v3967 = vsel %vm2729, %v3965, %v3966
        %v3968 = vrot.slane %v3859, 2
        %v3969 = vsel %vm2729, %v3966, %v3968
        %v3970 = vrot.slane %v3860, 2
        %v3971 = vrot.slane %v3861, 2
        %v3972 = vsel %vm2729, %v3970, %v3971
        %v3973 = vrot.slane %v3862, 2
        %v3974 = vsel %vm2729, %v3971, %v3973
        %v3975 = vrot.slane %v3863, 2
        %v3976 = vrot.slane %v3864, 2
        %v3977 = vsel %vm2729, %v3975, %v3976
        %v3978 = vrot.slane %v3865, 2
        %v3979 = vsel %vm2729, %v3976, %v3978
        %v3980 = vrot.slane %v3866, 2
        %v3981 = vrot.slane %v3867, 2
        %v3982 = vsel %vm2729, %v3980, %v3981
        %v3983 = vrot.slane %v3868, 2
        %v3984 = vsel %vm2729, %v3981, %v3983
        %v3985 = vrot.slane %v3869, 2
        %v3986 = vrot.slane %v3870, 2
        %v3987 = vsel %vm2729, %v3985, %v3986
        %v3988 = vrot.slane %v3871, 2
        %v3989 = vsel %vm2729, %v3986, %v3988
        %v3990 = vrot.slane %v3872, 2
        %v3991 = vrot.slane %v3873, 2
        %v3992 = vsel %vm2729, %v3990, %v3991
        %v3993 = vrot.slane %v3874, 2
        %v3994 = vsel %vm2729, %v3991, %v3993
        %v3995 = vrot.slane %v3875, 2
        %v3996 = vrot.slane %v3876, 2
        %v3997 = vsel %vm2729, %v3995, %v3996
        %v3998 = vrot.slane %v3877, 2
        %v3999 = vsel %vm2729, %v3996, %v3998
        %v4000 = vrot.slane %v3878, 2
        %v4001 = vrot.slane %v3879, 2
        %v4002 = vsel %vm2729, %v4000, %v4001
        %v4003 = vrot.slane %v3880, 2
        %v4004 = vsel %vm2729, %v4001, %v4003
        %v4005 = vrot.slane %v3881, 2
        %v4006 = vrot.slane %v3882, 2
        %v4007 = vsel %vm2729, %v4005, %v4006
        %v4008 = vrot.slane %v3883, 2
        %v4009 = vsel %vm2729, %v4006, %v4008
        %v4010 = vrot.slane %v3884, 2
        %v4011 = vrot.slane %v3885, 2
        %v4012 = vsel %vm2729, %v4010, %v4011
        %v4013 = vrot.slane %v3886, 2
        %v4014 = vsel %vm2729, %v4011, %v4013
        %v4047 = vadd.f32 %v3806, %v3937
        %v4048 = vadd.f32 %v3807, %v3939
        %v4049 = vadd.f32 %v3808, %v3942
        %v4050 = vadd.f32 %v3809, %v3944
        %v4051 = vadd.f32 %v3810, %v3947
        %v4052 = vadd.f32 %v3811, %v3949
        %v4053 = vadd.f32 %v3812, %v3952
        %v4054 = vadd.f32 %v3813, %v3954
        %v4055 = vadd.f32 %v3814, %v3957
        %v4056 = vadd.f32 %v3815, %v3959
        %v4057 = vadd.f32 %v3816, %v3962
        %v4058 = vadd.f32 %v3817, %v3964
        %v4059 = vadd.f32 %v3818, %v3967
        %v4060 = vadd.f32 %v3819, %v3969
        %v4061 = vadd.f32 %v3820, %v3972
        %v4062 = vadd.f32 %v3821, %v3974
        %v4063 = vadd.f32 %v3822, %v3977
        %v4064 = vadd.f32 %v3823, %v3979
        %v4065 = vadd.f32 %v3824, %v3982
        %v4066 = vadd.f32 %v3825, %v3984
        %v4067 = vadd.f32 %v3826, %v3987
        %v4068 = vadd.f32 %v3827, %v3989
        %v4069 = vadd.f32 %v3828, %v3992
        %v4070 = vadd.f32 %v3829, %v3994
        %v4071 = vadd.f32 %v3830, %v3997
        %v4072 = vadd.f32 %v3831, %v3999
        %v4073 = vadd.f32 %v3832, %v4002
        %v4074 = vadd.f32 %v3833, %v4004
        %v4075 = vadd.f32 %v3834, %v4007
        %v4076 = vadd.f32 %v3835, %v4009
        %v4077 = vadd.f32 %v3836, %v4012
        %v4078 = vadd.f32 %v3837, %v4014
        %v4079 = vperm.slane %v483, 4
        %v4080 = vmul.f32 %v430, %v4079
        %v4081 = vmul.f32 %v431, %v4079
        %v4082 = vmul.f32 %v432, %v4079
        %v4083 = vmul.f32 %v433, %v4079
        %v4084 = vmul.f32 %v434, %v4079
        %v4085 = vmul.f32 %v435, %v4079
        %v4086 = vmul.f32 %v436, %v4079
        %v4087 = vmul.f32 %v437, %v4079
        %v4088 = vmul.f32 %v438, %v4079
        %v4089 = vmul.f32 %v439, %v4079
        %v4090 = vmul.f32 %v440, %v4079
        %v4091 = vmul.f32 %v441, %v4079
        %v4092 = vmul.f32 %v442, %v4079
        %v4093 = vmul.f32 %v443, %v4079
        %v4094 = vmul.f32 %v444, %v4079
        %v4095 = vmul.f32 %v445, %v4079
        %v4096 = vmul.f32 %v446, %v4079
        %v4097 = vmul.f32 %v447, %v4079
        %v4098 = vmul.f32 %v448, %v4079
        %v4099 = vmul.f32 %v449, %v4079
        %v4100 = vmul.f32 %v450, %v4079
        %v4101 = vmul.f32 %v451, %v4079
        %v4102 = vmul.f32 %v452, %v4079
        %v4103 = vmul.f32 %v453, %v4079
        %v4104 = vmul.f32 %v454, %v4079
        %v4105 = vmul.f32 %v455, %v4079
        %v4106 = vmul.f32 %v456, %v4079
        %v4107 = vmul.f32 %v457, %v4079
        %v4108 = vmul.f32 %v458, %v4079
        %v4109 = vmul.f32 %v459, %v4079
        %v4110 = vmul.f32 %v460, %v4079
        %v4111 = vmul.f32 %v461, %v4079
        %v4112 = vmul.f32 %v462, %v4079
        %v4113 = vmul.f32 %v463, %v4079
        %v4114 = vmul.f32 %v464, %v4079
        %v4115 = vmul.f32 %v465, %v4079
        %v4116 = vmul.f32 %v466, %v4079
        %v4117 = vmul.f32 %v467, %v4079
        %v4118 = vmul.f32 %v468, %v4079
        %v4119 = vmul.f32 %v469, %v4079
        %v4120 = vmul.f32 %v470, %v4079
        %v4121 = vmul.f32 %v471, %v4079
        %v4122 = vmul.f32 %v472, %v4079
        %v4123 = vmul.f32 %v473, %v4079
        %v4124 = vmul.f32 %v474, %v4079
        %v4125 = vmul.f32 %v475, %v4079
        %v4126 = vmul.f32 %v476, %v4079
        %v4127 = vmul.f32 %v477, %v4079
        %v4176 = vrot.slane %v4080, 2
        %v4177 = vrot.slane %v4081, 2
        %v4178 = vsel %vm2729, %v4176, %v4177
        %v4179 = vrot.slane %v4082, 2
        %v4180 = vsel %vm2729, %v4177, %v4179
        %v4181 = vrot.slane %v4083, 2
        %v4182 = vrot.slane %v4084, 2
        %v4183 = vsel %vm2729, %v4181, %v4182
        %v4184 = vrot.slane %v4085, 2
        %v4185 = vsel %vm2729, %v4182, %v4184
        %v4186 = vrot.slane %v4086, 2
        %v4187 = vrot.slane %v4087, 2
        %v4188 = vsel %vm2729, %v4186, %v4187
        %v4189 = vrot.slane %v4088, 2
        %v4190 = vsel %vm2729, %v4187, %v4189
        %v4191 = vrot.slane %v4089, 2
        %v4192 = vrot.slane %v4090, 2
        %v4193 = vsel %vm2729, %v4191, %v4192
        %v4194 = vrot.slane %v4091, 2
        %v4195 = vsel %vm2729, %v4192, %v4194
        %v4196 = vrot.slane %v4092, 2
        %v4197 = vrot.slane %v4093, 2
        %v4198 = vsel %vm2729, %v4196, %v4197
        %v4199 = vrot.slane %v4094, 2
        %v4200 = vsel %vm2729, %v4197, %v4199
        %v4201 = vrot.slane %v4095, 2
        %v4202 = vrot.slane %v4096, 2
        %v4203 = vsel %vm2729, %v4201, %v4202
        %v4204 = vrot.slane %v4097, 2
        %v4205 = vsel %vm2729, %v4202, %v4204
        %v4206 = vrot.slane %v4098, 2
        %v4207 = vrot.slane %v4099, 2
        %v4208 = vsel %vm2729, %v4206, %v4207
        %v4209 = vrot.slane %v4100, 2
        %v4210 = vsel %vm2729, %v4207, %v4209
        %v4211 = vrot.slane %v4101, 2
        %v4212 = vrot.slane %v4102, 2
        %v4213 = vsel %vm2729, %v4211, %v4212
        %v4214 = vrot.slane %v4103, 2
        %v4215 = vsel %vm2729, %v4212, %v4214
        %v4216 = vrot.slane %v4104, 2
        %v4217 = vrot.slane %v4105, 2
        %v4218 = vsel %vm2729, %v4216, %v4217
        %v4219 = vrot.slane %v4106, 2
        %v4220 = vsel %vm2729, %v4217, %v4219
        %v4221 = vrot.slane %v4107, 2
        %v4222 = vrot.slane %v4108, 2
        %v4223 = vsel %vm2729, %v4221, %v4222
        %v4224 = vrot.slane %v4109, 2
        %v4225 = vsel %vm2729, %v4222, %v4224
        %v4226 = vrot.slane %v4110, 2
        %v4227 = vrot.slane %v4111, 2
        %v4228 = vsel %vm2729, %v4226, %v4227
        %v4229 = vrot.slane %v4112, 2
        %v4230 = vsel %vm2729, %v4227, %v4229
        %v4231 = vrot.slane %v4113, 2
        %v4232 = vrot.slane %v4114, 2
        %v4233 = vsel %vm2729, %v4231, %v4232
        %v4234 = vrot.slane %v4115, 2
        %v4235 = vsel %vm2729, %v4232, %v4234
        %v4236 = vrot.slane %v4116, 2
        %v4237 = vrot.slane %v4117, 2
        %v4238 = vsel %vm2729, %v4236, %v4237
        %v4239 = vrot.slane %v4118, 2
        %v4240 = vsel %vm2729, %v4237, %v4239
        %v4241 = vrot.slane %v4119, 2
        %v4242 = vrot.slane %v4120, 2
        %v4243 = vsel %vm2729, %v4241, %v4242
        %v4244 = vrot.slane %v4121, 2
        %v4245 = vsel %vm2729, %v4242, %v4244
        %v4246 = vrot.slane %v4122, 2
        %v4247 = vrot.slane %v4123, 2
        %v4248 = vsel %vm2729, %v4246, %v4247
        %v4249 = vrot.slane %v4124, 2
        %v4250 = vsel %vm2729, %v4247, %v4249
        %v4251 = vrot.slane %v4125, 2
        %v4252 = vrot.slane %v4126, 2
        %v4253 = vsel %vm2729, %v4251, %v4252
        %v4254 = vrot.slane %v4127, 2
        %v4255 = vsel %vm2729, %v4252, %v4254
        %v4288 = vadd.f32 %v4047, %v4178
        %v4289 = vadd.f32 %v4048, %v4180
        %v4290 = vadd.f32 %v4049, %v4183
        %v4291 = vadd.f32 %v4050, %v4185
        %v4292 = vadd.f32 %v4051, %v4188
        %v4293 = vadd.f32 %v4052, %v4190
        %v4294 = vadd.f32 %v4053, %v4193
        %v4295 = vadd.f32 %v4054, %v4195
        %v4296 = vadd.f32 %v4055, %v4198
        %v4297 = vadd.f32 %v4056, %v4200
        %v4298 = vadd.f32 %v4057, %v4203
        %v4299 = vadd.f32 %v4058, %v4205
        %v4300 = vadd.f32 %v4059, %v4208
        %v4301 = vadd.f32 %v4060, %v4210
        %v4302 = vadd.f32 %v4061, %v4213
        %v4303 = vadd.f32 %v4062, %v4215
        %v4304 = vadd.f32 %v4063, %v4218
        %v4305 = vadd.f32 %v4064, %v4220
        %v4306 = vadd.f32 %v4065, %v4223
        %v4307 = vadd.f32 %v4066, %v4225
        %v4308 = vadd.f32 %v4067, %v4228
        %v4309 = vadd.f32 %v4068, %v4230
        %v4310 = vadd.f32 %v4069, %v4233
        %v4311 = vadd.f32 %v4070, %v4235
        %v4312 = vadd.f32 %v4071, %v4238
        %v4313 = vadd.f32 %v4072, %v4240
        %v4314 = vadd.f32 %v4073, %v4243
        %v4315 = vadd.f32 %v4074, %v4245
        %v4316 = vadd.f32 %v4075, %v4248
        %v4317 = vadd.f32 %v4076, %v4250
        %v4318 = vadd.f32 %v4077, %v4253
        %v4319 = vadd.f32 %v4078, %v4255
        %v4320 = vperm.slane %v478, 3
        %v4321 = vmul.f32 %v412, %v4320
        %v4322 = vmul.f32 %v413, %v4320
        %v4323 = vmul.f32 %v414, %v4320
        %v4324 = vmul.f32 %v415, %v4320
        %v4325 = vmul.f32 %v416, %v4320
        %v4326 = vmul.f32 %v417, %v4320
        %v4327 = vmul.f32 %v418, %v4320
        %v4328 = vmul.f32 %v419, %v4320
        %v4329 = vmul.f32 %v420, %v4320
        %v4330 = vmul.f32 %v421, %v4320
        %v4331 = vmul.f32 %v422, %v4320
        %v4332 = vmul.f32 %v423, %v4320
        %v4333 = vmul.f32 %v424, %v4320
        %v4334 = vmul.f32 %v425, %v4320
        %v4335 = vmul.f32 %v426, %v4320
        %v4336 = vmul.f32 %v427, %v4320
        %v4337 = vmul.f32 %v428, %v4320
        %v4338 = vmul.f32 %v429, %v4320
        %v4339 = vmul.f32 %v430, %v4320
        %v4340 = vmul.f32 %v431, %v4320
        %v4341 = vmul.f32 %v432, %v4320
        %v4342 = vmul.f32 %v433, %v4320
        %v4343 = vmul.f32 %v434, %v4320
        %v4344 = vmul.f32 %v435, %v4320
        %v4345 = vmul.f32 %v436, %v4320
        %v4346 = vmul.f32 %v437, %v4320
        %v4347 = vmul.f32 %v438, %v4320
        %v4348 = vmul.f32 %v439, %v4320
        %v4349 = vmul.f32 %v440, %v4320
        %v4350 = vmul.f32 %v441, %v4320
        %v4351 = vmul.f32 %v442, %v4320
        %v4352 = vmul.f32 %v443, %v4320
        %v4353 = vmul.f32 %v444, %v4320
        %v4354 = vmul.f32 %v445, %v4320
        %v4355 = vmul.f32 %v446, %v4320
        %v4356 = vmul.f32 %v447, %v4320
        %v4357 = vmul.f32 %v448, %v4320
        %v4358 = vmul.f32 %v449, %v4320
        %v4359 = vmul.f32 %v450, %v4320
        %v4360 = vmul.f32 %v451, %v4320
        %v4361 = vmul.f32 %v452, %v4320
        %v4362 = vmul.f32 %v453, %v4320
        %v4363 = vmul.f32 %v454, %v4320
        %v4364 = vmul.f32 %v455, %v4320
        %v4365 = vmul.f32 %v456, %v4320
        %v4366 = vmul.f32 %v457, %v4320
        %v4367 = vmul.f32 %v458, %v4320
        %v4368 = vmul.f32 %v459, %v4320
        %vm4417 = vcmask 1044480
        %v4418 = vrot.slane %v4321, 3
        %v4419 = vrot.slane %v4322, 3
        %v4420 = vsel %vm4417, %v4418, %v4419
        %v4421 = vrot.slane %v4323, 3
        %v4422 = vsel %vm4417, %v4419, %v4421
        %v4423 = vrot.slane %v4324, 3
        %v4424 = vrot.slane %v4325, 3
        %v4425 = vsel %vm4417, %v4423, %v4424
        %v4426 = vrot.slane %v4326, 3
        %v4427 = vsel %vm4417, %v4424, %v4426
        %v4428 = vrot.slane %v4327, 3
        %v4429 = vrot.slane %v4328, 3
        %v4430 = vsel %vm4417, %v4428, %v4429
        %v4431 = vrot.slane %v4329, 3
        %v4432 = vsel %vm4417, %v4429, %v4431
        %v4433 = vrot.slane %v4330, 3
        %v4434 = vrot.slane %v4331, 3
        %v4435 = vsel %vm4417, %v4433, %v4434
        %v4436 = vrot.slane %v4332, 3
        %v4437 = vsel %vm4417, %v4434, %v4436
        %v4438 = vrot.slane %v4333, 3
        %v4439 = vrot.slane %v4334, 3
        %v4440 = vsel %vm4417, %v4438, %v4439
        %v4441 = vrot.slane %v4335, 3
        %v4442 = vsel %vm4417, %v4439, %v4441
        %v4443 = vrot.slane %v4336, 3
        %v4444 = vrot.slane %v4337, 3
        %v4445 = vsel %vm4417, %v4443, %v4444
        %v4446 = vrot.slane %v4338, 3
        %v4447 = vsel %vm4417, %v4444, %v4446
        %v4448 = vrot.slane %v4339, 3
        %v4449 = vrot.slane %v4340, 3
        %v4450 = vsel %vm4417, %v4448, %v4449
        %v4451 = vrot.slane %v4341, 3
        %v4452 = vsel %vm4417, %v4449, %v4451
        %v4453 = vrot.slane %v4342, 3
        %v4454 = vrot.slane %v4343, 3
        %v4455 = vsel %vm4417, %v4453, %v4454
        %v4456 = vrot.slane %v4344, 3
        %v4457 = vsel %vm4417, %v4454, %v4456
        %v4458 = vrot.slane %v4345, 3
        %v4459 = vrot.slane %v4346, 3
        %v4460 = vsel %vm4417, %v4458, %v4459
        %v4461 = vrot.slane %v4347, 3
        %v4462 = vsel %vm4417, %v4459, %v4461
        %v4463 = vrot.slane %v4348, 3
        %v4464 = vrot.slane %v4349, 3
        %v4465 = vsel %vm4417, %v4463, %v4464
        %v4466 = vrot.slane %v4350, 3
        %v4467 = vsel %vm4417, %v4464, %v4466
        %v4468 = vrot.slane %v4351, 3
        %v4469 = vrot.slane %v4352, 3
        %v4470 = vsel %vm4417, %v4468, %v4469
        %v4471 = vrot.slane %v4353, 3
        %v4472 = vsel %vm4417, %v4469, %v4471
        %v4473 = vrot.slane %v4354, 3
        %v4474 = vrot.slane %v4355, 3
        %v4475 = vsel %vm4417, %v4473, %v4474
        %v4476 = vrot.slane %v4356, 3
        %v4477 = vsel %vm4417, %v4474, %v4476
        %v4478 = vrot.slane %v4357, 3
        %v4479 = vrot.slane %v4358, 3
        %v4480 = vsel %vm4417, %v4478, %v4479
        %v4481 = vrot.slane %v4359, 3
        %v4482 = vsel %vm4417, %v4479, %v4481
        %v4483 = vrot.slane %v4360, 3
        %v4484 = vrot.slane %v4361, 3
        %v4485 = vsel %vm4417, %v4483, %v4484
        %v4486 = vrot.slane %v4362, 3
        %v4487 = vsel %vm4417, %v4484, %v4486
        %v4488 = vrot.slane %v4363, 3
        %v4489 = vrot.slane %v4364, 3
        %v4490 = vsel %vm4417, %v4488, %v4489
        %v4491 = vrot.slane %v4365, 3
        %v4492 = vsel %vm4417, %v4489, %v4491
        %v4493 = vrot.slane %v4366, 3
        %v4494 = vrot.slane %v4367, 3
        %v4495 = vsel %vm4417, %v4493, %v4494
        %v4496 = vrot.slane %v4368, 3
        %v4497 = vsel %vm4417, %v4494, %v4496
        %v4530 = vadd.f32 %v4288, %v4420
        %v4531 = vadd.f32 %v4289, %v4422
        %v4532 = vadd.f32 %v4290, %v4425
        %v4533 = vadd.f32 %v4291, %v4427
        %v4534 = vadd.f32 %v4292, %v4430
        %v4535 = vadd.f32 %v4293, %v4432
        %v4536 = vadd.f32 %v4294, %v4435
        %v4537 = vadd.f32 %v4295, %v4437
        %v4538 = vadd.f32 %v4296, %v4440
        %v4539 = vadd.f32 %v4297, %v4442
        %v4540 = vadd.f32 %v4298, %v4445
        %v4541 = vadd.f32 %v4299, %v4447
        %v4542 = vadd.f32 %v4300, %v4450
        %v4543 = vadd.f32 %v4301, %v4452
        %v4544 = vadd.f32 %v4302, %v4455
        %v4545 = vadd.f32 %v4303, %v4457
        %v4546 = vadd.f32 %v4304, %v4460
        %v4547 = vadd.f32 %v4305, %v4462
        %v4548 = vadd.f32 %v4306, %v4465
        %v4549 = vadd.f32 %v4307, %v4467
        %v4550 = vadd.f32 %v4308, %v4470
        %v4551 = vadd.f32 %v4309, %v4472
        %v4552 = vadd.f32 %v4310, %v4475
        %v4553 = vadd.f32 %v4311, %v4477
        %v4554 = vadd.f32 %v4312, %v4480
        %v4555 = vadd.f32 %v4313, %v4482
        %v4556 = vadd.f32 %v4314, %v4485
        %v4557 = vadd.f32 %v4315, %v4487
        %v4558 = vadd.f32 %v4316, %v4490
        %v4559 = vadd.f32 %v4317, %v4492
        %v4560 = vadd.f32 %v4318, %v4495
        %v4561 = vadd.f32 %v4319, %v4497
        %v4562 = vperm.slane %v479, 2
        %v4563 = vmul.f32 %v415, %v4562
        %v4564 = vmul.f32 %v416, %v4562
        %v4565 = vmul.f32 %v417, %v4562
        %v4566 = vmul.f32 %v418, %v4562
        %v4567 = vmul.f32 %v419, %v4562
        %v4568 = vmul.f32 %v420, %v4562
        %v4569 = vmul.f32 %v421, %v4562
        %v4570 = vmul.f32 %v422, %v4562
        %v4571 = vmul.f32 %v423, %v4562
        %v4572 = vmul.f32 %v424, %v4562
        %v4573 = vmul.f32 %v425, %v4562
        %v4574 = vmul.f32 %v426, %v4562
        %v4575 = vmul.f32 %v427, %v4562
        %v4576 = vmul.f32 %v428, %v4562
        %v4577 = vmul.f32 %v429, %v4562
        %v4578 = vmul.f32 %v430, %v4562
        %v4579 = vmul.f32 %v431, %v4562
        %v4580 = vmul.f32 %v432, %v4562
        %v4581 = vmul.f32 %v433, %v4562
        %v4582 = vmul.f32 %v434, %v4562
        %v4583 = vmul.f32 %v435, %v4562
        %v4584 = vmul.f32 %v436, %v4562
        %v4585 = vmul.f32 %v437, %v4562
        %v4586 = vmul.f32 %v438, %v4562
        %v4587 = vmul.f32 %v439, %v4562
        %v4588 = vmul.f32 %v440, %v4562
        %v4589 = vmul.f32 %v441, %v4562
        %v4590 = vmul.f32 %v442, %v4562
        %v4591 = vmul.f32 %v443, %v4562
        %v4592 = vmul.f32 %v444, %v4562
        %v4593 = vmul.f32 %v445, %v4562
        %v4594 = vmul.f32 %v446, %v4562
        %v4595 = vmul.f32 %v447, %v4562
        %v4596 = vmul.f32 %v448, %v4562
        %v4597 = vmul.f32 %v449, %v4562
        %v4598 = vmul.f32 %v450, %v4562
        %v4599 = vmul.f32 %v451, %v4562
        %v4600 = vmul.f32 %v452, %v4562
        %v4601 = vmul.f32 %v453, %v4562
        %v4602 = vmul.f32 %v454, %v4562
        %v4603 = vmul.f32 %v455, %v4562
        %v4604 = vmul.f32 %v456, %v4562
        %v4605 = vmul.f32 %v457, %v4562
        %v4606 = vmul.f32 %v458, %v4562
        %v4607 = vmul.f32 %v459, %v4562
        %v4608 = vmul.f32 %v460, %v4562
        %v4609 = vmul.f32 %v461, %v4562
        %v4610 = vmul.f32 %v462, %v4562
        %v4659 = vrot.slane %v4563, 3
        %v4660 = vrot.slane %v4564, 3
        %v4661 = vsel %vm4417, %v4659, %v4660
        %v4662 = vrot.slane %v4565, 3
        %v4663 = vsel %vm4417, %v4660, %v4662
        %v4664 = vrot.slane %v4566, 3
        %v4665 = vrot.slane %v4567, 3
        %v4666 = vsel %vm4417, %v4664, %v4665
        %v4667 = vrot.slane %v4568, 3
        %v4668 = vsel %vm4417, %v4665, %v4667
        %v4669 = vrot.slane %v4569, 3
        %v4670 = vrot.slane %v4570, 3
        %v4671 = vsel %vm4417, %v4669, %v4670
        %v4672 = vrot.slane %v4571, 3
        %v4673 = vsel %vm4417, %v4670, %v4672
        %v4674 = vrot.slane %v4572, 3
        %v4675 = vrot.slane %v4573, 3
        %v4676 = vsel %vm4417, %v4674, %v4675
        %v4677 = vrot.slane %v4574, 3
        %v4678 = vsel %vm4417, %v4675, %v4677
        %v4679 = vrot.slane %v4575, 3
        %v4680 = vrot.slane %v4576, 3
        %v4681 = vsel %vm4417, %v4679, %v4680
        %v4682 = vrot.slane %v4577, 3
        %v4683 = vsel %vm4417, %v4680, %v4682
        %v4684 = vrot.slane %v4578, 3
        %v4685 = vrot.slane %v4579, 3
        %v4686 = vsel %vm4417, %v4684, %v4685
        %v4687 = vrot.slane %v4580, 3
        %v4688 = vsel %vm4417, %v4685, %v4687
        %v4689 = vrot.slane %v4581, 3
        %v4690 = vrot.slane %v4582, 3
        %v4691 = vsel %vm4417, %v4689, %v4690
        %v4692 = vrot.slane %v4583, 3
        %v4693 = vsel %vm4417, %v4690, %v4692
        %v4694 = vrot.slane %v4584, 3
        %v4695 = vrot.slane %v4585, 3
        %v4696 = vsel %vm4417, %v4694, %v4695
        %v4697 = vrot.slane %v4586, 3
        %v4698 = vsel %vm4417, %v4695, %v4697
        %v4699 = vrot.slane %v4587, 3
        %v4700 = vrot.slane %v4588, 3
        %v4701 = vsel %vm4417, %v4699, %v4700
        %v4702 = vrot.slane %v4589, 3
        %v4703 = vsel %vm4417, %v4700, %v4702
        %v4704 = vrot.slane %v4590, 3
        %v4705 = vrot.slane %v4591, 3
        %v4706 = vsel %vm4417, %v4704, %v4705
        %v4707 = vrot.slane %v4592, 3
        %v4708 = vsel %vm4417, %v4705, %v4707
        %v4709 = vrot.slane %v4593, 3
        %v4710 = vrot.slane %v4594, 3
        %v4711 = vsel %vm4417, %v4709, %v4710
        %v4712 = vrot.slane %v4595, 3
        %v4713 = vsel %vm4417, %v4710, %v4712
        %v4714 = vrot.slane %v4596, 3
        %v4715 = vrot.slane %v4597, 3
        %v4716 = vsel %vm4417, %v4714, %v4715
        %v4717 = vrot.slane %v4598, 3
        %v4718 = vsel %vm4417, %v4715, %v4717
        %v4719 = vrot.slane %v4599, 3
        %v4720 = vrot.slane %v4600, 3
        %v4721 = vsel %vm4417, %v4719, %v4720
        %v4722 = vrot.slane %v4601, 3
        %v4723 = vsel %vm4417, %v4720, %v4722
        %v4724 = vrot.slane %v4602, 3
        %v4725 = vrot.slane %v4603, 3
        %v4726 = vsel %vm4417, %v4724, %v4725
        %v4727 = vrot.slane %v4604, 3
        %v4728 = vsel %vm4417, %v4725, %v4727
        %v4729 = vrot.slane %v4605, 3
        %v4730 = vrot.slane %v4606, 3
        %v4731 = vsel %vm4417, %v4729, %v4730
        %v4732 = vrot.slane %v4607, 3
        %v4733 = vsel %vm4417, %v4730, %v4732
        %v4734 = vrot.slane %v4608, 3
        %v4735 = vrot.slane %v4609, 3
        %v4736 = vsel %vm4417, %v4734, %v4735
        %v4737 = vrot.slane %v4610, 3
        %v4738 = vsel %vm4417, %v4735, %v4737
        %v4771 = vadd.f32 %v4530, %v4661
        %v4772 = vadd.f32 %v4531, %v4663
        %v4773 = vadd.f32 %v4532, %v4666
        %v4774 = vadd.f32 %v4533, %v4668
        %v4775 = vadd.f32 %v4534, %v4671
        %v4776 = vadd.f32 %v4535, %v4673
        %v4777 = vadd.f32 %v4536, %v4676
        %v4778 = vadd.f32 %v4537, %v4678
        %v4779 = vadd.f32 %v4538, %v4681
        %v4780 = vadd.f32 %v4539, %v4683
        %v4781 = vadd.f32 %v4540, %v4686
        %v4782 = vadd.f32 %v4541, %v4688
        %v4783 = vadd.f32 %v4542, %v4691
        %v4784 = vadd.f32 %v4543, %v4693
        %v4785 = vadd.f32 %v4544, %v4696
        %v4786 = vadd.f32 %v4545, %v4698
        %v4787 = vadd.f32 %v4546, %v4701
        %v4788 = vadd.f32 %v4547, %v4703
        %v4789 = vadd.f32 %v4548, %v4706
        %v4790 = vadd.f32 %v4549, %v4708
        %v4791 = vadd.f32 %v4550, %v4711
        %v4792 = vadd.f32 %v4551, %v4713
        %v4793 = vadd.f32 %v4552, %v4716
        %v4794 = vadd.f32 %v4553, %v4718
        %v4795 = vadd.f32 %v4554, %v4721
        %v4796 = vadd.f32 %v4555, %v4723
        %v4797 = vadd.f32 %v4556, %v4726
        %v4798 = vadd.f32 %v4557, %v4728
        %v4799 = vadd.f32 %v4558, %v4731
        %v4800 = vadd.f32 %v4559, %v4733
        %v4801 = vadd.f32 %v4560, %v4736
        %v4802 = vadd.f32 %v4561, %v4738
        %v4803 = vperm.slane %v480, 1
        %v4804 = vmul.f32 %v418, %v4803
        %v4805 = vmul.f32 %v419, %v4803
        %v4806 = vmul.f32 %v420, %v4803
        %v4807 = vmul.f32 %v421, %v4803
        %v4808 = vmul.f32 %v422, %v4803
        %v4809 = vmul.f32 %v423, %v4803
        %v4810 = vmul.f32 %v424, %v4803
        %v4811 = vmul.f32 %v425, %v4803
        %v4812 = vmul.f32 %v426, %v4803
        %v4813 = vmul.f32 %v427, %v4803
        %v4814 = vmul.f32 %v428, %v4803
        %v4815 = vmul.f32 %v429, %v4803
        %v4816 = vmul.f32 %v430, %v4803
        %v4817 = vmul.f32 %v431, %v4803
        %v4818 = vmul.f32 %v432, %v4803
        %v4819 = vmul.f32 %v433, %v4803
        %v4820 = vmul.f32 %v434, %v4803
        %v4821 = vmul.f32 %v435, %v4803
        %v4822 = vmul.f32 %v436, %v4803
        %v4823 = vmul.f32 %v437, %v4803
        %v4824 = vmul.f32 %v438, %v4803
        %v4825 = vmul.f32 %v439, %v4803
        %v4826 = vmul.f32 %v440, %v4803
        %v4827 = vmul.f32 %v441, %v4803
        %v4828 = vmul.f32 %v442, %v4803
        %v4829 = vmul.f32 %v443, %v4803
        %v4830 = vmul.f32 %v444, %v4803
        %v4831 = vmul.f32 %v445, %v4803
        %v4832 = vmul.f32 %v446, %v4803
        %v4833 = vmul.f32 %v447, %v4803
        %v4834 = vmul.f32 %v448, %v4803
        %v4835 = vmul.f32 %v449, %v4803
        %v4836 = vmul.f32 %v450, %v4803
        %v4837 = vmul.f32 %v451, %v4803
        %v4838 = vmul.f32 %v452, %v4803
        %v4839 = vmul.f32 %v453, %v4803
        %v4840 = vmul.f32 %v454, %v4803
        %v4841 = vmul.f32 %v455, %v4803
        %v4842 = vmul.f32 %v456, %v4803
        %v4843 = vmul.f32 %v457, %v4803
        %v4844 = vmul.f32 %v458, %v4803
        %v4845 = vmul.f32 %v459, %v4803
        %v4846 = vmul.f32 %v460, %v4803
        %v4847 = vmul.f32 %v461, %v4803
        %v4848 = vmul.f32 %v462, %v4803
        %v4849 = vmul.f32 %v463, %v4803
        %v4850 = vmul.f32 %v464, %v4803
        %v4851 = vmul.f32 %v465, %v4803
        %v4900 = vrot.slane %v4804, 3
        %v4901 = vrot.slane %v4805, 3
        %v4902 = vsel %vm4417, %v4900, %v4901
        %v4903 = vrot.slane %v4806, 3
        %v4904 = vsel %vm4417, %v4901, %v4903
        %v4905 = vrot.slane %v4807, 3
        %v4906 = vrot.slane %v4808, 3
        %v4907 = vsel %vm4417, %v4905, %v4906
        %v4908 = vrot.slane %v4809, 3
        %v4909 = vsel %vm4417, %v4906, %v4908
        %v4910 = vrot.slane %v4810, 3
        %v4911 = vrot.slane %v4811, 3
        %v4912 = vsel %vm4417, %v4910, %v4911
        %v4913 = vrot.slane %v4812, 3
        %v4914 = vsel %vm4417, %v4911, %v4913
        %v4915 = vrot.slane %v4813, 3
        %v4916 = vrot.slane %v4814, 3
        %v4917 = vsel %vm4417, %v4915, %v4916
        %v4918 = vrot.slane %v4815, 3
        %v4919 = vsel %vm4417, %v4916, %v4918
        %v4920 = vrot.slane %v4816, 3
        %v4921 = vrot.slane %v4817, 3
        %v4922 = vsel %vm4417, %v4920, %v4921
        %v4923 = vrot.slane %v4818, 3
        %v4924 = vsel %vm4417, %v4921, %v4923
        %v4925 = vrot.slane %v4819, 3
        %v4926 = vrot.slane %v4820, 3
        %v4927 = vsel %vm4417, %v4925, %v4926
        %v4928 = vrot.slane %v4821, 3
        %v4929 = vsel %vm4417, %v4926, %v4928
        %v4930 = vrot.slane %v4822, 3
        %v4931 = vrot.slane %v4823, 3
        %v4932 = vsel %vm4417, %v4930, %v4931
        %v4933 = vrot.slane %v4824, 3
        %v4934 = vsel %vm4417, %v4931, %v4933
        %v4935 = vrot.slane %v4825, 3
        %v4936 = vrot.slane %v4826, 3
        %v4937 = vsel %vm4417, %v4935, %v4936
        %v4938 = vrot.slane %v4827, 3
        %v4939 = vsel %vm4417, %v4936, %v4938
        %v4940 = vrot.slane %v4828, 3
        %v4941 = vrot.slane %v4829, 3
        %v4942 = vsel %vm4417, %v4940, %v4941
        %v4943 = vrot.slane %v4830, 3
        %v4944 = vsel %vm4417, %v4941, %v4943
        %v4945 = vrot.slane %v4831, 3
        %v4946 = vrot.slane %v4832, 3
        %v4947 = vsel %vm4417, %v4945, %v4946
        %v4948 = vrot.slane %v4833, 3
        %v4949 = vsel %vm4417, %v4946, %v4948
        %v4950 = vrot.slane %v4834, 3
        %v4951 = vrot.slane %v4835, 3
        %v4952 = vsel %vm4417, %v4950, %v4951
        %v4953 = vrot.slane %v4836, 3
        %v4954 = vsel %vm4417, %v4951, %v4953
        %v4955 = vrot.slane %v4837, 3
        %v4956 = vrot.slane %v4838, 3
        %v4957 = vsel %vm4417, %v4955, %v4956
        %v4958 = vrot.slane %v4839, 3
        %v4959 = vsel %vm4417, %v4956, %v4958
        %v4960 = vrot.slane %v4840, 3
        %v4961 = vrot.slane %v4841, 3
        %v4962 = vsel %vm4417, %v4960, %v4961
        %v4963 = vrot.slane %v4842, 3
        %v4964 = vsel %vm4417, %v4961, %v4963
        %v4965 = vrot.slane %v4843, 3
        %v4966 = vrot.slane %v4844, 3
        %v4967 = vsel %vm4417, %v4965, %v4966
        %v4968 = vrot.slane %v4845, 3
        %v4969 = vsel %vm4417, %v4966, %v4968
        %v4970 = vrot.slane %v4846, 3
        %v4971 = vrot.slane %v4847, 3
        %v4972 = vsel %vm4417, %v4970, %v4971
        %v4973 = vrot.slane %v4848, 3
        %v4974 = vsel %vm4417, %v4971, %v4973
        %v4975 = vrot.slane %v4849, 3
        %v4976 = vrot.slane %v4850, 3
        %v4977 = vsel %vm4417, %v4975, %v4976
        %v4978 = vrot.slane %v4851, 3
        %v4979 = vsel %vm4417, %v4976, %v4978
        %v5012 = vadd.f32 %v4771, %v4902
        %v5013 = vadd.f32 %v4772, %v4904
        %v5014 = vadd.f32 %v4773, %v4907
        %v5015 = vadd.f32 %v4774, %v4909
        %v5016 = vadd.f32 %v4775, %v4912
        %v5017 = vadd.f32 %v4776, %v4914
        %v5018 = vadd.f32 %v4777, %v4917
        %v5019 = vadd.f32 %v4778, %v4919
        %v5020 = vadd.f32 %v4779, %v4922
        %v5021 = vadd.f32 %v4780, %v4924
        %v5022 = vadd.f32 %v4781, %v4927
        %v5023 = vadd.f32 %v4782, %v4929
        %v5024 = vadd.f32 %v4783, %v4932
        %v5025 = vadd.f32 %v4784, %v4934
        %v5026 = vadd.f32 %v4785, %v4937
        %v5027 = vadd.f32 %v4786, %v4939
        %v5028 = vadd.f32 %v4787, %v4942
        %v5029 = vadd.f32 %v4788, %v4944
        %v5030 = vadd.f32 %v4789, %v4947
        %v5031 = vadd.f32 %v4790, %v4949
        %v5032 = vadd.f32 %v4791, %v4952
        %v5033 = vadd.f32 %v4792, %v4954
        %v5034 = vadd.f32 %v4793, %v4957
        %v5035 = vadd.f32 %v4794, %v4959
        %v5036 = vadd.f32 %v4795, %v4962
        %v5037 = vadd.f32 %v4796, %v4964
        %v5038 = vadd.f32 %v4797, %v4967
        %v5039 = vadd.f32 %v4798, %v4969
        %v5040 = vadd.f32 %v4799, %v4972
        %v5041 = vadd.f32 %v4800, %v4974
        %v5042 = vadd.f32 %v4801, %v4977
        %v5043 = vadd.f32 %v4802, %v4979
        %v5044 = vperm.slane %v481, 0
        %v5045 = vmul.f32 %v421, %v5044
        %v5046 = vmul.f32 %v422, %v5044
        %v5047 = vmul.f32 %v423, %v5044
        %v5048 = vmul.f32 %v424, %v5044
        %v5049 = vmul.f32 %v425, %v5044
        %v5050 = vmul.f32 %v426, %v5044
        %v5051 = vmul.f32 %v427, %v5044
        %v5052 = vmul.f32 %v428, %v5044
        %v5053 = vmul.f32 %v429, %v5044
        %v5054 = vmul.f32 %v430, %v5044
        %v5055 = vmul.f32 %v431, %v5044
        %v5056 = vmul.f32 %v432, %v5044
        %v5057 = vmul.f32 %v433, %v5044
        %v5058 = vmul.f32 %v434, %v5044
        %v5059 = vmul.f32 %v435, %v5044
        %v5060 = vmul.f32 %v436, %v5044
        %v5061 = vmul.f32 %v437, %v5044
        %v5062 = vmul.f32 %v438, %v5044
        %v5063 = vmul.f32 %v439, %v5044
        %v5064 = vmul.f32 %v440, %v5044
        %v5065 = vmul.f32 %v441, %v5044
        %v5066 = vmul.f32 %v442, %v5044
        %v5067 = vmul.f32 %v443, %v5044
        %v5068 = vmul.f32 %v444, %v5044
        %v5069 = vmul.f32 %v445, %v5044
        %v5070 = vmul.f32 %v446, %v5044
        %v5071 = vmul.f32 %v447, %v5044
        %v5072 = vmul.f32 %v448, %v5044
        %v5073 = vmul.f32 %v449, %v5044
        %v5074 = vmul.f32 %v450, %v5044
        %v5075 = vmul.f32 %v451, %v5044
        %v5076 = vmul.f32 %v452, %v5044
        %v5077 = vmul.f32 %v453, %v5044
        %v5078 = vmul.f32 %v454, %v5044
        %v5079 = vmul.f32 %v455, %v5044
        %v5080 = vmul.f32 %v456, %v5044
        %v5081 = vmul.f32 %v457, %v5044
        %v5082 = vmul.f32 %v458, %v5044
        %v5083 = vmul.f32 %v459, %v5044
        %v5084 = vmul.f32 %v460, %v5044
        %v5085 = vmul.f32 %v461, %v5044
        %v5086 = vmul.f32 %v462, %v5044
        %v5087 = vmul.f32 %v463, %v5044
        %v5088 = vmul.f32 %v464, %v5044
        %v5089 = vmul.f32 %v465, %v5044
        %v5090 = vmul.f32 %v466, %v5044
        %v5091 = vmul.f32 %v467, %v5044
        %v5092 = vmul.f32 %v468, %v5044
        %v5141 = vrot.slane %v5045, 3
        %v5142 = vrot.slane %v5046, 3
        %v5143 = vsel %vm4417, %v5141, %v5142
        %v5144 = vrot.slane %v5047, 3
        %v5145 = vsel %vm4417, %v5142, %v5144
        %v5146 = vrot.slane %v5048, 3
        %v5147 = vrot.slane %v5049, 3
        %v5148 = vsel %vm4417, %v5146, %v5147
        %v5149 = vrot.slane %v5050, 3
        %v5150 = vsel %vm4417, %v5147, %v5149
        %v5151 = vrot.slane %v5051, 3
        %v5152 = vrot.slane %v5052, 3
        %v5153 = vsel %vm4417, %v5151, %v5152
        %v5154 = vrot.slane %v5053, 3
        %v5155 = vsel %vm4417, %v5152, %v5154
        %v5156 = vrot.slane %v5054, 3
        %v5157 = vrot.slane %v5055, 3
        %v5158 = vsel %vm4417, %v5156, %v5157
        %v5159 = vrot.slane %v5056, 3
        %v5160 = vsel %vm4417, %v5157, %v5159
        %v5161 = vrot.slane %v5057, 3
        %v5162 = vrot.slane %v5058, 3
        %v5163 = vsel %vm4417, %v5161, %v5162
        %v5164 = vrot.slane %v5059, 3
        %v5165 = vsel %vm4417, %v5162, %v5164
        %v5166 = vrot.slane %v5060, 3
        %v5167 = vrot.slane %v5061, 3
        %v5168 = vsel %vm4417, %v5166, %v5167
        %v5169 = vrot.slane %v5062, 3
        %v5170 = vsel %vm4417, %v5167, %v5169
        %v5171 = vrot.slane %v5063, 3
        %v5172 = vrot.slane %v5064, 3
        %v5173 = vsel %vm4417, %v5171, %v5172
        %v5174 = vrot.slane %v5065, 3
        %v5175 = vsel %vm4417, %v5172, %v5174
        %v5176 = vrot.slane %v5066, 3
        %v5177 = vrot.slane %v5067, 3
        %v5178 = vsel %vm4417, %v5176, %v5177
        %v5179 = vrot.slane %v5068, 3
        %v5180 = vsel %vm4417, %v5177, %v5179
        %v5181 = vrot.slane %v5069, 3
        %v5182 = vrot.slane %v5070, 3
        %v5183 = vsel %vm4417, %v5181, %v5182
        %v5184 = vrot.slane %v5071, 3
        %v5185 = vsel %vm4417, %v5182, %v5184
        %v5186 = vrot.slane %v5072, 3
        %v5187 = vrot.slane %v5073, 3
        %v5188 = vsel %vm4417, %v5186, %v5187
        %v5189 = vrot.slane %v5074, 3
        %v5190 = vsel %vm4417, %v5187, %v5189
        %v5191 = vrot.slane %v5075, 3
        %v5192 = vrot.slane %v5076, 3
        %v5193 = vsel %vm4417, %v5191, %v5192
        %v5194 = vrot.slane %v5077, 3
        %v5195 = vsel %vm4417, %v5192, %v5194
        %v5196 = vrot.slane %v5078, 3
        %v5197 = vrot.slane %v5079, 3
        %v5198 = vsel %vm4417, %v5196, %v5197
        %v5199 = vrot.slane %v5080, 3
        %v5200 = vsel %vm4417, %v5197, %v5199
        %v5201 = vrot.slane %v5081, 3
        %v5202 = vrot.slane %v5082, 3
        %v5203 = vsel %vm4417, %v5201, %v5202
        %v5204 = vrot.slane %v5083, 3
        %v5205 = vsel %vm4417, %v5202, %v5204
        %v5206 = vrot.slane %v5084, 3
        %v5207 = vrot.slane %v5085, 3
        %v5208 = vsel %vm4417, %v5206, %v5207
        %v5209 = vrot.slane %v5086, 3
        %v5210 = vsel %vm4417, %v5207, %v5209
        %v5211 = vrot.slane %v5087, 3
        %v5212 = vrot.slane %v5088, 3
        %v5213 = vsel %vm4417, %v5211, %v5212
        %v5214 = vrot.slane %v5089, 3
        %v5215 = vsel %vm4417, %v5212, %v5214
        %v5216 = vrot.slane %v5090, 3
        %v5217 = vrot.slane %v5091, 3
        %v5218 = vsel %vm4417, %v5216, %v5217
        %v5219 = vrot.slane %v5092, 3
        %v5220 = vsel %vm4417, %v5217, %v5219
        %v5253 = vadd.f32 %v5012, %v5143
        %v5254 = vadd.f32 %v5013, %v5145
        %v5255 = vadd.f32 %v5014, %v5148
        %v5256 = vadd.f32 %v5015, %v5150
        %v5257 = vadd.f32 %v5016, %v5153
        %v5258 = vadd.f32 %v5017, %v5155
        %v5259 = vadd.f32 %v5018, %v5158
        %v5260 = vadd.f32 %v5019, %v5160
        %v5261 = vadd.f32 %v5020, %v5163
        %v5262 = vadd.f32 %v5021, %v5165
        %v5263 = vadd.f32 %v5022, %v5168
        %v5264 = vadd.f32 %v5023, %v5170
        %v5265 = vadd.f32 %v5024, %v5173
        %v5266 = vadd.f32 %v5025, %v5175
        %v5267 = vadd.f32 %v5026, %v5178
        %v5268 = vadd.f32 %v5027, %v5180
        %v5269 = vadd.f32 %v5028, %v5183
        %v5270 = vadd.f32 %v5029, %v5185
        %v5271 = vadd.f32 %v5030, %v5188
        %v5272 = vadd.f32 %v5031, %v5190
        %v5273 = vadd.f32 %v5032, %v5193
        %v5274 = vadd.f32 %v5033, %v5195
        %v5275 = vadd.f32 %v5034, %v5198
        %v5276 = vadd.f32 %v5035, %v5200
        %v5277 = vadd.f32 %v5036, %v5203
        %v5278 = vadd.f32 %v5037, %v5205
        %v5279 = vadd.f32 %v5038, %v5208
        %v5280 = vadd.f32 %v5039, %v5210
        %v5281 = vadd.f32 %v5040, %v5213
        %v5282 = vadd.f32 %v5041, %v5215
        %v5283 = vadd.f32 %v5042, %v5218
        %v5284 = vadd.f32 %v5043, %v5220
        %v5285 = vperm.slane %v481, 7
        %v5286 = vmul.f32 %v424, %v5285
        %v5287 = vmul.f32 %v425, %v5285
        %v5288 = vmul.f32 %v426, %v5285
        %v5289 = vmul.f32 %v427, %v5285
        %v5290 = vmul.f32 %v428, %v5285
        %v5291 = vmul.f32 %v429, %v5285
        %v5292 = vmul.f32 %v430, %v5285
        %v5293 = vmul.f32 %v431, %v5285
        %v5294 = vmul.f32 %v432, %v5285
        %v5295 = vmul.f32 %v433, %v5285
        %v5296 = vmul.f32 %v434, %v5285
        %v5297 = vmul.f32 %v435, %v5285
        %v5298 = vmul.f32 %v436, %v5285
        %v5299 = vmul.f32 %v437, %v5285
        %v5300 = vmul.f32 %v438, %v5285
        %v5301 = vmul.f32 %v439, %v5285
        %v5302 = vmul.f32 %v440, %v5285
        %v5303 = vmul.f32 %v441, %v5285
        %v5304 = vmul.f32 %v442, %v5285
        %v5305 = vmul.f32 %v443, %v5285
        %v5306 = vmul.f32 %v444, %v5285
        %v5307 = vmul.f32 %v445, %v5285
        %v5308 = vmul.f32 %v446, %v5285
        %v5309 = vmul.f32 %v447, %v5285
        %v5310 = vmul.f32 %v448, %v5285
        %v5311 = vmul.f32 %v449, %v5285
        %v5312 = vmul.f32 %v450, %v5285
        %v5313 = vmul.f32 %v451, %v5285
        %v5314 = vmul.f32 %v452, %v5285
        %v5315 = vmul.f32 %v453, %v5285
        %v5316 = vmul.f32 %v454, %v5285
        %v5317 = vmul.f32 %v455, %v5285
        %v5318 = vmul.f32 %v456, %v5285
        %v5319 = vmul.f32 %v457, %v5285
        %v5320 = vmul.f32 %v458, %v5285
        %v5321 = vmul.f32 %v459, %v5285
        %v5322 = vmul.f32 %v460, %v5285
        %v5323 = vmul.f32 %v461, %v5285
        %v5324 = vmul.f32 %v462, %v5285
        %v5325 = vmul.f32 %v463, %v5285
        %v5326 = vmul.f32 %v464, %v5285
        %v5327 = vmul.f32 %v465, %v5285
        %v5328 = vmul.f32 %v466, %v5285
        %v5329 = vmul.f32 %v467, %v5285
        %v5330 = vmul.f32 %v468, %v5285
        %v5331 = vmul.f32 %v469, %v5285
        %v5332 = vmul.f32 %v470, %v5285
        %v5333 = vmul.f32 %v471, %v5285
        %v5382 = vrot.slane %v5286, 3
        %v5383 = vrot.slane %v5287, 3
        %v5384 = vsel %vm4417, %v5382, %v5383
        %v5385 = vrot.slane %v5288, 3
        %v5386 = vsel %vm4417, %v5383, %v5385
        %v5387 = vrot.slane %v5289, 3
        %v5388 = vrot.slane %v5290, 3
        %v5389 = vsel %vm4417, %v5387, %v5388
        %v5390 = vrot.slane %v5291, 3
        %v5391 = vsel %vm4417, %v5388, %v5390
        %v5392 = vrot.slane %v5292, 3
        %v5393 = vrot.slane %v5293, 3
        %v5394 = vsel %vm4417, %v5392, %v5393
        %v5395 = vrot.slane %v5294, 3
        %v5396 = vsel %vm4417, %v5393, %v5395
        %v5397 = vrot.slane %v5295, 3
        %v5398 = vrot.slane %v5296, 3
        %v5399 = vsel %vm4417, %v5397, %v5398
        %v5400 = vrot.slane %v5297, 3
        %v5401 = vsel %vm4417, %v5398, %v5400
        %v5402 = vrot.slane %v5298, 3
        %v5403 = vrot.slane %v5299, 3
        %v5404 = vsel %vm4417, %v5402, %v5403
        %v5405 = vrot.slane %v5300, 3
        %v5406 = vsel %vm4417, %v5403, %v5405
        %v5407 = vrot.slane %v5301, 3
        %v5408 = vrot.slane %v5302, 3
        %v5409 = vsel %vm4417, %v5407, %v5408
        %v5410 = vrot.slane %v5303, 3
        %v5411 = vsel %vm4417, %v5408, %v5410
        %v5412 = vrot.slane %v5304, 3
        %v5413 = vrot.slane %v5305, 3
        %v5414 = vsel %vm4417, %v5412, %v5413
        %v5415 = vrot.slane %v5306, 3
        %v5416 = vsel %vm4417, %v5413, %v5415
        %v5417 = vrot.slane %v5307, 3
        %v5418 = vrot.slane %v5308, 3
        %v5419 = vsel %vm4417, %v5417, %v5418
        %v5420 = vrot.slane %v5309, 3
        %v5421 = vsel %vm4417, %v5418, %v5420
        %v5422 = vrot.slane %v5310, 3
        %v5423 = vrot.slane %v5311, 3
        %v5424 = vsel %vm4417, %v5422, %v5423
        %v5425 = vrot.slane %v5312, 3
        %v5426 = vsel %vm4417, %v5423, %v5425
        %v5427 = vrot.slane %v5313, 3
        %v5428 = vrot.slane %v5314, 3
        %v5429 = vsel %vm4417, %v5427, %v5428
        %v5430 = vrot.slane %v5315, 3
        %v5431 = vsel %vm4417, %v5428, %v5430
        %v5432 = vrot.slane %v5316, 3
        %v5433 = vrot.slane %v5317, 3
        %v5434 = vsel %vm4417, %v5432, %v5433
        %v5435 = vrot.slane %v5318, 3
        %v5436 = vsel %vm4417, %v5433, %v5435
        %v5437 = vrot.slane %v5319, 3
        %v5438 = vrot.slane %v5320, 3
        %v5439 = vsel %vm4417, %v5437, %v5438
        %v5440 = vrot.slane %v5321, 3
        %v5441 = vsel %vm4417, %v5438, %v5440
        %v5442 = vrot.slane %v5322, 3
        %v5443 = vrot.slane %v5323, 3
        %v5444 = vsel %vm4417, %v5442, %v5443
        %v5445 = vrot.slane %v5324, 3
        %v5446 = vsel %vm4417, %v5443, %v5445
        %v5447 = vrot.slane %v5325, 3
        %v5448 = vrot.slane %v5326, 3
        %v5449 = vsel %vm4417, %v5447, %v5448
        %v5450 = vrot.slane %v5327, 3
        %v5451 = vsel %vm4417, %v5448, %v5450
        %v5452 = vrot.slane %v5328, 3
        %v5453 = vrot.slane %v5329, 3
        %v5454 = vsel %vm4417, %v5452, %v5453
        %v5455 = vrot.slane %v5330, 3
        %v5456 = vsel %vm4417, %v5453, %v5455
        %v5457 = vrot.slane %v5331, 3
        %v5458 = vrot.slane %v5332, 3
        %v5459 = vsel %vm4417, %v5457, %v5458
        %v5460 = vrot.slane %v5333, 3
        %v5461 = vsel %vm4417, %v5458, %v5460
        %v5494 = vadd.f32 %v5253, %v5384
        %v5495 = vadd.f32 %v5254, %v5386
        %v5496 = vadd.f32 %v5255, %v5389
        %v5497 = vadd.f32 %v5256, %v5391
        %v5498 = vadd.f32 %v5257, %v5394
        %v5499 = vadd.f32 %v5258, %v5396
        %v5500 = vadd.f32 %v5259, %v5399
        %v5501 = vadd.f32 %v5260, %v5401
        %v5502 = vadd.f32 %v5261, %v5404
        %v5503 = vadd.f32 %v5262, %v5406
        %v5504 = vadd.f32 %v5263, %v5409
        %v5505 = vadd.f32 %v5264, %v5411
        %v5506 = vadd.f32 %v5265, %v5414
        %v5507 = vadd.f32 %v5266, %v5416
        %v5508 = vadd.f32 %v5267, %v5419
        %v5509 = vadd.f32 %v5268, %v5421
        %v5510 = vadd.f32 %v5269, %v5424
        %v5511 = vadd.f32 %v5270, %v5426
        %v5512 = vadd.f32 %v5271, %v5429
        %v5513 = vadd.f32 %v5272, %v5431
        %v5514 = vadd.f32 %v5273, %v5434
        %v5515 = vadd.f32 %v5274, %v5436
        %v5516 = vadd.f32 %v5275, %v5439
        %v5517 = vadd.f32 %v5276, %v5441
        %v5518 = vadd.f32 %v5277, %v5444
        %v5519 = vadd.f32 %v5278, %v5446
        %v5520 = vadd.f32 %v5279, %v5449
        %v5521 = vadd.f32 %v5280, %v5451
        %v5522 = vadd.f32 %v5281, %v5454
        %v5523 = vadd.f32 %v5282, %v5456
        %v5524 = vadd.f32 %v5283, %v5459
        %v5525 = vadd.f32 %v5284, %v5461
        %v5526 = vperm.slane %v482, 6
        %v5527 = vmul.f32 %v427, %v5526
        %v5528 = vmul.f32 %v428, %v5526
        %v5529 = vmul.f32 %v429, %v5526
        %v5530 = vmul.f32 %v430, %v5526
        %v5531 = vmul.f32 %v431, %v5526
        %v5532 = vmul.f32 %v432, %v5526
        %v5533 = vmul.f32 %v433, %v5526
        %v5534 = vmul.f32 %v434, %v5526
        %v5535 = vmul.f32 %v435, %v5526
        %v5536 = vmul.f32 %v436, %v5526
        %v5537 = vmul.f32 %v437, %v5526
        %v5538 = vmul.f32 %v438, %v5526
        %v5539 = vmul.f32 %v439, %v5526
        %v5540 = vmul.f32 %v440, %v5526
        %v5541 = vmul.f32 %v441, %v5526
        %v5542 = vmul.f32 %v442, %v5526
        %v5543 = vmul.f32 %v443, %v5526
        %v5544 = vmul.f32 %v444, %v5526
        %v5545 = vmul.f32 %v445, %v5526
        %v5546 = vmul.f32 %v446, %v5526
        %v5547 = vmul.f32 %v447, %v5526
        %v5548 = vmul.f32 %v448, %v5526
        %v5549 = vmul.f32 %v449, %v5526
        %v5550 = vmul.f32 %v450, %v5526
        %v5551 = vmul.f32 %v451, %v5526
        %v5552 = vmul.f32 %v452, %v5526
        %v5553 = vmul.f32 %v453, %v5526
        %v5554 = vmul.f32 %v454, %v5526
        %v5555 = vmul.f32 %v455, %v5526
        %v5556 = vmul.f32 %v456, %v5526
        %v5557 = vmul.f32 %v457, %v5526
        %v5558 = vmul.f32 %v458, %v5526
        %v5559 = vmul.f32 %v459, %v5526
        %v5560 = vmul.f32 %v460, %v5526
        %v5561 = vmul.f32 %v461, %v5526
        %v5562 = vmul.f32 %v462, %v5526
        %v5563 = vmul.f32 %v463, %v5526
        %v5564 = vmul.f32 %v464, %v5526
        %v5565 = vmul.f32 %v465, %v5526
        %v5566 = vmul.f32 %v466, %v5526
        %v5567 = vmul.f32 %v467, %v5526
        %v5568 = vmul.f32 %v468, %v5526
        %v5569 = vmul.f32 %v469, %v5526
        %v5570 = vmul.f32 %v470, %v5526
        %v5571 = vmul.f32 %v471, %v5526
        %v5572 = vmul.f32 %v472, %v5526
        %v5573 = vmul.f32 %v473, %v5526
        %v5574 = vmul.f32 %v474, %v5526
        %v5623 = vrot.slane %v5527, 3
        %v5624 = vrot.slane %v5528, 3
        %v5625 = vsel %vm4417, %v5623, %v5624
        %v5626 = vrot.slane %v5529, 3
        %v5627 = vsel %vm4417, %v5624, %v5626
        %v5628 = vrot.slane %v5530, 3
        %v5629 = vrot.slane %v5531, 3
        %v5630 = vsel %vm4417, %v5628, %v5629
        %v5631 = vrot.slane %v5532, 3
        %v5632 = vsel %vm4417, %v5629, %v5631
        %v5633 = vrot.slane %v5533, 3
        %v5634 = vrot.slane %v5534, 3
        %v5635 = vsel %vm4417, %v5633, %v5634
        %v5636 = vrot.slane %v5535, 3
        %v5637 = vsel %vm4417, %v5634, %v5636
        %v5638 = vrot.slane %v5536, 3
        %v5639 = vrot.slane %v5537, 3
        %v5640 = vsel %vm4417, %v5638, %v5639
        %v5641 = vrot.slane %v5538, 3
        %v5642 = vsel %vm4417, %v5639, %v5641
        %v5643 = vrot.slane %v5539, 3
        %v5644 = vrot.slane %v5540, 3
        %v5645 = vsel %vm4417, %v5643, %v5644
        %v5646 = vrot.slane %v5541, 3
        %v5647 = vsel %vm4417, %v5644, %v5646
        %v5648 = vrot.slane %v5542, 3
        %v5649 = vrot.slane %v5543, 3
        %v5650 = vsel %vm4417, %v5648, %v5649
        %v5651 = vrot.slane %v5544, 3
        %v5652 = vsel %vm4417, %v5649, %v5651
        %v5653 = vrot.slane %v5545, 3
        %v5654 = vrot.slane %v5546, 3
        %v5655 = vsel %vm4417, %v5653, %v5654
        %v5656 = vrot.slane %v5547, 3
        %v5657 = vsel %vm4417, %v5654, %v5656
        %v5658 = vrot.slane %v5548, 3
        %v5659 = vrot.slane %v5549, 3
        %v5660 = vsel %vm4417, %v5658, %v5659
        %v5661 = vrot.slane %v5550, 3
        %v5662 = vsel %vm4417, %v5659, %v5661
        %v5663 = vrot.slane %v5551, 3
        %v5664 = vrot.slane %v5552, 3
        %v5665 = vsel %vm4417, %v5663, %v5664
        %v5666 = vrot.slane %v5553, 3
        %v5667 = vsel %vm4417, %v5664, %v5666
        %v5668 = vrot.slane %v5554, 3
        %v5669 = vrot.slane %v5555, 3
        %v5670 = vsel %vm4417, %v5668, %v5669
        %v5671 = vrot.slane %v5556, 3
        %v5672 = vsel %vm4417, %v5669, %v5671
        %v5673 = vrot.slane %v5557, 3
        %v5674 = vrot.slane %v5558, 3
        %v5675 = vsel %vm4417, %v5673, %v5674
        %v5676 = vrot.slane %v5559, 3
        %v5677 = vsel %vm4417, %v5674, %v5676
        %v5678 = vrot.slane %v5560, 3
        %v5679 = vrot.slane %v5561, 3
        %v5680 = vsel %vm4417, %v5678, %v5679
        %v5681 = vrot.slane %v5562, 3
        %v5682 = vsel %vm4417, %v5679, %v5681
        %v5683 = vrot.slane %v5563, 3
        %v5684 = vrot.slane %v5564, 3
        %v5685 = vsel %vm4417, %v5683, %v5684
        %v5686 = vrot.slane %v5565, 3
        %v5687 = vsel %vm4417, %v5684, %v5686
        %v5688 = vrot.slane %v5566, 3
        %v5689 = vrot.slane %v5567, 3
        %v5690 = vsel %vm4417, %v5688, %v5689
        %v5691 = vrot.slane %v5568, 3
        %v5692 = vsel %vm4417, %v5689, %v5691
        %v5693 = vrot.slane %v5569, 3
        %v5694 = vrot.slane %v5570, 3
        %v5695 = vsel %vm4417, %v5693, %v5694
        %v5696 = vrot.slane %v5571, 3
        %v5697 = vsel %vm4417, %v5694, %v5696
        %v5698 = vrot.slane %v5572, 3
        %v5699 = vrot.slane %v5573, 3
        %v5700 = vsel %vm4417, %v5698, %v5699
        %v5701 = vrot.slane %v5574, 3
        %v5702 = vsel %vm4417, %v5699, %v5701
        %v5735 = vadd.f32 %v5494, %v5625
        %v5736 = vadd.f32 %v5495, %v5627
        %v5737 = vadd.f32 %v5496, %v5630
        %v5738 = vadd.f32 %v5497, %v5632
        %v5739 = vadd.f32 %v5498, %v5635
        %v5740 = vadd.f32 %v5499, %v5637
        %v5741 = vadd.f32 %v5500, %v5640
        %v5742 = vadd.f32 %v5501, %v5642
        %v5743 = vadd.f32 %v5502, %v5645
        %v5744 = vadd.f32 %v5503, %v5647
        %v5745 = vadd.f32 %v5504, %v5650
        %v5746 = vadd.f32 %v5505, %v5652
        %v5747 = vadd.f32 %v5506, %v5655
        %v5748 = vadd.f32 %v5507, %v5657
        %v5749 = vadd.f32 %v5508, %v5660
        %v5750 = vadd.f32 %v5509, %v5662
        %v5751 = vadd.f32 %v5510, %v5665
        %v5752 = vadd.f32 %v5511, %v5667
        %v5753 = vadd.f32 %v5512, %v5670
        %v5754 = vadd.f32 %v5513, %v5672
        %v5755 = vadd.f32 %v5514, %v5675
        %v5756 = vadd.f32 %v5515, %v5677
        %v5757 = vadd.f32 %v5516, %v5680
        %v5758 = vadd.f32 %v5517, %v5682
        %v5759 = vadd.f32 %v5518, %v5685
        %v5760 = vadd.f32 %v5519, %v5687
        %v5761 = vadd.f32 %v5520, %v5690
        %v5762 = vadd.f32 %v5521, %v5692
        %v5763 = vadd.f32 %v5522, %v5695
        %v5764 = vadd.f32 %v5523, %v5697
        %v5765 = vadd.f32 %v5524, %v5700
        %v5766 = vadd.f32 %v5525, %v5702
        %v5767 = vperm.slane %v483, 5
        %v5768 = vmul.f32 %v430, %v5767
        %v5769 = vmul.f32 %v431, %v5767
        %v5770 = vmul.f32 %v432, %v5767
        %v5771 = vmul.f32 %v433, %v5767
        %v5772 = vmul.f32 %v434, %v5767
        %v5773 = vmul.f32 %v435, %v5767
        %v5774 = vmul.f32 %v436, %v5767
        %v5775 = vmul.f32 %v437, %v5767
        %v5776 = vmul.f32 %v438, %v5767
        %v5777 = vmul.f32 %v439, %v5767
        %v5778 = vmul.f32 %v440, %v5767
        %v5779 = vmul.f32 %v441, %v5767
        %v5780 = vmul.f32 %v442, %v5767
        %v5781 = vmul.f32 %v443, %v5767
        %v5782 = vmul.f32 %v444, %v5767
        %v5783 = vmul.f32 %v445, %v5767
        %v5784 = vmul.f32 %v446, %v5767
        %v5785 = vmul.f32 %v447, %v5767
        %v5786 = vmul.f32 %v448, %v5767
        %v5787 = vmul.f32 %v449, %v5767
        %v5788 = vmul.f32 %v450, %v5767
        %v5789 = vmul.f32 %v451, %v5767
        %v5790 = vmul.f32 %v452, %v5767
        %v5791 = vmul.f32 %v453, %v5767
        %v5792 = vmul.f32 %v454, %v5767
        %v5793 = vmul.f32 %v455, %v5767
        %v5794 = vmul.f32 %v456, %v5767
        %v5795 = vmul.f32 %v457, %v5767
        %v5796 = vmul.f32 %v458, %v5767
        %v5797 = vmul.f32 %v459, %v5767
        %v5798 = vmul.f32 %v460, %v5767
        %v5799 = vmul.f32 %v461, %v5767
        %v5800 = vmul.f32 %v462, %v5767
        %v5801 = vmul.f32 %v463, %v5767
        %v5802 = vmul.f32 %v464, %v5767
        %v5803 = vmul.f32 %v465, %v5767
        %v5804 = vmul.f32 %v466, %v5767
        %v5805 = vmul.f32 %v467, %v5767
        %v5806 = vmul.f32 %v468, %v5767
        %v5807 = vmul.f32 %v469, %v5767
        %v5808 = vmul.f32 %v470, %v5767
        %v5809 = vmul.f32 %v471, %v5767
        %v5810 = vmul.f32 %v472, %v5767
        %v5811 = vmul.f32 %v473, %v5767
        %v5812 = vmul.f32 %v474, %v5767
        %v5813 = vmul.f32 %v475, %v5767
        %v5814 = vmul.f32 %v476, %v5767
        %v5815 = vmul.f32 %v477, %v5767
        %v5864 = vrot.slane %v5768, 3
        %v5865 = vrot.slane %v5769, 3
        %v5866 = vsel %vm4417, %v5864, %v5865
        %v5867 = vrot.slane %v5770, 3
        %v5868 = vsel %vm4417, %v5865, %v5867
        %v5869 = vrot.slane %v5771, 3
        %v5870 = vrot.slane %v5772, 3
        %v5871 = vsel %vm4417, %v5869, %v5870
        %v5872 = vrot.slane %v5773, 3
        %v5873 = vsel %vm4417, %v5870, %v5872
        %v5874 = vrot.slane %v5774, 3
        %v5875 = vrot.slane %v5775, 3
        %v5876 = vsel %vm4417, %v5874, %v5875
        %v5877 = vrot.slane %v5776, 3
        %v5878 = vsel %vm4417, %v5875, %v5877
        %v5879 = vrot.slane %v5777, 3
        %v5880 = vrot.slane %v5778, 3
        %v5881 = vsel %vm4417, %v5879, %v5880
        %v5882 = vrot.slane %v5779, 3
        %v5883 = vsel %vm4417, %v5880, %v5882
        %v5884 = vrot.slane %v5780, 3
        %v5885 = vrot.slane %v5781, 3
        %v5886 = vsel %vm4417, %v5884, %v5885
        %v5887 = vrot.slane %v5782, 3
        %v5888 = vsel %vm4417, %v5885, %v5887
        %v5889 = vrot.slane %v5783, 3
        %v5890 = vrot.slane %v5784, 3
        %v5891 = vsel %vm4417, %v5889, %v5890
        %v5892 = vrot.slane %v5785, 3
        %v5893 = vsel %vm4417, %v5890, %v5892
        %v5894 = vrot.slane %v5786, 3
        %v5895 = vrot.slane %v5787, 3
        %v5896 = vsel %vm4417, %v5894, %v5895
        %v5897 = vrot.slane %v5788, 3
        %v5898 = vsel %vm4417, %v5895, %v5897
        %v5899 = vrot.slane %v5789, 3
        %v5900 = vrot.slane %v5790, 3
        %v5901 = vsel %vm4417, %v5899, %v5900
        %v5902 = vrot.slane %v5791, 3
        %v5903 = vsel %vm4417, %v5900, %v5902
        %v5904 = vrot.slane %v5792, 3
        %v5905 = vrot.slane %v5793, 3
        %v5906 = vsel %vm4417, %v5904, %v5905
        %v5907 = vrot.slane %v5794, 3
        %v5908 = vsel %vm4417, %v5905, %v5907
        %v5909 = vrot.slane %v5795, 3
        %v5910 = vrot.slane %v5796, 3
        %v5911 = vsel %vm4417, %v5909, %v5910
        %v5912 = vrot.slane %v5797, 3
        %v5913 = vsel %vm4417, %v5910, %v5912
        %v5914 = vrot.slane %v5798, 3
        %v5915 = vrot.slane %v5799, 3
        %v5916 = vsel %vm4417, %v5914, %v5915
        %v5917 = vrot.slane %v5800, 3
        %v5918 = vsel %vm4417, %v5915, %v5917
        %v5919 = vrot.slane %v5801, 3
        %v5920 = vrot.slane %v5802, 3
        %v5921 = vsel %vm4417, %v5919, %v5920
        %v5922 = vrot.slane %v5803, 3
        %v5923 = vsel %vm4417, %v5920, %v5922
        %v5924 = vrot.slane %v5804, 3
        %v5925 = vrot.slane %v5805, 3
        %v5926 = vsel %vm4417, %v5924, %v5925
        %v5927 = vrot.slane %v5806, 3
        %v5928 = vsel %vm4417, %v5925, %v5927
        %v5929 = vrot.slane %v5807, 3
        %v5930 = vrot.slane %v5808, 3
        %v5931 = vsel %vm4417, %v5929, %v5930
        %v5932 = vrot.slane %v5809, 3
        %v5933 = vsel %vm4417, %v5930, %v5932
        %v5934 = vrot.slane %v5810, 3
        %v5935 = vrot.slane %v5811, 3
        %v5936 = vsel %vm4417, %v5934, %v5935
        %v5937 = vrot.slane %v5812, 3
        %v5938 = vsel %vm4417, %v5935, %v5937
        %v5939 = vrot.slane %v5813, 3
        %v5940 = vrot.slane %v5814, 3
        %v5941 = vsel %vm4417, %v5939, %v5940
        %v5942 = vrot.slane %v5815, 3
        %v5943 = vsel %vm4417, %v5940, %v5942
        %v5976 = vadd.f32 %v5735, %v5866
        %v5977 = vadd.f32 %v5736, %v5868
        %v5978 = vadd.f32 %v5737, %v5871
        %v5979 = vadd.f32 %v5738, %v5873
        %v5980 = vadd.f32 %v5739, %v5876
        %v5981 = vadd.f32 %v5740, %v5878
        %v5982 = vadd.f32 %v5741, %v5881
        %v5983 = vadd.f32 %v5742, %v5883
        %v5984 = vadd.f32 %v5743, %v5886
        %v5985 = vadd.f32 %v5744, %v5888
        %v5986 = vadd.f32 %v5745, %v5891
        %v5987 = vadd.f32 %v5746, %v5893
        %v5988 = vadd.f32 %v5747, %v5896
        %v5989 = vadd.f32 %v5748, %v5898
        %v5990 = vadd.f32 %v5749, %v5901
        %v5991 = vadd.f32 %v5750, %v5903
        %v5992 = vadd.f32 %v5751, %v5906
        %v5993 = vadd.f32 %v5752, %v5908
        %v5994 = vadd.f32 %v5753, %v5911
        %v5995 = vadd.f32 %v5754, %v5913
        %v5996 = vadd.f32 %v5755, %v5916
        %v5997 = vadd.f32 %v5756, %v5918
        %v5998 = vadd.f32 %v5757, %v5921
        %v5999 = vadd.f32 %v5758, %v5923
        %v6000 = vadd.f32 %v5759, %v5926
        %v6001 = vadd.f32 %v5760, %v5928
        %v6002 = vadd.f32 %v5761, %v5931
        %v6003 = vadd.f32 %v5762, %v5933
        %v6004 = vadd.f32 %v5763, %v5936
        %v6005 = vadd.f32 %v5764, %v5938
        %v6006 = vadd.f32 %v5765, %v5941
        %v6007 = vadd.f32 %v5766, %v5943
        %v6008 = vperm.slane %v478, 4
        %v6009 = vmul.f32 %v412, %v6008
        %v6010 = vmul.f32 %v413, %v6008
        %v6011 = vmul.f32 %v414, %v6008
        %v6012 = vmul.f32 %v415, %v6008
        %v6013 = vmul.f32 %v416, %v6008
        %v6014 = vmul.f32 %v417, %v6008
        %v6015 = vmul.f32 %v418, %v6008
        %v6016 = vmul.f32 %v419, %v6008
        %v6017 = vmul.f32 %v420, %v6008
        %v6018 = vmul.f32 %v421, %v6008
        %v6019 = vmul.f32 %v422, %v6008
        %v6020 = vmul.f32 %v423, %v6008
        %v6021 = vmul.f32 %v424, %v6008
        %v6022 = vmul.f32 %v425, %v6008
        %v6023 = vmul.f32 %v426, %v6008
        %v6024 = vmul.f32 %v427, %v6008
        %v6025 = vmul.f32 %v428, %v6008
        %v6026 = vmul.f32 %v429, %v6008
        %v6027 = vmul.f32 %v430, %v6008
        %v6028 = vmul.f32 %v431, %v6008
        %v6029 = vmul.f32 %v432, %v6008
        %v6030 = vmul.f32 %v433, %v6008
        %v6031 = vmul.f32 %v434, %v6008
        %v6032 = vmul.f32 %v435, %v6008
        %v6033 = vmul.f32 %v436, %v6008
        %v6034 = vmul.f32 %v437, %v6008
        %v6035 = vmul.f32 %v438, %v6008
        %v6036 = vmul.f32 %v439, %v6008
        %v6037 = vmul.f32 %v440, %v6008
        %v6038 = vmul.f32 %v441, %v6008
        %v6039 = vmul.f32 %v442, %v6008
        %v6040 = vmul.f32 %v443, %v6008
        %v6041 = vmul.f32 %v444, %v6008
        %v6042 = vmul.f32 %v445, %v6008
        %v6043 = vmul.f32 %v446, %v6008
        %v6044 = vmul.f32 %v447, %v6008
        %v6045 = vmul.f32 %v448, %v6008
        %v6046 = vmul.f32 %v449, %v6008
        %v6047 = vmul.f32 %v450, %v6008
        %v6048 = vmul.f32 %v451, %v6008
        %v6049 = vmul.f32 %v452, %v6008
        %v6050 = vmul.f32 %v453, %v6008
        %v6051 = vmul.f32 %v454, %v6008
        %v6052 = vmul.f32 %v455, %v6008
        %v6053 = vmul.f32 %v456, %v6008
        %v6054 = vmul.f32 %v457, %v6008
        %v6055 = vmul.f32 %v458, %v6008
        %v6056 = vmul.f32 %v459, %v6008
        %vm6105 = vcmask 1043456
        %v6106 = vrot.slane %v6009, 4
        %v6107 = vrot.slane %v6010, 4
        %v6108 = vsel %vm6105, %v6106, %v6107
        %v6109 = vrot.slane %v6011, 4
        %v6110 = vsel %vm6105, %v6107, %v6109
        %v6111 = vrot.slane %v6012, 4
        %v6112 = vrot.slane %v6013, 4
        %v6113 = vsel %vm6105, %v6111, %v6112
        %v6114 = vrot.slane %v6014, 4
        %v6115 = vsel %vm6105, %v6112, %v6114
        %v6116 = vrot.slane %v6015, 4
        %v6117 = vrot.slane %v6016, 4
        %v6118 = vsel %vm6105, %v6116, %v6117
        %v6119 = vrot.slane %v6017, 4
        %v6120 = vsel %vm6105, %v6117, %v6119
        %v6121 = vrot.slane %v6018, 4
        %v6122 = vrot.slane %v6019, 4
        %v6123 = vsel %vm6105, %v6121, %v6122
        %v6124 = vrot.slane %v6020, 4
        %v6125 = vsel %vm6105, %v6122, %v6124
        %v6126 = vrot.slane %v6021, 4
        %v6127 = vrot.slane %v6022, 4
        %v6128 = vsel %vm6105, %v6126, %v6127
        %v6129 = vrot.slane %v6023, 4
        %v6130 = vsel %vm6105, %v6127, %v6129
        %v6131 = vrot.slane %v6024, 4
        %v6132 = vrot.slane %v6025, 4
        %v6133 = vsel %vm6105, %v6131, %v6132
        %v6134 = vrot.slane %v6026, 4
        %v6135 = vsel %vm6105, %v6132, %v6134
        %v6136 = vrot.slane %v6027, 4
        %v6137 = vrot.slane %v6028, 4
        %v6138 = vsel %vm6105, %v6136, %v6137
        %v6139 = vrot.slane %v6029, 4
        %v6140 = vsel %vm6105, %v6137, %v6139
        %v6141 = vrot.slane %v6030, 4
        %v6142 = vrot.slane %v6031, 4
        %v6143 = vsel %vm6105, %v6141, %v6142
        %v6144 = vrot.slane %v6032, 4
        %v6145 = vsel %vm6105, %v6142, %v6144
        %v6146 = vrot.slane %v6033, 4
        %v6147 = vrot.slane %v6034, 4
        %v6148 = vsel %vm6105, %v6146, %v6147
        %v6149 = vrot.slane %v6035, 4
        %v6150 = vsel %vm6105, %v6147, %v6149
        %v6151 = vrot.slane %v6036, 4
        %v6152 = vrot.slane %v6037, 4
        %v6153 = vsel %vm6105, %v6151, %v6152
        %v6154 = vrot.slane %v6038, 4
        %v6155 = vsel %vm6105, %v6152, %v6154
        %v6156 = vrot.slane %v6039, 4
        %v6157 = vrot.slane %v6040, 4
        %v6158 = vsel %vm6105, %v6156, %v6157
        %v6159 = vrot.slane %v6041, 4
        %v6160 = vsel %vm6105, %v6157, %v6159
        %v6161 = vrot.slane %v6042, 4
        %v6162 = vrot.slane %v6043, 4
        %v6163 = vsel %vm6105, %v6161, %v6162
        %v6164 = vrot.slane %v6044, 4
        %v6165 = vsel %vm6105, %v6162, %v6164
        %v6166 = vrot.slane %v6045, 4
        %v6167 = vrot.slane %v6046, 4
        %v6168 = vsel %vm6105, %v6166, %v6167
        %v6169 = vrot.slane %v6047, 4
        %v6170 = vsel %vm6105, %v6167, %v6169
        %v6171 = vrot.slane %v6048, 4
        %v6172 = vrot.slane %v6049, 4
        %v6173 = vsel %vm6105, %v6171, %v6172
        %v6174 = vrot.slane %v6050, 4
        %v6175 = vsel %vm6105, %v6172, %v6174
        %v6176 = vrot.slane %v6051, 4
        %v6177 = vrot.slane %v6052, 4
        %v6178 = vsel %vm6105, %v6176, %v6177
        %v6179 = vrot.slane %v6053, 4
        %v6180 = vsel %vm6105, %v6177, %v6179
        %v6181 = vrot.slane %v6054, 4
        %v6182 = vrot.slane %v6055, 4
        %v6183 = vsel %vm6105, %v6181, %v6182
        %v6184 = vrot.slane %v6056, 4
        %v6185 = vsel %vm6105, %v6182, %v6184
        %v6218 = vadd.f32 %v5976, %v6108
        %v6219 = vadd.f32 %v5977, %v6110
        %v6220 = vadd.f32 %v5978, %v6113
        %v6221 = vadd.f32 %v5979, %v6115
        %v6222 = vadd.f32 %v5980, %v6118
        %v6223 = vadd.f32 %v5981, %v6120
        %v6224 = vadd.f32 %v5982, %v6123
        %v6225 = vadd.f32 %v5983, %v6125
        %v6226 = vadd.f32 %v5984, %v6128
        %v6227 = vadd.f32 %v5985, %v6130
        %v6228 = vadd.f32 %v5986, %v6133
        %v6229 = vadd.f32 %v5987, %v6135
        %v6230 = vadd.f32 %v5988, %v6138
        %v6231 = vadd.f32 %v5989, %v6140
        %v6232 = vadd.f32 %v5990, %v6143
        %v6233 = vadd.f32 %v5991, %v6145
        %v6234 = vadd.f32 %v5992, %v6148
        %v6235 = vadd.f32 %v5993, %v6150
        %v6236 = vadd.f32 %v5994, %v6153
        %v6237 = vadd.f32 %v5995, %v6155
        %v6238 = vadd.f32 %v5996, %v6158
        %v6239 = vadd.f32 %v5997, %v6160
        %v6240 = vadd.f32 %v5998, %v6163
        %v6241 = vadd.f32 %v5999, %v6165
        %v6242 = vadd.f32 %v6000, %v6168
        %v6243 = vadd.f32 %v6001, %v6170
        %v6244 = vadd.f32 %v6002, %v6173
        %v6245 = vadd.f32 %v6003, %v6175
        %v6246 = vadd.f32 %v6004, %v6178
        %v6247 = vadd.f32 %v6005, %v6180
        %v6248 = vadd.f32 %v6006, %v6183
        %v6249 = vadd.f32 %v6007, %v6185
        %v6250 = vperm.slane %v479, 3
        %v6251 = vmul.f32 %v415, %v6250
        %v6252 = vmul.f32 %v416, %v6250
        %v6253 = vmul.f32 %v417, %v6250
        %v6254 = vmul.f32 %v418, %v6250
        %v6255 = vmul.f32 %v419, %v6250
        %v6256 = vmul.f32 %v420, %v6250
        %v6257 = vmul.f32 %v421, %v6250
        %v6258 = vmul.f32 %v422, %v6250
        %v6259 = vmul.f32 %v423, %v6250
        %v6260 = vmul.f32 %v424, %v6250
        %v6261 = vmul.f32 %v425, %v6250
        %v6262 = vmul.f32 %v426, %v6250
        %v6263 = vmul.f32 %v427, %v6250
        %v6264 = vmul.f32 %v428, %v6250
        %v6265 = vmul.f32 %v429, %v6250
        %v6266 = vmul.f32 %v430, %v6250
        %v6267 = vmul.f32 %v431, %v6250
        %v6268 = vmul.f32 %v432, %v6250
        %v6269 = vmul.f32 %v433, %v6250
        %v6270 = vmul.f32 %v434, %v6250
        %v6271 = vmul.f32 %v435, %v6250
        %v6272 = vmul.f32 %v436, %v6250
        %v6273 = vmul.f32 %v437, %v6250
        %v6274 = vmul.f32 %v438, %v6250
        %v6275 = vmul.f32 %v439, %v6250
        %v6276 = vmul.f32 %v440, %v6250
        %v6277 = vmul.f32 %v441, %v6250
        %v6278 = vmul.f32 %v442, %v6250
        %v6279 = vmul.f32 %v443, %v6250
        %v6280 = vmul.f32 %v444, %v6250
        %v6281 = vmul.f32 %v445, %v6250
        %v6282 = vmul.f32 %v446, %v6250
        %v6283 = vmul.f32 %v447, %v6250
        %v6284 = vmul.f32 %v448, %v6250
        %v6285 = vmul.f32 %v449, %v6250
        %v6286 = vmul.f32 %v450, %v6250
        %v6287 = vmul.f32 %v451, %v6250
        %v6288 = vmul.f32 %v452, %v6250
        %v6289 = vmul.f32 %v453, %v6250
        %v6290 = vmul.f32 %v454, %v6250
        %v6291 = vmul.f32 %v455, %v6250
        %v6292 = vmul.f32 %v456, %v6250
        %v6293 = vmul.f32 %v457, %v6250
        %v6294 = vmul.f32 %v458, %v6250
        %v6295 = vmul.f32 %v459, %v6250
        %v6296 = vmul.f32 %v460, %v6250
        %v6297 = vmul.f32 %v461, %v6250
        %v6298 = vmul.f32 %v462, %v6250
        %v6347 = vrot.slane %v6251, 4
        %v6348 = vrot.slane %v6252, 4
        %v6349 = vsel %vm6105, %v6347, %v6348
        %v6350 = vrot.slane %v6253, 4
        %v6351 = vsel %vm6105, %v6348, %v6350
        %v6352 = vrot.slane %v6254, 4
        %v6353 = vrot.slane %v6255, 4
        %v6354 = vsel %vm6105, %v6352, %v6353
        %v6355 = vrot.slane %v6256, 4
        %v6356 = vsel %vm6105, %v6353, %v6355
        %v6357 = vrot.slane %v6257, 4
        %v6358 = vrot.slane %v6258, 4
        %v6359 = vsel %vm6105, %v6357, %v6358
        %v6360 = vrot.slane %v6259, 4
        %v6361 = vsel %vm6105, %v6358, %v6360
        %v6362 = vrot.slane %v6260, 4
        %v6363 = vrot.slane %v6261, 4
        %v6364 = vsel %vm6105, %v6362, %v6363
        %v6365 = vrot.slane %v6262, 4
        %v6366 = vsel %vm6105, %v6363, %v6365
        %v6367 = vrot.slane %v6263, 4
        %v6368 = vrot.slane %v6264, 4
        %v6369 = vsel %vm6105, %v6367, %v6368
        %v6370 = vrot.slane %v6265, 4
        %v6371 = vsel %vm6105, %v6368, %v6370
        %v6372 = vrot.slane %v6266, 4
        %v6373 = vrot.slane %v6267, 4
        %v6374 = vsel %vm6105, %v6372, %v6373
        %v6375 = vrot.slane %v6268, 4
        %v6376 = vsel %vm6105, %v6373, %v6375
        %v6377 = vrot.slane %v6269, 4
        %v6378 = vrot.slane %v6270, 4
        %v6379 = vsel %vm6105, %v6377, %v6378
        %v6380 = vrot.slane %v6271, 4
        %v6381 = vsel %vm6105, %v6378, %v6380
        %v6382 = vrot.slane %v6272, 4
        %v6383 = vrot.slane %v6273, 4
        %v6384 = vsel %vm6105, %v6382, %v6383
        %v6385 = vrot.slane %v6274, 4
        %v6386 = vsel %vm6105, %v6383, %v6385
        %v6387 = vrot.slane %v6275, 4
        %v6388 = vrot.slane %v6276, 4
        %v6389 = vsel %vm6105, %v6387, %v6388
        %v6390 = vrot.slane %v6277, 4
        %v6391 = vsel %vm6105, %v6388, %v6390
        %v6392 = vrot.slane %v6278, 4
        %v6393 = vrot.slane %v6279, 4
        %v6394 = vsel %vm6105, %v6392, %v6393
        %v6395 = vrot.slane %v6280, 4
        %v6396 = vsel %vm6105, %v6393, %v6395
        %v6397 = vrot.slane %v6281, 4
        %v6398 = vrot.slane %v6282, 4
        %v6399 = vsel %vm6105, %v6397, %v6398
        %v6400 = vrot.slane %v6283, 4
        %v6401 = vsel %vm6105, %v6398, %v6400
        %v6402 = vrot.slane %v6284, 4
        %v6403 = vrot.slane %v6285, 4
        %v6404 = vsel %vm6105, %v6402, %v6403
        %v6405 = vrot.slane %v6286, 4
        %v6406 = vsel %vm6105, %v6403, %v6405
        %v6407 = vrot.slane %v6287, 4
        %v6408 = vrot.slane %v6288, 4
        %v6409 = vsel %vm6105, %v6407, %v6408
        %v6410 = vrot.slane %v6289, 4
        %v6411 = vsel %vm6105, %v6408, %v6410
        %v6412 = vrot.slane %v6290, 4
        %v6413 = vrot.slane %v6291, 4
        %v6414 = vsel %vm6105, %v6412, %v6413
        %v6415 = vrot.slane %v6292, 4
        %v6416 = vsel %vm6105, %v6413, %v6415
        %v6417 = vrot.slane %v6293, 4
        %v6418 = vrot.slane %v6294, 4
        %v6419 = vsel %vm6105, %v6417, %v6418
        %v6420 = vrot.slane %v6295, 4
        %v6421 = vsel %vm6105, %v6418, %v6420
        %v6422 = vrot.slane %v6296, 4
        %v6423 = vrot.slane %v6297, 4
        %v6424 = vsel %vm6105, %v6422, %v6423
        %v6425 = vrot.slane %v6298, 4
        %v6426 = vsel %vm6105, %v6423, %v6425
        %v6459 = vadd.f32 %v6218, %v6349
        %v6460 = vadd.f32 %v6219, %v6351
        %v6461 = vadd.f32 %v6220, %v6354
        %v6462 = vadd.f32 %v6221, %v6356
        %v6463 = vadd.f32 %v6222, %v6359
        %v6464 = vadd.f32 %v6223, %v6361
        %v6465 = vadd.f32 %v6224, %v6364
        %v6466 = vadd.f32 %v6225, %v6366
        %v6467 = vadd.f32 %v6226, %v6369
        %v6468 = vadd.f32 %v6227, %v6371
        %v6469 = vadd.f32 %v6228, %v6374
        %v6470 = vadd.f32 %v6229, %v6376
        %v6471 = vadd.f32 %v6230, %v6379
        %v6472 = vadd.f32 %v6231, %v6381
        %v6473 = vadd.f32 %v6232, %v6384
        %v6474 = vadd.f32 %v6233, %v6386
        %v6475 = vadd.f32 %v6234, %v6389
        %v6476 = vadd.f32 %v6235, %v6391
        %v6477 = vadd.f32 %v6236, %v6394
        %v6478 = vadd.f32 %v6237, %v6396
        %v6479 = vadd.f32 %v6238, %v6399
        %v6480 = vadd.f32 %v6239, %v6401
        %v6481 = vadd.f32 %v6240, %v6404
        %v6482 = vadd.f32 %v6241, %v6406
        %v6483 = vadd.f32 %v6242, %v6409
        %v6484 = vadd.f32 %v6243, %v6411
        %v6485 = vadd.f32 %v6244, %v6414
        %v6486 = vadd.f32 %v6245, %v6416
        %v6487 = vadd.f32 %v6246, %v6419
        %v6488 = vadd.f32 %v6247, %v6421
        %v6489 = vadd.f32 %v6248, %v6424
        %v6490 = vadd.f32 %v6249, %v6426
        %v6491 = vperm.slane %v480, 2
        %v6492 = vmul.f32 %v418, %v6491
        %v6493 = vmul.f32 %v419, %v6491
        %v6494 = vmul.f32 %v420, %v6491
        %v6495 = vmul.f32 %v421, %v6491
        %v6496 = vmul.f32 %v422, %v6491
        %v6497 = vmul.f32 %v423, %v6491
        %v6498 = vmul.f32 %v424, %v6491
        %v6499 = vmul.f32 %v425, %v6491
        %v6500 = vmul.f32 %v426, %v6491
        %v6501 = vmul.f32 %v427, %v6491
        %v6502 = vmul.f32 %v428, %v6491
        %v6503 = vmul.f32 %v429, %v6491
        %v6504 = vmul.f32 %v430, %v6491
        %v6505 = vmul.f32 %v431, %v6491
        %v6506 = vmul.f32 %v432, %v6491
        %v6507 = vmul.f32 %v433, %v6491
        %v6508 = vmul.f32 %v434, %v6491
        %v6509 = vmul.f32 %v435, %v6491
        %v6510 = vmul.f32 %v436, %v6491
        %v6511 = vmul.f32 %v437, %v6491
        %v6512 = vmul.f32 %v438, %v6491
        %v6513 = vmul.f32 %v439, %v6491
        %v6514 = vmul.f32 %v440, %v6491
        %v6515 = vmul.f32 %v441, %v6491
        %v6516 = vmul.f32 %v442, %v6491
        %v6517 = vmul.f32 %v443, %v6491
        %v6518 = vmul.f32 %v444, %v6491
        %v6519 = vmul.f32 %v445, %v6491
        %v6520 = vmul.f32 %v446, %v6491
        %v6521 = vmul.f32 %v447, %v6491
        %v6522 = vmul.f32 %v448, %v6491
        %v6523 = vmul.f32 %v449, %v6491
        %v6524 = vmul.f32 %v450, %v6491
        %v6525 = vmul.f32 %v451, %v6491
        %v6526 = vmul.f32 %v452, %v6491
        %v6527 = vmul.f32 %v453, %v6491
        %v6528 = vmul.f32 %v454, %v6491
        %v6529 = vmul.f32 %v455, %v6491
        %v6530 = vmul.f32 %v456, %v6491
        %v6531 = vmul.f32 %v457, %v6491
        %v6532 = vmul.f32 %v458, %v6491
        %v6533 = vmul.f32 %v459, %v6491
        %v6534 = vmul.f32 %v460, %v6491
        %v6535 = vmul.f32 %v461, %v6491
        %v6536 = vmul.f32 %v462, %v6491
        %v6537 = vmul.f32 %v463, %v6491
        %v6538 = vmul.f32 %v464, %v6491
        %v6539 = vmul.f32 %v465, %v6491
        %v6588 = vrot.slane %v6492, 4
        %v6589 = vrot.slane %v6493, 4
        %v6590 = vsel %vm6105, %v6588, %v6589
        %v6591 = vrot.slane %v6494, 4
        %v6592 = vsel %vm6105, %v6589, %v6591
        %v6593 = vrot.slane %v6495, 4
        %v6594 = vrot.slane %v6496, 4
        %v6595 = vsel %vm6105, %v6593, %v6594
        %v6596 = vrot.slane %v6497, 4
        %v6597 = vsel %vm6105, %v6594, %v6596
        %v6598 = vrot.slane %v6498, 4
        %v6599 = vrot.slane %v6499, 4
        %v6600 = vsel %vm6105, %v6598, %v6599
        %v6601 = vrot.slane %v6500, 4
        %v6602 = vsel %vm6105, %v6599, %v6601
        %v6603 = vrot.slane %v6501, 4
        %v6604 = vrot.slane %v6502, 4
        %v6605 = vsel %vm6105, %v6603, %v6604
        %v6606 = vrot.slane %v6503, 4
        %v6607 = vsel %vm6105, %v6604, %v6606
        %v6608 = vrot.slane %v6504, 4
        %v6609 = vrot.slane %v6505, 4
        %v6610 = vsel %vm6105, %v6608, %v6609
        %v6611 = vrot.slane %v6506, 4
        %v6612 = vsel %vm6105, %v6609, %v6611
        %v6613 = vrot.slane %v6507, 4
        %v6614 = vrot.slane %v6508, 4
        %v6615 = vsel %vm6105, %v6613, %v6614
        %v6616 = vrot.slane %v6509, 4
        %v6617 = vsel %vm6105, %v6614, %v6616
        %v6618 = vrot.slane %v6510, 4
        %v6619 = vrot.slane %v6511, 4
        %v6620 = vsel %vm6105, %v6618, %v6619
        %v6621 = vrot.slane %v6512, 4
        %v6622 = vsel %vm6105, %v6619, %v6621
        %v6623 = vrot.slane %v6513, 4
        %v6624 = vrot.slane %v6514, 4
        %v6625 = vsel %vm6105, %v6623, %v6624
        %v6626 = vrot.slane %v6515, 4
        %v6627 = vsel %vm6105, %v6624, %v6626
        %v6628 = vrot.slane %v6516, 4
        %v6629 = vrot.slane %v6517, 4
        %v6630 = vsel %vm6105, %v6628, %v6629
        %v6631 = vrot.slane %v6518, 4
        %v6632 = vsel %vm6105, %v6629, %v6631
        %v6633 = vrot.slane %v6519, 4
        %v6634 = vrot.slane %v6520, 4
        %v6635 = vsel %vm6105, %v6633, %v6634
        %v6636 = vrot.slane %v6521, 4
        %v6637 = vsel %vm6105, %v6634, %v6636
        %v6638 = vrot.slane %v6522, 4
        %v6639 = vrot.slane %v6523, 4
        %v6640 = vsel %vm6105, %v6638, %v6639
        %v6641 = vrot.slane %v6524, 4
        %v6642 = vsel %vm6105, %v6639, %v6641
        %v6643 = vrot.slane %v6525, 4
        %v6644 = vrot.slane %v6526, 4
        %v6645 = vsel %vm6105, %v6643, %v6644
        %v6646 = vrot.slane %v6527, 4
        %v6647 = vsel %vm6105, %v6644, %v6646
        %v6648 = vrot.slane %v6528, 4
        %v6649 = vrot.slane %v6529, 4
        %v6650 = vsel %vm6105, %v6648, %v6649
        %v6651 = vrot.slane %v6530, 4
        %v6652 = vsel %vm6105, %v6649, %v6651
        %v6653 = vrot.slane %v6531, 4
        %v6654 = vrot.slane %v6532, 4
        %v6655 = vsel %vm6105, %v6653, %v6654
        %v6656 = vrot.slane %v6533, 4
        %v6657 = vsel %vm6105, %v6654, %v6656
        %v6658 = vrot.slane %v6534, 4
        %v6659 = vrot.slane %v6535, 4
        %v6660 = vsel %vm6105, %v6658, %v6659
        %v6661 = vrot.slane %v6536, 4
        %v6662 = vsel %vm6105, %v6659, %v6661
        %v6663 = vrot.slane %v6537, 4
        %v6664 = vrot.slane %v6538, 4
        %v6665 = vsel %vm6105, %v6663, %v6664
        %v6666 = vrot.slane %v6539, 4
        %v6667 = vsel %vm6105, %v6664, %v6666
        %v6700 = vadd.f32 %v6459, %v6590
        %v6701 = vadd.f32 %v6460, %v6592
        %v6702 = vadd.f32 %v6461, %v6595
        %v6703 = vadd.f32 %v6462, %v6597
        %v6704 = vadd.f32 %v6463, %v6600
        %v6705 = vadd.f32 %v6464, %v6602
        %v6706 = vadd.f32 %v6465, %v6605
        %v6707 = vadd.f32 %v6466, %v6607
        %v6708 = vadd.f32 %v6467, %v6610
        %v6709 = vadd.f32 %v6468, %v6612
        %v6710 = vadd.f32 %v6469, %v6615
        %v6711 = vadd.f32 %v6470, %v6617
        %v6712 = vadd.f32 %v6471, %v6620
        %v6713 = vadd.f32 %v6472, %v6622
        %v6714 = vadd.f32 %v6473, %v6625
        %v6715 = vadd.f32 %v6474, %v6627
        %v6716 = vadd.f32 %v6475, %v6630
        %v6717 = vadd.f32 %v6476, %v6632
        %v6718 = vadd.f32 %v6477, %v6635
        %v6719 = vadd.f32 %v6478, %v6637
        %v6720 = vadd.f32 %v6479, %v6640
        %v6721 = vadd.f32 %v6480, %v6642
        %v6722 = vadd.f32 %v6481, %v6645
        %v6723 = vadd.f32 %v6482, %v6647
        %v6724 = vadd.f32 %v6483, %v6650
        %v6725 = vadd.f32 %v6484, %v6652
        %v6726 = vadd.f32 %v6485, %v6655
        %v6727 = vadd.f32 %v6486, %v6657
        %v6728 = vadd.f32 %v6487, %v6660
        %v6729 = vadd.f32 %v6488, %v6662
        %v6730 = vadd.f32 %v6489, %v6665
        %v6731 = vadd.f32 %v6490, %v6667
        %v6732 = vperm.slane %v481, 1
        %v6733 = vmul.f32 %v421, %v6732
        %v6734 = vmul.f32 %v422, %v6732
        %v6735 = vmul.f32 %v423, %v6732
        %v6736 = vmul.f32 %v424, %v6732
        %v6737 = vmul.f32 %v425, %v6732
        %v6738 = vmul.f32 %v426, %v6732
        %v6739 = vmul.f32 %v427, %v6732
        %v6740 = vmul.f32 %v428, %v6732
        %v6741 = vmul.f32 %v429, %v6732
        %v6742 = vmul.f32 %v430, %v6732
        %v6743 = vmul.f32 %v431, %v6732
        %v6744 = vmul.f32 %v432, %v6732
        %v6745 = vmul.f32 %v433, %v6732
        %v6746 = vmul.f32 %v434, %v6732
        %v6747 = vmul.f32 %v435, %v6732
        %v6748 = vmul.f32 %v436, %v6732
        %v6749 = vmul.f32 %v437, %v6732
        %v6750 = vmul.f32 %v438, %v6732
        %v6751 = vmul.f32 %v439, %v6732
        %v6752 = vmul.f32 %v440, %v6732
        %v6753 = vmul.f32 %v441, %v6732
        %v6754 = vmul.f32 %v442, %v6732
        %v6755 = vmul.f32 %v443, %v6732
        %v6756 = vmul.f32 %v444, %v6732
        %v6757 = vmul.f32 %v445, %v6732
        %v6758 = vmul.f32 %v446, %v6732
        %v6759 = vmul.f32 %v447, %v6732
        %v6760 = vmul.f32 %v448, %v6732
        %v6761 = vmul.f32 %v449, %v6732
        %v6762 = vmul.f32 %v450, %v6732
        %v6763 = vmul.f32 %v451, %v6732
        %v6764 = vmul.f32 %v452, %v6732
        %v6765 = vmul.f32 %v453, %v6732
        %v6766 = vmul.f32 %v454, %v6732
        %v6767 = vmul.f32 %v455, %v6732
        %v6768 = vmul.f32 %v456, %v6732
        %v6769 = vmul.f32 %v457, %v6732
        %v6770 = vmul.f32 %v458, %v6732
        %v6771 = vmul.f32 %v459, %v6732
        %v6772 = vmul.f32 %v460, %v6732
        %v6773 = vmul.f32 %v461, %v6732
        %v6774 = vmul.f32 %v462, %v6732
        %v6775 = vmul.f32 %v463, %v6732
        %v6776 = vmul.f32 %v464, %v6732
        %v6777 = vmul.f32 %v465, %v6732
        %v6778 = vmul.f32 %v466, %v6732
        %v6779 = vmul.f32 %v467, %v6732
        %v6780 = vmul.f32 %v468, %v6732
        %v6829 = vrot.slane %v6733, 4
        %v6830 = vrot.slane %v6734, 4
        %v6831 = vsel %vm6105, %v6829, %v6830
        %v6832 = vrot.slane %v6735, 4
        %v6833 = vsel %vm6105, %v6830, %v6832
        %v6834 = vrot.slane %v6736, 4
        %v6835 = vrot.slane %v6737, 4
        %v6836 = vsel %vm6105, %v6834, %v6835
        %v6837 = vrot.slane %v6738, 4
        %v6838 = vsel %vm6105, %v6835, %v6837
        %v6839 = vrot.slane %v6739, 4
        %v6840 = vrot.slane %v6740, 4
        %v6841 = vsel %vm6105, %v6839, %v6840
        %v6842 = vrot.slane %v6741, 4
        %v6843 = vsel %vm6105, %v6840, %v6842
        %v6844 = vrot.slane %v6742, 4
        %v6845 = vrot.slane %v6743, 4
        %v6846 = vsel %vm6105, %v6844, %v6845
        %v6847 = vrot.slane %v6744, 4
        %v6848 = vsel %vm6105, %v6845, %v6847
        %v6849 = vrot.slane %v6745, 4
        %v6850 = vrot.slane %v6746, 4
        %v6851 = vsel %vm6105, %v6849, %v6850
        %v6852 = vrot.slane %v6747, 4
        %v6853 = vsel %vm6105, %v6850, %v6852
        %v6854 = vrot.slane %v6748, 4
        %v6855 = vrot.slane %v6749, 4
        %v6856 = vsel %vm6105, %v6854, %v6855
        %v6857 = vrot.slane %v6750, 4
        %v6858 = vsel %vm6105, %v6855, %v6857
        %v6859 = vrot.slane %v6751, 4
        %v6860 = vrot.slane %v6752, 4
        %v6861 = vsel %vm6105, %v6859, %v6860
        %v6862 = vrot.slane %v6753, 4
        %v6863 = vsel %vm6105, %v6860, %v6862
        %v6864 = vrot.slane %v6754, 4
        %v6865 = vrot.slane %v6755, 4
        %v6866 = vsel %vm6105, %v6864, %v6865
        %v6867 = vrot.slane %v6756, 4
        %v6868 = vsel %vm6105, %v6865, %v6867
        %v6869 = vrot.slane %v6757, 4
        %v6870 = vrot.slane %v6758, 4
        %v6871 = vsel %vm6105, %v6869, %v6870
        %v6872 = vrot.slane %v6759, 4
        %v6873 = vsel %vm6105, %v6870, %v6872
        %v6874 = vrot.slane %v6760, 4
        %v6875 = vrot.slane %v6761, 4
        %v6876 = vsel %vm6105, %v6874, %v6875
        %v6877 = vrot.slane %v6762, 4
        %v6878 = vsel %vm6105, %v6875, %v6877
        %v6879 = vrot.slane %v6763, 4
        %v6880 = vrot.slane %v6764, 4
        %v6881 = vsel %vm6105, %v6879, %v6880
        %v6882 = vrot.slane %v6765, 4
        %v6883 = vsel %vm6105, %v6880, %v6882
        %v6884 = vrot.slane %v6766, 4
        %v6885 = vrot.slane %v6767, 4
        %v6886 = vsel %vm6105, %v6884, %v6885
        %v6887 = vrot.slane %v6768, 4
        %v6888 = vsel %vm6105, %v6885, %v6887
        %v6889 = vrot.slane %v6769, 4
        %v6890 = vrot.slane %v6770, 4
        %v6891 = vsel %vm6105, %v6889, %v6890
        %v6892 = vrot.slane %v6771, 4
        %v6893 = vsel %vm6105, %v6890, %v6892
        %v6894 = vrot.slane %v6772, 4
        %v6895 = vrot.slane %v6773, 4
        %v6896 = vsel %vm6105, %v6894, %v6895
        %v6897 = vrot.slane %v6774, 4
        %v6898 = vsel %vm6105, %v6895, %v6897
        %v6899 = vrot.slane %v6775, 4
        %v6900 = vrot.slane %v6776, 4
        %v6901 = vsel %vm6105, %v6899, %v6900
        %v6902 = vrot.slane %v6777, 4
        %v6903 = vsel %vm6105, %v6900, %v6902
        %v6904 = vrot.slane %v6778, 4
        %v6905 = vrot.slane %v6779, 4
        %v6906 = vsel %vm6105, %v6904, %v6905
        %v6907 = vrot.slane %v6780, 4
        %v6908 = vsel %vm6105, %v6905, %v6907
        %v6941 = vadd.f32 %v6700, %v6831
        %v6942 = vadd.f32 %v6701, %v6833
        %v6943 = vadd.f32 %v6702, %v6836
        %v6944 = vadd.f32 %v6703, %v6838
        %v6945 = vadd.f32 %v6704, %v6841
        %v6946 = vadd.f32 %v6705, %v6843
        %v6947 = vadd.f32 %v6706, %v6846
        %v6948 = vadd.f32 %v6707, %v6848
        %v6949 = vadd.f32 %v6708, %v6851
        %v6950 = vadd.f32 %v6709, %v6853
        %v6951 = vadd.f32 %v6710, %v6856
        %v6952 = vadd.f32 %v6711, %v6858
        %v6953 = vadd.f32 %v6712, %v6861
        %v6954 = vadd.f32 %v6713, %v6863
        %v6955 = vadd.f32 %v6714, %v6866
        %v6956 = vadd.f32 %v6715, %v6868
        %v6957 = vadd.f32 %v6716, %v6871
        %v6958 = vadd.f32 %v6717, %v6873
        %v6959 = vadd.f32 %v6718, %v6876
        %v6960 = vadd.f32 %v6719, %v6878
        %v6961 = vadd.f32 %v6720, %v6881
        %v6962 = vadd.f32 %v6721, %v6883
        %v6963 = vadd.f32 %v6722, %v6886
        %v6964 = vadd.f32 %v6723, %v6888
        %v6965 = vadd.f32 %v6724, %v6891
        %v6966 = vadd.f32 %v6725, %v6893
        %v6967 = vadd.f32 %v6726, %v6896
        %v6968 = vadd.f32 %v6727, %v6898
        %v6969 = vadd.f32 %v6728, %v6901
        %v6970 = vadd.f32 %v6729, %v6903
        %v6971 = vadd.f32 %v6730, %v6906
        %v6972 = vadd.f32 %v6731, %v6908
        %v6973 = vperm.slane %v482, 0
        %v6974 = vmul.f32 %v424, %v6973
        %v6975 = vmul.f32 %v425, %v6973
        %v6976 = vmul.f32 %v426, %v6973
        %v6977 = vmul.f32 %v427, %v6973
        %v6978 = vmul.f32 %v428, %v6973
        %v6979 = vmul.f32 %v429, %v6973
        %v6980 = vmul.f32 %v430, %v6973
        %v6981 = vmul.f32 %v431, %v6973
        %v6982 = vmul.f32 %v432, %v6973
        %v6983 = vmul.f32 %v433, %v6973
        %v6984 = vmul.f32 %v434, %v6973
        %v6985 = vmul.f32 %v435, %v6973
        %v6986 = vmul.f32 %v436, %v6973
        %v6987 = vmul.f32 %v437, %v6973
        %v6988 = vmul.f32 %v438, %v6973
        %v6989 = vmul.f32 %v439, %v6973
        %v6990 = vmul.f32 %v440, %v6973
        %v6991 = vmul.f32 %v441, %v6973
        %v6992 = vmul.f32 %v442, %v6973
        %v6993 = vmul.f32 %v443, %v6973
        %v6994 = vmul.f32 %v444, %v6973
        %v6995 = vmul.f32 %v445, %v6973
        %v6996 = vmul.f32 %v446, %v6973
        %v6997 = vmul.f32 %v447, %v6973
        %v6998 = vmul.f32 %v448, %v6973
        %v6999 = vmul.f32 %v449, %v6973
        %v7000 = vmul.f32 %v450, %v6973
        %v7001 = vmul.f32 %v451, %v6973
        %v7002 = vmul.f32 %v452, %v6973
        %v7003 = vmul.f32 %v453, %v6973
        %v7004 = vmul.f32 %v454, %v6973
        %v7005 = vmul.f32 %v455, %v6973
        %v7006 = vmul.f32 %v456, %v6973
        %v7007 = vmul.f32 %v457, %v6973
        %v7008 = vmul.f32 %v458, %v6973
        %v7009 = vmul.f32 %v459, %v6973
        %v7010 = vmul.f32 %v460, %v6973
        %v7011 = vmul.f32 %v461, %v6973
        %v7012 = vmul.f32 %v462, %v6973
        %v7013 = vmul.f32 %v463, %v6973
        %v7014 = vmul.f32 %v464, %v6973
        %v7015 = vmul.f32 %v465, %v6973
        %v7016 = vmul.f32 %v466, %v6973
        %v7017 = vmul.f32 %v467, %v6973
        %v7018 = vmul.f32 %v468, %v6973
        %v7019 = vmul.f32 %v469, %v6973
        %v7020 = vmul.f32 %v470, %v6973
        %v7021 = vmul.f32 %v471, %v6973
        %v7070 = vrot.slane %v6974, 4
        %v7071 = vrot.slane %v6975, 4
        %v7072 = vsel %vm6105, %v7070, %v7071
        %v7073 = vrot.slane %v6976, 4
        %v7074 = vsel %vm6105, %v7071, %v7073
        %v7075 = vrot.slane %v6977, 4
        %v7076 = vrot.slane %v6978, 4
        %v7077 = vsel %vm6105, %v7075, %v7076
        %v7078 = vrot.slane %v6979, 4
        %v7079 = vsel %vm6105, %v7076, %v7078
        %v7080 = vrot.slane %v6980, 4
        %v7081 = vrot.slane %v6981, 4
        %v7082 = vsel %vm6105, %v7080, %v7081
        %v7083 = vrot.slane %v6982, 4
        %v7084 = vsel %vm6105, %v7081, %v7083
        %v7085 = vrot.slane %v6983, 4
        %v7086 = vrot.slane %v6984, 4
        %v7087 = vsel %vm6105, %v7085, %v7086
        %v7088 = vrot.slane %v6985, 4
        %v7089 = vsel %vm6105, %v7086, %v7088
        %v7090 = vrot.slane %v6986, 4
        %v7091 = vrot.slane %v6987, 4
        %v7092 = vsel %vm6105, %v7090, %v7091
        %v7093 = vrot.slane %v6988, 4
        %v7094 = vsel %vm6105, %v7091, %v7093
        %v7095 = vrot.slane %v6989, 4
        %v7096 = vrot.slane %v6990, 4
        %v7097 = vsel %vm6105, %v7095, %v7096
        %v7098 = vrot.slane %v6991, 4
        %v7099 = vsel %vm6105, %v7096, %v7098
        %v7100 = vrot.slane %v6992, 4
        %v7101 = vrot.slane %v6993, 4
        %v7102 = vsel %vm6105, %v7100, %v7101
        %v7103 = vrot.slane %v6994, 4
        %v7104 = vsel %vm6105, %v7101, %v7103
        %v7105 = vrot.slane %v6995, 4
        %v7106 = vrot.slane %v6996, 4
        %v7107 = vsel %vm6105, %v7105, %v7106
        %v7108 = vrot.slane %v6997, 4
        %v7109 = vsel %vm6105, %v7106, %v7108
        %v7110 = vrot.slane %v6998, 4
        %v7111 = vrot.slane %v6999, 4
        %v7112 = vsel %vm6105, %v7110, %v7111
        %v7113 = vrot.slane %v7000, 4
        %v7114 = vsel %vm6105, %v7111, %v7113
        %v7115 = vrot.slane %v7001, 4
        %v7116 = vrot.slane %v7002, 4
        %v7117 = vsel %vm6105, %v7115, %v7116
        %v7118 = vrot.slane %v7003, 4
        %v7119 = vsel %vm6105, %v7116, %v7118
        %v7120 = vrot.slane %v7004, 4
        %v7121 = vrot.slane %v7005, 4
        %v7122 = vsel %vm6105, %v7120, %v7121
        %v7123 = vrot.slane %v7006, 4
        %v7124 = vsel %vm6105, %v7121, %v7123
        %v7125 = vrot.slane %v7007, 4
        %v7126 = vrot.slane %v7008, 4
        %v7127 = vsel %vm6105, %v7125, %v7126
        %v7128 = vrot.slane %v7009, 4
        %v7129 = vsel %vm6105, %v7126, %v7128
        %v7130 = vrot.slane %v7010, 4
        %v7131 = vrot.slane %v7011, 4
        %v7132 = vsel %vm6105, %v7130, %v7131
        %v7133 = vrot.slane %v7012, 4
        %v7134 = vsel %vm6105, %v7131, %v7133
        %v7135 = vrot.slane %v7013, 4
        %v7136 = vrot.slane %v7014, 4
        %v7137 = vsel %vm6105, %v7135, %v7136
        %v7138 = vrot.slane %v7015, 4
        %v7139 = vsel %vm6105, %v7136, %v7138
        %v7140 = vrot.slane %v7016, 4
        %v7141 = vrot.slane %v7017, 4
        %v7142 = vsel %vm6105, %v7140, %v7141
        %v7143 = vrot.slane %v7018, 4
        %v7144 = vsel %vm6105, %v7141, %v7143
        %v7145 = vrot.slane %v7019, 4
        %v7146 = vrot.slane %v7020, 4
        %v7147 = vsel %vm6105, %v7145, %v7146
        %v7148 = vrot.slane %v7021, 4
        %v7149 = vsel %vm6105, %v7146, %v7148
        %v7182 = vadd.f32 %v6941, %v7072
        %v7183 = vadd.f32 %v6942, %v7074
        %v7184 = vadd.f32 %v6943, %v7077
        %v7185 = vadd.f32 %v6944, %v7079
        %v7186 = vadd.f32 %v6945, %v7082
        %v7187 = vadd.f32 %v6946, %v7084
        %v7188 = vadd.f32 %v6947, %v7087
        %v7189 = vadd.f32 %v6948, %v7089
        %v7190 = vadd.f32 %v6949, %v7092
        %v7191 = vadd.f32 %v6950, %v7094
        %v7192 = vadd.f32 %v6951, %v7097
        %v7193 = vadd.f32 %v6952, %v7099
        %v7194 = vadd.f32 %v6953, %v7102
        %v7195 = vadd.f32 %v6954, %v7104
        %v7196 = vadd.f32 %v6955, %v7107
        %v7197 = vadd.f32 %v6956, %v7109
        %v7198 = vadd.f32 %v6957, %v7112
        %v7199 = vadd.f32 %v6958, %v7114
        %v7200 = vadd.f32 %v6959, %v7117
        %v7201 = vadd.f32 %v6960, %v7119
        %v7202 = vadd.f32 %v6961, %v7122
        %v7203 = vadd.f32 %v6962, %v7124
        %v7204 = vadd.f32 %v6963, %v7127
        %v7205 = vadd.f32 %v6964, %v7129
        %v7206 = vadd.f32 %v6965, %v7132
        %v7207 = vadd.f32 %v6966, %v7134
        %v7208 = vadd.f32 %v6967, %v7137
        %v7209 = vadd.f32 %v6968, %v7139
        %v7210 = vadd.f32 %v6969, %v7142
        %v7211 = vadd.f32 %v6970, %v7144
        %v7212 = vadd.f32 %v6971, %v7147
        %v7213 = vadd.f32 %v6972, %v7149
        %v7214 = vperm.slane %v482, 7
        %v7215 = vmul.f32 %v427, %v7214
        %v7216 = vmul.f32 %v428, %v7214
        %v7217 = vmul.f32 %v429, %v7214
        %v7218 = vmul.f32 %v430, %v7214
        %v7219 = vmul.f32 %v431, %v7214
        %v7220 = vmul.f32 %v432, %v7214
        %v7221 = vmul.f32 %v433, %v7214
        %v7222 = vmul.f32 %v434, %v7214
        %v7223 = vmul.f32 %v435, %v7214
        %v7224 = vmul.f32 %v436, %v7214
        %v7225 = vmul.f32 %v437, %v7214
        %v7226 = vmul.f32 %v438, %v7214
        %v7227 = vmul.f32 %v439, %v7214
        %v7228 = vmul.f32 %v440, %v7214
        %v7229 = vmul.f32 %v441, %v7214
        %v7230 = vmul.f32 %v442, %v7214
        %v7231 = vmul.f32 %v443, %v7214
        %v7232 = vmul.f32 %v444, %v7214
        %v7233 = vmul.f32 %v445, %v7214
        %v7234 = vmul.f32 %v446, %v7214
        %v7235 = vmul.f32 %v447, %v7214
        %v7236 = vmul.f32 %v448, %v7214
        %v7237 = vmul.f32 %v449, %v7214
        %v7238 = vmul.f32 %v450, %v7214
        %v7239 = vmul.f32 %v451, %v7214
        %v7240 = vmul.f32 %v452, %v7214
        %v7241 = vmul.f32 %v453, %v7214
        %v7242 = vmul.f32 %v454, %v7214
        %v7243 = vmul.f32 %v455, %v7214
        %v7244 = vmul.f32 %v456, %v7214
        %v7245 = vmul.f32 %v457, %v7214
        %v7246 = vmul.f32 %v458, %v7214
        %v7247 = vmul.f32 %v459, %v7214
        %v7248 = vmul.f32 %v460, %v7214
        %v7249 = vmul.f32 %v461, %v7214
        %v7250 = vmul.f32 %v462, %v7214
        %v7251 = vmul.f32 %v463, %v7214
        %v7252 = vmul.f32 %v464, %v7214
        %v7253 = vmul.f32 %v465, %v7214
        %v7254 = vmul.f32 %v466, %v7214
        %v7255 = vmul.f32 %v467, %v7214
        %v7256 = vmul.f32 %v468, %v7214
        %v7257 = vmul.f32 %v469, %v7214
        %v7258 = vmul.f32 %v470, %v7214
        %v7259 = vmul.f32 %v471, %v7214
        %v7260 = vmul.f32 %v472, %v7214
        %v7261 = vmul.f32 %v473, %v7214
        %v7262 = vmul.f32 %v474, %v7214
        %v7311 = vrot.slane %v7215, 4
        %v7312 = vrot.slane %v7216, 4
        %v7313 = vsel %vm6105, %v7311, %v7312
        %v7314 = vrot.slane %v7217, 4
        %v7315 = vsel %vm6105, %v7312, %v7314
        %v7316 = vrot.slane %v7218, 4
        %v7317 = vrot.slane %v7219, 4
        %v7318 = vsel %vm6105, %v7316, %v7317
        %v7319 = vrot.slane %v7220, 4
        %v7320 = vsel %vm6105, %v7317, %v7319
        %v7321 = vrot.slane %v7221, 4
        %v7322 = vrot.slane %v7222, 4
        %v7323 = vsel %vm6105, %v7321, %v7322
        %v7324 = vrot.slane %v7223, 4
        %v7325 = vsel %vm6105, %v7322, %v7324
        %v7326 = vrot.slane %v7224, 4
        %v7327 = vrot.slane %v7225, 4
        %v7328 = vsel %vm6105, %v7326, %v7327
        %v7329 = vrot.slane %v7226, 4
        %v7330 = vsel %vm6105, %v7327, %v7329
        %v7331 = vrot.slane %v7227, 4
        %v7332 = vrot.slane %v7228, 4
        %v7333 = vsel %vm6105, %v7331, %v7332
        %v7334 = vrot.slane %v7229, 4
        %v7335 = vsel %vm6105, %v7332, %v7334
        %v7336 = vrot.slane %v7230, 4
        %v7337 = vrot.slane %v7231, 4
        %v7338 = vsel %vm6105, %v7336, %v7337
        %v7339 = vrot.slane %v7232, 4
        %v7340 = vsel %vm6105, %v7337, %v7339
        %v7341 = vrot.slane %v7233, 4
        %v7342 = vrot.slane %v7234, 4
        %v7343 = vsel %vm6105, %v7341, %v7342
        %v7344 = vrot.slane %v7235, 4
        %v7345 = vsel %vm6105, %v7342, %v7344
        %v7346 = vrot.slane %v7236, 4
        %v7347 = vrot.slane %v7237, 4
        %v7348 = vsel %vm6105, %v7346, %v7347
        %v7349 = vrot.slane %v7238, 4
        %v7350 = vsel %vm6105, %v7347, %v7349
        %v7351 = vrot.slane %v7239, 4
        %v7352 = vrot.slane %v7240, 4
        %v7353 = vsel %vm6105, %v7351, %v7352
        %v7354 = vrot.slane %v7241, 4
        %v7355 = vsel %vm6105, %v7352, %v7354
        %v7356 = vrot.slane %v7242, 4
        %v7357 = vrot.slane %v7243, 4
        %v7358 = vsel %vm6105, %v7356, %v7357
        %v7359 = vrot.slane %v7244, 4
        %v7360 = vsel %vm6105, %v7357, %v7359
        %v7361 = vrot.slane %v7245, 4
        %v7362 = vrot.slane %v7246, 4
        %v7363 = vsel %vm6105, %v7361, %v7362
        %v7364 = vrot.slane %v7247, 4
        %v7365 = vsel %vm6105, %v7362, %v7364
        %v7366 = vrot.slane %v7248, 4
        %v7367 = vrot.slane %v7249, 4
        %v7368 = vsel %vm6105, %v7366, %v7367
        %v7369 = vrot.slane %v7250, 4
        %v7370 = vsel %vm6105, %v7367, %v7369
        %v7371 = vrot.slane %v7251, 4
        %v7372 = vrot.slane %v7252, 4
        %v7373 = vsel %vm6105, %v7371, %v7372
        %v7374 = vrot.slane %v7253, 4
        %v7375 = vsel %vm6105, %v7372, %v7374
        %v7376 = vrot.slane %v7254, 4
        %v7377 = vrot.slane %v7255, 4
        %v7378 = vsel %vm6105, %v7376, %v7377
        %v7379 = vrot.slane %v7256, 4
        %v7380 = vsel %vm6105, %v7377, %v7379
        %v7381 = vrot.slane %v7257, 4
        %v7382 = vrot.slane %v7258, 4
        %v7383 = vsel %vm6105, %v7381, %v7382
        %v7384 = vrot.slane %v7259, 4
        %v7385 = vsel %vm6105, %v7382, %v7384
        %v7386 = vrot.slane %v7260, 4
        %v7387 = vrot.slane %v7261, 4
        %v7388 = vsel %vm6105, %v7386, %v7387
        %v7389 = vrot.slane %v7262, 4
        %v7390 = vsel %vm6105, %v7387, %v7389
        %v7423 = vadd.f32 %v7182, %v7313
        %v7424 = vadd.f32 %v7183, %v7315
        %v7425 = vadd.f32 %v7184, %v7318
        %v7426 = vadd.f32 %v7185, %v7320
        %v7427 = vadd.f32 %v7186, %v7323
        %v7428 = vadd.f32 %v7187, %v7325
        %v7429 = vadd.f32 %v7188, %v7328
        %v7430 = vadd.f32 %v7189, %v7330
        %v7431 = vadd.f32 %v7190, %v7333
        %v7432 = vadd.f32 %v7191, %v7335
        %v7433 = vadd.f32 %v7192, %v7338
        %v7434 = vadd.f32 %v7193, %v7340
        %v7435 = vadd.f32 %v7194, %v7343
        %v7436 = vadd.f32 %v7195, %v7345
        %v7437 = vadd.f32 %v7196, %v7348
        %v7438 = vadd.f32 %v7197, %v7350
        %v7439 = vadd.f32 %v7198, %v7353
        %v7440 = vadd.f32 %v7199, %v7355
        %v7441 = vadd.f32 %v7200, %v7358
        %v7442 = vadd.f32 %v7201, %v7360
        %v7443 = vadd.f32 %v7202, %v7363
        %v7444 = vadd.f32 %v7203, %v7365
        %v7445 = vadd.f32 %v7204, %v7368
        %v7446 = vadd.f32 %v7205, %v7370
        %v7447 = vadd.f32 %v7206, %v7373
        %v7448 = vadd.f32 %v7207, %v7375
        %v7449 = vadd.f32 %v7208, %v7378
        %v7450 = vadd.f32 %v7209, %v7380
        %v7451 = vadd.f32 %v7210, %v7383
        %v7452 = vadd.f32 %v7211, %v7385
        %v7453 = vadd.f32 %v7212, %v7388
        %v7454 = vadd.f32 %v7213, %v7390
        %v7455 = vperm.slane %v483, 6
        %v7456 = vmul.f32 %v430, %v7455
        %v7457 = vmul.f32 %v431, %v7455
        %v7458 = vmul.f32 %v432, %v7455
        %v7459 = vmul.f32 %v433, %v7455
        %v7460 = vmul.f32 %v434, %v7455
        %v7461 = vmul.f32 %v435, %v7455
        %v7462 = vmul.f32 %v436, %v7455
        %v7463 = vmul.f32 %v437, %v7455
        %v7464 = vmul.f32 %v438, %v7455
        %v7465 = vmul.f32 %v439, %v7455
        %v7466 = vmul.f32 %v440, %v7455
        %v7467 = vmul.f32 %v441, %v7455
        %v7468 = vmul.f32 %v442, %v7455
        %v7469 = vmul.f32 %v443, %v7455
        %v7470 = vmul.f32 %v444, %v7455
        %v7471 = vmul.f32 %v445, %v7455
        %v7472 = vmul.f32 %v446, %v7455
        %v7473 = vmul.f32 %v447, %v7455
        %v7474 = vmul.f32 %v448, %v7455
        %v7475 = vmul.f32 %v449, %v7455
        %v7476 = vmul.f32 %v450, %v7455
        %v7477 = vmul.f32 %v451, %v7455
        %v7478 = vmul.f32 %v452, %v7455
        %v7479 = vmul.f32 %v453, %v7455
        %v7480 = vmul.f32 %v454, %v7455
        %v7481 = vmul.f32 %v455, %v7455
        %v7482 = vmul.f32 %v456, %v7455
        %v7483 = vmul.f32 %v457, %v7455
        %v7484 = vmul.f32 %v458, %v7455
        %v7485 = vmul.f32 %v459, %v7455
        %v7486 = vmul.f32 %v460, %v7455
        %v7487 = vmul.f32 %v461, %v7455
        %v7488 = vmul.f32 %v462, %v7455
        %v7489 = vmul.f32 %v463, %v7455
        %v7490 = vmul.f32 %v464, %v7455
        %v7491 = vmul.f32 %v465, %v7455
        %v7492 = vmul.f32 %v466, %v7455
        %v7493 = vmul.f32 %v467, %v7455
        %v7494 = vmul.f32 %v468, %v7455
        %v7495 = vmul.f32 %v469, %v7455
        %v7496 = vmul.f32 %v470, %v7455
        %v7497 = vmul.f32 %v471, %v7455
        %v7498 = vmul.f32 %v472, %v7455
        %v7499 = vmul.f32 %v473, %v7455
        %v7500 = vmul.f32 %v474, %v7455
        %v7501 = vmul.f32 %v475, %v7455
        %v7502 = vmul.f32 %v476, %v7455
        %v7503 = vmul.f32 %v477, %v7455
        %v7552 = vrot.slane %v7456, 4
        %v7553 = vrot.slane %v7457, 4
        %v7554 = vsel %vm6105, %v7552, %v7553
        %v7555 = vrot.slane %v7458, 4
        %v7556 = vsel %vm6105, %v7553, %v7555
        %v7557 = vrot.slane %v7459, 4
        %v7558 = vrot.slane %v7460, 4
        %v7559 = vsel %vm6105, %v7557, %v7558
        %v7560 = vrot.slane %v7461, 4
        %v7561 = vsel %vm6105, %v7558, %v7560
        %v7562 = vrot.slane %v7462, 4
        %v7563 = vrot.slane %v7463, 4
        %v7564 = vsel %vm6105, %v7562, %v7563
        %v7565 = vrot.slane %v7464, 4
        %v7566 = vsel %vm6105, %v7563, %v7565
        %v7567 = vrot.slane %v7465, 4
        %v7568 = vrot.slane %v7466, 4
        %v7569 = vsel %vm6105, %v7567, %v7568
        %v7570 = vrot.slane %v7467, 4
        %v7571 = vsel %vm6105, %v7568, %v7570
        %v7572 = vrot.slane %v7468, 4
        %v7573 = vrot.slane %v7469, 4
        %v7574 = vsel %vm6105, %v7572, %v7573
        %v7575 = vrot.slane %v7470, 4
        %v7576 = vsel %vm6105, %v7573, %v7575
        %v7577 = vrot.slane %v7471, 4
        %v7578 = vrot.slane %v7472, 4
        %v7579 = vsel %vm6105, %v7577, %v7578
        %v7580 = vrot.slane %v7473, 4
        %v7581 = vsel %vm6105, %v7578, %v7580
        %v7582 = vrot.slane %v7474, 4
        %v7583 = vrot.slane %v7475, 4
        %v7584 = vsel %vm6105, %v7582, %v7583
        %v7585 = vrot.slane %v7476, 4
        %v7586 = vsel %vm6105, %v7583, %v7585
        %v7587 = vrot.slane %v7477, 4
        %v7588 = vrot.slane %v7478, 4
        %v7589 = vsel %vm6105, %v7587, %v7588
        %v7590 = vrot.slane %v7479, 4
        %v7591 = vsel %vm6105, %v7588, %v7590
        %v7592 = vrot.slane %v7480, 4
        %v7593 = vrot.slane %v7481, 4
        %v7594 = vsel %vm6105, %v7592, %v7593
        %v7595 = vrot.slane %v7482, 4
        %v7596 = vsel %vm6105, %v7593, %v7595
        %v7597 = vrot.slane %v7483, 4
        %v7598 = vrot.slane %v7484, 4
        %v7599 = vsel %vm6105, %v7597, %v7598
        %v7600 = vrot.slane %v7485, 4
        %v7601 = vsel %vm6105, %v7598, %v7600
        %v7602 = vrot.slane %v7486, 4
        %v7603 = vrot.slane %v7487, 4
        %v7604 = vsel %vm6105, %v7602, %v7603
        %v7605 = vrot.slane %v7488, 4
        %v7606 = vsel %vm6105, %v7603, %v7605
        %v7607 = vrot.slane %v7489, 4
        %v7608 = vrot.slane %v7490, 4
        %v7609 = vsel %vm6105, %v7607, %v7608
        %v7610 = vrot.slane %v7491, 4
        %v7611 = vsel %vm6105, %v7608, %v7610
        %v7612 = vrot.slane %v7492, 4
        %v7613 = vrot.slane %v7493, 4
        %v7614 = vsel %vm6105, %v7612, %v7613
        %v7615 = vrot.slane %v7494, 4
        %v7616 = vsel %vm6105, %v7613, %v7615
        %v7617 = vrot.slane %v7495, 4
        %v7618 = vrot.slane %v7496, 4
        %v7619 = vsel %vm6105, %v7617, %v7618
        %v7620 = vrot.slane %v7497, 4
        %v7621 = vsel %vm6105, %v7618, %v7620
        %v7622 = vrot.slane %v7498, 4
        %v7623 = vrot.slane %v7499, 4
        %v7624 = vsel %vm6105, %v7622, %v7623
        %v7625 = vrot.slane %v7500, 4
        %v7626 = vsel %vm6105, %v7623, %v7625
        %v7627 = vrot.slane %v7501, 4
        %v7628 = vrot.slane %v7502, 4
        %v7629 = vsel %vm6105, %v7627, %v7628
        %v7630 = vrot.slane %v7503, 4
        %v7631 = vsel %vm6105, %v7628, %v7630
        %v7664 = vadd.f32 %v7423, %v7554
        %v7665 = vadd.f32 %v7424, %v7556
        %v7666 = vadd.f32 %v7425, %v7559
        %v7667 = vadd.f32 %v7426, %v7561
        %v7668 = vadd.f32 %v7427, %v7564
        %v7669 = vadd.f32 %v7428, %v7566
        %v7670 = vadd.f32 %v7429, %v7569
        %v7671 = vadd.f32 %v7430, %v7571
        %v7672 = vadd.f32 %v7431, %v7574
        %v7673 = vadd.f32 %v7432, %v7576
        %v7674 = vadd.f32 %v7433, %v7579
        %v7675 = vadd.f32 %v7434, %v7581
        %v7676 = vadd.f32 %v7435, %v7584
        %v7677 = vadd.f32 %v7436, %v7586
        %v7678 = vadd.f32 %v7437, %v7589
        %v7679 = vadd.f32 %v7438, %v7591
        %v7680 = vadd.f32 %v7439, %v7594
        %v7681 = vadd.f32 %v7440, %v7596
        %v7682 = vadd.f32 %v7441, %v7599
        %v7683 = vadd.f32 %v7442, %v7601
        %v7684 = vadd.f32 %v7443, %v7604
        %v7685 = vadd.f32 %v7444, %v7606
        %v7686 = vadd.f32 %v7445, %v7609
        %v7687 = vadd.f32 %v7446, %v7611
        %v7688 = vadd.f32 %v7447, %v7614
        %v7689 = vadd.f32 %v7448, %v7616
        %v7690 = vadd.f32 %v7449, %v7619
        %v7691 = vadd.f32 %v7450, %v7621
        %v7692 = vadd.f32 %v7451, %v7624
        %v7693 = vadd.f32 %v7452, %v7626
        %v7694 = vadd.f32 %v7453, %v7629
        %v7695 = vadd.f32 %v7454, %v7631
        %v7696 = vperm.slane %v478, 5
        %v7697 = vmul.f32 %v412, %v7696
        %v7698 = vmul.f32 %v413, %v7696
        %v7699 = vmul.f32 %v414, %v7696
        %v7700 = vmul.f32 %v415, %v7696
        %v7701 = vmul.f32 %v416, %v7696
        %v7702 = vmul.f32 %v417, %v7696
        %v7703 = vmul.f32 %v418, %v7696
        %v7704 = vmul.f32 %v419, %v7696
        %v7705 = vmul.f32 %v420, %v7696
        %v7706 = vmul.f32 %v421, %v7696
        %v7707 = vmul.f32 %v422, %v7696
        %v7708 = vmul.f32 %v423, %v7696
        %v7709 = vmul.f32 %v424, %v7696
        %v7710 = vmul.f32 %v425, %v7696
        %v7711 = vmul.f32 %v426, %v7696
        %v7712 = vmul.f32 %v427, %v7696
        %v7713 = vmul.f32 %v428, %v7696
        %v7714 = vmul.f32 %v429, %v7696
        %v7715 = vmul.f32 %v430, %v7696
        %v7716 = vmul.f32 %v431, %v7696
        %v7717 = vmul.f32 %v432, %v7696
        %v7718 = vmul.f32 %v433, %v7696
        %v7719 = vmul.f32 %v434, %v7696
        %v7720 = vmul.f32 %v435, %v7696
        %v7721 = vmul.f32 %v436, %v7696
        %v7722 = vmul.f32 %v437, %v7696
        %v7723 = vmul.f32 %v438, %v7696
        %v7724 = vmul.f32 %v439, %v7696
        %v7725 = vmul.f32 %v440, %v7696
        %v7726 = vmul.f32 %v441, %v7696
        %v7727 = vmul.f32 %v442, %v7696
        %v7728 = vmul.f32 %v443, %v7696
        %v7729 = vmul.f32 %v444, %v7696
        %v7730 = vmul.f32 %v445, %v7696
        %v7731 = vmul.f32 %v446, %v7696
        %v7732 = vmul.f32 %v447, %v7696
        %v7733 = vmul.f32 %v448, %v7696
        %v7734 = vmul.f32 %v449, %v7696
        %v7735 = vmul.f32 %v450, %v7696
        %v7736 = vmul.f32 %v451, %v7696
        %v7737 = vmul.f32 %v452, %v7696
        %v7738 = vmul.f32 %v453, %v7696
        %v7739 = vmul.f32 %v454, %v7696
        %v7740 = vmul.f32 %v455, %v7696
        %v7741 = vmul.f32 %v456, %v7696
        %v7742 = vmul.f32 %v457, %v7696
        %v7743 = vmul.f32 %v458, %v7696
        %v7744 = vmul.f32 %v459, %v7696
        %vm7793 = vcmask 1042432
        %v7794 = vrot.slane %v7697, 5
        %v7795 = vrot.slane %v7698, 5
        %v7796 = vsel %vm7793, %v7794, %v7795
        %v7797 = vrot.slane %v7699, 5
        %v7798 = vsel %vm7793, %v7795, %v7797
        %v7799 = vrot.slane %v7700, 5
        %v7800 = vrot.slane %v7701, 5
        %v7801 = vsel %vm7793, %v7799, %v7800
        %v7802 = vrot.slane %v7702, 5
        %v7803 = vsel %vm7793, %v7800, %v7802
        %v7804 = vrot.slane %v7703, 5
        %v7805 = vrot.slane %v7704, 5
        %v7806 = vsel %vm7793, %v7804, %v7805
        %v7807 = vrot.slane %v7705, 5
        %v7808 = vsel %vm7793, %v7805, %v7807
        %v7809 = vrot.slane %v7706, 5
        %v7810 = vrot.slane %v7707, 5
        %v7811 = vsel %vm7793, %v7809, %v7810
        %v7812 = vrot.slane %v7708, 5
        %v7813 = vsel %vm7793, %v7810, %v7812
        %v7814 = vrot.slane %v7709, 5
        %v7815 = vrot.slane %v7710, 5
        %v7816 = vsel %vm7793, %v7814, %v7815
        %v7817 = vrot.slane %v7711, 5
        %v7818 = vsel %vm7793, %v7815, %v7817
        %v7819 = vrot.slane %v7712, 5
        %v7820 = vrot.slane %v7713, 5
        %v7821 = vsel %vm7793, %v7819, %v7820
        %v7822 = vrot.slane %v7714, 5
        %v7823 = vsel %vm7793, %v7820, %v7822
        %v7824 = vrot.slane %v7715, 5
        %v7825 = vrot.slane %v7716, 5
        %v7826 = vsel %vm7793, %v7824, %v7825
        %v7827 = vrot.slane %v7717, 5
        %v7828 = vsel %vm7793, %v7825, %v7827
        %v7829 = vrot.slane %v7718, 5
        %v7830 = vrot.slane %v7719, 5
        %v7831 = vsel %vm7793, %v7829, %v7830
        %v7832 = vrot.slane %v7720, 5
        %v7833 = vsel %vm7793, %v7830, %v7832
        %v7834 = vrot.slane %v7721, 5
        %v7835 = vrot.slane %v7722, 5
        %v7836 = vsel %vm7793, %v7834, %v7835
        %v7837 = vrot.slane %v7723, 5
        %v7838 = vsel %vm7793, %v7835, %v7837
        %v7839 = vrot.slane %v7724, 5
        %v7840 = vrot.slane %v7725, 5
        %v7841 = vsel %vm7793, %v7839, %v7840
        %v7842 = vrot.slane %v7726, 5
        %v7843 = vsel %vm7793, %v7840, %v7842
        %v7844 = vrot.slane %v7727, 5
        %v7845 = vrot.slane %v7728, 5
        %v7846 = vsel %vm7793, %v7844, %v7845
        %v7847 = vrot.slane %v7729, 5
        %v7848 = vsel %vm7793, %v7845, %v7847
        %v7849 = vrot.slane %v7730, 5
        %v7850 = vrot.slane %v7731, 5
        %v7851 = vsel %vm7793, %v7849, %v7850
        %v7852 = vrot.slane %v7732, 5
        %v7853 = vsel %vm7793, %v7850, %v7852
        %v7854 = vrot.slane %v7733, 5
        %v7855 = vrot.slane %v7734, 5
        %v7856 = vsel %vm7793, %v7854, %v7855
        %v7857 = vrot.slane %v7735, 5
        %v7858 = vsel %vm7793, %v7855, %v7857
        %v7859 = vrot.slane %v7736, 5
        %v7860 = vrot.slane %v7737, 5
        %v7861 = vsel %vm7793, %v7859, %v7860
        %v7862 = vrot.slane %v7738, 5
        %v7863 = vsel %vm7793, %v7860, %v7862
        %v7864 = vrot.slane %v7739, 5
        %v7865 = vrot.slane %v7740, 5
        %v7866 = vsel %vm7793, %v7864, %v7865
        %v7867 = vrot.slane %v7741, 5
        %v7868 = vsel %vm7793, %v7865, %v7867
        %v7869 = vrot.slane %v7742, 5
        %v7870 = vrot.slane %v7743, 5
        %v7871 = vsel %vm7793, %v7869, %v7870
        %v7872 = vrot.slane %v7744, 5
        %v7873 = vsel %vm7793, %v7870, %v7872
        %v7906 = vadd.f32 %v7664, %v7796
        %v7907 = vadd.f32 %v7665, %v7798
        %v7908 = vadd.f32 %v7666, %v7801
        %v7909 = vadd.f32 %v7667, %v7803
        %v7910 = vadd.f32 %v7668, %v7806
        %v7911 = vadd.f32 %v7669, %v7808
        %v7912 = vadd.f32 %v7670, %v7811
        %v7913 = vadd.f32 %v7671, %v7813
        %v7914 = vadd.f32 %v7672, %v7816
        %v7915 = vadd.f32 %v7673, %v7818
        %v7916 = vadd.f32 %v7674, %v7821
        %v7917 = vadd.f32 %v7675, %v7823
        %v7918 = vadd.f32 %v7676, %v7826
        %v7919 = vadd.f32 %v7677, %v7828
        %v7920 = vadd.f32 %v7678, %v7831
        %v7921 = vadd.f32 %v7679, %v7833
        %v7922 = vadd.f32 %v7680, %v7836
        %v7923 = vadd.f32 %v7681, %v7838
        %v7924 = vadd.f32 %v7682, %v7841
        %v7925 = vadd.f32 %v7683, %v7843
        %v7926 = vadd.f32 %v7684, %v7846
        %v7927 = vadd.f32 %v7685, %v7848
        %v7928 = vadd.f32 %v7686, %v7851
        %v7929 = vadd.f32 %v7687, %v7853
        %v7930 = vadd.f32 %v7688, %v7856
        %v7931 = vadd.f32 %v7689, %v7858
        %v7932 = vadd.f32 %v7690, %v7861
        %v7933 = vadd.f32 %v7691, %v7863
        %v7934 = vadd.f32 %v7692, %v7866
        %v7935 = vadd.f32 %v7693, %v7868
        %v7936 = vadd.f32 %v7694, %v7871
        %v7937 = vadd.f32 %v7695, %v7873
        %v7938 = vperm.slane %v479, 4
        %v7939 = vmul.f32 %v415, %v7938
        %v7940 = vmul.f32 %v416, %v7938
        %v7941 = vmul.f32 %v417, %v7938
        %v7942 = vmul.f32 %v418, %v7938
        %v7943 = vmul.f32 %v419, %v7938
        %v7944 = vmul.f32 %v420, %v7938
        %v7945 = vmul.f32 %v421, %v7938
        %v7946 = vmul.f32 %v422, %v7938
        %v7947 = vmul.f32 %v423, %v7938
        %v7948 = vmul.f32 %v424, %v7938
        %v7949 = vmul.f32 %v425, %v7938
        %v7950 = vmul.f32 %v426, %v7938
        %v7951 = vmul.f32 %v427, %v7938
        %v7952 = vmul.f32 %v428, %v7938
        %v7953 = vmul.f32 %v429, %v7938
        %v7954 = vmul.f32 %v430, %v7938
        %v7955 = vmul.f32 %v431, %v7938
        %v7956 = vmul.f32 %v432, %v7938
        %v7957 = vmul.f32 %v433, %v7938
        %v7958 = vmul.f32 %v434, %v7938
        %v7959 = vmul.f32 %v435, %v7938
        %v7960 = vmul.f32 %v436, %v7938
        %v7961 = vmul.f32 %v437, %v7938
        %v7962 = vmul.f32 %v438, %v7938
        %v7963 = vmul.f32 %v439, %v7938
        %v7964 = vmul.f32 %v440, %v7938
        %v7965 = vmul.f32 %v441, %v7938
        %v7966 = vmul.f32 %v442, %v7938
        %v7967 = vmul.f32 %v443, %v7938
        %v7968 = vmul.f32 %v444, %v7938
        %v7969 = vmul.f32 %v445, %v7938
        %v7970 = vmul.f32 %v446, %v7938
        %v7971 = vmul.f32 %v447, %v7938
        %v7972 = vmul.f32 %v448, %v7938
        %v7973 = vmul.f32 %v449, %v7938
        %v7974 = vmul.f32 %v450, %v7938
        %v7975 = vmul.f32 %v451, %v7938
        %v7976 = vmul.f32 %v452, %v7938
        %v7977 = vmul.f32 %v453, %v7938
        %v7978 = vmul.f32 %v454, %v7938
        %v7979 = vmul.f32 %v455, %v7938
        %v7980 = vmul.f32 %v456, %v7938
        %v7981 = vmul.f32 %v457, %v7938
        %v7982 = vmul.f32 %v458, %v7938
        %v7983 = vmul.f32 %v459, %v7938
        %v7984 = vmul.f32 %v460, %v7938
        %v7985 = vmul.f32 %v461, %v7938
        %v7986 = vmul.f32 %v462, %v7938
        %v8035 = vrot.slane %v7939, 5
        %v8036 = vrot.slane %v7940, 5
        %v8037 = vsel %vm7793, %v8035, %v8036
        %v8038 = vrot.slane %v7941, 5
        %v8039 = vsel %vm7793, %v8036, %v8038
        %v8040 = vrot.slane %v7942, 5
        %v8041 = vrot.slane %v7943, 5
        %v8042 = vsel %vm7793, %v8040, %v8041
        %v8043 = vrot.slane %v7944, 5
        %v8044 = vsel %vm7793, %v8041, %v8043
        %v8045 = vrot.slane %v7945, 5
        %v8046 = vrot.slane %v7946, 5
        %v8047 = vsel %vm7793, %v8045, %v8046
        %v8048 = vrot.slane %v7947, 5
        %v8049 = vsel %vm7793, %v8046, %v8048
        %v8050 = vrot.slane %v7948, 5
        %v8051 = vrot.slane %v7949, 5
        %v8052 = vsel %vm7793, %v8050, %v8051
        %v8053 = vrot.slane %v7950, 5
        %v8054 = vsel %vm7793, %v8051, %v8053
        %v8055 = vrot.slane %v7951, 5
        %v8056 = vrot.slane %v7952, 5
        %v8057 = vsel %vm7793, %v8055, %v8056
        %v8058 = vrot.slane %v7953, 5
        %v8059 = vsel %vm7793, %v8056, %v8058
        %v8060 = vrot.slane %v7954, 5
        %v8061 = vrot.slane %v7955, 5
        %v8062 = vsel %vm7793, %v8060, %v8061
        %v8063 = vrot.slane %v7956, 5
        %v8064 = vsel %vm7793, %v8061, %v8063
        %v8065 = vrot.slane %v7957, 5
        %v8066 = vrot.slane %v7958, 5
        %v8067 = vsel %vm7793, %v8065, %v8066
        %v8068 = vrot.slane %v7959, 5
        %v8069 = vsel %vm7793, %v8066, %v8068
        %v8070 = vrot.slane %v7960, 5
        %v8071 = vrot.slane %v7961, 5
        %v8072 = vsel %vm7793, %v8070, %v8071
        %v8073 = vrot.slane %v7962, 5
        %v8074 = vsel %vm7793, %v8071, %v8073
        %v8075 = vrot.slane %v7963, 5
        %v8076 = vrot.slane %v7964, 5
        %v8077 = vsel %vm7793, %v8075, %v8076
        %v8078 = vrot.slane %v7965, 5
        %v8079 = vsel %vm7793, %v8076, %v8078
        %v8080 = vrot.slane %v7966, 5
        %v8081 = vrot.slane %v7967, 5
        %v8082 = vsel %vm7793, %v8080, %v8081
        %v8083 = vrot.slane %v7968, 5
        %v8084 = vsel %vm7793, %v8081, %v8083
        %v8085 = vrot.slane %v7969, 5
        %v8086 = vrot.slane %v7970, 5
        %v8087 = vsel %vm7793, %v8085, %v8086
        %v8088 = vrot.slane %v7971, 5
        %v8089 = vsel %vm7793, %v8086, %v8088
        %v8090 = vrot.slane %v7972, 5
        %v8091 = vrot.slane %v7973, 5
        %v8092 = vsel %vm7793, %v8090, %v8091
        %v8093 = vrot.slane %v7974, 5
        %v8094 = vsel %vm7793, %v8091, %v8093
        %v8095 = vrot.slane %v7975, 5
        %v8096 = vrot.slane %v7976, 5
        %v8097 = vsel %vm7793, %v8095, %v8096
        %v8098 = vrot.slane %v7977, 5
        %v8099 = vsel %vm7793, %v8096, %v8098
        %v8100 = vrot.slane %v7978, 5
        %v8101 = vrot.slane %v7979, 5
        %v8102 = vsel %vm7793, %v8100, %v8101
        %v8103 = vrot.slane %v7980, 5
        %v8104 = vsel %vm7793, %v8101, %v8103
        %v8105 = vrot.slane %v7981, 5
        %v8106 = vrot.slane %v7982, 5
        %v8107 = vsel %vm7793, %v8105, %v8106
        %v8108 = vrot.slane %v7983, 5
        %v8109 = vsel %vm7793, %v8106, %v8108
        %v8110 = vrot.slane %v7984, 5
        %v8111 = vrot.slane %v7985, 5
        %v8112 = vsel %vm7793, %v8110, %v8111
        %v8113 = vrot.slane %v7986, 5
        %v8114 = vsel %vm7793, %v8111, %v8113
        %v8147 = vadd.f32 %v7906, %v8037
        %v8148 = vadd.f32 %v7907, %v8039
        %v8149 = vadd.f32 %v7908, %v8042
        %v8150 = vadd.f32 %v7909, %v8044
        %v8151 = vadd.f32 %v7910, %v8047
        %v8152 = vadd.f32 %v7911, %v8049
        %v8153 = vadd.f32 %v7912, %v8052
        %v8154 = vadd.f32 %v7913, %v8054
        %v8155 = vadd.f32 %v7914, %v8057
        %v8156 = vadd.f32 %v7915, %v8059
        %v8157 = vadd.f32 %v7916, %v8062
        %v8158 = vadd.f32 %v7917, %v8064
        %v8159 = vadd.f32 %v7918, %v8067
        %v8160 = vadd.f32 %v7919, %v8069
        %v8161 = vadd.f32 %v7920, %v8072
        %v8162 = vadd.f32 %v7921, %v8074
        %v8163 = vadd.f32 %v7922, %v8077
        %v8164 = vadd.f32 %v7923, %v8079
        %v8165 = vadd.f32 %v7924, %v8082
        %v8166 = vadd.f32 %v7925, %v8084
        %v8167 = vadd.f32 %v7926, %v8087
        %v8168 = vadd.f32 %v7927, %v8089
        %v8169 = vadd.f32 %v7928, %v8092
        %v8170 = vadd.f32 %v7929, %v8094
        %v8171 = vadd.f32 %v7930, %v8097
        %v8172 = vadd.f32 %v7931, %v8099
        %v8173 = vadd.f32 %v7932, %v8102
        %v8174 = vadd.f32 %v7933, %v8104
        %v8175 = vadd.f32 %v7934, %v8107
        %v8176 = vadd.f32 %v7935, %v8109
        %v8177 = vadd.f32 %v7936, %v8112
        %v8178 = vadd.f32 %v7937, %v8114
        %v8179 = vperm.slane %v480, 3
        %v8180 = vmul.f32 %v418, %v8179
        %v8181 = vmul.f32 %v419, %v8179
        %v8182 = vmul.f32 %v420, %v8179
        %v8183 = vmul.f32 %v421, %v8179
        %v8184 = vmul.f32 %v422, %v8179
        %v8185 = vmul.f32 %v423, %v8179
        %v8186 = vmul.f32 %v424, %v8179
        %v8187 = vmul.f32 %v425, %v8179
        %v8188 = vmul.f32 %v426, %v8179
        %v8189 = vmul.f32 %v427, %v8179
        %v8190 = vmul.f32 %v428, %v8179
        %v8191 = vmul.f32 %v429, %v8179
        %v8192 = vmul.f32 %v430, %v8179
        %v8193 = vmul.f32 %v431, %v8179
        %v8194 = vmul.f32 %v432, %v8179
        %v8195 = vmul.f32 %v433, %v8179
        %v8196 = vmul.f32 %v434, %v8179
        %v8197 = vmul.f32 %v435, %v8179
        %v8198 = vmul.f32 %v436, %v8179
        %v8199 = vmul.f32 %v437, %v8179
        %v8200 = vmul.f32 %v438, %v8179
        %v8201 = vmul.f32 %v439, %v8179
        %v8202 = vmul.f32 %v440, %v8179
        %v8203 = vmul.f32 %v441, %v8179
        %v8204 = vmul.f32 %v442, %v8179
        %v8205 = vmul.f32 %v443, %v8179
        %v8206 = vmul.f32 %v444, %v8179
        %v8207 = vmul.f32 %v445, %v8179
        %v8208 = vmul.f32 %v446, %v8179
        %v8209 = vmul.f32 %v447, %v8179
        %v8210 = vmul.f32 %v448, %v8179
        %v8211 = vmul.f32 %v449, %v8179
        %v8212 = vmul.f32 %v450, %v8179
        %v8213 = vmul.f32 %v451, %v8179
        %v8214 = vmul.f32 %v452, %v8179
        %v8215 = vmul.f32 %v453, %v8179
        %v8216 = vmul.f32 %v454, %v8179
        %v8217 = vmul.f32 %v455, %v8179
        %v8218 = vmul.f32 %v456, %v8179
        %v8219 = vmul.f32 %v457, %v8179
        %v8220 = vmul.f32 %v458, %v8179
        %v8221 = vmul.f32 %v459, %v8179
        %v8222 = vmul.f32 %v460, %v8179
        %v8223 = vmul.f32 %v461, %v8179
        %v8224 = vmul.f32 %v462, %v8179
        %v8225 = vmul.f32 %v463, %v8179
        %v8226 = vmul.f32 %v464, %v8179
        %v8227 = vmul.f32 %v465, %v8179
        %v8276 = vrot.slane %v8180, 5
        %v8277 = vrot.slane %v8181, 5
        %v8278 = vsel %vm7793, %v8276, %v8277
        %v8279 = vrot.slane %v8182, 5
        %v8280 = vsel %vm7793, %v8277, %v8279
        %v8281 = vrot.slane %v8183, 5
        %v8282 = vrot.slane %v8184, 5
        %v8283 = vsel %vm7793, %v8281, %v8282
        %v8284 = vrot.slane %v8185, 5
        %v8285 = vsel %vm7793, %v8282, %v8284
        %v8286 = vrot.slane %v8186, 5
        %v8287 = vrot.slane %v8187, 5
        %v8288 = vsel %vm7793, %v8286, %v8287
        %v8289 = vrot.slane %v8188, 5
        %v8290 = vsel %vm7793, %v8287, %v8289
        %v8291 = vrot.slane %v8189, 5
        %v8292 = vrot.slane %v8190, 5
        %v8293 = vsel %vm7793, %v8291, %v8292
        %v8294 = vrot.slane %v8191, 5
        %v8295 = vsel %vm7793, %v8292, %v8294
        %v8296 = vrot.slane %v8192, 5
        %v8297 = vrot.slane %v8193, 5
        %v8298 = vsel %vm7793, %v8296, %v8297
        %v8299 = vrot.slane %v8194, 5
        %v8300 = vsel %vm7793, %v8297, %v8299
        %v8301 = vrot.slane %v8195, 5
        %v8302 = vrot.slane %v8196, 5
        %v8303 = vsel %vm7793, %v8301, %v8302
        %v8304 = vrot.slane %v8197, 5
        %v8305 = vsel %vm7793, %v8302, %v8304
        %v8306 = vrot.slane %v8198, 5
        %v8307 = vrot.slane %v8199, 5
        %v8308 = vsel %vm7793, %v8306, %v8307
        %v8309 = vrot.slane %v8200, 5
        %v8310 = vsel %vm7793, %v8307, %v8309
        %v8311 = vrot.slane %v8201, 5
        %v8312 = vrot.slane %v8202, 5
        %v8313 = vsel %vm7793, %v8311, %v8312
        %v8314 = vrot.slane %v8203, 5
        %v8315 = vsel %vm7793, %v8312, %v8314
        %v8316 = vrot.slane %v8204, 5
        %v8317 = vrot.slane %v8205, 5
        %v8318 = vsel %vm7793, %v8316, %v8317
        %v8319 = vrot.slane %v8206, 5
        %v8320 = vsel %vm7793, %v8317, %v8319
        %v8321 = vrot.slane %v8207, 5
        %v8322 = vrot.slane %v8208, 5
        %v8323 = vsel %vm7793, %v8321, %v8322
        %v8324 = vrot.slane %v8209, 5
        %v8325 = vsel %vm7793, %v8322, %v8324
        %v8326 = vrot.slane %v8210, 5
        %v8327 = vrot.slane %v8211, 5
        %v8328 = vsel %vm7793, %v8326, %v8327
        %v8329 = vrot.slane %v8212, 5
        %v8330 = vsel %vm7793, %v8327, %v8329
        %v8331 = vrot.slane %v8213, 5
        %v8332 = vrot.slane %v8214, 5
        %v8333 = vsel %vm7793, %v8331, %v8332
        %v8334 = vrot.slane %v8215, 5
        %v8335 = vsel %vm7793, %v8332, %v8334
        %v8336 = vrot.slane %v8216, 5
        %v8337 = vrot.slane %v8217, 5
        %v8338 = vsel %vm7793, %v8336, %v8337
        %v8339 = vrot.slane %v8218, 5
        %v8340 = vsel %vm7793, %v8337, %v8339
        %v8341 = vrot.slane %v8219, 5
        %v8342 = vrot.slane %v8220, 5
        %v8343 = vsel %vm7793, %v8341, %v8342
        %v8344 = vrot.slane %v8221, 5
        %v8345 = vsel %vm7793, %v8342, %v8344
        %v8346 = vrot.slane %v8222, 5
        %v8347 = vrot.slane %v8223, 5
        %v8348 = vsel %vm7793, %v8346, %v8347
        %v8349 = vrot.slane %v8224, 5
        %v8350 = vsel %vm7793, %v8347, %v8349
        %v8351 = vrot.slane %v8225, 5
        %v8352 = vrot.slane %v8226, 5
        %v8353 = vsel %vm7793, %v8351, %v8352
        %v8354 = vrot.slane %v8227, 5
        %v8355 = vsel %vm7793, %v8352, %v8354
        %v8388 = vadd.f32 %v8147, %v8278
        %v8389 = vadd.f32 %v8148, %v8280
        %v8390 = vadd.f32 %v8149, %v8283
        %v8391 = vadd.f32 %v8150, %v8285
        %v8392 = vadd.f32 %v8151, %v8288
        %v8393 = vadd.f32 %v8152, %v8290
        %v8394 = vadd.f32 %v8153, %v8293
        %v8395 = vadd.f32 %v8154, %v8295
        %v8396 = vadd.f32 %v8155, %v8298
        %v8397 = vadd.f32 %v8156, %v8300
        %v8398 = vadd.f32 %v8157, %v8303
        %v8399 = vadd.f32 %v8158, %v8305
        %v8400 = vadd.f32 %v8159, %v8308
        %v8401 = vadd.f32 %v8160, %v8310
        %v8402 = vadd.f32 %v8161, %v8313
        %v8403 = vadd.f32 %v8162, %v8315
        %v8404 = vadd.f32 %v8163, %v8318
        %v8405 = vadd.f32 %v8164, %v8320
        %v8406 = vadd.f32 %v8165, %v8323
        %v8407 = vadd.f32 %v8166, %v8325
        %v8408 = vadd.f32 %v8167, %v8328
        %v8409 = vadd.f32 %v8168, %v8330
        %v8410 = vadd.f32 %v8169, %v8333
        %v8411 = vadd.f32 %v8170, %v8335
        %v8412 = vadd.f32 %v8171, %v8338
        %v8413 = vadd.f32 %v8172, %v8340
        %v8414 = vadd.f32 %v8173, %v8343
        %v8415 = vadd.f32 %v8174, %v8345
        %v8416 = vadd.f32 %v8175, %v8348
        %v8417 = vadd.f32 %v8176, %v8350
        %v8418 = vadd.f32 %v8177, %v8353
        %v8419 = vadd.f32 %v8178, %v8355
        %v8420 = vperm.slane %v481, 2
        %v8421 = vmul.f32 %v421, %v8420
        %v8422 = vmul.f32 %v422, %v8420
        %v8423 = vmul.f32 %v423, %v8420
        %v8424 = vmul.f32 %v424, %v8420
        %v8425 = vmul.f32 %v425, %v8420
        %v8426 = vmul.f32 %v426, %v8420
        %v8427 = vmul.f32 %v427, %v8420
        %v8428 = vmul.f32 %v428, %v8420
        %v8429 = vmul.f32 %v429, %v8420
        %v8430 = vmul.f32 %v430, %v8420
        %v8431 = vmul.f32 %v431, %v8420
        %v8432 = vmul.f32 %v432, %v8420
        %v8433 = vmul.f32 %v433, %v8420
        %v8434 = vmul.f32 %v434, %v8420
        %v8435 = vmul.f32 %v435, %v8420
        %v8436 = vmul.f32 %v436, %v8420
        %v8437 = vmul.f32 %v437, %v8420
        %v8438 = vmul.f32 %v438, %v8420
        %v8439 = vmul.f32 %v439, %v8420
        %v8440 = vmul.f32 %v440, %v8420
        %v8441 = vmul.f32 %v441, %v8420
        %v8442 = vmul.f32 %v442, %v8420
        %v8443 = vmul.f32 %v443, %v8420
        %v8444 = vmul.f32 %v444, %v8420
        %v8445 = vmul.f32 %v445, %v8420
        %v8446 = vmul.f32 %v446, %v8420
        %v8447 = vmul.f32 %v447, %v8420
        %v8448 = vmul.f32 %v448, %v8420
        %v8449 = vmul.f32 %v449, %v8420
        %v8450 = vmul.f32 %v450, %v8420
        %v8451 = vmul.f32 %v451, %v8420
        %v8452 = vmul.f32 %v452, %v8420
        %v8453 = vmul.f32 %v453, %v8420
        %v8454 = vmul.f32 %v454, %v8420
        %v8455 = vmul.f32 %v455, %v8420
        %v8456 = vmul.f32 %v456, %v8420
        %v8457 = vmul.f32 %v457, %v8420
        %v8458 = vmul.f32 %v458, %v8420
        %v8459 = vmul.f32 %v459, %v8420
        %v8460 = vmul.f32 %v460, %v8420
        %v8461 = vmul.f32 %v461, %v8420
        %v8462 = vmul.f32 %v462, %v8420
        %v8463 = vmul.f32 %v463, %v8420
        %v8464 = vmul.f32 %v464, %v8420
        %v8465 = vmul.f32 %v465, %v8420
        %v8466 = vmul.f32 %v466, %v8420
        %v8467 = vmul.f32 %v467, %v8420
        %v8468 = vmul.f32 %v468, %v8420
        %v8517 = vrot.slane %v8421, 5
        %v8518 = vrot.slane %v8422, 5
        %v8519 = vsel %vm7793, %v8517, %v8518
        %v8520 = vrot.slane %v8423, 5
        %v8521 = vsel %vm7793, %v8518, %v8520
        %v8522 = vrot.slane %v8424, 5
        %v8523 = vrot.slane %v8425, 5
        %v8524 = vsel %vm7793, %v8522, %v8523
        %v8525 = vrot.slane %v8426, 5
        %v8526 = vsel %vm7793, %v8523, %v8525
        %v8527 = vrot.slane %v8427, 5
        %v8528 = vrot.slane %v8428, 5
        %v8529 = vsel %vm7793, %v8527, %v8528
        %v8530 = vrot.slane %v8429, 5
        %v8531 = vsel %vm7793, %v8528, %v8530
        %v8532 = vrot.slane %v8430, 5
        %v8533 = vrot.slane %v8431, 5
        %v8534 = vsel %vm7793, %v8532, %v8533
        %v8535 = vrot.slane %v8432, 5
        %v8536 = vsel %vm7793, %v8533, %v8535
        %v8537 = vrot.slane %v8433, 5
        %v8538 = vrot.slane %v8434, 5
        %v8539 = vsel %vm7793, %v8537, %v8538
        %v8540 = vrot.slane %v8435, 5
        %v8541 = vsel %vm7793, %v8538, %v8540
        %v8542 = vrot.slane %v8436, 5
        %v8543 = vrot.slane %v8437, 5
        %v8544 = vsel %vm7793, %v8542, %v8543
        %v8545 = vrot.slane %v8438, 5
        %v8546 = vsel %vm7793, %v8543, %v8545
        %v8547 = vrot.slane %v8439, 5
        %v8548 = vrot.slane %v8440, 5
        %v8549 = vsel %vm7793, %v8547, %v8548
        %v8550 = vrot.slane %v8441, 5
        %v8551 = vsel %vm7793, %v8548, %v8550
        %v8552 = vrot.slane %v8442, 5
        %v8553 = vrot.slane %v8443, 5
        %v8554 = vsel %vm7793, %v8552, %v8553
        %v8555 = vrot.slane %v8444, 5
        %v8556 = vsel %vm7793, %v8553, %v8555
        %v8557 = vrot.slane %v8445, 5
        %v8558 = vrot.slane %v8446, 5
        %v8559 = vsel %vm7793, %v8557, %v8558
        %v8560 = vrot.slane %v8447, 5
        %v8561 = vsel %vm7793, %v8558, %v8560
        %v8562 = vrot.slane %v8448, 5
        %v8563 = vrot.slane %v8449, 5
        %v8564 = vsel %vm7793, %v8562, %v8563
        %v8565 = vrot.slane %v8450, 5
        %v8566 = vsel %vm7793, %v8563, %v8565
        %v8567 = vrot.slane %v8451, 5
        %v8568 = vrot.slane %v8452, 5
        %v8569 = vsel %vm7793, %v8567, %v8568
        %v8570 = vrot.slane %v8453, 5
        %v8571 = vsel %vm7793, %v8568, %v8570
        %v8572 = vrot.slane %v8454, 5
        %v8573 = vrot.slane %v8455, 5
        %v8574 = vsel %vm7793, %v8572, %v8573
        %v8575 = vrot.slane %v8456, 5
        %v8576 = vsel %vm7793, %v8573, %v8575
        %v8577 = vrot.slane %v8457, 5
        %v8578 = vrot.slane %v8458, 5
        %v8579 = vsel %vm7793, %v8577, %v8578
        %v8580 = vrot.slane %v8459, 5
        %v8581 = vsel %vm7793, %v8578, %v8580
        %v8582 = vrot.slane %v8460, 5
        %v8583 = vrot.slane %v8461, 5
        %v8584 = vsel %vm7793, %v8582, %v8583
        %v8585 = vrot.slane %v8462, 5
        %v8586 = vsel %vm7793, %v8583, %v8585
        %v8587 = vrot.slane %v8463, 5
        %v8588 = vrot.slane %v8464, 5
        %v8589 = vsel %vm7793, %v8587, %v8588
        %v8590 = vrot.slane %v8465, 5
        %v8591 = vsel %vm7793, %v8588, %v8590
        %v8592 = vrot.slane %v8466, 5
        %v8593 = vrot.slane %v8467, 5
        %v8594 = vsel %vm7793, %v8592, %v8593
        %v8595 = vrot.slane %v8468, 5
        %v8596 = vsel %vm7793, %v8593, %v8595
        %v8629 = vadd.f32 %v8388, %v8519
        %v8630 = vadd.f32 %v8389, %v8521
        %v8631 = vadd.f32 %v8390, %v8524
        %v8632 = vadd.f32 %v8391, %v8526
        %v8633 = vadd.f32 %v8392, %v8529
        %v8634 = vadd.f32 %v8393, %v8531
        %v8635 = vadd.f32 %v8394, %v8534
        %v8636 = vadd.f32 %v8395, %v8536
        %v8637 = vadd.f32 %v8396, %v8539
        %v8638 = vadd.f32 %v8397, %v8541
        %v8639 = vadd.f32 %v8398, %v8544
        %v8640 = vadd.f32 %v8399, %v8546
        %v8641 = vadd.f32 %v8400, %v8549
        %v8642 = vadd.f32 %v8401, %v8551
        %v8643 = vadd.f32 %v8402, %v8554
        %v8644 = vadd.f32 %v8403, %v8556
        %v8645 = vadd.f32 %v8404, %v8559
        %v8646 = vadd.f32 %v8405, %v8561
        %v8647 = vadd.f32 %v8406, %v8564
        %v8648 = vadd.f32 %v8407, %v8566
        %v8649 = vadd.f32 %v8408, %v8569
        %v8650 = vadd.f32 %v8409, %v8571
        %v8651 = vadd.f32 %v8410, %v8574
        %v8652 = vadd.f32 %v8411, %v8576
        %v8653 = vadd.f32 %v8412, %v8579
        %v8654 = vadd.f32 %v8413, %v8581
        %v8655 = vadd.f32 %v8414, %v8584
        %v8656 = vadd.f32 %v8415, %v8586
        %v8657 = vadd.f32 %v8416, %v8589
        %v8658 = vadd.f32 %v8417, %v8591
        %v8659 = vadd.f32 %v8418, %v8594
        %v8660 = vadd.f32 %v8419, %v8596
        %v8661 = vperm.slane %v482, 1
        %v8662 = vmul.f32 %v424, %v8661
        %v8663 = vmul.f32 %v425, %v8661
        %v8664 = vmul.f32 %v426, %v8661
        %v8665 = vmul.f32 %v427, %v8661
        %v8666 = vmul.f32 %v428, %v8661
        %v8667 = vmul.f32 %v429, %v8661
        %v8668 = vmul.f32 %v430, %v8661
        %v8669 = vmul.f32 %v431, %v8661
        %v8670 = vmul.f32 %v432, %v8661
        %v8671 = vmul.f32 %v433, %v8661
        %v8672 = vmul.f32 %v434, %v8661
        %v8673 = vmul.f32 %v435, %v8661
        %v8674 = vmul.f32 %v436, %v8661
        %v8675 = vmul.f32 %v437, %v8661
        %v8676 = vmul.f32 %v438, %v8661
        %v8677 = vmul.f32 %v439, %v8661
        %v8678 = vmul.f32 %v440, %v8661
        %v8679 = vmul.f32 %v441, %v8661
        %v8680 = vmul.f32 %v442, %v8661
        %v8681 = vmul.f32 %v443, %v8661
        %v8682 = vmul.f32 %v444, %v8661
        %v8683 = vmul.f32 %v445, %v8661
        %v8684 = vmul.f32 %v446, %v8661
        %v8685 = vmul.f32 %v447, %v8661
        %v8686 = vmul.f32 %v448, %v8661
        %v8687 = vmul.f32 %v449, %v8661
        %v8688 = vmul.f32 %v450, %v8661
        %v8689 = vmul.f32 %v451, %v8661
        %v8690 = vmul.f32 %v452, %v8661
        %v8691 = vmul.f32 %v453, %v8661
        %v8692 = vmul.f32 %v454, %v8661
        %v8693 = vmul.f32 %v455, %v8661
        %v8694 = vmul.f32 %v456, %v8661
        %v8695 = vmul.f32 %v457, %v8661
        %v8696 = vmul.f32 %v458, %v8661
        %v8697 = vmul.f32 %v459, %v8661
        %v8698 = vmul.f32 %v460, %v8661
        %v8699 = vmul.f32 %v461, %v8661
        %v8700 = vmul.f32 %v462, %v8661
        %v8701 = vmul.f32 %v463, %v8661
        %v8702 = vmul.f32 %v464, %v8661
        %v8703 = vmul.f32 %v465, %v8661
        %v8704 = vmul.f32 %v466, %v8661
        %v8705 = vmul.f32 %v467, %v8661
        %v8706 = vmul.f32 %v468, %v8661
        %v8707 = vmul.f32 %v469, %v8661
        %v8708 = vmul.f32 %v470, %v8661
        %v8709 = vmul.f32 %v471, %v8661
        %v8758 = vrot.slane %v8662, 5
        %v8759 = vrot.slane %v8663, 5
        %v8760 = vsel %vm7793, %v8758, %v8759
        %v8761 = vrot.slane %v8664, 5
        %v8762 = vsel %vm7793, %v8759, %v8761
        %v8763 = vrot.slane %v8665, 5
        %v8764 = vrot.slane %v8666, 5
        %v8765 = vsel %vm7793, %v8763, %v8764
        %v8766 = vrot.slane %v8667, 5
        %v8767 = vsel %vm7793, %v8764, %v8766
        %v8768 = vrot.slane %v8668, 5
        %v8769 = vrot.slane %v8669, 5
        %v8770 = vsel %vm7793, %v8768, %v8769
        %v8771 = vrot.slane %v8670, 5
        %v8772 = vsel %vm7793, %v8769, %v8771
        %v8773 = vrot.slane %v8671, 5
        %v8774 = vrot.slane %v8672, 5
        %v8775 = vsel %vm7793, %v8773, %v8774
        %v8776 = vrot.slane %v8673, 5
        %v8777 = vsel %vm7793, %v8774, %v8776
        %v8778 = vrot.slane %v8674, 5
        %v8779 = vrot.slane %v8675, 5
        %v8780 = vsel %vm7793, %v8778, %v8779
        %v8781 = vrot.slane %v8676, 5
        %v8782 = vsel %vm7793, %v8779, %v8781
        %v8783 = vrot.slane %v8677, 5
        %v8784 = vrot.slane %v8678, 5
        %v8785 = vsel %vm7793, %v8783, %v8784
        %v8786 = vrot.slane %v8679, 5
        %v8787 = vsel %vm7793, %v8784, %v8786
        %v8788 = vrot.slane %v8680, 5
        %v8789 = vrot.slane %v8681, 5
        %v8790 = vsel %vm7793, %v8788, %v8789
        %v8791 = vrot.slane %v8682, 5
        %v8792 = vsel %vm7793, %v8789, %v8791
        %v8793 = vrot.slane %v8683, 5
        %v8794 = vrot.slane %v8684, 5
        %v8795 = vsel %vm7793, %v8793, %v8794
        %v8796 = vrot.slane %v8685, 5
        %v8797 = vsel %vm7793, %v8794, %v8796
        %v8798 = vrot.slane %v8686, 5
        %v8799 = vrot.slane %v8687, 5
        %v8800 = vsel %vm7793, %v8798, %v8799
        %v8801 = vrot.slane %v8688, 5
        %v8802 = vsel %vm7793, %v8799, %v8801
        %v8803 = vrot.slane %v8689, 5
        %v8804 = vrot.slane %v8690, 5
        %v8805 = vsel %vm7793, %v8803, %v8804
        %v8806 = vrot.slane %v8691, 5
        %v8807 = vsel %vm7793, %v8804, %v8806
        %v8808 = vrot.slane %v8692, 5
        %v8809 = vrot.slane %v8693, 5
        %v8810 = vsel %vm7793, %v8808, %v8809
        %v8811 = vrot.slane %v8694, 5
        %v8812 = vsel %vm7793, %v8809, %v8811
        %v8813 = vrot.slane %v8695, 5
        %v8814 = vrot.slane %v8696, 5
        %v8815 = vsel %vm7793, %v8813, %v8814
        %v8816 = vrot.slane %v8697, 5
        %v8817 = vsel %vm7793, %v8814, %v8816
        %v8818 = vrot.slane %v8698, 5
        %v8819 = vrot.slane %v8699, 5
        %v8820 = vsel %vm7793, %v8818, %v8819
        %v8821 = vrot.slane %v8700, 5
        %v8822 = vsel %vm7793, %v8819, %v8821
        %v8823 = vrot.slane %v8701, 5
        %v8824 = vrot.slane %v8702, 5
        %v8825 = vsel %vm7793, %v8823, %v8824
        %v8826 = vrot.slane %v8703, 5
        %v8827 = vsel %vm7793, %v8824, %v8826
        %v8828 = vrot.slane %v8704, 5
        %v8829 = vrot.slane %v8705, 5
        %v8830 = vsel %vm7793, %v8828, %v8829
        %v8831 = vrot.slane %v8706, 5
        %v8832 = vsel %vm7793, %v8829, %v8831
        %v8833 = vrot.slane %v8707, 5
        %v8834 = vrot.slane %v8708, 5
        %v8835 = vsel %vm7793, %v8833, %v8834
        %v8836 = vrot.slane %v8709, 5
        %v8837 = vsel %vm7793, %v8834, %v8836
        %v8870 = vadd.f32 %v8629, %v8760
        %v8871 = vadd.f32 %v8630, %v8762
        %v8872 = vadd.f32 %v8631, %v8765
        %v8873 = vadd.f32 %v8632, %v8767
        %v8874 = vadd.f32 %v8633, %v8770
        %v8875 = vadd.f32 %v8634, %v8772
        %v8876 = vadd.f32 %v8635, %v8775
        %v8877 = vadd.f32 %v8636, %v8777
        %v8878 = vadd.f32 %v8637, %v8780
        %v8879 = vadd.f32 %v8638, %v8782
        %v8880 = vadd.f32 %v8639, %v8785
        %v8881 = vadd.f32 %v8640, %v8787
        %v8882 = vadd.f32 %v8641, %v8790
        %v8883 = vadd.f32 %v8642, %v8792
        %v8884 = vadd.f32 %v8643, %v8795
        %v8885 = vadd.f32 %v8644, %v8797
        %v8886 = vadd.f32 %v8645, %v8800
        %v8887 = vadd.f32 %v8646, %v8802
        %v8888 = vadd.f32 %v8647, %v8805
        %v8889 = vadd.f32 %v8648, %v8807
        %v8890 = vadd.f32 %v8649, %v8810
        %v8891 = vadd.f32 %v8650, %v8812
        %v8892 = vadd.f32 %v8651, %v8815
        %v8893 = vadd.f32 %v8652, %v8817
        %v8894 = vadd.f32 %v8653, %v8820
        %v8895 = vadd.f32 %v8654, %v8822
        %v8896 = vadd.f32 %v8655, %v8825
        %v8897 = vadd.f32 %v8656, %v8827
        %v8898 = vadd.f32 %v8657, %v8830
        %v8899 = vadd.f32 %v8658, %v8832
        %v8900 = vadd.f32 %v8659, %v8835
        %v8901 = vadd.f32 %v8660, %v8837
        %v8902 = vperm.slane %v483, 0
        %v8903 = vmul.f32 %v427, %v8902
        %v8904 = vmul.f32 %v428, %v8902
        %v8905 = vmul.f32 %v429, %v8902
        %v8906 = vmul.f32 %v430, %v8902
        %v8907 = vmul.f32 %v431, %v8902
        %v8908 = vmul.f32 %v432, %v8902
        %v8909 = vmul.f32 %v433, %v8902
        %v8910 = vmul.f32 %v434, %v8902
        %v8911 = vmul.f32 %v435, %v8902
        %v8912 = vmul.f32 %v436, %v8902
        %v8913 = vmul.f32 %v437, %v8902
        %v8914 = vmul.f32 %v438, %v8902
        %v8915 = vmul.f32 %v439, %v8902
        %v8916 = vmul.f32 %v440, %v8902
        %v8917 = vmul.f32 %v441, %v8902
        %v8918 = vmul.f32 %v442, %v8902
        %v8919 = vmul.f32 %v443, %v8902
        %v8920 = vmul.f32 %v444, %v8902
        %v8921 = vmul.f32 %v445, %v8902
        %v8922 = vmul.f32 %v446, %v8902
        %v8923 = vmul.f32 %v447, %v8902
        %v8924 = vmul.f32 %v448, %v8902
        %v8925 = vmul.f32 %v449, %v8902
        %v8926 = vmul.f32 %v450, %v8902
        %v8927 = vmul.f32 %v451, %v8902
        %v8928 = vmul.f32 %v452, %v8902
        %v8929 = vmul.f32 %v453, %v8902
        %v8930 = vmul.f32 %v454, %v8902
        %v8931 = vmul.f32 %v455, %v8902
        %v8932 = vmul.f32 %v456, %v8902
        %v8933 = vmul.f32 %v457, %v8902
        %v8934 = vmul.f32 %v458, %v8902
        %v8935 = vmul.f32 %v459, %v8902
        %v8936 = vmul.f32 %v460, %v8902
        %v8937 = vmul.f32 %v461, %v8902
        %v8938 = vmul.f32 %v462, %v8902
        %v8939 = vmul.f32 %v463, %v8902
        %v8940 = vmul.f32 %v464, %v8902
        %v8941 = vmul.f32 %v465, %v8902
        %v8942 = vmul.f32 %v466, %v8902
        %v8943 = vmul.f32 %v467, %v8902
        %v8944 = vmul.f32 %v468, %v8902
        %v8945 = vmul.f32 %v469, %v8902
        %v8946 = vmul.f32 %v470, %v8902
        %v8947 = vmul.f32 %v471, %v8902
        %v8948 = vmul.f32 %v472, %v8902
        %v8949 = vmul.f32 %v473, %v8902
        %v8950 = vmul.f32 %v474, %v8902
        %v8999 = vrot.slane %v8903, 5
        %v9000 = vrot.slane %v8904, 5
        %v9001 = vsel %vm7793, %v8999, %v9000
        %v9002 = vrot.slane %v8905, 5
        %v9003 = vsel %vm7793, %v9000, %v9002
        %v9004 = vrot.slane %v8906, 5
        %v9005 = vrot.slane %v8907, 5
        %v9006 = vsel %vm7793, %v9004, %v9005
        %v9007 = vrot.slane %v8908, 5
        %v9008 = vsel %vm7793, %v9005, %v9007
        %v9009 = vrot.slane %v8909, 5
        %v9010 = vrot.slane %v8910, 5
        %v9011 = vsel %vm7793, %v9009, %v9010
        %v9012 = vrot.slane %v8911, 5
        %v9013 = vsel %vm7793, %v9010, %v9012
        %v9014 = vrot.slane %v8912, 5
        %v9015 = vrot.slane %v8913, 5
        %v9016 = vsel %vm7793, %v9014, %v9015
        %v9017 = vrot.slane %v8914, 5
        %v9018 = vsel %vm7793, %v9015, %v9017
        %v9019 = vrot.slane %v8915, 5
        %v9020 = vrot.slane %v8916, 5
        %v9021 = vsel %vm7793, %v9019, %v9020
        %v9022 = vrot.slane %v8917, 5
        %v9023 = vsel %vm7793, %v9020, %v9022
        %v9024 = vrot.slane %v8918, 5
        %v9025 = vrot.slane %v8919, 5
        %v9026 = vsel %vm7793, %v9024, %v9025
        %v9027 = vrot.slane %v8920, 5
        %v9028 = vsel %vm7793, %v9025, %v9027
        %v9029 = vrot.slane %v8921, 5
        %v9030 = vrot.slane %v8922, 5
        %v9031 = vsel %vm7793, %v9029, %v9030
        %v9032 = vrot.slane %v8923, 5
        %v9033 = vsel %vm7793, %v9030, %v9032
        %v9034 = vrot.slane %v8924, 5
        %v9035 = vrot.slane %v8925, 5
        %v9036 = vsel %vm7793, %v9034, %v9035
        %v9037 = vrot.slane %v8926, 5
        %v9038 = vsel %vm7793, %v9035, %v9037
        %v9039 = vrot.slane %v8927, 5
        %v9040 = vrot.slane %v8928, 5
        %v9041 = vsel %vm7793, %v9039, %v9040
        %v9042 = vrot.slane %v8929, 5
        %v9043 = vsel %vm7793, %v9040, %v9042
        %v9044 = vrot.slane %v8930, 5
        %v9045 = vrot.slane %v8931, 5
        %v9046 = vsel %vm7793, %v9044, %v9045
        %v9047 = vrot.slane %v8932, 5
        %v9048 = vsel %vm7793, %v9045, %v9047
        %v9049 = vrot.slane %v8933, 5
        %v9050 = vrot.slane %v8934, 5
        %v9051 = vsel %vm7793, %v9049, %v9050
        %v9052 = vrot.slane %v8935, 5
        %v9053 = vsel %vm7793, %v9050, %v9052
        %v9054 = vrot.slane %v8936, 5
        %v9055 = vrot.slane %v8937, 5
        %v9056 = vsel %vm7793, %v9054, %v9055
        %v9057 = vrot.slane %v8938, 5
        %v9058 = vsel %vm7793, %v9055, %v9057
        %v9059 = vrot.slane %v8939, 5
        %v9060 = vrot.slane %v8940, 5
        %v9061 = vsel %vm7793, %v9059, %v9060
        %v9062 = vrot.slane %v8941, 5
        %v9063 = vsel %vm7793, %v9060, %v9062
        %v9064 = vrot.slane %v8942, 5
        %v9065 = vrot.slane %v8943, 5
        %v9066 = vsel %vm7793, %v9064, %v9065
        %v9067 = vrot.slane %v8944, 5
        %v9068 = vsel %vm7793, %v9065, %v9067
        %v9069 = vrot.slane %v8945, 5
        %v9070 = vrot.slane %v8946, 5
        %v9071 = vsel %vm7793, %v9069, %v9070
        %v9072 = vrot.slane %v8947, 5
        %v9073 = vsel %vm7793, %v9070, %v9072
        %v9074 = vrot.slane %v8948, 5
        %v9075 = vrot.slane %v8949, 5
        %v9076 = vsel %vm7793, %v9074, %v9075
        %v9077 = vrot.slane %v8950, 5
        %v9078 = vsel %vm7793, %v9075, %v9077
        %v9111 = vadd.f32 %v8870, %v9001
        %v9112 = vadd.f32 %v8871, %v9003
        %v9113 = vadd.f32 %v8872, %v9006
        %v9114 = vadd.f32 %v8873, %v9008
        %v9115 = vadd.f32 %v8874, %v9011
        %v9116 = vadd.f32 %v8875, %v9013
        %v9117 = vadd.f32 %v8876, %v9016
        %v9118 = vadd.f32 %v8877, %v9018
        %v9119 = vadd.f32 %v8878, %v9021
        %v9120 = vadd.f32 %v8879, %v9023
        %v9121 = vadd.f32 %v8880, %v9026
        %v9122 = vadd.f32 %v8881, %v9028
        %v9123 = vadd.f32 %v8882, %v9031
        %v9124 = vadd.f32 %v8883, %v9033
        %v9125 = vadd.f32 %v8884, %v9036
        %v9126 = vadd.f32 %v8885, %v9038
        %v9127 = vadd.f32 %v8886, %v9041
        %v9128 = vadd.f32 %v8887, %v9043
        %v9129 = vadd.f32 %v8888, %v9046
        %v9130 = vadd.f32 %v8889, %v9048
        %v9131 = vadd.f32 %v8890, %v9051
        %v9132 = vadd.f32 %v8891, %v9053
        %v9133 = vadd.f32 %v8892, %v9056
        %v9134 = vadd.f32 %v8893, %v9058
        %v9135 = vadd.f32 %v8894, %v9061
        %v9136 = vadd.f32 %v8895, %v9063
        %v9137 = vadd.f32 %v8896, %v9066
        %v9138 = vadd.f32 %v8897, %v9068
        %v9139 = vadd.f32 %v8898, %v9071
        %v9140 = vadd.f32 %v8899, %v9073
        %v9141 = vadd.f32 %v8900, %v9076
        %v9142 = vadd.f32 %v8901, %v9078
        %v9143 = vperm.slane %v483, 7
        %v9144 = vmul.f32 %v430, %v9143
        %v9145 = vmul.f32 %v431, %v9143
        %v9146 = vmul.f32 %v432, %v9143
        %v9147 = vmul.f32 %v433, %v9143
        %v9148 = vmul.f32 %v434, %v9143
        %v9149 = vmul.f32 %v435, %v9143
        %v9150 = vmul.f32 %v436, %v9143
        %v9151 = vmul.f32 %v437, %v9143
        %v9152 = vmul.f32 %v438, %v9143
        %v9153 = vmul.f32 %v439, %v9143
        %v9154 = vmul.f32 %v440, %v9143
        %v9155 = vmul.f32 %v441, %v9143
        %v9156 = vmul.f32 %v442, %v9143
        %v9157 = vmul.f32 %v443, %v9143
        %v9158 = vmul.f32 %v444, %v9143
        %v9159 = vmul.f32 %v445, %v9143
        %v9160 = vmul.f32 %v446, %v9143
        %v9161 = vmul.f32 %v447, %v9143
        %v9162 = vmul.f32 %v448, %v9143
        %v9163 = vmul.f32 %v449, %v9143
        %v9164 = vmul.f32 %v450, %v9143
        %v9165 = vmul.f32 %v451, %v9143
        %v9166 = vmul.f32 %v452, %v9143
        %v9167 = vmul.f32 %v453, %v9143
        %v9168 = vmul.f32 %v454, %v9143
        %v9169 = vmul.f32 %v455, %v9143
        %v9170 = vmul.f32 %v456, %v9143
        %v9171 = vmul.f32 %v457, %v9143
        %v9172 = vmul.f32 %v458, %v9143
        %v9173 = vmul.f32 %v459, %v9143
        %v9174 = vmul.f32 %v460, %v9143
        %v9175 = vmul.f32 %v461, %v9143
        %v9176 = vmul.f32 %v462, %v9143
        %v9177 = vmul.f32 %v463, %v9143
        %v9178 = vmul.f32 %v464, %v9143
        %v9179 = vmul.f32 %v465, %v9143
        %v9180 = vmul.f32 %v466, %v9143
        %v9181 = vmul.f32 %v467, %v9143
        %v9182 = vmul.f32 %v468, %v9143
        %v9183 = vmul.f32 %v469, %v9143
        %v9184 = vmul.f32 %v470, %v9143
        %v9185 = vmul.f32 %v471, %v9143
        %v9186 = vmul.f32 %v472, %v9143
        %v9187 = vmul.f32 %v473, %v9143
        %v9188 = vmul.f32 %v474, %v9143
        %v9189 = vmul.f32 %v475, %v9143
        %v9190 = vmul.f32 %v476, %v9143
        %v9191 = vmul.f32 %v477, %v9143
        %v9240 = vrot.slane %v9144, 5
        %v9241 = vrot.slane %v9145, 5
        %v9242 = vsel %vm7793, %v9240, %v9241
        %v9243 = vrot.slane %v9146, 5
        %v9244 = vsel %vm7793, %v9241, %v9243
        %v9245 = vrot.slane %v9147, 5
        %v9246 = vrot.slane %v9148, 5
        %v9247 = vsel %vm7793, %v9245, %v9246
        %v9248 = vrot.slane %v9149, 5
        %v9249 = vsel %vm7793, %v9246, %v9248
        %v9250 = vrot.slane %v9150, 5
        %v9251 = vrot.slane %v9151, 5
        %v9252 = vsel %vm7793, %v9250, %v9251
        %v9253 = vrot.slane %v9152, 5
        %v9254 = vsel %vm7793, %v9251, %v9253
        %v9255 = vrot.slane %v9153, 5
        %v9256 = vrot.slane %v9154, 5
        %v9257 = vsel %vm7793, %v9255, %v9256
        %v9258 = vrot.slane %v9155, 5
        %v9259 = vsel %vm7793, %v9256, %v9258
        %v9260 = vrot.slane %v9156, 5
        %v9261 = vrot.slane %v9157, 5
        %v9262 = vsel %vm7793, %v9260, %v9261
        %v9263 = vrot.slane %v9158, 5
        %v9264 = vsel %vm7793, %v9261, %v9263
        %v9265 = vrot.slane %v9159, 5
        %v9266 = vrot.slane %v9160, 5
        %v9267 = vsel %vm7793, %v9265, %v9266
        %v9268 = vrot.slane %v9161, 5
        %v9269 = vsel %vm7793, %v9266, %v9268
        %v9270 = vrot.slane %v9162, 5
        %v9271 = vrot.slane %v9163, 5
        %v9272 = vsel %vm7793, %v9270, %v9271
        %v9273 = vrot.slane %v9164, 5
        %v9274 = vsel %vm7793, %v9271, %v9273
        %v9275 = vrot.slane %v9165, 5
        %v9276 = vrot.slane %v9166, 5
        %v9277 = vsel %vm7793, %v9275, %v9276
        %v9278 = vrot.slane %v9167, 5
        %v9279 = vsel %vm7793, %v9276, %v9278
        %v9280 = vrot.slane %v9168, 5
        %v9281 = vrot.slane %v9169, 5
        %v9282 = vsel %vm7793, %v9280, %v9281
        %v9283 = vrot.slane %v9170, 5
        %v9284 = vsel %vm7793, %v9281, %v9283
        %v9285 = vrot.slane %v9171, 5
        %v9286 = vrot.slane %v9172, 5
        %v9287 = vsel %vm7793, %v9285, %v9286
        %v9288 = vrot.slane %v9173, 5
        %v9289 = vsel %vm7793, %v9286, %v9288
        %v9290 = vrot.slane %v9174, 5
        %v9291 = vrot.slane %v9175, 5
        %v9292 = vsel %vm7793, %v9290, %v9291
        %v9293 = vrot.slane %v9176, 5
        %v9294 = vsel %vm7793, %v9291, %v9293
        %v9295 = vrot.slane %v9177, 5
        %v9296 = vrot.slane %v9178, 5
        %v9297 = vsel %vm7793, %v9295, %v9296
        %v9298 = vrot.slane %v9179, 5
        %v9299 = vsel %vm7793, %v9296, %v9298
        %v9300 = vrot.slane %v9180, 5
        %v9301 = vrot.slane %v9181, 5
        %v9302 = vsel %vm7793, %v9300, %v9301
        %v9303 = vrot.slane %v9182, 5
        %v9304 = vsel %vm7793, %v9301, %v9303
        %v9305 = vrot.slane %v9183, 5
        %v9306 = vrot.slane %v9184, 5
        %v9307 = vsel %vm7793, %v9305, %v9306
        %v9308 = vrot.slane %v9185, 5
        %v9309 = vsel %vm7793, %v9306, %v9308
        %v9310 = vrot.slane %v9186, 5
        %v9311 = vrot.slane %v9187, 5
        %v9312 = vsel %vm7793, %v9310, %v9311
        %v9313 = vrot.slane %v9188, 5
        %v9314 = vsel %vm7793, %v9311, %v9313
        %v9315 = vrot.slane %v9189, 5
        %v9316 = vrot.slane %v9190, 5
        %v9317 = vsel %vm7793, %v9315, %v9316
        %v9318 = vrot.slane %v9191, 5
        %v9319 = vsel %vm7793, %v9316, %v9318
        %v9352 = vadd.f32 %v9111, %v9242
        %v9353 = vadd.f32 %v9112, %v9244
        %v9354 = vadd.f32 %v9113, %v9247
        %v9355 = vadd.f32 %v9114, %v9249
        %v9356 = vadd.f32 %v9115, %v9252
        %v9357 = vadd.f32 %v9116, %v9254
        %v9358 = vadd.f32 %v9117, %v9257
        %v9359 = vadd.f32 %v9118, %v9259
        %v9360 = vadd.f32 %v9119, %v9262
        %v9361 = vadd.f32 %v9120, %v9264
        %v9362 = vadd.f32 %v9121, %v9267
        %v9363 = vadd.f32 %v9122, %v9269
        %v9364 = vadd.f32 %v9123, %v9272
        %v9365 = vadd.f32 %v9124, %v9274
        %v9366 = vadd.f32 %v9125, %v9277
        %v9367 = vadd.f32 %v9126, %v9279
        %v9368 = vadd.f32 %v9127, %v9282
        %v9369 = vadd.f32 %v9128, %v9284
        %v9370 = vadd.f32 %v9129, %v9287
        %v9371 = vadd.f32 %v9130, %v9289
        %v9372 = vadd.f32 %v9131, %v9292
        %v9373 = vadd.f32 %v9132, %v9294
        %v9374 = vadd.f32 %v9133, %v9297
        %v9375 = vadd.f32 %v9134, %v9299
        %v9376 = vadd.f32 %v9135, %v9302
        %v9377 = vadd.f32 %v9136, %v9304
        %v9378 = vadd.f32 %v9137, %v9307
        %v9379 = vadd.f32 %v9138, %v9309
        %v9380 = vadd.f32 %v9139, %v9312
        %v9381 = vadd.f32 %v9140, %v9314
        %v9382 = vadd.f32 %v9141, %v9317
        %v9383 = vadd.f32 %v9142, %v9319
        %v9384 = vperm.slane %v478, 6
        %v9385 = vmul.f32 %v412, %v9384
        %v9386 = vmul.f32 %v413, %v9384
        %v9387 = vmul.f32 %v414, %v9384
        %v9388 = vmul.f32 %v415, %v9384
        %v9389 = vmul.f32 %v416, %v9384
        %v9390 = vmul.f32 %v417, %v9384
        %v9391 = vmul.f32 %v418, %v9384
        %v9392 = vmul.f32 %v419, %v9384
        %v9393 = vmul.f32 %v420, %v9384
        %v9394 = vmul.f32 %v421, %v9384
        %v9395 = vmul.f32 %v422, %v9384
        %v9396 = vmul.f32 %v423, %v9384
        %v9397 = vmul.f32 %v424, %v9384
        %v9398 = vmul.f32 %v425, %v9384
        %v9399 = vmul.f32 %v426, %v9384
        %v9400 = vmul.f32 %v427, %v9384
        %v9401 = vmul.f32 %v428, %v9384
        %v9402 = vmul.f32 %v429, %v9384
        %v9403 = vmul.f32 %v430, %v9384
        %v9404 = vmul.f32 %v431, %v9384
        %v9405 = vmul.f32 %v432, %v9384
        %v9406 = vmul.f32 %v433, %v9384
        %v9407 = vmul.f32 %v434, %v9384
        %v9408 = vmul.f32 %v435, %v9384
        %v9409 = vmul.f32 %v436, %v9384
        %v9410 = vmul.f32 %v437, %v9384
        %v9411 = vmul.f32 %v438, %v9384
        %v9412 = vmul.f32 %v439, %v9384
        %v9413 = vmul.f32 %v440, %v9384
        %v9414 = vmul.f32 %v441, %v9384
        %v9415 = vmul.f32 %v442, %v9384
        %v9416 = vmul.f32 %v443, %v9384
        %v9417 = vmul.f32 %v444, %v9384
        %v9418 = vmul.f32 %v445, %v9384
        %v9419 = vmul.f32 %v446, %v9384
        %v9420 = vmul.f32 %v447, %v9384
        %v9421 = vmul.f32 %v448, %v9384
        %v9422 = vmul.f32 %v449, %v9384
        %v9423 = vmul.f32 %v450, %v9384
        %v9424 = vmul.f32 %v451, %v9384
        %v9425 = vmul.f32 %v452, %v9384
        %v9426 = vmul.f32 %v453, %v9384
        %v9427 = vmul.f32 %v454, %v9384
        %v9428 = vmul.f32 %v455, %v9384
        %v9429 = vmul.f32 %v456, %v9384
        %v9430 = vmul.f32 %v457, %v9384
        %v9431 = vmul.f32 %v458, %v9384
        %v9432 = vmul.f32 %v459, %v9384
        %vm9481 = vcmask 1041408
        %v9482 = vrot.slane %v9385, 6
        %v9483 = vrot.slane %v9386, 6
        %v9484 = vsel %vm9481, %v9482, %v9483
        %v9485 = vrot.slane %v9387, 6
        %v9486 = vsel %vm9481, %v9483, %v9485
        %v9487 = vrot.slane %v9388, 6
        %v9488 = vrot.slane %v9389, 6
        %v9489 = vsel %vm9481, %v9487, %v9488
        %v9490 = vrot.slane %v9390, 6
        %v9491 = vsel %vm9481, %v9488, %v9490
        %v9492 = vrot.slane %v9391, 6
        %v9493 = vrot.slane %v9392, 6
        %v9494 = vsel %vm9481, %v9492, %v9493
        %v9495 = vrot.slane %v9393, 6
        %v9496 = vsel %vm9481, %v9493, %v9495
        %v9497 = vrot.slane %v9394, 6
        %v9498 = vrot.slane %v9395, 6
        %v9499 = vsel %vm9481, %v9497, %v9498
        %v9500 = vrot.slane %v9396, 6
        %v9501 = vsel %vm9481, %v9498, %v9500
        %v9502 = vrot.slane %v9397, 6
        %v9503 = vrot.slane %v9398, 6
        %v9504 = vsel %vm9481, %v9502, %v9503
        %v9505 = vrot.slane %v9399, 6
        %v9506 = vsel %vm9481, %v9503, %v9505
        %v9507 = vrot.slane %v9400, 6
        %v9508 = vrot.slane %v9401, 6
        %v9509 = vsel %vm9481, %v9507, %v9508
        %v9510 = vrot.slane %v9402, 6
        %v9511 = vsel %vm9481, %v9508, %v9510
        %v9512 = vrot.slane %v9403, 6
        %v9513 = vrot.slane %v9404, 6
        %v9514 = vsel %vm9481, %v9512, %v9513
        %v9515 = vrot.slane %v9405, 6
        %v9516 = vsel %vm9481, %v9513, %v9515
        %v9517 = vrot.slane %v9406, 6
        %v9518 = vrot.slane %v9407, 6
        %v9519 = vsel %vm9481, %v9517, %v9518
        %v9520 = vrot.slane %v9408, 6
        %v9521 = vsel %vm9481, %v9518, %v9520
        %v9522 = vrot.slane %v9409, 6
        %v9523 = vrot.slane %v9410, 6
        %v9524 = vsel %vm9481, %v9522, %v9523
        %v9525 = vrot.slane %v9411, 6
        %v9526 = vsel %vm9481, %v9523, %v9525
        %v9527 = vrot.slane %v9412, 6
        %v9528 = vrot.slane %v9413, 6
        %v9529 = vsel %vm9481, %v9527, %v9528
        %v9530 = vrot.slane %v9414, 6
        %v9531 = vsel %vm9481, %v9528, %v9530
        %v9532 = vrot.slane %v9415, 6
        %v9533 = vrot.slane %v9416, 6
        %v9534 = vsel %vm9481, %v9532, %v9533
        %v9535 = vrot.slane %v9417, 6
        %v9536 = vsel %vm9481, %v9533, %v9535
        %v9537 = vrot.slane %v9418, 6
        %v9538 = vrot.slane %v9419, 6
        %v9539 = vsel %vm9481, %v9537, %v9538
        %v9540 = vrot.slane %v9420, 6
        %v9541 = vsel %vm9481, %v9538, %v9540
        %v9542 = vrot.slane %v9421, 6
        %v9543 = vrot.slane %v9422, 6
        %v9544 = vsel %vm9481, %v9542, %v9543
        %v9545 = vrot.slane %v9423, 6
        %v9546 = vsel %vm9481, %v9543, %v9545
        %v9547 = vrot.slane %v9424, 6
        %v9548 = vrot.slane %v9425, 6
        %v9549 = vsel %vm9481, %v9547, %v9548
        %v9550 = vrot.slane %v9426, 6
        %v9551 = vsel %vm9481, %v9548, %v9550
        %v9552 = vrot.slane %v9427, 6
        %v9553 = vrot.slane %v9428, 6
        %v9554 = vsel %vm9481, %v9552, %v9553
        %v9555 = vrot.slane %v9429, 6
        %v9556 = vsel %vm9481, %v9553, %v9555
        %v9557 = vrot.slane %v9430, 6
        %v9558 = vrot.slane %v9431, 6
        %v9559 = vsel %vm9481, %v9557, %v9558
        %v9560 = vrot.slane %v9432, 6
        %v9561 = vsel %vm9481, %v9558, %v9560
        %v9594 = vadd.f32 %v9352, %v9484
        %v9595 = vadd.f32 %v9353, %v9486
        %v9596 = vadd.f32 %v9354, %v9489
        %v9597 = vadd.f32 %v9355, %v9491
        %v9598 = vadd.f32 %v9356, %v9494
        %v9599 = vadd.f32 %v9357, %v9496
        %v9600 = vadd.f32 %v9358, %v9499
        %v9601 = vadd.f32 %v9359, %v9501
        %v9602 = vadd.f32 %v9360, %v9504
        %v9603 = vadd.f32 %v9361, %v9506
        %v9604 = vadd.f32 %v9362, %v9509
        %v9605 = vadd.f32 %v9363, %v9511
        %v9606 = vadd.f32 %v9364, %v9514
        %v9607 = vadd.f32 %v9365, %v9516
        %v9608 = vadd.f32 %v9366, %v9519
        %v9609 = vadd.f32 %v9367, %v9521
        %v9610 = vadd.f32 %v9368, %v9524
        %v9611 = vadd.f32 %v9369, %v9526
        %v9612 = vadd.f32 %v9370, %v9529
        %v9613 = vadd.f32 %v9371, %v9531
        %v9614 = vadd.f32 %v9372, %v9534
        %v9615 = vadd.f32 %v9373, %v9536
        %v9616 = vadd.f32 %v9374, %v9539
        %v9617 = vadd.f32 %v9375, %v9541
        %v9618 = vadd.f32 %v9376, %v9544
        %v9619 = vadd.f32 %v9377, %v9546
        %v9620 = vadd.f32 %v9378, %v9549
        %v9621 = vadd.f32 %v9379, %v9551
        %v9622 = vadd.f32 %v9380, %v9554
        %v9623 = vadd.f32 %v9381, %v9556
        %v9624 = vadd.f32 %v9382, %v9559
        %v9625 = vadd.f32 %v9383, %v9561
        %v9626 = vperm.slane %v479, 5
        %v9627 = vmul.f32 %v415, %v9626
        %v9628 = vmul.f32 %v416, %v9626
        %v9629 = vmul.f32 %v417, %v9626
        %v9630 = vmul.f32 %v418, %v9626
        %v9631 = vmul.f32 %v419, %v9626
        %v9632 = vmul.f32 %v420, %v9626
        %v9633 = vmul.f32 %v421, %v9626
        %v9634 = vmul.f32 %v422, %v9626
        %v9635 = vmul.f32 %v423, %v9626
        %v9636 = vmul.f32 %v424, %v9626
        %v9637 = vmul.f32 %v425, %v9626
        %v9638 = vmul.f32 %v426, %v9626
        %v9639 = vmul.f32 %v427, %v9626
        %v9640 = vmul.f32 %v428, %v9626
        %v9641 = vmul.f32 %v429, %v9626
        %v9642 = vmul.f32 %v430, %v9626
        %v9643 = vmul.f32 %v431, %v9626
        %v9644 = vmul.f32 %v432, %v9626
        %v9645 = vmul.f32 %v433, %v9626
        %v9646 = vmul.f32 %v434, %v9626
        %v9647 = vmul.f32 %v435, %v9626
        %v9648 = vmul.f32 %v436, %v9626
        %v9649 = vmul.f32 %v437, %v9626
        %v9650 = vmul.f32 %v438, %v9626
        %v9651 = vmul.f32 %v439, %v9626
        %v9652 = vmul.f32 %v440, %v9626
        %v9653 = vmul.f32 %v441, %v9626
        %v9654 = vmul.f32 %v442, %v9626
        %v9655 = vmul.f32 %v443, %v9626
        %v9656 = vmul.f32 %v444, %v9626
        %v9657 = vmul.f32 %v445, %v9626
        %v9658 = vmul.f32 %v446, %v9626
        %v9659 = vmul.f32 %v447, %v9626
        %v9660 = vmul.f32 %v448, %v9626
        %v9661 = vmul.f32 %v449, %v9626
        %v9662 = vmul.f32 %v450, %v9626
        %v9663 = vmul.f32 %v451, %v9626
        %v9664 = vmul.f32 %v452, %v9626
        %v9665 = vmul.f32 %v453, %v9626
        %v9666 = vmul.f32 %v454, %v9626
        %v9667 = vmul.f32 %v455, %v9626
        %v9668 = vmul.f32 %v456, %v9626
        %v9669 = vmul.f32 %v457, %v9626
        %v9670 = vmul.f32 %v458, %v9626
        %v9671 = vmul.f32 %v459, %v9626
        %v9672 = vmul.f32 %v460, %v9626
        %v9673 = vmul.f32 %v461, %v9626
        %v9674 = vmul.f32 %v462, %v9626
        %v9723 = vrot.slane %v9627, 6
        %v9724 = vrot.slane %v9628, 6
        %v9725 = vsel %vm9481, %v9723, %v9724
        %v9726 = vrot.slane %v9629, 6
        %v9727 = vsel %vm9481, %v9724, %v9726
        %v9728 = vrot.slane %v9630, 6
        %v9729 = vrot.slane %v9631, 6
        %v9730 = vsel %vm9481, %v9728, %v9729
        %v9731 = vrot.slane %v9632, 6
        %v9732 = vsel %vm9481, %v9729, %v9731
        %v9733 = vrot.slane %v9633, 6
        %v9734 = vrot.slane %v9634, 6
        %v9735 = vsel %vm9481, %v9733, %v9734
        %v9736 = vrot.slane %v9635, 6
        %v9737 = vsel %vm9481, %v9734, %v9736
        %v9738 = vrot.slane %v9636, 6
        %v9739 = vrot.slane %v9637, 6
        %v9740 = vsel %vm9481, %v9738, %v9739
        %v9741 = vrot.slane %v9638, 6
        %v9742 = vsel %vm9481, %v9739, %v9741
        %v9743 = vrot.slane %v9639, 6
        %v9744 = vrot.slane %v9640, 6
        %v9745 = vsel %vm9481, %v9743, %v9744
        %v9746 = vrot.slane %v9641, 6
        %v9747 = vsel %vm9481, %v9744, %v9746
        %v9748 = vrot.slane %v9642, 6
        %v9749 = vrot.slane %v9643, 6
        %v9750 = vsel %vm9481, %v9748, %v9749
        %v9751 = vrot.slane %v9644, 6
        %v9752 = vsel %vm9481, %v9749, %v9751
        %v9753 = vrot.slane %v9645, 6
        %v9754 = vrot.slane %v9646, 6
        %v9755 = vsel %vm9481, %v9753, %v9754
        %v9756 = vrot.slane %v9647, 6
        %v9757 = vsel %vm9481, %v9754, %v9756
        %v9758 = vrot.slane %v9648, 6
        %v9759 = vrot.slane %v9649, 6
        %v9760 = vsel %vm9481, %v9758, %v9759
        %v9761 = vrot.slane %v9650, 6
        %v9762 = vsel %vm9481, %v9759, %v9761
        %v9763 = vrot.slane %v9651, 6
        %v9764 = vrot.slane %v9652, 6
        %v9765 = vsel %vm9481, %v9763, %v9764
        %v9766 = vrot.slane %v9653, 6
        %v9767 = vsel %vm9481, %v9764, %v9766
        %v9768 = vrot.slane %v9654, 6
        %v9769 = vrot.slane %v9655, 6
        %v9770 = vsel %vm9481, %v9768, %v9769
        %v9771 = vrot.slane %v9656, 6
        %v9772 = vsel %vm9481, %v9769, %v9771
        %v9773 = vrot.slane %v9657, 6
        %v9774 = vrot.slane %v9658, 6
        %v9775 = vsel %vm9481, %v9773, %v9774
        %v9776 = vrot.slane %v9659, 6
        %v9777 = vsel %vm9481, %v9774, %v9776
        %v9778 = vrot.slane %v9660, 6
        %v9779 = vrot.slane %v9661, 6
        %v9780 = vsel %vm9481, %v9778, %v9779
        %v9781 = vrot.slane %v9662, 6
        %v9782 = vsel %vm9481, %v9779, %v9781
        %v9783 = vrot.slane %v9663, 6
        %v9784 = vrot.slane %v9664, 6
        %v9785 = vsel %vm9481, %v9783, %v9784
        %v9786 = vrot.slane %v9665, 6
        %v9787 = vsel %vm9481, %v9784, %v9786
        %v9788 = vrot.slane %v9666, 6
        %v9789 = vrot.slane %v9667, 6
        %v9790 = vsel %vm9481, %v9788, %v9789
        %v9791 = vrot.slane %v9668, 6
        %v9792 = vsel %vm9481, %v9789, %v9791
        %v9793 = vrot.slane %v9669, 6
        %v9794 = vrot.slane %v9670, 6
        %v9795 = vsel %vm9481, %v9793, %v9794
        %v9796 = vrot.slane %v9671, 6
        %v9797 = vsel %vm9481, %v9794, %v9796
        %v9798 = vrot.slane %v9672, 6
        %v9799 = vrot.slane %v9673, 6
        %v9800 = vsel %vm9481, %v9798, %v9799
        %v9801 = vrot.slane %v9674, 6
        %v9802 = vsel %vm9481, %v9799, %v9801
        %v9835 = vadd.f32 %v9594, %v9725
        %v9836 = vadd.f32 %v9595, %v9727
        %v9837 = vadd.f32 %v9596, %v9730
        %v9838 = vadd.f32 %v9597, %v9732
        %v9839 = vadd.f32 %v9598, %v9735
        %v9840 = vadd.f32 %v9599, %v9737
        %v9841 = vadd.f32 %v9600, %v9740
        %v9842 = vadd.f32 %v9601, %v9742
        %v9843 = vadd.f32 %v9602, %v9745
        %v9844 = vadd.f32 %v9603, %v9747
        %v9845 = vadd.f32 %v9604, %v9750
        %v9846 = vadd.f32 %v9605, %v9752
        %v9847 = vadd.f32 %v9606, %v9755
        %v9848 = vadd.f32 %v9607, %v9757
        %v9849 = vadd.f32 %v9608, %v9760
        %v9850 = vadd.f32 %v9609, %v9762
        %v9851 = vadd.f32 %v9610, %v9765
        %v9852 = vadd.f32 %v9611, %v9767
        %v9853 = vadd.f32 %v9612, %v9770
        %v9854 = vadd.f32 %v9613, %v9772
        %v9855 = vadd.f32 %v9614, %v9775
        %v9856 = vadd.f32 %v9615, %v9777
        %v9857 = vadd.f32 %v9616, %v9780
        %v9858 = vadd.f32 %v9617, %v9782
        %v9859 = vadd.f32 %v9618, %v9785
        %v9860 = vadd.f32 %v9619, %v9787
        %v9861 = vadd.f32 %v9620, %v9790
        %v9862 = vadd.f32 %v9621, %v9792
        %v9863 = vadd.f32 %v9622, %v9795
        %v9864 = vadd.f32 %v9623, %v9797
        %v9865 = vadd.f32 %v9624, %v9800
        %v9866 = vadd.f32 %v9625, %v9802
        %v9867 = vperm.slane %v480, 4
        %v9868 = vmul.f32 %v418, %v9867
        %v9869 = vmul.f32 %v419, %v9867
        %v9870 = vmul.f32 %v420, %v9867
        %v9871 = vmul.f32 %v421, %v9867
        %v9872 = vmul.f32 %v422, %v9867
        %v9873 = vmul.f32 %v423, %v9867
        %v9874 = vmul.f32 %v424, %v9867
        %v9875 = vmul.f32 %v425, %v9867
        %v9876 = vmul.f32 %v426, %v9867
        %v9877 = vmul.f32 %v427, %v9867
        %v9878 = vmul.f32 %v428, %v9867
        %v9879 = vmul.f32 %v429, %v9867
        %v9880 = vmul.f32 %v430, %v9867
        %v9881 = vmul.f32 %v431, %v9867
        %v9882 = vmul.f32 %v432, %v9867
        %v9883 = vmul.f32 %v433, %v9867
        %v9884 = vmul.f32 %v434, %v9867
        %v9885 = vmul.f32 %v435, %v9867
        %v9886 = vmul.f32 %v436, %v9867
        %v9887 = vmul.f32 %v437, %v9867
        %v9888 = vmul.f32 %v438, %v9867
        %v9889 = vmul.f32 %v439, %v9867
        %v9890 = vmul.f32 %v440, %v9867
        %v9891 = vmul.f32 %v441, %v9867
        %v9892 = vmul.f32 %v442, %v9867
        %v9893 = vmul.f32 %v443, %v9867
        %v9894 = vmul.f32 %v444, %v9867
        %v9895 = vmul.f32 %v445, %v9867
        %v9896 = vmul.f32 %v446, %v9867
        %v9897 = vmul.f32 %v447, %v9867
        %v9898 = vmul.f32 %v448, %v9867
        %v9899 = vmul.f32 %v449, %v9867
        %v9900 = vmul.f32 %v450, %v9867
        %v9901 = vmul.f32 %v451, %v9867
        %v9902 = vmul.f32 %v452, %v9867
        %v9903 = vmul.f32 %v453, %v9867
        %v9904 = vmul.f32 %v454, %v9867
        %v9905 = vmul.f32 %v455, %v9867
        %v9906 = vmul.f32 %v456, %v9867
        %v9907 = vmul.f32 %v457, %v9867
        %v9908 = vmul.f32 %v458, %v9867
        %v9909 = vmul.f32 %v459, %v9867
        %v9910 = vmul.f32 %v460, %v9867
        %v9911 = vmul.f32 %v461, %v9867
        %v9912 = vmul.f32 %v462, %v9867
        %v9913 = vmul.f32 %v463, %v9867
        %v9914 = vmul.f32 %v464, %v9867
        %v9915 = vmul.f32 %v465, %v9867
        %v9964 = vrot.slane %v9868, 6
        %v9965 = vrot.slane %v9869, 6
        %v9966 = vsel %vm9481, %v9964, %v9965
        %v9967 = vrot.slane %v9870, 6
        %v9968 = vsel %vm9481, %v9965, %v9967
        %v9969 = vrot.slane %v9871, 6
        %v9970 = vrot.slane %v9872, 6
        %v9971 = vsel %vm9481, %v9969, %v9970
        %v9972 = vrot.slane %v9873, 6
        %v9973 = vsel %vm9481, %v9970, %v9972
        %v9974 = vrot.slane %v9874, 6
        %v9975 = vrot.slane %v9875, 6
        %v9976 = vsel %vm9481, %v9974, %v9975
        %v9977 = vrot.slane %v9876, 6
        %v9978 = vsel %vm9481, %v9975, %v9977
        %v9979 = vrot.slane %v9877, 6
        %v9980 = vrot.slane %v9878, 6
        %v9981 = vsel %vm9481, %v9979, %v9980
        %v9982 = vrot.slane %v9879, 6
        %v9983 = vsel %vm9481, %v9980, %v9982
        %v9984 = vrot.slane %v9880, 6
        %v9985 = vrot.slane %v9881, 6
        %v9986 = vsel %vm9481, %v9984, %v9985
        %v9987 = vrot.slane %v9882, 6
        %v9988 = vsel %vm9481, %v9985, %v9987
        %v9989 = vrot.slane %v9883, 6
        %v9990 = vrot.slane %v9884, 6
        %v9991 = vsel %vm9481, %v9989, %v9990
        %v9992 = vrot.slane %v9885, 6
        %v9993 = vsel %vm9481, %v9990, %v9992
        %v9994 = vrot.slane %v9886, 6
        %v9995 = vrot.slane %v9887, 6
        %v9996 = vsel %vm9481, %v9994, %v9995
        %v9997 = vrot.slane %v9888, 6
        %v9998 = vsel %vm9481, %v9995, %v9997
        %v9999 = vrot.slane %v9889, 6
        %v10000 = vrot.slane %v9890, 6
        %v10001 = vsel %vm9481, %v9999, %v10000
        %v10002 = vrot.slane %v9891, 6
        %v10003 = vsel %vm9481, %v10000, %v10002
        %v10004 = vrot.slane %v9892, 6
        %v10005 = vrot.slane %v9893, 6
        %v10006 = vsel %vm9481, %v10004, %v10005
        %v10007 = vrot.slane %v9894, 6
        %v10008 = vsel %vm9481, %v10005, %v10007
        %v10009 = vrot.slane %v9895, 6
        %v10010 = vrot.slane %v9896, 6
        %v10011 = vsel %vm9481, %v10009, %v10010
        %v10012 = vrot.slane %v9897, 6
        %v10013 = vsel %vm9481, %v10010, %v10012
        %v10014 = vrot.slane %v9898, 6
        %v10015 = vrot.slane %v9899, 6
        %v10016 = vsel %vm9481, %v10014, %v10015
        %v10017 = vrot.slane %v9900, 6
        %v10018 = vsel %vm9481, %v10015, %v10017
        %v10019 = vrot.slane %v9901, 6
        %v10020 = vrot.slane %v9902, 6
        %v10021 = vsel %vm9481, %v10019, %v10020
        %v10022 = vrot.slane %v9903, 6
        %v10023 = vsel %vm9481, %v10020, %v10022
        %v10024 = vrot.slane %v9904, 6
        %v10025 = vrot.slane %v9905, 6
        %v10026 = vsel %vm9481, %v10024, %v10025
        %v10027 = vrot.slane %v9906, 6
        %v10028 = vsel %vm9481, %v10025, %v10027
        %v10029 = vrot.slane %v9907, 6
        %v10030 = vrot.slane %v9908, 6
        %v10031 = vsel %vm9481, %v10029, %v10030
        %v10032 = vrot.slane %v9909, 6
        %v10033 = vsel %vm9481, %v10030, %v10032
        %v10034 = vrot.slane %v9910, 6
        %v10035 = vrot.slane %v9911, 6
        %v10036 = vsel %vm9481, %v10034, %v10035
        %v10037 = vrot.slane %v9912, 6
        %v10038 = vsel %vm9481, %v10035, %v10037
        %v10039 = vrot.slane %v9913, 6
        %v10040 = vrot.slane %v9914, 6
        %v10041 = vsel %vm9481, %v10039, %v10040
        %v10042 = vrot.slane %v9915, 6
        %v10043 = vsel %vm9481, %v10040, %v10042
        %v10076 = vadd.f32 %v9835, %v9966
        %v10077 = vadd.f32 %v9836, %v9968
        %v10078 = vadd.f32 %v9837, %v9971
        %v10079 = vadd.f32 %v9838, %v9973
        %v10080 = vadd.f32 %v9839, %v9976
        %v10081 = vadd.f32 %v9840, %v9978
        %v10082 = vadd.f32 %v9841, %v9981
        %v10083 = vadd.f32 %v9842, %v9983
        %v10084 = vadd.f32 %v9843, %v9986
        %v10085 = vadd.f32 %v9844, %v9988
        %v10086 = vadd.f32 %v9845, %v9991
        %v10087 = vadd.f32 %v9846, %v9993
        %v10088 = vadd.f32 %v9847, %v9996
        %v10089 = vadd.f32 %v9848, %v9998
        %v10090 = vadd.f32 %v9849, %v10001
        %v10091 = vadd.f32 %v9850, %v10003
        %v10092 = vadd.f32 %v9851, %v10006
        %v10093 = vadd.f32 %v9852, %v10008
        %v10094 = vadd.f32 %v9853, %v10011
        %v10095 = vadd.f32 %v9854, %v10013
        %v10096 = vadd.f32 %v9855, %v10016
        %v10097 = vadd.f32 %v9856, %v10018
        %v10098 = vadd.f32 %v9857, %v10021
        %v10099 = vadd.f32 %v9858, %v10023
        %v10100 = vadd.f32 %v9859, %v10026
        %v10101 = vadd.f32 %v9860, %v10028
        %v10102 = vadd.f32 %v9861, %v10031
        %v10103 = vadd.f32 %v9862, %v10033
        %v10104 = vadd.f32 %v9863, %v10036
        %v10105 = vadd.f32 %v9864, %v10038
        %v10106 = vadd.f32 %v9865, %v10041
        %v10107 = vadd.f32 %v9866, %v10043
        %v10108 = vperm.slane %v481, 3
        %v10109 = vmul.f32 %v421, %v10108
        %v10110 = vmul.f32 %v422, %v10108
        %v10111 = vmul.f32 %v423, %v10108
        %v10112 = vmul.f32 %v424, %v10108
        %v10113 = vmul.f32 %v425, %v10108
        %v10114 = vmul.f32 %v426, %v10108
        %v10115 = vmul.f32 %v427, %v10108
        %v10116 = vmul.f32 %v428, %v10108
        %v10117 = vmul.f32 %v429, %v10108
        %v10118 = vmul.f32 %v430, %v10108
        %v10119 = vmul.f32 %v431, %v10108
        %v10120 = vmul.f32 %v432, %v10108
        %v10121 = vmul.f32 %v433, %v10108
        %v10122 = vmul.f32 %v434, %v10108
        %v10123 = vmul.f32 %v435, %v10108
        %v10124 = vmul.f32 %v436, %v10108
        %v10125 = vmul.f32 %v437, %v10108
        %v10126 = vmul.f32 %v438, %v10108
        %v10127 = vmul.f32 %v439, %v10108
        %v10128 = vmul.f32 %v440, %v10108
        %v10129 = vmul.f32 %v441, %v10108
        %v10130 = vmul.f32 %v442, %v10108
        %v10131 = vmul.f32 %v443, %v10108
        %v10132 = vmul.f32 %v444, %v10108
        %v10133 = vmul.f32 %v445, %v10108
        %v10134 = vmul.f32 %v446, %v10108
        %v10135 = vmul.f32 %v447, %v10108
        %v10136 = vmul.f32 %v448, %v10108
        %v10137 = vmul.f32 %v449, %v10108
        %v10138 = vmul.f32 %v450, %v10108
        %v10139 = vmul.f32 %v451, %v10108
        %v10140 = vmul.f32 %v452, %v10108
        %v10141 = vmul.f32 %v453, %v10108
        %v10142 = vmul.f32 %v454, %v10108
        %v10143 = vmul.f32 %v455, %v10108
        %v10144 = vmul.f32 %v456, %v10108
        %v10145 = vmul.f32 %v457, %v10108
        %v10146 = vmul.f32 %v458, %v10108
        %v10147 = vmul.f32 %v459, %v10108
        %v10148 = vmul.f32 %v460, %v10108
        %v10149 = vmul.f32 %v461, %v10108
        %v10150 = vmul.f32 %v462, %v10108
        %v10151 = vmul.f32 %v463, %v10108
        %v10152 = vmul.f32 %v464, %v10108
        %v10153 = vmul.f32 %v465, %v10108
        %v10154 = vmul.f32 %v466, %v10108
        %v10155 = vmul.f32 %v467, %v10108
        %v10156 = vmul.f32 %v468, %v10108
        %v10205 = vrot.slane %v10109, 6
        %v10206 = vrot.slane %v10110, 6
        %v10207 = vsel %vm9481, %v10205, %v10206
        %v10208 = vrot.slane %v10111, 6
        %v10209 = vsel %vm9481, %v10206, %v10208
        %v10210 = vrot.slane %v10112, 6
        %v10211 = vrot.slane %v10113, 6
        %v10212 = vsel %vm9481, %v10210, %v10211
        %v10213 = vrot.slane %v10114, 6
        %v10214 = vsel %vm9481, %v10211, %v10213
        %v10215 = vrot.slane %v10115, 6
        %v10216 = vrot.slane %v10116, 6
        %v10217 = vsel %vm9481, %v10215, %v10216
        %v10218 = vrot.slane %v10117, 6
        %v10219 = vsel %vm9481, %v10216, %v10218
        %v10220 = vrot.slane %v10118, 6
        %v10221 = vrot.slane %v10119, 6
        %v10222 = vsel %vm9481, %v10220, %v10221
        %v10223 = vrot.slane %v10120, 6
        %v10224 = vsel %vm9481, %v10221, %v10223
        %v10225 = vrot.slane %v10121, 6
        %v10226 = vrot.slane %v10122, 6
        %v10227 = vsel %vm9481, %v10225, %v10226
        %v10228 = vrot.slane %v10123, 6
        %v10229 = vsel %vm9481, %v10226, %v10228
        %v10230 = vrot.slane %v10124, 6
        %v10231 = vrot.slane %v10125, 6
        %v10232 = vsel %vm9481, %v10230, %v10231
        %v10233 = vrot.slane %v10126, 6
        %v10234 = vsel %vm9481, %v10231, %v10233
        %v10235 = vrot.slane %v10127, 6
        %v10236 = vrot.slane %v10128, 6
        %v10237 = vsel %vm9481, %v10235, %v10236
        %v10238 = vrot.slane %v10129, 6
        %v10239 = vsel %vm9481, %v10236, %v10238
        %v10240 = vrot.slane %v10130, 6
        %v10241 = vrot.slane %v10131, 6
        %v10242 = vsel %vm9481, %v10240, %v10241
        %v10243 = vrot.slane %v10132, 6
        %v10244 = vsel %vm9481, %v10241, %v10243
        %v10245 = vrot.slane %v10133, 6
        %v10246 = vrot.slane %v10134, 6
        %v10247 = vsel %vm9481, %v10245, %v10246
        %v10248 = vrot.slane %v10135, 6
        %v10249 = vsel %vm9481, %v10246, %v10248
        %v10250 = vrot.slane %v10136, 6
        %v10251 = vrot.slane %v10137, 6
        %v10252 = vsel %vm9481, %v10250, %v10251
        %v10253 = vrot.slane %v10138, 6
        %v10254 = vsel %vm9481, %v10251, %v10253
        %v10255 = vrot.slane %v10139, 6
        %v10256 = vrot.slane %v10140, 6
        %v10257 = vsel %vm9481, %v10255, %v10256
        %v10258 = vrot.slane %v10141, 6
        %v10259 = vsel %vm9481, %v10256, %v10258
        %v10260 = vrot.slane %v10142, 6
        %v10261 = vrot.slane %v10143, 6
        %v10262 = vsel %vm9481, %v10260, %v10261
        %v10263 = vrot.slane %v10144, 6
        %v10264 = vsel %vm9481, %v10261, %v10263
        %v10265 = vrot.slane %v10145, 6
        %v10266 = vrot.slane %v10146, 6
        %v10267 = vsel %vm9481, %v10265, %v10266
        %v10268 = vrot.slane %v10147, 6
        %v10269 = vsel %vm9481, %v10266, %v10268
        %v10270 = vrot.slane %v10148, 6
        %v10271 = vrot.slane %v10149, 6
        %v10272 = vsel %vm9481, %v10270, %v10271
        %v10273 = vrot.slane %v10150, 6
        %v10274 = vsel %vm9481, %v10271, %v10273
        %v10275 = vrot.slane %v10151, 6
        %v10276 = vrot.slane %v10152, 6
        %v10277 = vsel %vm9481, %v10275, %v10276
        %v10278 = vrot.slane %v10153, 6
        %v10279 = vsel %vm9481, %v10276, %v10278
        %v10280 = vrot.slane %v10154, 6
        %v10281 = vrot.slane %v10155, 6
        %v10282 = vsel %vm9481, %v10280, %v10281
        %v10283 = vrot.slane %v10156, 6
        %v10284 = vsel %vm9481, %v10281, %v10283
        %v10317 = vadd.f32 %v10076, %v10207
        %v10318 = vadd.f32 %v10077, %v10209
        %v10319 = vadd.f32 %v10078, %v10212
        %v10320 = vadd.f32 %v10079, %v10214
        %v10321 = vadd.f32 %v10080, %v10217
        %v10322 = vadd.f32 %v10081, %v10219
        %v10323 = vadd.f32 %v10082, %v10222
        %v10324 = vadd.f32 %v10083, %v10224
        %v10325 = vadd.f32 %v10084, %v10227
        %v10326 = vadd.f32 %v10085, %v10229
        %v10327 = vadd.f32 %v10086, %v10232
        %v10328 = vadd.f32 %v10087, %v10234
        %v10329 = vadd.f32 %v10088, %v10237
        %v10330 = vadd.f32 %v10089, %v10239
        %v10331 = vadd.f32 %v10090, %v10242
        %v10332 = vadd.f32 %v10091, %v10244
        %v10333 = vadd.f32 %v10092, %v10247
        %v10334 = vadd.f32 %v10093, %v10249
        %v10335 = vadd.f32 %v10094, %v10252
        %v10336 = vadd.f32 %v10095, %v10254
        %v10337 = vadd.f32 %v10096, %v10257
        %v10338 = vadd.f32 %v10097, %v10259
        %v10339 = vadd.f32 %v10098, %v10262
        %v10340 = vadd.f32 %v10099, %v10264
        %v10341 = vadd.f32 %v10100, %v10267
        %v10342 = vadd.f32 %v10101, %v10269
        %v10343 = vadd.f32 %v10102, %v10272
        %v10344 = vadd.f32 %v10103, %v10274
        %v10345 = vadd.f32 %v10104, %v10277
        %v10346 = vadd.f32 %v10105, %v10279
        %v10347 = vadd.f32 %v10106, %v10282
        %v10348 = vadd.f32 %v10107, %v10284
        %v10349 = vperm.slane %v482, 2
        %v10350 = vmul.f32 %v424, %v10349
        %v10351 = vmul.f32 %v425, %v10349
        %v10352 = vmul.f32 %v426, %v10349
        %v10353 = vmul.f32 %v427, %v10349
        %v10354 = vmul.f32 %v428, %v10349
        %v10355 = vmul.f32 %v429, %v10349
        %v10356 = vmul.f32 %v430, %v10349
        %v10357 = vmul.f32 %v431, %v10349
        %v10358 = vmul.f32 %v432, %v10349
        %v10359 = vmul.f32 %v433, %v10349
        %v10360 = vmul.f32 %v434, %v10349
        %v10361 = vmul.f32 %v435, %v10349
        %v10362 = vmul.f32 %v436, %v10349
        %v10363 = vmul.f32 %v437, %v10349
        %v10364 = vmul.f32 %v438, %v10349
        %v10365 = vmul.f32 %v439, %v10349
        %v10366 = vmul.f32 %v440, %v10349
        %v10367 = vmul.f32 %v441, %v10349
        %v10368 = vmul.f32 %v442, %v10349
        %v10369 = vmul.f32 %v443, %v10349
        %v10370 = vmul.f32 %v444, %v10349
        %v10371 = vmul.f32 %v445, %v10349
        %v10372 = vmul.f32 %v446, %v10349
        %v10373 = vmul.f32 %v447, %v10349
        %v10374 = vmul.f32 %v448, %v10349
        %v10375 = vmul.f32 %v449, %v10349
        %v10376 = vmul.f32 %v450, %v10349
        %v10377 = vmul.f32 %v451, %v10349
        %v10378 = vmul.f32 %v452, %v10349
        %v10379 = vmul.f32 %v453, %v10349
        %v10380 = vmul.f32 %v454, %v10349
        %v10381 = vmul.f32 %v455, %v10349
        %v10382 = vmul.f32 %v456, %v10349
        %v10383 = vmul.f32 %v457, %v10349
        %v10384 = vmul.f32 %v458, %v10349
        %v10385 = vmul.f32 %v459, %v10349
        %v10386 = vmul.f32 %v460, %v10349
        %v10387 = vmul.f32 %v461, %v10349
        %v10388 = vmul.f32 %v462, %v10349
        %v10389 = vmul.f32 %v463, %v10349
        %v10390 = vmul.f32 %v464, %v10349
        %v10391 = vmul.f32 %v465, %v10349
        %v10392 = vmul.f32 %v466, %v10349
        %v10393 = vmul.f32 %v467, %v10349
        %v10394 = vmul.f32 %v468, %v10349
        %v10395 = vmul.f32 %v469, %v10349
        %v10396 = vmul.f32 %v470, %v10349
        %v10397 = vmul.f32 %v471, %v10349
        %v10446 = vrot.slane %v10350, 6
        %v10447 = vrot.slane %v10351, 6
        %v10448 = vsel %vm9481, %v10446, %v10447
        %v10449 = vrot.slane %v10352, 6
        %v10450 = vsel %vm9481, %v10447, %v10449
        %v10451 = vrot.slane %v10353, 6
        %v10452 = vrot.slane %v10354, 6
        %v10453 = vsel %vm9481, %v10451, %v10452
        %v10454 = vrot.slane %v10355, 6
        %v10455 = vsel %vm9481, %v10452, %v10454
        %v10456 = vrot.slane %v10356, 6
        %v10457 = vrot.slane %v10357, 6
        %v10458 = vsel %vm9481, %v10456, %v10457
        %v10459 = vrot.slane %v10358, 6
        %v10460 = vsel %vm9481, %v10457, %v10459
        %v10461 = vrot.slane %v10359, 6
        %v10462 = vrot.slane %v10360, 6
        %v10463 = vsel %vm9481, %v10461, %v10462
        %v10464 = vrot.slane %v10361, 6
        %v10465 = vsel %vm9481, %v10462, %v10464
        %v10466 = vrot.slane %v10362, 6
        %v10467 = vrot.slane %v10363, 6
        %v10468 = vsel %vm9481, %v10466, %v10467
        %v10469 = vrot.slane %v10364, 6
        %v10470 = vsel %vm9481, %v10467, %v10469
        %v10471 = vrot.slane %v10365, 6
        %v10472 = vrot.slane %v10366, 6
        %v10473 = vsel %vm9481, %v10471, %v10472
        %v10474 = vrot.slane %v10367, 6
        %v10475 = vsel %vm9481, %v10472, %v10474
        %v10476 = vrot.slane %v10368, 6
        %v10477 = vrot.slane %v10369, 6
        %v10478 = vsel %vm9481, %v10476, %v10477
        %v10479 = vrot.slane %v10370, 6
        %v10480 = vsel %vm9481, %v10477, %v10479
        %v10481 = vrot.slane %v10371, 6
        %v10482 = vrot.slane %v10372, 6
        %v10483 = vsel %vm9481, %v10481, %v10482
        %v10484 = vrot.slane %v10373, 6
        %v10485 = vsel %vm9481, %v10482, %v10484
        %v10486 = vrot.slane %v10374, 6
        %v10487 = vrot.slane %v10375, 6
        %v10488 = vsel %vm9481, %v10486, %v10487
        %v10489 = vrot.slane %v10376, 6
        %v10490 = vsel %vm9481, %v10487, %v10489
        %v10491 = vrot.slane %v10377, 6
        %v10492 = vrot.slane %v10378, 6
        %v10493 = vsel %vm9481, %v10491, %v10492
        %v10494 = vrot.slane %v10379, 6
        %v10495 = vsel %vm9481, %v10492, %v10494
        %v10496 = vrot.slane %v10380, 6
        %v10497 = vrot.slane %v10381, 6
        %v10498 = vsel %vm9481, %v10496, %v10497
        %v10499 = vrot.slane %v10382, 6
        %v10500 = vsel %vm9481, %v10497, %v10499
        %v10501 = vrot.slane %v10383, 6
        %v10502 = vrot.slane %v10384, 6
        %v10503 = vsel %vm9481, %v10501, %v10502
        %v10504 = vrot.slane %v10385, 6
        %v10505 = vsel %vm9481, %v10502, %v10504
        %v10506 = vrot.slane %v10386, 6
        %v10507 = vrot.slane %v10387, 6
        %v10508 = vsel %vm9481, %v10506, %v10507
        %v10509 = vrot.slane %v10388, 6
        %v10510 = vsel %vm9481, %v10507, %v10509
        %v10511 = vrot.slane %v10389, 6
        %v10512 = vrot.slane %v10390, 6
        %v10513 = vsel %vm9481, %v10511, %v10512
        %v10514 = vrot.slane %v10391, 6
        %v10515 = vsel %vm9481, %v10512, %v10514
        %v10516 = vrot.slane %v10392, 6
        %v10517 = vrot.slane %v10393, 6
        %v10518 = vsel %vm9481, %v10516, %v10517
        %v10519 = vrot.slane %v10394, 6
        %v10520 = vsel %vm9481, %v10517, %v10519
        %v10521 = vrot.slane %v10395, 6
        %v10522 = vrot.slane %v10396, 6
        %v10523 = vsel %vm9481, %v10521, %v10522
        %v10524 = vrot.slane %v10397, 6
        %v10525 = vsel %vm9481, %v10522, %v10524
        %v10558 = vadd.f32 %v10317, %v10448
        %v10559 = vadd.f32 %v10318, %v10450
        %v10560 = vadd.f32 %v10319, %v10453
        %v10561 = vadd.f32 %v10320, %v10455
        %v10562 = vadd.f32 %v10321, %v10458
        %v10563 = vadd.f32 %v10322, %v10460
        %v10564 = vadd.f32 %v10323, %v10463
        %v10565 = vadd.f32 %v10324, %v10465
        %v10566 = vadd.f32 %v10325, %v10468
        %v10567 = vadd.f32 %v10326, %v10470
        %v10568 = vadd.f32 %v10327, %v10473
        %v10569 = vadd.f32 %v10328, %v10475
        %v10570 = vadd.f32 %v10329, %v10478
        %v10571 = vadd.f32 %v10330, %v10480
        %v10572 = vadd.f32 %v10331, %v10483
        %v10573 = vadd.f32 %v10332, %v10485
        %v10574 = vadd.f32 %v10333, %v10488
        %v10575 = vadd.f32 %v10334, %v10490
        %v10576 = vadd.f32 %v10335, %v10493
        %v10577 = vadd.f32 %v10336, %v10495
        %v10578 = vadd.f32 %v10337, %v10498
        %v10579 = vadd.f32 %v10338, %v10500
        %v10580 = vadd.f32 %v10339, %v10503
        %v10581 = vadd.f32 %v10340, %v10505
        %v10582 = vadd.f32 %v10341, %v10508
        %v10583 = vadd.f32 %v10342, %v10510
        %v10584 = vadd.f32 %v10343, %v10513
        %v10585 = vadd.f32 %v10344, %v10515
        %v10586 = vadd.f32 %v10345, %v10518
        %v10587 = vadd.f32 %v10346, %v10520
        %v10588 = vadd.f32 %v10347, %v10523
        %v10589 = vadd.f32 %v10348, %v10525
        %v10590 = vperm.slane %v483, 1
        %v10591 = vmul.f32 %v427, %v10590
        %v10592 = vmul.f32 %v428, %v10590
        %v10593 = vmul.f32 %v429, %v10590
        %v10594 = vmul.f32 %v430, %v10590
        %v10595 = vmul.f32 %v431, %v10590
        %v10596 = vmul.f32 %v432, %v10590
        %v10597 = vmul.f32 %v433, %v10590
        %v10598 = vmul.f32 %v434, %v10590
        %v10599 = vmul.f32 %v435, %v10590
        %v10600 = vmul.f32 %v436, %v10590
        %v10601 = vmul.f32 %v437, %v10590
        %v10602 = vmul.f32 %v438, %v10590
        %v10603 = vmul.f32 %v439, %v10590
        %v10604 = vmul.f32 %v440, %v10590
        %v10605 = vmul.f32 %v441, %v10590
        %v10606 = vmul.f32 %v442, %v10590
        %v10607 = vmul.f32 %v443, %v10590
        %v10608 = vmul.f32 %v444, %v10590
        %v10609 = vmul.f32 %v445, %v10590
        %v10610 = vmul.f32 %v446, %v10590
        %v10611 = vmul.f32 %v447, %v10590
        %v10612 = vmul.f32 %v448, %v10590
        %v10613 = vmul.f32 %v449, %v10590
        %v10614 = vmul.f32 %v450, %v10590
        %v10615 = vmul.f32 %v451, %v10590
        %v10616 = vmul.f32 %v452, %v10590
        %v10617 = vmul.f32 %v453, %v10590
        %v10618 = vmul.f32 %v454, %v10590
        %v10619 = vmul.f32 %v455, %v10590
        %v10620 = vmul.f32 %v456, %v10590
        %v10621 = vmul.f32 %v457, %v10590
        %v10622 = vmul.f32 %v458, %v10590
        %v10623 = vmul.f32 %v459, %v10590
        %v10624 = vmul.f32 %v460, %v10590
        %v10625 = vmul.f32 %v461, %v10590
        %v10626 = vmul.f32 %v462, %v10590
        %v10627 = vmul.f32 %v463, %v10590
        %v10628 = vmul.f32 %v464, %v10590
        %v10629 = vmul.f32 %v465, %v10590
        %v10630 = vmul.f32 %v466, %v10590
        %v10631 = vmul.f32 %v467, %v10590
        %v10632 = vmul.f32 %v468, %v10590
        %v10633 = vmul.f32 %v469, %v10590
        %v10634 = vmul.f32 %v470, %v10590
        %v10635 = vmul.f32 %v471, %v10590
        %v10636 = vmul.f32 %v472, %v10590
        %v10637 = vmul.f32 %v473, %v10590
        %v10638 = vmul.f32 %v474, %v10590
        %v10687 = vrot.slane %v10591, 6
        %v10688 = vrot.slane %v10592, 6
        %v10689 = vsel %vm9481, %v10687, %v10688
        %v10690 = vrot.slane %v10593, 6
        %v10691 = vsel %vm9481, %v10688, %v10690
        %v10692 = vrot.slane %v10594, 6
        %v10693 = vrot.slane %v10595, 6
        %v10694 = vsel %vm9481, %v10692, %v10693
        %v10695 = vrot.slane %v10596, 6
        %v10696 = vsel %vm9481, %v10693, %v10695
        %v10697 = vrot.slane %v10597, 6
        %v10698 = vrot.slane %v10598, 6
        %v10699 = vsel %vm9481, %v10697, %v10698
        %v10700 = vrot.slane %v10599, 6
        %v10701 = vsel %vm9481, %v10698, %v10700
        %v10702 = vrot.slane %v10600, 6
        %v10703 = vrot.slane %v10601, 6
        %v10704 = vsel %vm9481, %v10702, %v10703
        %v10705 = vrot.slane %v10602, 6
        %v10706 = vsel %vm9481, %v10703, %v10705
        %v10707 = vrot.slane %v10603, 6
        %v10708 = vrot.slane %v10604, 6
        %v10709 = vsel %vm9481, %v10707, %v10708
        %v10710 = vrot.slane %v10605, 6
        %v10711 = vsel %vm9481, %v10708, %v10710
        %v10712 = vrot.slane %v10606, 6
        %v10713 = vrot.slane %v10607, 6
        %v10714 = vsel %vm9481, %v10712, %v10713
        %v10715 = vrot.slane %v10608, 6
        %v10716 = vsel %vm9481, %v10713, %v10715
        %v10717 = vrot.slane %v10609, 6
        %v10718 = vrot.slane %v10610, 6
        %v10719 = vsel %vm9481, %v10717, %v10718
        %v10720 = vrot.slane %v10611, 6
        %v10721 = vsel %vm9481, %v10718, %v10720
        %v10722 = vrot.slane %v10612, 6
        %v10723 = vrot.slane %v10613, 6
        %v10724 = vsel %vm9481, %v10722, %v10723
        %v10725 = vrot.slane %v10614, 6
        %v10726 = vsel %vm9481, %v10723, %v10725
        %v10727 = vrot.slane %v10615, 6
        %v10728 = vrot.slane %v10616, 6
        %v10729 = vsel %vm9481, %v10727, %v10728
        %v10730 = vrot.slane %v10617, 6
        %v10731 = vsel %vm9481, %v10728, %v10730
        %v10732 = vrot.slane %v10618, 6
        %v10733 = vrot.slane %v10619, 6
        %v10734 = vsel %vm9481, %v10732, %v10733
        %v10735 = vrot.slane %v10620, 6
        %v10736 = vsel %vm9481, %v10733, %v10735
        %v10737 = vrot.slane %v10621, 6
        %v10738 = vrot.slane %v10622, 6
        %v10739 = vsel %vm9481, %v10737, %v10738
        %v10740 = vrot.slane %v10623, 6
        %v10741 = vsel %vm9481, %v10738, %v10740
        %v10742 = vrot.slane %v10624, 6
        %v10743 = vrot.slane %v10625, 6
        %v10744 = vsel %vm9481, %v10742, %v10743
        %v10745 = vrot.slane %v10626, 6
        %v10746 = vsel %vm9481, %v10743, %v10745
        %v10747 = vrot.slane %v10627, 6
        %v10748 = vrot.slane %v10628, 6
        %v10749 = vsel %vm9481, %v10747, %v10748
        %v10750 = vrot.slane %v10629, 6
        %v10751 = vsel %vm9481, %v10748, %v10750
        %v10752 = vrot.slane %v10630, 6
        %v10753 = vrot.slane %v10631, 6
        %v10754 = vsel %vm9481, %v10752, %v10753
        %v10755 = vrot.slane %v10632, 6
        %v10756 = vsel %vm9481, %v10753, %v10755
        %v10757 = vrot.slane %v10633, 6
        %v10758 = vrot.slane %v10634, 6
        %v10759 = vsel %vm9481, %v10757, %v10758
        %v10760 = vrot.slane %v10635, 6
        %v10761 = vsel %vm9481, %v10758, %v10760
        %v10762 = vrot.slane %v10636, 6
        %v10763 = vrot.slane %v10637, 6
        %v10764 = vsel %vm9481, %v10762, %v10763
        %v10765 = vrot.slane %v10638, 6
        %v10766 = vsel %vm9481, %v10763, %v10765
        %v10799 = vadd.f32 %v10558, %v10689
        %v10800 = vadd.f32 %v10559, %v10691
        %v10801 = vadd.f32 %v10560, %v10694
        %v10802 = vadd.f32 %v10561, %v10696
        %v10803 = vadd.f32 %v10562, %v10699
        %v10804 = vadd.f32 %v10563, %v10701
        %v10805 = vadd.f32 %v10564, %v10704
        %v10806 = vadd.f32 %v10565, %v10706
        %v10807 = vadd.f32 %v10566, %v10709
        %v10808 = vadd.f32 %v10567, %v10711
        %v10809 = vadd.f32 %v10568, %v10714
        %v10810 = vadd.f32 %v10569, %v10716
        %v10811 = vadd.f32 %v10570, %v10719
        %v10812 = vadd.f32 %v10571, %v10721
        %v10813 = vadd.f32 %v10572, %v10724
        %v10814 = vadd.f32 %v10573, %v10726
        %v10815 = vadd.f32 %v10574, %v10729
        %v10816 = vadd.f32 %v10575, %v10731
        %v10817 = vadd.f32 %v10576, %v10734
        %v10818 = vadd.f32 %v10577, %v10736
        %v10819 = vadd.f32 %v10578, %v10739
        %v10820 = vadd.f32 %v10579, %v10741
        %v10821 = vadd.f32 %v10580, %v10744
        %v10822 = vadd.f32 %v10581, %v10746
        %v10823 = vadd.f32 %v10582, %v10749
        %v10824 = vadd.f32 %v10583, %v10751
        %v10825 = vadd.f32 %v10584, %v10754
        %v10826 = vadd.f32 %v10585, %v10756
        %v10827 = vadd.f32 %v10586, %v10759
        %v10828 = vadd.f32 %v10587, %v10761
        %v10829 = vadd.f32 %v10588, %v10764
        %v10830 = vadd.f32 %v10589, %v10766
        %v10831 = vperm.slane %v484, 0
        %v10832 = vmul.f32 %v430, %v10831
        %v10833 = vmul.f32 %v431, %v10831
        %v10834 = vmul.f32 %v432, %v10831
        %v10835 = vmul.f32 %v433, %v10831
        %v10836 = vmul.f32 %v434, %v10831
        %v10837 = vmul.f32 %v435, %v10831
        %v10838 = vmul.f32 %v436, %v10831
        %v10839 = vmul.f32 %v437, %v10831
        %v10840 = vmul.f32 %v438, %v10831
        %v10841 = vmul.f32 %v439, %v10831
        %v10842 = vmul.f32 %v440, %v10831
        %v10843 = vmul.f32 %v441, %v10831
        %v10844 = vmul.f32 %v442, %v10831
        %v10845 = vmul.f32 %v443, %v10831
        %v10846 = vmul.f32 %v444, %v10831
        %v10847 = vmul.f32 %v445, %v10831
        %v10848 = vmul.f32 %v446, %v10831
        %v10849 = vmul.f32 %v447, %v10831
        %v10850 = vmul.f32 %v448, %v10831
        %v10851 = vmul.f32 %v449, %v10831
        %v10852 = vmul.f32 %v450, %v10831
        %v10853 = vmul.f32 %v451, %v10831
        %v10854 = vmul.f32 %v452, %v10831
        %v10855 = vmul.f32 %v453, %v10831
        %v10856 = vmul.f32 %v454, %v10831
        %v10857 = vmul.f32 %v455, %v10831
        %v10858 = vmul.f32 %v456, %v10831
        %v10859 = vmul.f32 %v457, %v10831
        %v10860 = vmul.f32 %v458, %v10831
        %v10861 = vmul.f32 %v459, %v10831
        %v10862 = vmul.f32 %v460, %v10831
        %v10863 = vmul.f32 %v461, %v10831
        %v10864 = vmul.f32 %v462, %v10831
        %v10865 = vmul.f32 %v463, %v10831
        %v10866 = vmul.f32 %v464, %v10831
        %v10867 = vmul.f32 %v465, %v10831
        %v10868 = vmul.f32 %v466, %v10831
        %v10869 = vmul.f32 %v467, %v10831
        %v10870 = vmul.f32 %v468, %v10831
        %v10871 = vmul.f32 %v469, %v10831
        %v10872 = vmul.f32 %v470, %v10831
        %v10873 = vmul.f32 %v471, %v10831
        %v10874 = vmul.f32 %v472, %v10831
        %v10875 = vmul.f32 %v473, %v10831
        %v10876 = vmul.f32 %v474, %v10831
        %v10877 = vmul.f32 %v475, %v10831
        %v10878 = vmul.f32 %v476, %v10831
        %v10879 = vmul.f32 %v477, %v10831
        %v10928 = vrot.slane %v10832, 6
        %v10929 = vrot.slane %v10833, 6
        %v10930 = vsel %vm9481, %v10928, %v10929
        %v10931 = vrot.slane %v10834, 6
        %v10932 = vsel %vm9481, %v10929, %v10931
        %v10933 = vrot.slane %v10835, 6
        %v10934 = vrot.slane %v10836, 6
        %v10935 = vsel %vm9481, %v10933, %v10934
        %v10936 = vrot.slane %v10837, 6
        %v10937 = vsel %vm9481, %v10934, %v10936
        %v10938 = vrot.slane %v10838, 6
        %v10939 = vrot.slane %v10839, 6
        %v10940 = vsel %vm9481, %v10938, %v10939
        %v10941 = vrot.slane %v10840, 6
        %v10942 = vsel %vm9481, %v10939, %v10941
        %v10943 = vrot.slane %v10841, 6
        %v10944 = vrot.slane %v10842, 6
        %v10945 = vsel %vm9481, %v10943, %v10944
        %v10946 = vrot.slane %v10843, 6
        %v10947 = vsel %vm9481, %v10944, %v10946
        %v10948 = vrot.slane %v10844, 6
        %v10949 = vrot.slane %v10845, 6
        %v10950 = vsel %vm9481, %v10948, %v10949
        %v10951 = vrot.slane %v10846, 6
        %v10952 = vsel %vm9481, %v10949, %v10951
        %v10953 = vrot.slane %v10847, 6
        %v10954 = vrot.slane %v10848, 6
        %v10955 = vsel %vm9481, %v10953, %v10954
        %v10956 = vrot.slane %v10849, 6
        %v10957 = vsel %vm9481, %v10954, %v10956
        %v10958 = vrot.slane %v10850, 6
        %v10959 = vrot.slane %v10851, 6
        %v10960 = vsel %vm9481, %v10958, %v10959
        %v10961 = vrot.slane %v10852, 6
        %v10962 = vsel %vm9481, %v10959, %v10961
        %v10963 = vrot.slane %v10853, 6
        %v10964 = vrot.slane %v10854, 6
        %v10965 = vsel %vm9481, %v10963, %v10964
        %v10966 = vrot.slane %v10855, 6
        %v10967 = vsel %vm9481, %v10964, %v10966
        %v10968 = vrot.slane %v10856, 6
        %v10969 = vrot.slane %v10857, 6
        %v10970 = vsel %vm9481, %v10968, %v10969
        %v10971 = vrot.slane %v10858, 6
        %v10972 = vsel %vm9481, %v10969, %v10971
        %v10973 = vrot.slane %v10859, 6
        %v10974 = vrot.slane %v10860, 6
        %v10975 = vsel %vm9481, %v10973, %v10974
        %v10976 = vrot.slane %v10861, 6
        %v10977 = vsel %vm9481, %v10974, %v10976
        %v10978 = vrot.slane %v10862, 6
        %v10979 = vrot.slane %v10863, 6
        %v10980 = vsel %vm9481, %v10978, %v10979
        %v10981 = vrot.slane %v10864, 6
        %v10982 = vsel %vm9481, %v10979, %v10981
        %v10983 = vrot.slane %v10865, 6
        %v10984 = vrot.slane %v10866, 6
        %v10985 = vsel %vm9481, %v10983, %v10984
        %v10986 = vrot.slane %v10867, 6
        %v10987 = vsel %vm9481, %v10984, %v10986
        %v10988 = vrot.slane %v10868, 6
        %v10989 = vrot.slane %v10869, 6
        %v10990 = vsel %vm9481, %v10988, %v10989
        %v10991 = vrot.slane %v10870, 6
        %v10992 = vsel %vm9481, %v10989, %v10991
        %v10993 = vrot.slane %v10871, 6
        %v10994 = vrot.slane %v10872, 6
        %v10995 = vsel %vm9481, %v10993, %v10994
        %v10996 = vrot.slane %v10873, 6
        %v10997 = vsel %vm9481, %v10994, %v10996
        %v10998 = vrot.slane %v10874, 6
        %v10999 = vrot.slane %v10875, 6
        %v11000 = vsel %vm9481, %v10998, %v10999
        %v11001 = vrot.slane %v10876, 6
        %v11002 = vsel %vm9481, %v10999, %v11001
        %v11003 = vrot.slane %v10877, 6
        %v11004 = vrot.slane %v10878, 6
        %v11005 = vsel %vm9481, %v11003, %v11004
        %v11006 = vrot.slane %v10879, 6
        %v11007 = vsel %vm9481, %v11004, %v11006
        %v11040 = vadd.f32 %v10799, %v10930
        %v11041 = vadd.f32 %v10800, %v10932
        %v11042 = vadd.f32 %v10801, %v10935
        %v11043 = vadd.f32 %v10802, %v10937
        %v11044 = vadd.f32 %v10803, %v10940
        %v11045 = vadd.f32 %v10804, %v10942
        %v11046 = vadd.f32 %v10805, %v10945
        %v11047 = vadd.f32 %v10806, %v10947
        %v11048 = vadd.f32 %v10807, %v10950
        %v11049 = vadd.f32 %v10808, %v10952
        %v11050 = vadd.f32 %v10809, %v10955
        %v11051 = vadd.f32 %v10810, %v10957
        %v11052 = vadd.f32 %v10811, %v10960
        %v11053 = vadd.f32 %v10812, %v10962
        %v11054 = vadd.f32 %v10813, %v10965
        %v11055 = vadd.f32 %v10814, %v10967
        %v11056 = vadd.f32 %v10815, %v10970
        %v11057 = vadd.f32 %v10816, %v10972
        %v11058 = vadd.f32 %v10817, %v10975
        %v11059 = vadd.f32 %v10818, %v10977
        %v11060 = vadd.f32 %v10819, %v10980
        %v11061 = vadd.f32 %v10820, %v10982
        %v11062 = vadd.f32 %v10821, %v10985
        %v11063 = vadd.f32 %v10822, %v10987
        %v11064 = vadd.f32 %v10823, %v10990
        %v11065 = vadd.f32 %v10824, %v10992
        %v11066 = vadd.f32 %v10825, %v10995
        %v11067 = vadd.f32 %v10826, %v10997
        %v11068 = vadd.f32 %v10827, %v11000
        %v11069 = vadd.f32 %v10828, %v11002
        %v11070 = vadd.f32 %v10829, %v11005
        %v11071 = vadd.f32 %v10830, %v11007
        %11072 = vadd.xlane.f32.xlu0 %v11040
        %v11073 = vpop.xlane.xlu0 %11072
        %11074 = vadd.xlane.f32.xlu0 %v11041
        %v11075 = vpop.xlane.xlu0 %11074
        %11076 = vadd.xlane.f32.xlu0 %v11042
        %v11077 = vpop.xlane.xlu0 %11076
        %11078 = vadd.xlane.f32.xlu0 %v11043
        %v11079 = vpop.xlane.xlu0 %11078
        %11080 = vadd.xlane.f32.xlu0 %v11044
        %v11081 = vpop.xlane.xlu0 %11080
        %11082 = vadd.xlane.f32.xlu0 %v11045
        %v11083 = vpop.xlane.xlu0 %11082
        %11084 = vadd.xlane.f32.xlu0 %v11046
        %v11085 = vpop.xlane.xlu0 %11084
        %11086 = vadd.xlane.f32.xlu0 %v11047
        %v11087 = vpop.xlane.xlu0 %11086
        %11088 = vadd.xlane.f32.xlu0 %v11048
        %v11089 = vpop.xlane.xlu0 %11088
        %11090 = vadd.xlane.f32.xlu0 %v11049
        %v11091 = vpop.xlane.xlu0 %11090
        %11092 = vadd.xlane.f32.xlu0 %v11050
        %v11093 = vpop.xlane.xlu0 %11092
        %11094 = vadd.xlane.f32.xlu0 %v11051
        %v11095 = vpop.xlane.xlu0 %11094
        %11096 = vadd.xlane.f32.xlu0 %v11052
        %v11097 = vpop.xlane.xlu0 %11096
        %11098 = vadd.xlane.f32.xlu0 %v11053
        %v11099 = vpop.xlane.xlu0 %11098
        %11100 = vadd.xlane.f32.xlu0 %v11054
        %v11101 = vpop.xlane.xlu0 %11100
        %11102 = vadd.xlane.f32.xlu0 %v11055
        %v11103 = vpop.xlane.xlu0 %11102
        %11104 = vadd.xlane.f32.xlu0 %v11056
        %v11105 = vpop.xlane.xlu0 %11104
        %11106 = vadd.xlane.f32.xlu0 %v11057
        %v11107 = vpop.xlane.xlu0 %11106
        %11108 = vadd.xlane.f32.xlu0 %v11058
        %v11109 = vpop.xlane.xlu0 %11108
        %11110 = vadd.xlane.f32.xlu0 %v11059
        %v11111 = vpop.xlane.xlu0 %11110
        %11112 = vadd.xlane.f32.xlu0 %v11060
        %v11113 = vpop.xlane.xlu0 %11112
        %11114 = vadd.xlane.f32.xlu0 %v11061
        %v11115 = vpop.xlane.xlu0 %11114
        %11116 = vadd.xlane.f32.xlu0 %v11062
        %v11117 = vpop.xlane.xlu0 %11116
        %11118 = vadd.xlane.f32.xlu0 %v11063
        %v11119 = vpop.xlane.xlu0 %11118
        %11120 = vadd.xlane.f32.xlu0 %v11064
        %v11121 = vpop.xlane.xlu0 %11120
        %11122 = vadd.xlane.f32.xlu0 %v11065
        %v11123 = vpop.xlane.xlu0 %11122
        %11124 = vadd.xlane.f32.xlu0 %v11066
        %v11125 = vpop.xlane.xlu0 %11124
        %11126 = vadd.xlane.f32.xlu0 %v11067
        %v11127 = vpop.xlane.xlu0 %11126
        %11128 = vadd.xlane.f32.xlu0 %v11068
        %v11129 = vpop.xlane.xlu0 %11128
        %11130 = vadd.xlane.f32.xlu0 %v11069
        %v11131 = vpop.xlane.xlu0 %11130
        %11132 = vadd.xlane.f32.xlu0 %v11070
        %v11133 = vpop.xlane.xlu0 %11132
        %11134 = vadd.xlane.f32.xlu0 %v11071
        %v11135 = vpop.xlane.xlu0 %11134
        %v11136 = vmul.f32 %v11073, 0.25
        %v11137 = vmul.f32 %v11075, 0.25
        %v11138 = vmul.f32 %v11077, 0.25
        %v11139 = vmul.f32 %v11079, 0.25
        %v11140 = vmul.f32 %v11081, 0.25
        %v11141 = vmul.f32 %v11083, 0.25
        %v11142 = vmul.f32 %v11085, 0.25
        %v11143 = vmul.f32 %v11087, 0.25
        %v11144 = vmul.f32 %v11089, 0.25
        %v11145 = vmul.f32 %v11091, 0.25
        %v11146 = vmul.f32 %v11093, 0.25
        %v11147 = vmul.f32 %v11095, 0.25
        %v11148 = vmul.f32 %v11097, 0.25
        %v11149 = vmul.f32 %v11099, 0.25
        %v11150 = vmul.f32 %v11101, 0.25
        %v11151 = vmul.f32 %v11103, 0.25
        %v11152 = vmul.f32 %v11105, 0.25
        %v11153 = vmul.f32 %v11107, 0.25
        %v11154 = vmul.f32 %v11109, 0.25
        %v11155 = vmul.f32 %v11111, 0.25
        %v11156 = vmul.f32 %v11113, 0.25
        %v11157 = vmul.f32 %v11115, 0.25
        %v11158 = vmul.f32 %v11117, 0.25
        %v11159 = vmul.f32 %v11119, 0.25
        %v11160 = vmul.f32 %v11121, 0.25
        %v11161 = vmul.f32 %v11123, 0.25
        %v11162 = vmul.f32 %v11125, 0.25
        %v11163 = vmul.f32 %v11127, 0.25
        %v11164 = vmul.f32 %v11129, 0.25
        %v11165 = vmul.f32 %v11131, 0.25
        %v11166 = vmul.f32 %v11133, 0.25
        %v11167 = vmul.f32 %v11135, 0.25
        %v11168 = vsub.f32 %v11040, %v11136
        %v11169 = vsub.f32 %v11041, %v11137
        %v11170 = vsub.f32 %v11042, %v11138
        %v11171 = vsub.f32 %v11043, %v11139
        %v11172 = vsub.f32 %v11044, %v11140
        %v11173 = vsub.f32 %v11045, %v11141
        %v11174 = vsub.f32 %v11046, %v11142
        %v11175 = vsub.f32 %v11047, %v11143
        %v11176 = vsub.f32 %v11048, %v11144
        %v11177 = vsub.f32 %v11049, %v11145
        %v11178 = vsub.f32 %v11050, %v11146
        %v11179 = vsub.f32 %v11051, %v11147
        %v11180 = vsub.f32 %v11052, %v11148
        %v11181 = vsub.f32 %v11053, %v11149
        %v11182 = vsub.f32 %v11054, %v11150
        %v11183 = vsub.f32 %v11055, %v11151
        %v11184 = vsub.f32 %v11056, %v11152
        %v11185 = vsub.f32 %v11057, %v11153
        %v11186 = vsub.f32 %v11058, %v11154
        %v11187 = vsub.f32 %v11059, %v11155
        %v11188 = vsub.f32 %v11060, %v11156
        %v11189 = vsub.f32 %v11061, %v11157
        %v11190 = vsub.f32 %v11062, %v11158
        %v11191 = vsub.f32 %v11063, %v11159
        %v11192 = vsub.f32 %v11064, %v11160
        %v11193 = vsub.f32 %v11065, %v11161
        %v11194 = vsub.f32 %v11066, %v11162
        %v11195 = vsub.f32 %v11067, %v11163
        %v11196 = vsub.f32 %v11068, %v11164
        %v11197 = vsub.f32 %v11069, %v11165
        %v11198 = vsub.f32 %v11070, %v11166
        %v11199 = vsub.f32 %v11071, %v11167
        %v11200 = vlaneseq
        %v11201 = vand.u32 %v11200, 127
        %vm11202 = vcmp.lt.s32.totalorder %v11201, 4
        %v11203 = vsel %vm11202, 1, 0
        %vm11204 = vcmp.eq.s32.totalorder %v11203, 1
        %v11205 = vsel %vm11204, %v11168, 0.0
        %v11206 = vsel %vm11204, %v11169, 0.0
        %v11207 = vsel %vm11204, %v11170, 0.0
        %v11208 = vsel %vm11204, %v11171, 0.0
        %v11209 = vsel %vm11204, %v11172, 0.0
        %v11210 = vsel %vm11204, %v11173, 0.0
        %v11211 = vsel %vm11204, %v11174, 0.0
        %v11212 = vsel %vm11204, %v11175, 0.0
        %v11213 = vsel %vm11204, %v11176, 0.0
        %v11214 = vsel %vm11204, %v11177, 0.0
        %v11215 = vsel %vm11204, %v11178, 0.0
        %v11216 = vsel %vm11204, %v11179, 0.0
        %v11217 = vsel %vm11204, %v11180, 0.0
        %v11218 = vsel %vm11204, %v11181, 0.0
        %v11219 = vsel %vm11204, %v11182, 0.0
        %v11220 = vsel %vm11204, %v11183, 0.0
        %v11221 = vsel %vm11204, %v11184, 0.0
        %v11222 = vsel %vm11204, %v11185, 0.0
        %v11223 = vsel %vm11204, %v11186, 0.0
        %v11224 = vsel %vm11204, %v11187, 0.0
        %v11225 = vsel %vm11204, %v11188, 0.0
        %v11226 = vsel %vm11204, %v11189, 0.0
        %v11227 = vsel %vm11204, %v11190, 0.0
        %v11228 = vsel %vm11204, %v11191, 0.0
        %v11229 = vsel %vm11204, %v11192, 0.0
        %v11230 = vsel %vm11204, %v11193, 0.0
        %v11231 = vsel %vm11204, %v11194, 0.0
        %v11232 = vsel %vm11204, %v11195, 0.0
        %v11233 = vsel %vm11204, %v11196, 0.0
        %v11234 = vsel %vm11204, %v11197, 0.0
        %v11235 = vsel %vm11204, %v11198, 0.0
        %v11236 = vsel %vm11204, %v11199, 0.0
        %v11237 = vmul.f32 %v11205, %v11205
        %v11238 = vmul.f32 %v11206, %v11206
        %v11239 = vmul.f32 %v11207, %v11207
        %v11240 = vmul.f32 %v11208, %v11208
        %v11241 = vmul.f32 %v11209, %v11209
        %v11242 = vmul.f32 %v11210, %v11210
        %v11243 = vmul.f32 %v11211, %v11211
        %v11244 = vmul.f32 %v11212, %v11212
        %v11245 = vmul.f32 %v11213, %v11213
        %v11246 = vmul.f32 %v11214, %v11214
        %v11247 = vmul.f32 %v11215, %v11215
        %v11248 = vmul.f32 %v11216, %v11216
        %v11249 = vmul.f32 %v11217, %v11217
        %v11250 = vmul.f32 %v11218, %v11218
        %v11251 = vmul.f32 %v11219, %v11219
        %v11252 = vmul.f32 %v11220, %v11220
        %v11253 = vmul.f32 %v11221, %v11221
        %v11254 = vmul.f32 %v11222, %v11222
        %v11255 = vmul.f32 %v11223, %v11223
        %v11256 = vmul.f32 %v11224, %v11224
        %v11257 = vmul.f32 %v11225, %v11225
        %v11258 = vmul.f32 %v11226, %v11226
        %v11259 = vmul.f32 %v11227, %v11227
        %v11260 = vmul.f32 %v11228, %v11228
        %v11261 = vmul.f32 %v11229, %v11229
        %v11262 = vmul.f32 %v11230, %v11230
        %v11263 = vmul.f32 %v11231, %v11231
        %v11264 = vmul.f32 %v11232, %v11232
        %v11265 = vmul.f32 %v11233, %v11233
        %v11266 = vmul.f32 %v11234, %v11234
        %v11267 = vmul.f32 %v11235, %v11235
        %v11268 = vmul.f32 %v11236, %v11236
        %11269 = vadd.xlane.f32.xlu0 %v11237
        %v11270 = vpop.xlane.xlu0 %11269
        %11271 = vadd.xlane.f32.xlu0 %v11238
        %v11272 = vpop.xlane.xlu0 %11271
        %11273 = vadd.xlane.f32.xlu0 %v11239
        %v11274 = vpop.xlane.xlu0 %11273
        %11275 = vadd.xlane.f32.xlu0 %v11240
        %v11276 = vpop.xlane.xlu0 %11275
        %11277 = vadd.xlane.f32.xlu0 %v11241
        %v11278 = vpop.xlane.xlu0 %11277
        %11279 = vadd.xlane.f32.xlu0 %v11242
        %v11280 = vpop.xlane.xlu0 %11279
        %11281 = vadd.xlane.f32.xlu0 %v11243
        %v11282 = vpop.xlane.xlu0 %11281
        %11283 = vadd.xlane.f32.xlu0 %v11244
        %v11284 = vpop.xlane.xlu0 %11283
        %11285 = vadd.xlane.f32.xlu0 %v11245
        %v11286 = vpop.xlane.xlu0 %11285
        %11287 = vadd.xlane.f32.xlu0 %v11246
        %v11288 = vpop.xlane.xlu0 %11287
        %11289 = vadd.xlane.f32.xlu0 %v11247
        %v11290 = vpop.xlane.xlu0 %11289
        %11291 = vadd.xlane.f32.xlu0 %v11248
        %v11292 = vpop.xlane.xlu0 %11291
        %11293 = vadd.xlane.f32.xlu0 %v11249
        %v11294 = vpop.xlane.xlu0 %11293
        %11295 = vadd.xlane.f32.xlu0 %v11250
        %v11296 = vpop.xlane.xlu0 %11295
        %11297 = vadd.xlane.f32.xlu0 %v11251
        %v11298 = vpop.xlane.xlu0 %11297
        %11299 = vadd.xlane.f32.xlu0 %v11252
        %v11300 = vpop.xlane.xlu0 %11299
        %11301 = vadd.xlane.f32.xlu0 %v11253
        %v11302 = vpop.xlane.xlu0 %11301
        %11303 = vadd.xlane.f32.xlu0 %v11254
        %v11304 = vpop.xlane.xlu0 %11303
        %11305 = vadd.xlane.f32.xlu0 %v11255
        %v11306 = vpop.xlane.xlu0 %11305
        %11307 = vadd.xlane.f32.xlu0 %v11256
        %v11308 = vpop.xlane.xlu0 %11307
        %11309 = vadd.xlane.f32.xlu0 %v11257
        %v11310 = vpop.xlane.xlu0 %11309
        %11311 = vadd.xlane.f32.xlu0 %v11258
        %v11312 = vpop.xlane.xlu0 %11311
        %11313 = vadd.xlane.f32.xlu0 %v11259
        %v11314 = vpop.xlane.xlu0 %11313
        %11315 = vadd.xlane.f32.xlu0 %v11260
        %v11316 = vpop.xlane.xlu0 %11315
        %11317 = vadd.xlane.f32.xlu0 %v11261
        %v11318 = vpop.xlane.xlu0 %11317
        %11319 = vadd.xlane.f32.xlu0 %v11262
        %v11320 = vpop.xlane.xlu0 %11319
        %11321 = vadd.xlane.f32.xlu0 %v11263
        %v11322 = vpop.xlane.xlu0 %11321
        %11323 = vadd.xlane.f32.xlu0 %v11264
        %v11324 = vpop.xlane.xlu0 %11323
        %11325 = vadd.xlane.f32.xlu0 %v11265
        %v11326 = vpop.xlane.xlu0 %11325
        %11327 = vadd.xlane.f32.xlu0 %v11266
        %v11328 = vpop.xlane.xlu0 %11327
        %11329 = vadd.xlane.f32.xlu0 %v11267
        %v11330 = vpop.xlane.xlu0 %11329
        %11331 = vadd.xlane.f32.xlu0 %v11268
        %v11332 = vpop.xlane.xlu0 %11331
        %v11333 = vmul.f32 %v11270, 0.25
        %v11334 = vmul.f32 %v11272, 0.25
        %v11335 = vmul.f32 %v11274, 0.25
        %v11336 = vmul.f32 %v11276, 0.25
        %v11337 = vmul.f32 %v11278, 0.25
        %v11338 = vmul.f32 %v11280, 0.25
        %v11339 = vmul.f32 %v11282, 0.25
        %v11340 = vmul.f32 %v11284, 0.25
        %v11341 = vmul.f32 %v11286, 0.25
        %v11342 = vmul.f32 %v11288, 0.25
        %v11343 = vmul.f32 %v11290, 0.25
        %v11344 = vmul.f32 %v11292, 0.25
        %v11345 = vmul.f32 %v11294, 0.25
        %v11346 = vmul.f32 %v11296, 0.25
        %v11347 = vmul.f32 %v11298, 0.25
        %v11348 = vmul.f32 %v11300, 0.25
        %v11349 = vmul.f32 %v11302, 0.25
        %v11350 = vmul.f32 %v11304, 0.25
        %v11351 = vmul.f32 %v11306, 0.25
        %v11352 = vmul.f32 %v11308, 0.25
        %v11353 = vmul.f32 %v11310, 0.25
        %v11354 = vmul.f32 %v11312, 0.25
        %v11355 = vmul.f32 %v11314, 0.25
        %v11356 = vmul.f32 %v11316, 0.25
        %v11357 = vmul.f32 %v11318, 0.25
        %v11358 = vmul.f32 %v11320, 0.25
        %v11359 = vmul.f32 %v11322, 0.25
        %v11360 = vmul.f32 %v11324, 0.25
        %v11361 = vmul.f32 %v11326, 0.25
        %v11362 = vmul.f32 %v11328, 0.25
        %v11363 = vmul.f32 %v11330, 0.25
        %v11364 = vmul.f32 %v11332, 0.25
        %v11365 = vadd.f32 %v11333, 1e-05
        %v11366 = vadd.f32 %v11334, 1e-05
        %v11367 = vadd.f32 %v11335, 1e-05
        %v11368 = vadd.f32 %v11336, 1e-05
        %v11369 = vadd.f32 %v11337, 1e-05
        %v11370 = vadd.f32 %v11338, 1e-05
        %v11371 = vadd.f32 %v11339, 1e-05
        %v11372 = vadd.f32 %v11340, 1e-05
        %v11373 = vadd.f32 %v11341, 1e-05
        %v11374 = vadd.f32 %v11342, 1e-05
        %v11375 = vadd.f32 %v11343, 1e-05
        %v11376 = vadd.f32 %v11344, 1e-05
        %v11377 = vadd.f32 %v11345, 1e-05
        %v11378 = vadd.f32 %v11346, 1e-05
        %v11379 = vadd.f32 %v11347, 1e-05
        %v11380 = vadd.f32 %v11348, 1e-05
        %v11381 = vadd.f32 %v11349, 1e-05
        %v11382 = vadd.f32 %v11350, 1e-05
        %v11383 = vadd.f32 %v11351, 1e-05
        %v11384 = vadd.f32 %v11352, 1e-05
        %v11385 = vadd.f32 %v11353, 1e-05
        %v11386 = vadd.f32 %v11354, 1e-05
        %v11387 = vadd.f32 %v11355, 1e-05
        %v11388 = vadd.f32 %v11356, 1e-05
        %v11389 = vadd.f32 %v11357, 1e-05
        %v11390 = vadd.f32 %v11358, 1e-05
        %v11391 = vadd.f32 %v11359, 1e-05
        %v11392 = vadd.f32 %v11360, 1e-05
        %v11393 = vadd.f32 %v11361, 1e-05
        %v11394 = vadd.f32 %v11362, 1e-05
        %v11395 = vadd.f32 %v11363, 1e-05
        %v11396 = vadd.f32 %v11364, 1e-05
        %v11397 = vrsqrt.pop %v11365
        %v11398 = vmul.f32 %v11397, %v11365
        %v11399 = vmul.f32 %v11398, %v11397
        %v11400 = vmul.f32 0.5, %v11399
        %v11401 = vsub.f32 1.5, %v11400
        %v11402 = vmul.f32 %v11397, %v11401
        %vm11403 = vweird.f32 %v11365
        %vm11404 = vweird.f32 %v11397
        %vm11405 = vmor %vm11403, %vm11404
        %v11406 = vsel %vm11405, %v11397, %v11402
        %v11407 = vrsqrt.pop %v11366
        %v11408 = vmul.f32 %v11407, %v11366
        %v11409 = vmul.f32 %v11408, %v11407
        %v11410 = vmul.f32 0.5, %v11409
        %v11411 = vsub.f32 1.5, %v11410
        %v11412 = vmul.f32 %v11407, %v11411
        %vm11413 = vweird.f32 %v11366
        %vm11414 = vweird.f32 %v11407
        %vm11415 = vmor %vm11413, %vm11414
        %v11416 = vsel %vm11415, %v11407, %v11412
        %v11417 = vrsqrt.pop %v11367
        %v11418 = vmul.f32 %v11417, %v11367
        %v11419 = vmul.f32 %v11418, %v11417
        %v11420 = vmul.f32 0.5, %v11419
        %v11421 = vsub.f32 1.5, %v11420
        %v11422 = vmul.f32 %v11417, %v11421
        %vm11423 = vweird.f32 %v11367
        %vm11424 = vweird.f32 %v11417
        %vm11425 = vmor %vm11423, %vm11424
        %v11426 = vsel %vm11425, %v11417, %v11422
        %v11427 = vrsqrt.pop %v11368
        %v11428 = vmul.f32 %v11427, %v11368
        %v11429 = vmul.f32 %v11428, %v11427
        %v11430 = vmul.f32 0.5, %v11429
        %v11431 = vsub.f32 1.5, %v11430
        %v11432 = vmul.f32 %v11427, %v11431
        %vm11433 = vweird.f32 %v11368
        %vm11434 = vweird.f32 %v11427
        %vm11435 = vmor %vm11433, %vm11434
        %v11436 = vsel %vm11435, %v11427, %v11432
        %v11437 = vrsqrt.pop %v11369
        %v11438 = vmul.f32 %v11437, %v11369
        %v11439 = vmul.f32 %v11438, %v11437
        %v11440 = vmul.f32 0.5, %v11439
        %v11441 = vsub.f32 1.5, %v11440
        %v11442 = vmul.f32 %v11437, %v11441
        %vm11443 = vweird.f32 %v11369
        %vm11444 = vweird.f32 %v11437
        %vm11445 = vmor %vm11443, %vm11444
        %v11446 = vsel %vm11445, %v11437, %v11442
        %v11447 = vrsqrt.pop %v11370
        %v11448 = vmul.f32 %v11447, %v11370
        %v11449 = vmul.f32 %v11448, %v11447
        %v11450 = vmul.f32 0.5, %v11449
        %v11451 = vsub.f32 1.5, %v11450
        %v11452 = vmul.f32 %v11447, %v11451
        %vm11453 = vweird.f32 %v11370
        %vm11454 = vweird.f32 %v11447
        %vm11455 = vmor %vm11453, %vm11454
        %v11456 = vsel %vm11455, %v11447, %v11452
        %v11457 = vrsqrt.pop %v11371
        %v11458 = vmul.f32 %v11457, %v11371
        %v11459 = vmul.f32 %v11458, %v11457
        %v11460 = vmul.f32 0.5, %v11459
        %v11461 = vsub.f32 1.5, %v11460
        %v11462 = vmul.f32 %v11457, %v11461
        %vm11463 = vweird.f32 %v11371
        %vm11464 = vweird.f32 %v11457
        %vm11465 = vmor %vm11463, %vm11464
        %v11466 = vsel %vm11465, %v11457, %v11462
        %v11467 = vrsqrt.pop %v11372
        %v11468 = vmul.f32 %v11467, %v11372
        %v11469 = vmul.f32 %v11468, %v11467
        %v11470 = vmul.f32 0.5, %v11469
        %v11471 = vsub.f32 1.5, %v11470
        %v11472 = vmul.f32 %v11467, %v11471
        %vm11473 = vweird.f32 %v11372
        %vm11474 = vweird.f32 %v11467
        %vm11475 = vmor %vm11473, %vm11474
        %v11476 = vsel %vm11475, %v11467, %v11472
        %v11477 = vrsqrt.pop %v11373
        %v11478 = vmul.f32 %v11477, %v11373
        %v11479 = vmul.f32 %v11478, %v11477
        %v11480 = vmul.f32 0.5, %v11479
        %v11481 = vsub.f32 1.5, %v11480
        %v11482 = vmul.f32 %v11477, %v11481
        %vm11483 = vweird.f32 %v11373
        %vm11484 = vweird.f32 %v11477
        %vm11485 = vmor %vm11483, %vm11484
        %v11486 = vsel %vm11485, %v11477, %v11482
        %v11487 = vrsqrt.pop %v11374
        %v11488 = vmul.f32 %v11487, %v11374
        %v11489 = vmul.f32 %v11488, %v11487
        %v11490 = vmul.f32 0.5, %v11489
        %v11491 = vsub.f32 1.5, %v11490
        %v11492 = vmul.f32 %v11487, %v11491
        %vm11493 = vweird.f32 %v11374
        %vm11494 = vweird.f32 %v11487
        %vm11495 = vmor %vm11493, %vm11494
        %v11496 = vsel %vm11495, %v11487, %v11492
        %v11497 = vrsqrt.pop %v11375
        %v11498 = vmul.f32 %v11497, %v11375
        %v11499 = vmul.f32 %v11498, %v11497
        %v11500 = vmul.f32 0.5, %v11499
        %v11501 = vsub.f32 1.5, %v11500
        %v11502 = vmul.f32 %v11497, %v11501
        %vm11503 = vweird.f32 %v11375
        %vm11504 = vweird.f32 %v11497
        %vm11505 = vmor %vm11503, %vm11504
        %v11506 = vsel %vm11505, %v11497, %v11502
        %v11507 = vrsqrt.pop %v11376
        %v11508 = vmul.f32 %v11507, %v11376
        %v11509 = vmul.f32 %v11508, %v11507
        %v11510 = vmul.f32 0.5, %v11509
        %v11511 = vsub.f32 1.5, %v11510
        %v11512 = vmul.f32 %v11507, %v11511
        %vm11513 = vweird.f32 %v11376
        %vm11514 = vweird.f32 %v11507
        %vm11515 = vmor %vm11513, %vm11514
        %v11516 = vsel %vm11515, %v11507, %v11512
        %v11517 = vrsqrt.pop %v11377
        %v11518 = vmul.f32 %v11517, %v11377
        %v11519 = vmul.f32 %v11518, %v11517
        %v11520 = vmul.f32 0.5, %v11519
        %v11521 = vsub.f32 1.5, %v11520
        %v11522 = vmul.f32 %v11517, %v11521
        %vm11523 = vweird.f32 %v11377
        %vm11524 = vweird.f32 %v11517
        %vm11525 = vmor %vm11523, %vm11524
        %v11526 = vsel %vm11525, %v11517, %v11522
        %v11527 = vrsqrt.pop %v11378
        %v11528 = vmul.f32 %v11527, %v11378
        %v11529 = vmul.f32 %v11528, %v11527
        %v11530 = vmul.f32 0.5, %v11529
        %v11531 = vsub.f32 1.5, %v11530
        %v11532 = vmul.f32 %v11527, %v11531
        %vm11533 = vweird.f32 %v11378
        %vm11534 = vweird.f32 %v11527
        %vm11535 = vmor %vm11533, %vm11534
        %v11536 = vsel %vm11535, %v11527, %v11532
        %v11537 = vrsqrt.pop %v11379
        %v11538 = vmul.f32 %v11537, %v11379
        %v11539 = vmul.f32 %v11538, %v11537
        %v11540 = vmul.f32 0.5, %v11539
        %v11541 = vsub.f32 1.5, %v11540
        %v11542 = vmul.f32 %v11537, %v11541
        %vm11543 = vweird.f32 %v11379
        %vm11544 = vweird.f32 %v11537
        %vm11545 = vmor %vm11543, %vm11544
        %v11546 = vsel %vm11545, %v11537, %v11542
        %v11547 = vrsqrt.pop %v11380
        %v11548 = vmul.f32 %v11547, %v11380
        %v11549 = vmul.f32 %v11548, %v11547
        %v11550 = vmul.f32 0.5, %v11549
        %v11551 = vsub.f32 1.5, %v11550
        %v11552 = vmul.f32 %v11547, %v11551
        %vm11553 = vweird.f32 %v11380
        %vm11554 = vweird.f32 %v11547
        %vm11555 = vmor %vm11553, %vm11554
        %v11556 = vsel %vm11555, %v11547, %v11552
        %v11557 = vrsqrt.pop %v11381
        %v11558 = vmul.f32 %v11557, %v11381
        %v11559 = vmul.f32 %v11558, %v11557
        %v11560 = vmul.f32 0.5, %v11559
        %v11561 = vsub.f32 1.5, %v11560
        %v11562 = vmul.f32 %v11557, %v11561
        %vm11563 = vweird.f32 %v11381
        %vm11564 = vweird.f32 %v11557
        %vm11565 = vmor %vm11563, %vm11564
        %v11566 = vsel %vm11565, %v11557, %v11562
        %v11567 = vrsqrt.pop %v11382
        %v11568 = vmul.f32 %v11567, %v11382
        %v11569 = vmul.f32 %v11568, %v11567
        %v11570 = vmul.f32 0.5, %v11569
        %v11571 = vsub.f32 1.5, %v11570
        %v11572 = vmul.f32 %v11567, %v11571
        %vm11573 = vweird.f32 %v11382
        %vm11574 = vweird.f32 %v11567
        %vm11575 = vmor %vm11573, %vm11574
        %v11576 = vsel %vm11575, %v11567, %v11572
        %v11577 = vrsqrt.pop %v11383
        %v11578 = vmul.f32 %v11577, %v11383
        %v11579 = vmul.f32 %v11578, %v11577
        %v11580 = vmul.f32 0.5, %v11579
        %v11581 = vsub.f32 1.5, %v11580
        %v11582 = vmul.f32 %v11577, %v11581
        %vm11583 = vweird.f32 %v11383
        %vm11584 = vweird.f32 %v11577
        %vm11585 = vmor %vm11583, %vm11584
        %v11586 = vsel %vm11585, %v11577, %v11582
        %v11587 = vrsqrt.pop %v11384
        %v11588 = vmul.f32 %v11587, %v11384
        %v11589 = vmul.f32 %v11588, %v11587
        %v11590 = vmul.f32 0.5, %v11589
        %v11591 = vsub.f32 1.5, %v11590
        %v11592 = vmul.f32 %v11587, %v11591
        %vm11593 = vweird.f32 %v11384
        %vm11594 = vweird.f32 %v11587
        %vm11595 = vmor %vm11593, %vm11594
        %v11596 = vsel %vm11595, %v11587, %v11592
        %v11597 = vrsqrt.pop %v11385
        %v11598 = vmul.f32 %v11597, %v11385
        %v11599 = vmul.f32 %v11598, %v11597
        %v11600 = vmul.f32 0.5, %v11599
        %v11601 = vsub.f32 1.5, %v11600
        %v11602 = vmul.f32 %v11597, %v11601
        %vm11603 = vweird.f32 %v11385
        %vm11604 = vweird.f32 %v11597
        %vm11605 = vmor %vm11603, %vm11604
        %v11606 = vsel %vm11605, %v11597, %v11602
        %v11607 = vrsqrt.pop %v11386
        %v11608 = vmul.f32 %v11607, %v11386
        %v11609 = vmul.f32 %v11608, %v11607
        %v11610 = vmul.f32 0.5, %v11609
        %v11611 = vsub.f32 1.5, %v11610
        %v11612 = vmul.f32 %v11607, %v11611
        %vm11613 = vweird.f32 %v11386
        %vm11614 = vweird.f32 %v11607
        %vm11615 = vmor %vm11613, %vm11614
        %v11616 = vsel %vm11615, %v11607, %v11612
        %v11617 = vrsqrt.pop %v11387
        %v11618 = vmul.f32 %v11617, %v11387
        %v11619 = vmul.f32 %v11618, %v11617
        %v11620 = vmul.f32 0.5, %v11619
        %v11621 = vsub.f32 1.5, %v11620
        %v11622 = vmul.f32 %v11617, %v11621
        %vm11623 = vweird.f32 %v11387
        %vm11624 = vweird.f32 %v11617
        %vm11625 = vmor %vm11623, %vm11624
        %v11626 = vsel %vm11625, %v11617, %v11622
        %v11627 = vrsqrt.pop %v11388
        %v11628 = vmul.f32 %v11627, %v11388
        %v11629 = vmul.f32 %v11628, %v11627
        %v11630 = vmul.f32 0.5, %v11629
        %v11631 = vsub.f32 1.5, %v11630
        %v11632 = vmul.f32 %v11627, %v11631
        %vm11633 = vweird.f32 %v11388
        %vm11634 = vweird.f32 %v11627
        %vm11635 = vmor %vm11633, %vm11634
        %v11636 = vsel %vm11635, %v11627, %v11632
        %v11637 = vrsqrt.pop %v11389
        %v11638 = vmul.f32 %v11637, %v11389
        %v11639 = vmul.f32 %v11638, %v11637
        %v11640 = vmul.f32 0.5, %v11639
        %v11641 = vsub.f32 1.5, %v11640
        %v11642 = vmul.f32 %v11637, %v11641
        %vm11643 = vweird.f32 %v11389
        %vm11644 = vweird.f32 %v11637
        %vm11645 = vmor %vm11643, %vm11644
        %v11646 = vsel %vm11645, %v11637, %v11642
        %v11647 = vrsqrt.pop %v11390
        %v11648 = vmul.f32 %v11647, %v11390
        %v11649 = vmul.f32 %v11648, %v11647
        %v11650 = vmul.f32 0.5, %v11649
        %v11651 = vsub.f32 1.5, %v11650
        %v11652 = vmul.f32 %v11647, %v11651
        %vm11653 = vweird.f32 %v11390
        %vm11654 = vweird.f32 %v11647
        %vm11655 = vmor %vm11653, %vm11654
        %v11656 = vsel %vm11655, %v11647, %v11652
        %v11657 = vrsqrt.pop %v11391
        %v11658 = vmul.f32 %v11657, %v11391
        %v11659 = vmul.f32 %v11658, %v11657
        %v11660 = vmul.f32 0.5, %v11659
        %v11661 = vsub.f32 1.5, %v11660
        %v11662 = vmul.f32 %v11657, %v11661
        %vm11663 = vweird.f32 %v11391
        %vm11664 = vweird.f32 %v11657
        %vm11665 = vmor %vm11663, %vm11664
        %v11666 = vsel %vm11665, %v11657, %v11662
        %v11667 = vrsqrt.pop %v11392
        %v11668 = vmul.f32 %v11667, %v11392
        %v11669 = vmul.f32 %v11668, %v11667
        %v11670 = vmul.f32 0.5, %v11669
        %v11671 = vsub.f32 1.5, %v11670
        %v11672 = vmul.f32 %v11667, %v11671
        %vm11673 = vweird.f32 %v11392
        %vm11674 = vweird.f32 %v11667
        %vm11675 = vmor %vm11673, %vm11674
        %v11676 = vsel %vm11675, %v11667, %v11672
        %v11677 = vrsqrt.pop %v11393
        %v11678 = vmul.f32 %v11677, %v11393
        %v11679 = vmul.f32 %v11678, %v11677
        %v11680 = vmul.f32 0.5, %v11679
        %v11681 = vsub.f32 1.5, %v11680
        %v11682 = vmul.f32 %v11677, %v11681
        %vm11683 = vweird.f32 %v11393
        %vm11684 = vweird.f32 %v11677
        %vm11685 = vmor %vm11683, %vm11684
        %v11686 = vsel %vm11685, %v11677, %v11682
        %v11687 = vrsqrt.pop %v11394
        %v11688 = vmul.f32 %v11687, %v11394
        %v11689 = vmul.f32 %v11688, %v11687
        %v11690 = vmul.f32 0.5, %v11689
        %v11691 = vsub.f32 1.5, %v11690
        %v11692 = vmul.f32 %v11687, %v11691
        %vm11693 = vweird.f32 %v11394
        %vm11694 = vweird.f32 %v11687
        %vm11695 = vmor %vm11693, %vm11694
        %v11696 = vsel %vm11695, %v11687, %v11692
        %v11697 = vrsqrt.pop %v11395
        %v11698 = vmul.f32 %v11697, %v11395
        %v11699 = vmul.f32 %v11698, %v11697
        %v11700 = vmul.f32 0.5, %v11699
        %v11701 = vsub.f32 1.5, %v11700
        %v11702 = vmul.f32 %v11697, %v11701
        %vm11703 = vweird.f32 %v11395
        %vm11704 = vweird.f32 %v11697
        %vm11705 = vmor %vm11703, %vm11704
        %v11706 = vsel %vm11705, %v11697, %v11702
        %v11707 = vrsqrt.pop %v11396
        %v11708 = vmul.f32 %v11707, %v11396
        %v11709 = vmul.f32 %v11708, %v11707
        %v11710 = vmul.f32 0.5, %v11709
        %v11711 = vsub.f32 1.5, %v11710
        %v11712 = vmul.f32 %v11707, %v11711
        %vm11713 = vweird.f32 %v11396
        %vm11714 = vweird.f32 %v11707
        %vm11715 = vmor %vm11713, %vm11714
        %v11716 = vsel %vm11715, %v11707, %v11712
        %v11717 = vmul.f32 %v11168, %v11406
        %v11718 = vmul.f32 %v11169, %v11416
        %v11719 = vmul.f32 %v11170, %v11426
        %v11720 = vmul.f32 %v11171, %v11436
        %v11721 = vmul.f32 %v11172, %v11446
        %v11722 = vmul.f32 %v11173, %v11456
        %v11723 = vmul.f32 %v11174, %v11466
        %v11724 = vmul.f32 %v11175, %v11476
        %v11725 = vmul.f32 %v11176, %v11486
        %v11726 = vmul.f32 %v11177, %v11496
        %v11727 = vmul.f32 %v11178, %v11506
        %v11728 = vmul.f32 %v11179, %v11516
        %v11729 = vmul.f32 %v11180, %v11526
        %v11730 = vmul.f32 %v11181, %v11536
        %v11731 = vmul.f32 %v11182, %v11546
        %v11732 = vmul.f32 %v11183, %v11556
        %v11733 = vmul.f32 %v11184, %v11566
        %v11734 = vmul.f32 %v11185, %v11576
        %v11735 = vmul.f32 %v11186, %v11586
        %v11736 = vmul.f32 %v11187, %v11596
        %v11737 = vmul.f32 %v11188, %v11606
        %v11738 = vmul.f32 %v11189, %v11616
        %v11739 = vmul.f32 %v11190, %v11626
        %v11740 = vmul.f32 %v11191, %v11636
        %v11741 = vmul.f32 %v11192, %v11646
        %v11742 = vmul.f32 %v11193, %v11656
        %v11743 = vmul.f32 %v11194, %v11666
        %v11744 = vmul.f32 %v11195, %v11676
        %v11745 = vmul.f32 %v11196, %v11686
        %v11746 = vmul.f32 %v11197, %v11696
        %v11747 = vmul.f32 %v11198, %v11706
        %v11748 = vmul.f32 %v11199, %v11716
        %v11749 = vld [vmem:[%s3] sm:$0x1]
        %v11751 = vperm.slane %v11749, 0
        %v11753 = vmul.f32 %v11717, %v11751
        %v11754 = vmul.f32 %v11718, %v11751
        %v11755 = vmul.f32 %v11719, %v11751
        %v11756 = vmul.f32 %v11720, %v11751
        %v11757 = vmul.f32 %v11721, %v11751
        %v11758 = vmul.f32 %v11722, %v11751
        %v11759 = vmul.f32 %v11723, %v11751
        %v11760 = vmul.f32 %v11724, %v11751
        %v11761 = vmul.f32 %v11725, %v11751
        %v11762 = vmul.f32 %v11726, %v11751
        %v11763 = vmul.f32 %v11727, %v11751
        %v11764 = vmul.f32 %v11728, %v11751
        %v11765 = vmul.f32 %v11729, %v11751
        %v11766 = vmul.f32 %v11730, %v11751
        %v11767 = vmul.f32 %v11731, %v11751
        %v11768 = vmul.f32 %v11732, %v11751
        %v11769 = vmul.f32 %v11733, %v11751
        %v11770 = vmul.f32 %v11734, %v11751
        %v11771 = vmul.f32 %v11735, %v11751
        %v11772 = vmul.f32 %v11736, %v11751
        %v11773 = vmul.f32 %v11737, %v11751
        %v11774 = vmul.f32 %v11738, %v11751
        %v11775 = vmul.f32 %v11739, %v11751
        %v11776 = vmul.f32 %v11740, %v11751
        %v11777 = vmul.f32 %v11741, %v11751
        %v11778 = vmul.f32 %v11742, %v11751
        %v11779 = vmul.f32 %v11743, %v11751
        %v11780 = vmul.f32 %v11744, %v11751
        %v11781 = vmul.f32 %v11745, %v11751
        %v11782 = vmul.f32 %v11746, %v11751
        %v11783 = vmul.f32 %v11747, %v11751
        %v11784 = vmul.f32 %v11748, %v11751
        %v11785 = vld [vmem:[%s4] sm:$0x1]
        %v11787 = vperm.slane %v11785, 0
        %v11789 = vadd.f32 %v11753, %v11787
        %v11790 = vadd.f32 %v11754, %v11787
        %v11791 = vadd.f32 %v11755, %v11787
        %v11792 = vadd.f32 %v11756, %v11787
        %v11793 = vadd.f32 %v11757, %v11787
        %v11794 = vadd.f32 %v11758, %v11787
        %v11795 = vadd.f32 %v11759, %v11787
        %v11796 = vadd.f32 %v11760, %v11787
        %v11797 = vadd.f32 %v11761, %v11787
        %v11798 = vadd.f32 %v11762, %v11787
        %v11799 = vadd.f32 %v11763, %v11787
        %v11800 = vadd.f32 %v11764, %v11787
        %v11801 = vadd.f32 %v11765, %v11787
        %v11802 = vadd.f32 %v11766, %v11787
        %v11803 = vadd.f32 %v11767, %v11787
        %v11804 = vadd.f32 %v11768, %v11787
        %v11805 = vadd.f32 %v11769, %v11787
        %v11806 = vadd.f32 %v11770, %v11787
        %v11807 = vadd.f32 %v11771, %v11787
        %v11808 = vadd.f32 %v11772, %v11787
        %v11809 = vadd.f32 %v11773, %v11787
        %v11810 = vadd.f32 %v11774, %v11787
        %v11811 = vadd.f32 %v11775, %v11787
        %v11812 = vadd.f32 %v11776, %v11787
        %v11813 = vadd.f32 %v11777, %v11787
        %v11814 = vadd.f32 %v11778, %v11787
        %v11815 = vadd.f32 %v11779, %v11787
        %v11816 = vadd.f32 %v11780, %v11787
        %v11817 = vadd.f32 %v11781, %v11787
        %v11818 = vadd.f32 %v11782, %v11787
        %v11819 = vadd.f32 %v11783, %v11787
        %v11820 = vadd.f32 %v11784, %v11787
        %v11821 = vld [vmem:[#allocation7] sm:$0xf]
        %v11822 = vld [vmem:[#allocation7 + $0x4] sm:$0xf]
        %v11823 = vld [vmem:[#allocation7 + $0x8] sm:$0xf]
        %v11824 = vld [vmem:[#allocation7 + $0xc] sm:$0xf]
        %v11825 = vld [vmem:[#allocation7 + $0x10] sm:$0xf]
        %v11826 = vld [vmem:[#allocation7 + $0x14] sm:$0xf]
        %v11827 = vld [vmem:[#allocation7 + $0x18] sm:$0xf]
        %v11828 = vld [vmem:[#allocation7 + $0x1c] sm:$0xf]
        %v11829 = vld [vmem:[#allocation7 + $0x20] sm:$0xf]
        %v11830 = vld [vmem:[#allocation7 + $0x24] sm:$0xf]
        %v11831 = vld [vmem:[#allocation7 + $0x28] sm:$0xf]
        %v11832 = vld [vmem:[#allocation7 + $0x2c] sm:$0xf]
        %v11833 = vld [vmem:[#allocation7 + $0x30] sm:$0xf]
        %v11834 = vld [vmem:[#allocation7 + $0x34] sm:$0xf]
        %v11835 = vld [vmem:[#allocation7 + $0x38] sm:$0xf]
        %v11836 = vld [vmem:[#allocation7 + $0x3c] sm:$0xf]
        %v11837 = vld [vmem:[#allocation9] sm:$0xf]
        %v11838 = vld [vmem:[#allocation9 + $0x4] sm:$0xf]
        %v11839 = vld [vmem:[#allocation9 + $0x8] sm:$0xf]
        %v11840 = vld [vmem:[#allocation9 + $0xc] sm:$0xf]
        %v11841 = vld [vmem:[#allocation9 + $0x10] sm:$0xf]
        %v11842 = vld [vmem:[#allocation9 + $0x14] sm:$0xf]
        %v11843 = vld [vmem:[#allocation9 + $0x18] sm:$0xf]
        %v11844 = vld [vmem:[#allocation9 + $0x1c] sm:$0xf]
        %v11845 = vld [vmem:[#allocation9 + $0x20] sm:$0xf]
        %v11846 = vld [vmem:[#allocation9 + $0x24] sm:$0xf]
        %v11847 = vld [vmem:[#allocation9 + $0x28] sm:$0xf]
        %v11848 = vld [vmem:[#allocation9 + $0x2c] sm:$0xf]
        %v11849 = vld [vmem:[#allocation9 + $0x30] sm:$0xf]
        %v11850 = vld [vmem:[#allocation9 + $0x34] sm:$0xf]
        %v11851 = vld [vmem:[#allocation9 + $0x38] sm:$0xf]
        %v11852 = vld [vmem:[#allocation9 + $0x3c] sm:$0xf]
        %v11853 = vld [vmem:[%s6] sm:$0x1]
        %v11854 = vld [vmem:[%s8] sm:$0x1]
        %v11855 = vpack.c.bf16 %v11790, %v11789
        %v11856 = vpack.c.bf16 %v11792, %v11791
        %v11857 = vpack.c.bf16 %v11794, %v11793
        %v11858 = vpack.c.bf16 %v11796, %v11795
        %v11859 = vpack.c.bf16 %v11798, %v11797
        %v11860 = vpack.c.bf16 %v11800, %v11799
        %v11861 = vpack.c.bf16 %v11802, %v11801
        %v11862 = vpack.c.bf16 %v11804, %v11803
        %v11863 = vpack.c.bf16 %v11806, %v11805
        %v11864 = vpack.c.bf16 %v11808, %v11807
        %v11865 = vpack.c.bf16 %v11810, %v11809
        %v11866 = vpack.c.bf16 %v11812, %v11811
        %v11867 = vpack.c.bf16 %v11814, %v11813
        %v11868 = vpack.c.bf16 %v11816, %v11815
        %v11869 = vpack.c.bf16 %v11818, %v11817
        %v11870 = vpack.c.bf16 %v11820, %v11819
        %v11872 = vperm.slane %v11853, 0
        %v11890 = vunpack.c.l.b16 %v11821
        %v11891 = vunpack.c.l.b16 %v11822
        %v11892 = vunpack.c.l.b16 %v11823
        %v11893 = vunpack.c.l.b16 %v11824
        %v11894 = vunpack.c.l.b16 %v11825
        %v11895 = vunpack.c.l.b16 %v11826
        %v11896 = vunpack.c.l.b16 %v11827
        %v11897 = vunpack.c.l.b16 %v11828
        %v11898 = vunpack.c.l.b16 %v11829
        %v11899 = vunpack.c.l.b16 %v11830
        %v11900 = vunpack.c.l.b16 %v11831
        %v11901 = vunpack.c.l.b16 %v11832
        %v11902 = vunpack.c.l.b16 %v11833
        %v11903 = vunpack.c.l.b16 %v11834
        %v11904 = vunpack.c.l.b16 %v11835
        %v11905 = vunpack.c.l.b16 %v11836
        %v11906 = vpack.c.b16 %v11891, %v11890
        %v11907 = vpack.c.b16 %v11893, %v11892
        %v11908 = vpack.c.b16 %v11895, %v11894
        %v11909 = vpack.c.b16 %v11897, %v11896
        %v11910 = vpack.c.b16 %v11899, %v11898
        %v11911 = vpack.c.b16 %v11901, %v11900
        %v11912 = vpack.c.b16 %v11903, %v11902
        %v11913 = vpack.c.b16 %v11905, %v11904
        %11922 = vmatpush.bf16.msra.mxu0 %v11913
        %11923 = vmatpush.bf16.msra.mxu0 %v11912
        %11924 = vmatpush.bf16.msra.mxu0 %v11911
        %11925 = vmatpush.bf16.msra.mxu0 %v11910
        %11926 = vmatpush.bf16.msra.mxu0 %v11909
        %11927 = vmatpush.bf16.msra.mxu0 %v11908
        %11928 = vmatpush.bf16.msra.mxu0 %v11907
        %11929 = vmatpush.bf16.msra.mxu0 %v11906
        %11930 = vmatmul.bf16.gmra.mxu0 %v11855
        %v11931 = vpop.f32.mrf.mxu0
        %v11932 = vadd.f32 %v11872, %v11931
        %v11933 = vpop.f32.mrf.mxu0
        %v11934 = vadd.f32 %v11872, %v11933
        %11935 = vmatmul.bf16.gmra.mxu0 %v11856
        %v11936 = vpop.f32.mrf.mxu0
        %v11937 = vadd.f32 %v11872, %v11936
        %v11938 = vpop.f32.mrf.mxu0
        %v11939 = vadd.f32 %v11872, %v11938
        %11940 = vmatmul.bf16.gmra.mxu0 %v11857
        %v11941 = vpop.f32.mrf.mxu0
        %v11942 = vadd.f32 %v11872, %v11941
        %v11943 = vpop.f32.mrf.mxu0
        %v11944 = vadd.f32 %v11872, %v11943
        %11945 = vmatmul.bf16.gmra.mxu0 %v11858
        %v11946 = vpop.f32.mrf.mxu0
        %v11947 = vadd.f32 %v11872, %v11946
        %v11948 = vpop.f32.mrf.mxu0
        %v11949 = vadd.f32 %v11872, %v11948
        %11950 = vmatmul.bf16.gmra.mxu0 %v11859
        %v11951 = vpop.f32.mrf.mxu0
        %v11952 = vadd.f32 %v11872, %v11951
        %v11953 = vpop.f32.mrf.mxu0
        %v11954 = vadd.f32 %v11872, %v11953
        %11955 = vmatmul.bf16.gmra.mxu0 %v11860
        %v11956 = vpop.f32.mrf.mxu0
        %v11957 = vadd.f32 %v11872, %v11956
        %v11958 = vpop.f32.mrf.mxu0
        %v11959 = vadd.f32 %v11872, %v11958
        %11960 = vmatmul.bf16.gmra.mxu0 %v11861
        %v11961 = vpop.f32.mrf.mxu0
        %v11962 = vadd.f32 %v11872, %v11961
        %v11963 = vpop.f32.mrf.mxu0
        %v11964 = vadd.f32 %v11872, %v11963
        %11965 = vmatmul.bf16.gmra.mxu0 %v11862
        %v11966 = vpop.f32.mrf.mxu0
        %v11967 = vadd.f32 %v11872, %v11966
        %v11968 = vpop.f32.mrf.mxu0
        %v11969 = vadd.f32 %v11872, %v11968
        %11970 = vmatmul.bf16.gmra.mxu0 %v11863
        %v11971 = vpop.f32.mrf.mxu0
        %v11972 = vadd.f32 %v11872, %v11971
        %v11973 = vpop.f32.mrf.mxu0
        %v11974 = vadd.f32 %v11872, %v11973
        %11975 = vmatmul.bf16.gmra.mxu0 %v11864
        %v11976 = vpop.f32.mrf.mxu0
        %v11977 = vadd.f32 %v11872, %v11976
        %v11978 = vpop.f32.mrf.mxu0
        %v11979 = vadd.f32 %v11872, %v11978
        %11980 = vmatmul.bf16.gmra.mxu0 %v11865
        %v11981 = vpop.f32.mrf.mxu0
        %v11982 = vadd.f32 %v11872, %v11981
        %v11983 = vpop.f32.mrf.mxu0
        %v11984 = vadd.f32 %v11872, %v11983
        %11985 = vmatmul.bf16.gmra.mxu0 %v11866
        %v11986 = vpop.f32.mrf.mxu0
        %v11987 = vadd.f32 %v11872, %v11986
        %v11988 = vpop.f32.mrf.mxu0
        %v11989 = vadd.f32 %v11872, %v11988
        %11990 = vmatmul.bf16.gmra.mxu0 %v11867
        %v11991 = vpop.f32.mrf.mxu0
        %v11992 = vadd.f32 %v11872, %v11991
        %v11993 = vpop.f32.mrf.mxu0
        %v11994 = vadd.f32 %v11872, %v11993
        %11995 = vmatmul.bf16.gmra.mxu0 %v11868
        %v11996 = vpop.f32.mrf.mxu0
        %v11997 = vadd.f32 %v11872, %v11996
        %v11998 = vpop.f32.mrf.mxu0
        %v11999 = vadd.f32 %v11872, %v11998
        %12000 = vmatmul.bf16.gmra.mxu0 %v11869
        %v12001 = vpop.f32.mrf.mxu0
        %v12002 = vadd.f32 %v11872, %v12001
        %v12003 = vpop.f32.mrf.mxu0
        %v12004 = vadd.f32 %v11872, %v12003
        %12005 = vmatmul.bf16.gmra.mxu0 %v11870
        %v12006 = vpop.f32.mrf.mxu0
        %v12007 = vadd.f32 %v11872, %v12006
        %v12008 = vpop.f32.mrf.mxu0
        %v12009 = vadd.f32 %v11872, %v12008
        %12010 = vdwg.mxu0
        %v12011 = vmul.f32 %v11932, 0.5
        %v12012 = vmul.f32 %v11934, 0.5
        %v12013 = vmul.f32 %v11937, 0.5
        %v12014 = vmul.f32 %v11939, 0.5
        %v12015 = vmul.f32 %v11942, 0.5
        %v12016 = vmul.f32 %v11944, 0.5
        %v12017 = vmul.f32 %v11947, 0.5
        %v12018 = vmul.f32 %v11949, 0.5
        %v12019 = vmul.f32 %v11952, 0.5
        %v12020 = vmul.f32 %v11954, 0.5
        %v12021 = vmul.f32 %v11957, 0.5
        %v12022 = vmul.f32 %v11959, 0.5
        %v12023 = vmul.f32 %v11962, 0.5
        %v12024 = vmul.f32 %v11964, 0.5
        %v12025 = vmul.f32 %v11967, 0.5
        %v12026 = vmul.f32 %v11969, 0.5
        %v12027 = vmul.f32 %v11972, 0.5
        %v12028 = vmul.f32 %v11974, 0.5
        %v12029 = vmul.f32 %v11977, 0.5
        %v12030 = vmul.f32 %v11979, 0.5
        %v12031 = vmul.f32 %v11982, 0.5
        %v12032 = vmul.f32 %v11984, 0.5
        %v12033 = vmul.f32 %v11987, 0.5
        %v12034 = vmul.f32 %v11989, 0.5
        %v12035 = vmul.f32 %v11992, 0.5
        %v12036 = vmul.f32 %v11994, 0.5
        %v12037 = vmul.f32 %v11997, 0.5
        %v12038 = vmul.f32 %v11999, 0.5
        %v12039 = vmul.f32 %v12002, 0.5
        %v12040 = vmul.f32 %v12004, 0.5
        %v12041 = vmul.f32 %v12007, 0.5
        %v12042 = vmul.f32 %v12009, 0.5
        %v12043 = vmul.f32 %v11932, 0.70710677
        %v12044 = vmul.f32 %v11934, 0.70710677
        %v12045 = vmul.f32 %v11937, 0.70710677
        %v12046 = vmul.f32 %v11939, 0.70710677
        %v12047 = vmul.f32 %v11942, 0.70710677
        %v12048 = vmul.f32 %v11944, 0.70710677
        %v12049 = vmul.f32 %v11947, 0.70710677
        %v12050 = vmul.f32 %v11949, 0.70710677
        %v12051 = vmul.f32 %v11952, 0.70710677
        %v12052 = vmul.f32 %v11954, 0.70710677
        %v12053 = vmul.f32 %v11957, 0.70710677
        %v12054 = vmul.f32 %v11959, 0.70710677
        %v12055 = vmul.f32 %v11962, 0.70710677
        %v12056 = vmul.f32 %v11964, 0.70710677
        %v12057 = vmul.f32 %v11967, 0.70710677
        %v12058 = vmul.f32 %v11969, 0.70710677
        %v12059 = vmul.f32 %v11972, 0.70710677
        %v12060 = vmul.f32 %v11974, 0.70710677
        %v12061 = vmul.f32 %v11977, 0.70710677
        %v12062 = vmul.f32 %v11979, 0.70710677
        %v12063 = vmul.f32 %v11982, 0.70710677
        %v12064 = vmul.f32 %v11984, 0.70710677
        %v12065 = vmul.f32 %v11987, 0.70710677
        %v12066 = vmul.f32 %v11989, 0.70710677
        %v12067 = vmul.f32 %v11992, 0.70710677
        %v12068 = vmul.f32 %v11994, 0.70710677
        %v12069 = vmul.f32 %v11997, 0.70710677
        %v12070 = vmul.f32 %v11999, 0.70710677
        %v12071 = vmul.f32 %v12002, 0.70710677
        %v12072 = vmul.f32 %v12004, 0.70710677
        %v12073 = vmul.f32 %v12007, 0.70710677
        %v12074 = vmul.f32 %v12009, 0.70710677
        %v12075 = vmax.f32 %v12043, -3.832507
        %v12076 = vmax.f32 %v12044, -3.832507
        %v12077 = vmax.f32 %v12045, -3.832507
        %v12078 = vmax.f32 %v12046, -3.832507
        %v12079 = vmax.f32 %v12047, -3.832507
        %v12080 = vmax.f32 %v12048, -3.832507
        %v12081 = vmax.f32 %v12049, -3.832507
        %v12082 = vmax.f32 %v12050, -3.832507
        %v12083 = vmax.f32 %v12051, -3.832507
        %v12084 = vmax.f32 %v12052, -3.832507
        %v12085 = vmax.f32 %v12053, -3.832507
        %v12086 = vmax.f32 %v12054, -3.832507
        %v12087 = vmax.f32 %v12055, -3.832507
        %v12088 = vmax.f32 %v12056, -3.832507
        %v12089 = vmax.f32 %v12057, -3.832507
        %v12090 = vmax.f32 %v12058, -3.832507
        %v12091 = vmax.f32 %v12059, -3.832507
        %v12092 = vmax.f32 %v12060, -3.832507
        %v12093 = vmax.f32 %v12061, -3.832507
        %v12094 = vmax.f32 %v12062, -3.832507
        %v12095 = vmax.f32 %v12063, -3.832507
        %v12096 = vmax.f32 %v12064, -3.832507
        %v12097 = vmax.f32 %v12065, -3.832507
        %v12098 = vmax.f32 %v12066, -3.832507
        %v12099 = vmax.f32 %v12067, -3.832507
        %v12100 = vmax.f32 %v12068, -3.832507
        %v12101 = vmax.f32 %v12069, -3.832507
        %v12102 = vmax.f32 %v12070, -3.832507
        %v12103 = vmax.f32 %v12071, -3.832507
        %v12104 = vmax.f32 %v12072, -3.832507
        %v12105 = vmax.f32 %v12073, -3.832507
        %v12106 = vmax.f32 %v12074, -3.832507
        %v12107 = vmin.f32 %v12075, 3.832507
        %v12108 = vmin.f32 %v12076, 3.832507
        %v12109 = vmin.f32 %v12077, 3.832507
        %v12110 = vmin.f32 %v12078, 3.832507
        %v12111 = vmin.f32 %v12079, 3.832507
        %v12112 = vmin.f32 %v12080, 3.832507
        %v12113 = vmin.f32 %v12081, 3.832507
        %v12114 = vmin.f32 %v12082, 3.832507
        %v12115 = vmin.f32 %v12083, 3.832507
        %v12116 = vmin.f32 %v12084, 3.832507
        %v12117 = vmin.f32 %v12085, 3.832507
        %v12118 = vmin.f32 %v12086, 3.832507
        %v12119 = vmin.f32 %v12087, 3.832507
        %v12120 = vmin.f32 %v12088, 3.832507
        %v12121 = vmin.f32 %v12089, 3.832507
        %v12122 = vmin.f32 %v12090, 3.832507
        %v12123 = vmin.f32 %v12091, 3.832507
        %v12124 = vmin.f32 %v12092, 3.832507
        %v12125 = vmin.f32 %v12093, 3.832507
        %v12126 = vmin.f32 %v12094, 3.832507
        %v12127 = vmin.f32 %v12095, 3.832507
        %v12128 = vmin.f32 %v12096, 3.832507
        %v12129 = vmin.f32 %v12097, 3.832507
        %v12130 = vmin.f32 %v12098, 3.832507
        %v12131 = vmin.f32 %v12099, 3.832507
        %v12132 = vmin.f32 %v12100, 3.832507
        %v12133 = vmin.f32 %v12101, 3.832507
        %v12134 = vmin.f32 %v12102, 3.832507
        %v12135 = vmin.f32 %v12103, 3.832507
        %v12136 = vmin.f32 %v12104, 3.832507
        %v12137 = vmin.f32 %v12105, 3.832507
        %v12138 = vmin.f32 %v12106, 3.832507
        %v12139 = vmul.f32 %v12107, %v12107
        %v12140 = vmul.f32 %v12108, %v12108
        %v12141 = vmul.f32 %v12109, %v12109
        %v12142 = vmul.f32 %v12110, %v12110
        %v12143 = vmul.f32 %v12111, %v12111
        %v12144 = vmul.f32 %v12112, %v12112
        %v12145 = vmul.f32 %v12113, %v12113
        %v12146 = vmul.f32 %v12114, %v12114
        %v12147 = vmul.f32 %v12115, %v12115
        %v12148 = vmul.f32 %v12116, %v12116
        %v12149 = vmul.f32 %v12117, %v12117
        %v12150 = vmul.f32 %v12118, %v12118
        %v12151 = vmul.f32 %v12119, %v12119
        %v12152 = vmul.f32 %v12120, %v12120
        %v12153 = vmul.f32 %v12121, %v12121
        %v12154 = vmul.f32 %v12122, %v12122
        %v12155 = vmul.f32 %v12123, %v12123
        %v12156 = vmul.f32 %v12124, %v12124
        %v12157 = vmul.f32 %v12125, %v12125
        %v12158 = vmul.f32 %v12126, %v12126
        %v12159 = vmul.f32 %v12127, %v12127
        %v12160 = vmul.f32 %v12128, %v12128
        %v12161 = vmul.f32 %v12129, %v12129
        %v12162 = vmul.f32 %v12130, %v12130
        %v12163 = vmul.f32 %v12131, %v12131
        %v12164 = vmul.f32 %v12132, %v12132
        %v12165 = vmul.f32 %v12133, %v12133
        %v12166 = vmul.f32 %v12134, %v12134
        %v12167 = vmul.f32 %v12135, %v12135
        %v12168 = vmul.f32 %v12136, %v12136
        %v12169 = vmul.f32 %v12137, %v12137
        %v12170 = vmul.f32 %v12138, %v12138
        %v12171 = vmul.f32 %v12139, -2.7261424e-10
        %v12172 = vmul.f32 %v12140, -2.7261424e-10
        %v12173 = vmul.f32 %v12141, -2.7261424e-10
        %v12174 = vmul.f32 %v12142, -2.7261424e-10
        %v12175 = vmul.f32 %v12143, -2.7261424e-10
        %v12176 = vmul.f32 %v12144, -2.7261424e-10
        %v12177 = vmul.f32 %v12145, -2.7261424e-10
        %v12178 = vmul.f32 %v12146, -2.7261424e-10
        %v12179 = vmul.f32 %v12147, -2.7261424e-10
        %v12180 = vmul.f32 %v12148, -2.7261424e-10
        %v12181 = vmul.f32 %v12149, -2.7261424e-10
        %v12182 = vmul.f32 %v12150, -2.7261424e-10
        %v12183 = vmul.f32 %v12151, -2.7261424e-10
        %v12184 = vmul.f32 %v12152, -2.7261424e-10
        %v12185 = vmul.f32 %v12153, -2.7261424e-10
        %v12186 = vmul.f32 %v12154, -2.7261424e-10
        %v12187 = vmul.f32 %v12155, -2.7261424e-10
        %v12188 = vmul.f32 %v12156, -2.7261424e-10
        %v12189 = vmul.f32 %v12157, -2.7261424e-10
        %v12190 = vmul.f32 %v12158, -2.7261424e-10
        %v12191 = vmul.f32 %v12159, -2.7261424e-10
        %v12192 = vmul.f32 %v12160, -2.7261424e-10
        %v12193 = vmul.f32 %v12161, -2.7261424e-10
        %v12194 = vmul.f32 %v12162, -2.7261424e-10
        %v12195 = vmul.f32 %v12163, -2.7261424e-10
        %v12196 = vmul.f32 %v12164, -2.7261424e-10
        %v12197 = vmul.f32 %v12165, -2.7261424e-10
        %v12198 = vmul.f32 %v12166, -2.7261424e-10
        %v12199 = vmul.f32 %v12167, -2.7261424e-10
        %v12200 = vmul.f32 %v12168, -2.7261424e-10
        %v12201 = vmul.f32 %v12169, -2.7261424e-10
        %v12202 = vmul.f32 %v12170, -2.7261424e-10
        %v12203 = vadd.f32 %v12171, 2.7706815e-08
        %v12204 = vadd.f32 %v12172, 2.7706815e-08
        %v12205 = vadd.f32 %v12173, 2.7706815e-08
        %v12206 = vadd.f32 %v12174, 2.7706815e-08
        %v12207 = vadd.f32 %v12175, 2.7706815e-08
        %v12208 = vadd.f32 %v12176, 2.7706815e-08
        %v12209 = vadd.f32 %v12177, 2.7706815e-08
        %v12210 = vadd.f32 %v12178, 2.7706815e-08
        %v12211 = vadd.f32 %v12179, 2.7706815e-08
        %v12212 = vadd.f32 %v12180, 2.7706815e-08
        %v12213 = vadd.f32 %v12181, 2.7706815e-08
        %v12214 = vadd.f32 %v12182, 2.7706815e-08
        %v12215 = vadd.f32 %v12183, 2.7706815e-08
        %v12216 = vadd.f32 %v12184, 2.7706815e-08
        %v12217 = vadd.f32 %v12185, 2.7706815e-08
        %v12218 = vadd.f32 %v12186, 2.7706815e-08
        %v12219 = vadd.f32 %v12187, 2.7706815e-08
        %v12220 = vadd.f32 %v12188, 2.7706815e-08
        %v12221 = vadd.f32 %v12189, 2.7706815e-08
        %v12222 = vadd.f32 %v12190, 2.7706815e-08
        %v12223 = vadd.f32 %v12191, 2.7706815e-08
        %v12224 = vadd.f32 %v12192, 2.7706815e-08
        %v12225 = vadd.f32 %v12193, 2.7706815e-08
        %v12226 = vadd.f32 %v12194, 2.7706815e-08
        %v12227 = vadd.f32 %v12195, 2.7706815e-08
        %v12228 = vadd.f32 %v12196, 2.7706815e-08
        %v12229 = vadd.f32 %v12197, 2.7706815e-08
        %v12230 = vadd.f32 %v12198, 2.7706815e-08
        %v12231 = vadd.f32 %v12199, 2.7706815e-08
        %v12232 = vadd.f32 %v12200, 2.7706815e-08
        %v12233 = vadd.f32 %v12201, 2.7706815e-08
        %v12234 = vadd.f32 %v12202, 2.7706815e-08
        %v12235 = vmul.f32 %v12203, %v12139
        %v12236 = vmul.f32 %v12204, %v12140
        %v12237 = vmul.f32 %v12205, %v12141
        %v12238 = vmul.f32 %v12206, %v12142
        %v12239 = vmul.f32 %v12207, %v12143
        %v12240 = vmul.f32 %v12208, %v12144
        %v12241 = vmul.f32 %v12209, %v12145
        %v12242 = vmul.f32 %v12210, %v12146
        %v12243 = vmul.f32 %v12211, %v12147
        %v12244 = vmul.f32 %v12212, %v12148
        %v12245 = vmul.f32 %v12213, %v12149
        %v12246 = vmul.f32 %v12214, %v12150
        %v12247 = vmul.f32 %v12215, %v12151
        %v12248 = vmul.f32 %v12216, %v12152
        %v12249 = vmul.f32 %v12217, %v12153
        %v12250 = vmul.f32 %v12218, %v12154
        %v12251 = vmul.f32 %v12219, %v12155
        %v12252 = vmul.f32 %v12220, %v12156
        %v12253 = vmul.f32 %v12221, %v12157
        %v12254 = vmul.f32 %v12222, %v12158
        %v12255 = vmul.f32 %v12223, %v12159
        %v12256 = vmul.f32 %v12224, %v12160
        %v12257 = vmul.f32 %v12225, %v12161
        %v12258 = vmul.f32 %v12226, %v12162
        %v12259 = vmul.f32 %v12227, %v12163
        %v12260 = vmul.f32 %v12228, %v12164
        %v12261 = vmul.f32 %v12229, %v12165
        %v12262 = vmul.f32 %v12230, %v12166
        %v12263 = vmul.f32 %v12231, %v12167
        %v12264 = vmul.f32 %v12232, %v12168
        %v12265 = vmul.f32 %v12233, %v12169
        %v12266 = vmul.f32 %v12234, %v12170
        %v12267 = vadd.f32 %v12235, -2.101024e-06
        %v12268 = vadd.f32 %v12236, -2.101024e-06
        %v12269 = vadd.f32 %v12237, -2.101024e-06
        %v12270 = vadd.f32 %v12238, -2.101024e-06
        %v12271 = vadd.f32 %v12239, -2.101024e-06
        %v12272 = vadd.f32 %v12240, -2.101024e-06
        %v12273 = vadd.f32 %v12241, -2.101024e-06
        %v12274 = vadd.f32 %v12242, -2.101024e-06
        %v12275 = vadd.f32 %v12243, -2.101024e-06
        %v12276 = vadd.f32 %v12244, -2.101024e-06
        %v12277 = vadd.f32 %v12245, -2.101024e-06
        %v12278 = vadd.f32 %v12246, -2.101024e-06
        %v12279 = vadd.f32 %v12247, -2.101024e-06
        %v12280 = vadd.f32 %v12248, -2.101024e-06
        %v12281 = vadd.f32 %v12249, -2.101024e-06
        %v12282 = vadd.f32 %v12250, -2.101024e-06
        %v12283 = vadd.f32 %v12251, -2.101024e-06
        %v12284 = vadd.f32 %v12252, -2.101024e-06
        %v12285 = vadd.f32 %v12253, -2.101024e-06
        %v12286 = vadd.f32 %v12254, -2.101024e-06
        %v12287 = vadd.f32 %v12255, -2.101024e-06
        %v12288 = vadd.f32 %v12256, -2.101024e-06
        %v12289 = vadd.f32 %v12257, -2.101024e-06
        %v12290 = vadd.f32 %v12258, -2.101024e-06
        %v12291 = vadd.f32 %v12259, -2.101024e-06
        %v12292 = vadd.f32 %v12260, -2.101024e-06
        %v12293 = vadd.f32 %v12261, -2.101024e-06
        %v12294 = vadd.f32 %v12262, -2.101024e-06
        %v12295 = vadd.f32 %v12263, -2.101024e-06
        %v12296 = vadd.f32 %v12264, -2.101024e-06
        %v12297 = vadd.f32 %v12265, -2.101024e-06
        %v12298 = vadd.f32 %v12266, -2.101024e-06
        %v12299 = vmul.f32 %v12267, %v12139
        %v12300 = vmul.f32 %v12268, %v12140
        %v12301 = vmul.f32 %v12269, %v12141
        %v12302 = vmul.f32 %v12270, %v12142
        %v12303 = vmul.f32 %v12271, %v12143
        %v12304 = vmul.f32 %v12272, %v12144
        %v12305 = vmul.f32 %v12273, %v12145
        %v12306 = vmul.f32 %v12274, %v12146
        %v12307 = vmul.f32 %v12275, %v12147
        %v12308 = vmul.f32 %v12276, %v12148
        %v12309 = vmul.f32 %v12277, %v12149
        %v12310 = vmul.f32 %v12278, %v12150
        %v12311 = vmul.f32 %v12279, %v12151
        %v12312 = vmul.f32 %v12280, %v12152
        %v12313 = vmul.f32 %v12281, %v12153
        %v12314 = vmul.f32 %v12282, %v12154
        %v12315 = vmul.f32 %v12283, %v12155
        %v12316 = vmul.f32 %v12284, %v12156
        %v12317 = vmul.f32 %v12285, %v12157
        %v12318 = vmul.f32 %v12286, %v12158
        %v12319 = vmul.f32 %v12287, %v12159
        %v12320 = vmul.f32 %v12288, %v12160
        %v12321 = vmul.f32 %v12289, %v12161
        %v12322 = vmul.f32 %v12290, %v12162
        %v12323 = vmul.f32 %v12291, %v12163
        %v12324 = vmul.f32 %v12292, %v12164
        %v12325 = vmul.f32 %v12293, %v12165
        %v12326 = vmul.f32 %v12294, %v12166
        %v12327 = vmul.f32 %v12295, %v12167
        %v12328 = vmul.f32 %v12296, %v12168
        %v12329 = vmul.f32 %v12297, %v12169
        %v12330 = vmul.f32 %v12298, %v12170
        %v12331 = vadd.f32 %v12299, -5.6925062e-05
        %v12332 = vadd.f32 %v12300, -5.6925062e-05
        %v12333 = vadd.f32 %v12301, -5.6925062e-05
        %v12334 = vadd.f32 %v12302, -5.6925062e-05
        %v12335 = vadd.f32 %v12303, -5.6925062e-05
        %v12336 = vadd.f32 %v12304, -5.6925062e-05
        %v12337 = vadd.f32 %v12305, -5.6925062e-05
        %v12338 = vadd.f32 %v12306, -5.6925062e-05
        %v12339 = vadd.f32 %v12307, -5.6925062e-05
        %v12340 = vadd.f32 %v12308, -5.6925062e-05
        %v12341 = vadd.f32 %v12309, -5.6925062e-05
        %v12342 = vadd.f32 %v12310, -5.6925062e-05
        %v12343 = vadd.f32 %v12311, -5.6925062e-05
        %v12344 = vadd.f32 %v12312, -5.6925062e-05
        %v12345 = vadd.f32 %v12313, -5.6925062e-05
        %v12346 = vadd.f32 %v12314, -5.6925062e-05
        %v12347 = vadd.f32 %v12315, -5.6925062e-05
        %v12348 = vadd.f32 %v12316, -5.6925062e-05
        %v12349 = vadd.f32 %v12317, -5.6925062e-05
        %v12350 = vadd.f32 %v12318, -5.6925062e-05
        %v12351 = vadd.f32 %v12319, -5.6925062e-05
        %v12352 = vadd.f32 %v12320, -5.6925062e-05
        %v12353 = vadd.f32 %v12321, -5.6925062e-05
        %v12354 = vadd.f32 %v12322, -5.6925062e-05
        %v12355 = vadd.f32 %v12323, -5.6925062e-05
        %v12356 = vadd.f32 %v12324, -5.6925062e-05
        %v12357 = vadd.f32 %v12325, -5.6925062e-05
        %v12358 = vadd.f32 %v12326, -5.6925062e-05
        %v12359 = vadd.f32 %v12327, -5.6925062e-05
        %v12360 = vadd.f32 %v12328, -5.6925062e-05
        %v12361 = vadd.f32 %v12329, -5.6925062e-05
        %v12362 = vadd.f32 %v12330, -5.6925062e-05
        %v12363 = vmul.f32 %v12331, %v12139
        %v12364 = vmul.f32 %v12332, %v12140
        %v12365 = vmul.f32 %v12333, %v12141
        %v12366 = vmul.f32 %v12334, %v12142
        %v12367 = vmul.f32 %v12335, %v12143
        %v12368 = vmul.f32 %v12336, %v12144
        %v12369 = vmul.f32 %v12337, %v12145
        %v12370 = vmul.f32 %v12338, %v12146
        %v12371 = vmul.f32 %v12339, %v12147
        %v12372 = vmul.f32 %v12340, %v12148
        %v12373 = vmul.f32 %v12341, %v12149
        %v12374 = vmul.f32 %v12342, %v12150
        %v12375 = vmul.f32 %v12343, %v12151
        %v12376 = vmul.f32 %v12344, %v12152
        %v12377 = vmul.f32 %v12345, %v12153
        %v12378 = vmul.f32 %v12346, %v12154
        %v12379 = vmul.f32 %v12347, %v12155
        %v12380 = vmul.f32 %v12348, %v12156
        %v12381 = vmul.f32 %v12349, %v12157
        %v12382 = vmul.f32 %v12350, %v12158
        %v12383 = vmul.f32 %v12351, %v12159
        %v12384 = vmul.f32 %v12352, %v12160
        %v12385 = vmul.f32 %v12353, %v12161
        %v12386 = vmul.f32 %v12354, %v12162
        %v12387 = vmul.f32 %v12355, %v12163
        %v12388 = vmul.f32 %v12356, %v12164
        %v12389 = vmul.f32 %v12357, %v12165
        %v12390 = vmul.f32 %v12358, %v12166
        %v12391 = vmul.f32 %v12359, %v12167
        %v12392 = vmul.f32 %v12360, %v12168
        %v12393 = vmul.f32 %v12361, %v12169
        %v12394 = vmul.f32 %v12362, %v12170
        %v12395 = vadd.f32 %v12363, -0.00073499064
        %v12396 = vadd.f32 %v12364, -0.00073499064
        %v12397 = vadd.f32 %v12365, -0.00073499064
        %v12398 = vadd.f32 %v12366, -0.00073499064
        %v12399 = vadd.f32 %v12367, -0.00073499064
        %v12400 = vadd.f32 %v12368, -0.00073499064
        %v12401 = vadd.f32 %v12369, -0.00073499064
        %v12402 = vadd.f32 %v12370, -0.00073499064
        %v12403 = vadd.f32 %v12371, -0.00073499064
        %v12404 = vadd.f32 %v12372, -0.00073499064
        %v12405 = vadd.f32 %v12373, -0.00073499064
        %v12406 = vadd.f32 %v12374, -0.00073499064
        %v12407 = vadd.f32 %v12375, -0.00073499064
        %v12408 = vadd.f32 %v12376, -0.00073499064
        %v12409 = vadd.f32 %v12377, -0.00073499064
        %v12410 = vadd.f32 %v12378, -0.00073499064
        %v12411 = vadd.f32 %v12379, -0.00073499064
        %v12412 = vadd.f32 %v12380, -0.00073499064
        %v12413 = vadd.f32 %v12381, -0.00073499064
        %v12414 = vadd.f32 %v12382, -0.00073499064
        %v12415 = vadd.f32 %v12383, -0.00073499064
        %v12416 = vadd.f32 %v12384, -0.00073499064
        %v12417 = vadd.f32 %v12385, -0.00073499064
        %v12418 = vadd.f32 %v12386, -0.00073499064
        %v12419 = vadd.f32 %v12387, -0.00073499064
        %v12420 = vadd.f32 %v12388, -0.00073499064
        %v12421 = vadd.f32 %v12389, -0.00073499064
        %v12422 = vadd.f32 %v12390, -0.00073499064
        %v12423 = vadd.f32 %v12391, -0.00073499064
        %v12424 = vadd.f32 %v12392, -0.00073499064
        %v12425 = vadd.f32 %v12393, -0.00073499064
        %v12426 = vadd.f32 %v12394, -0.00073499064
        %v12427 = vmul.f32 %v12395, %v12139
        %v12428 = vmul.f32 %v12396, %v12140
        %v12429 = vmul.f32 %v12397, %v12141
        %v12430 = vmul.f32 %v12398, %v12142
        %v12431 = vmul.f32 %v12399, %v12143
        %v12432 = vmul.f32 %v12400, %v12144
        %v12433 = vmul.f32 %v12401, %v12145
        %v12434 = vmul.f32 %v12402, %v12146
        %v12435 = vmul.f32 %v12403, %v12147
        %v12436 = vmul.f32 %v12404, %v12148
        %v12437 = vmul.f32 %v12405, %v12149
        %v12438 = vmul.f32 %v12406, %v12150
        %v12439 = vmul.f32 %v12407, %v12151
        %v12440 = vmul.f32 %v12408, %v12152
        %v12441 = vmul.f32 %v12409, %v12153
        %v12442 = vmul.f32 %v12410, %v12154
        %v12443 = vmul.f32 %v12411, %v12155
        %v12444 = vmul.f32 %v12412, %v12156
        %v12445 = vmul.f32 %v12413, %v12157
        %v12446 = vmul.f32 %v12414, %v12158
        %v12447 = vmul.f32 %v12415, %v12159
        %v12448 = vmul.f32 %v12416, %v12160
        %v12449 = vmul.f32 %v12417, %v12161
        %v12450 = vmul.f32 %v12418, %v12162
        %v12451 = vmul.f32 %v12419, %v12163
        %v12452 = vmul.f32 %v12420, %v12164
        %v12453 = vmul.f32 %v12421, %v12165
        %v12454 = vmul.f32 %v12422, %v12166
        %v12455 = vmul.f32 %v12423, %v12167
        %v12456 = vmul.f32 %v12424, %v12168
        %v12457 = vmul.f32 %v12425, %v12169
        %v12458 = vmul.f32 %v12426, %v12170
        %v12459 = vadd.f32 %v12427, -0.0029546
        %v12460 = vadd.f32 %v12428, -0.0029546
        %v12461 = vadd.f32 %v12429, -0.0029546
        %v12462 = vadd.f32 %v12430, -0.0029546
        %v12463 = vadd.f32 %v12431, -0.0029546
        %v12464 = vadd.f32 %v12432, -0.0029546
        %v12465 = vadd.f32 %v12433, -0.0029546
        %v12466 = vadd.f32 %v12434, -0.0029546
        %v12467 = vadd.f32 %v12435, -0.0029546
        %v12468 = vadd.f32 %v12436, -0.0029546
        %v12469 = vadd.f32 %v12437, -0.0029546
        %v12470 = vadd.f32 %v12438, -0.0029546
        %v12471 = vadd.f32 %v12439, -0.0029546
        %v12472 = vadd.f32 %v12440, -0.0029546
        %v12473 = vadd.f32 %v12441, -0.0029546
        %v12474 = vadd.f32 %v12442, -0.0029546
        %v12475 = vadd.f32 %v12443, -0.0029546
        %v12476 = vadd.f32 %v12444, -0.0029546
        %v12477 = vadd.f32 %v12445, -0.0029546
        %v12478 = vadd.f32 %v12446, -0.0029546
        %v12479 = vadd.f32 %v12447, -0.0029546
        %v12480 = vadd.f32 %v12448, -0.0029546
        %v12481 = vadd.f32 %v12449, -0.0029546
        %v12482 = vadd.f32 %v12450, -0.0029546
        %v12483 = vadd.f32 %v12451, -0.0029546
        %v12484 = vadd.f32 %v12452, -0.0029546
        %v12485 = vadd.f32 %v12453, -0.0029546
        %v12486 = vadd.f32 %v12454, -0.0029546
        %v12487 = vadd.f32 %v12455, -0.0029546
        %v12488 = vadd.f32 %v12456, -0.0029546
        %v12489 = vadd.f32 %v12457, -0.0029546
        %v12490 = vadd.f32 %v12458, -0.0029546
        %v12491 = vmul.f32 %v12459, %v12139
        %v12492 = vmul.f32 %v12460, %v12140
        %v12493 = vmul.f32 %v12461, %v12141
        %v12494 = vmul.f32 %v12462, %v12142
        %v12495 = vmul.f32 %v12463, %v12143
        %v12496 = vmul.f32 %v12464, %v12144
        %v12497 = vmul.f32 %v12465, %v12145
        %v12498 = vmul.f32 %v12466, %v12146
        %v12499 = vmul.f32 %v12467, %v12147
        %v12500 = vmul.f32 %v12468, %v12148
        %v12501 = vmul.f32 %v12469, %v12149
        %v12502 = vmul.f32 %v12470, %v12150
        %v12503 = vmul.f32 %v12471, %v12151
        %v12504 = vmul.f32 %v12472, %v12152
        %v12505 = vmul.f32 %v12473, %v12153
        %v12506 = vmul.f32 %v12474, %v12154
        %v12507 = vmul.f32 %v12475, %v12155
        %v12508 = vmul.f32 %v12476, %v12156
        %v12509 = vmul.f32 %v12477, %v12157
        %v12510 = vmul.f32 %v12478, %v12158
        %v12511 = vmul.f32 %v12479, %v12159
        %v12512 = vmul.f32 %v12480, %v12160
        %v12513 = vmul.f32 %v12481, %v12161
        %v12514 = vmul.f32 %v12482, %v12162
        %v12515 = vmul.f32 %v12483, %v12163
        %v12516 = vmul.f32 %v12484, %v12164
        %v12517 = vmul.f32 %v12485, %v12165
        %v12518 = vmul.f32 %v12486, %v12166
        %v12519 = vmul.f32 %v12487, %v12167
        %v12520 = vmul.f32 %v12488, %v12168
        %v12521 = vmul.f32 %v12489, %v12169
        %v12522 = vmul.f32 %v12490, %v12170
        %v12523 = vadd.f32 %v12491, -0.016096033
        %v12524 = vadd.f32 %v12492, -0.016096033
        %v12525 = vadd.f32 %v12493, -0.016096033
        %v12526 = vadd.f32 %v12494, -0.016096033
        %v12527 = vadd.f32 %v12495, -0.016096033
        %v12528 = vadd.f32 %v12496, -0.016096033
        %v12529 = vadd.f32 %v12497, -0.016096033
        %v12530 = vadd.f32 %v12498, -0.016096033
        %v12531 = vadd.f32 %v12499, -0.016096033
        %v12532 = vadd.f32 %v12500, -0.016096033
        %v12533 = vadd.f32 %v12501, -0.016096033
        %v12534 = vadd.f32 %v12502, -0.016096033
        %v12535 = vadd.f32 %v12503, -0.016096033
        %v12536 = vadd.f32 %v12504, -0.016096033
        %v12537 = vadd.f32 %v12505, -0.016096033
        %v12538 = vadd.f32 %v12506, -0.016096033
        %v12539 = vadd.f32 %v12507, -0.016096033
        %v12540 = vadd.f32 %v12508, -0.016096033
        %v12541 = vadd.f32 %v12509, -0.016096033
        %v12542 = vadd.f32 %v12510, -0.016096033
        %v12543 = vadd.f32 %v12511, -0.016096033
        %v12544 = vadd.f32 %v12512, -0.016096033
        %v12545 = vadd.f32 %v12513, -0.016096033
        %v12546 = vadd.f32 %v12514, -0.016096033
        %v12547 = vadd.f32 %v12515, -0.016096033
        %v12548 = vadd.f32 %v12516, -0.016096033
        %v12549 = vadd.f32 %v12517, -0.016096033
        %v12550 = vadd.f32 %v12518, -0.016096033
        %v12551 = vadd.f32 %v12519, -0.016096033
        %v12552 = vadd.f32 %v12520, -0.016096033
        %v12553 = vadd.f32 %v12521, -0.016096033
        %v12554 = vadd.f32 %v12522, -0.016096033
        %v12555 = vmul.f32 %v12523, %v12107
        %v12556 = vmul.f32 %v12524, %v12108
        %v12557 = vmul.f32 %v12525, %v12109
        %v12558 = vmul.f32 %v12526, %v12110
        %v12559 = vmul.f32 %v12527, %v12111
        %v12560 = vmul.f32 %v12528, %v12112
        %v12561 = vmul.f32 %v12529, %v12113
        %v12562 = vmul.f32 %v12530, %v12114
        %v12563 = vmul.f32 %v12531, %v12115
        %v12564 = vmul.f32 %v12532, %v12116
        %v12565 = vmul.f32 %v12533, %v12117
        %v12566 = vmul.f32 %v12534, %v12118
        %v12567 = vmul.f32 %v12535, %v12119
        %v12568 = vmul.f32 %v12536, %v12120
        %v12569 = vmul.f32 %v12537, %v12121
        %v12570 = vmul.f32 %v12538, %v12122
        %v12571 = vmul.f32 %v12539, %v12123
        %v12572 = vmul.f32 %v12540, %v12124
        %v12573 = vmul.f32 %v12541, %v12125
        %v12574 = vmul.f32 %v12542, %v12126
        %v12575 = vmul.f32 %v12543, %v12127
        %v12576 = vmul.f32 %v12544, %v12128
        %v12577 = vmul.f32 %v12545, %v12129
        %v12578 = vmul.f32 %v12546, %v12130
        %v12579 = vmul.f32 %v12547, %v12131
        %v12580 = vmul.f32 %v12548, %v12132
        %v12581 = vmul.f32 %v12549, %v12133
        %v12582 = vmul.f32 %v12550, %v12134
        %v12583 = vmul.f32 %v12551, %v12135
        %v12584 = vmul.f32 %v12552, %v12136
        %v12585 = vmul.f32 %v12553, %v12137
        %v12586 = vmul.f32 %v12554, %v12138
        %v12587 = vmul.f32 %v12139, -1.45660715e-05
        %v12588 = vmul.f32 %v12140, -1.45660715e-05
        %v12589 = vmul.f32 %v12141, -1.45660715e-05
        %v12590 = vmul.f32 %v12142, -1.45660715e-05
        %v12591 = vmul.f32 %v12143, -1.45660715e-05
        %v12592 = vmul.f32 %v12144, -1.45660715e-05
        %v12593 = vmul.f32 %v12145, -1.45660715e-05
        %v12594 = vmul.f32 %v12146, -1.45660715e-05
        %v12595 = vmul.f32 %v12147, -1.45660715e-05
        %v12596 = vmul.f32 %v12148, -1.45660715e-05
        %v12597 = vmul.f32 %v12149, -1.45660715e-05
        %v12598 = vmul.f32 %v12150, -1.45660715e-05
        %v12599 = vmul.f32 %v12151, -1.45660715e-05
        %v12600 = vmul.f32 %v12152, -1.45660715e-05
        %v12601 = vmul.f32 %v12153, -1.45660715e-05
        %v12602 = vmul.f32 %v12154, -1.45660715e-05
        %v12603 = vmul.f32 %v12155, -1.45660715e-05
        %v12604 = vmul.f32 %v12156, -1.45660715e-05
        %v12605 = vmul.f32 %v12157, -1.45660715e-05
        %v12606 = vmul.f32 %v12158, -1.45660715e-05
        %v12607 = vmul.f32 %v12159, -1.45660715e-05
        %v12608 = vmul.f32 %v12160, -1.45660715e-05
        %v12609 = vmul.f32 %v12161, -1.45660715e-05
        %v12610 = vmul.f32 %v12162, -1.45660715e-05
        %v12611 = vmul.f32 %v12163, -1.45660715e-05
        %v12612 = vmul.f32 %v12164, -1.45660715e-05
        %v12613 = vmul.f32 %v12165, -1.45660715e-05
        %v12614 = vmul.f32 %v12166, -1.45660715e-05
        %v12615 = vmul.f32 %v12167, -1.45660715e-05
        %v12616 = vmul.f32 %v12168, -1.45660715e-05
        %v12617 = vmul.f32 %v12169, -1.45660715e-05
        %v12618 = vmul.f32 %v12170, -1.45660715e-05
        %v12619 = vadd.f32 %v12587, -0.00021337405
        %v12620 = vadd.f32 %v12588, -0.00021337405
        %v12621 = vadd.f32 %v12589, -0.00021337405
        %v12622 = vadd.f32 %v12590, -0.00021337405
        %v12623 = vadd.f32 %v12591, -0.00021337405
        %v12624 = vadd.f32 %v12592, -0.00021337405
        %v12625 = vadd.f32 %v12593, -0.00021337405
        %v12626 = vadd.f32 %v12594, -0.00021337405
        %v12627 = vadd.f32 %v12595, -0.00021337405
        %v12628 = vadd.f32 %v12596, -0.00021337405
        %v12629 = vadd.f32 %v12597, -0.00021337405
        %v12630 = vadd.f32 %v12598, -0.00021337405
        %v12631 = vadd.f32 %v12599, -0.00021337405
        %v12632 = vadd.f32 %v12600, -0.00021337405
        %v12633 = vadd.f32 %v12601, -0.00021337405
        %v12634 = vadd.f32 %v12602, -0.00021337405
        %v12635 = vadd.f32 %v12603, -0.00021337405
        %v12636 = vadd.f32 %v12604, -0.00021337405
        %v12637 = vadd.f32 %v12605, -0.00021337405
        %v12638 = vadd.f32 %v12606, -0.00021337405
        %v12639 = vadd.f32 %v12607, -0.00021337405
        %v12640 = vadd.f32 %v12608, -0.00021337405
        %v12641 = vadd.f32 %v12609, -0.00021337405
        %v12642 = vadd.f32 %v12610, -0.00021337405
        %v12643 = vadd.f32 %v12611, -0.00021337405
        %v12644 = vadd.f32 %v12612, -0.00021337405
        %v12645 = vadd.f32 %v12613, -0.00021337405
        %v12646 = vadd.f32 %v12614, -0.00021337405
        %v12647 = vadd.f32 %v12615, -0.00021337405
        %v12648 = vadd.f32 %v12616, -0.00021337405
        %v12649 = vadd.f32 %v12617, -0.00021337405
        %v12650 = vadd.f32 %v12618, -0.00021337405
        %v12651 = vmul.f32 %v12619, %v12139
        %v12652 = vmul.f32 %v12620, %v12140
        %v12653 = vmul.f32 %v12621, %v12141
        %v12654 = vmul.f32 %v12622, %v12142
        %v12655 = vmul.f32 %v12623, %v12143
        %v12656 = vmul.f32 %v12624, %v12144
        %v12657 = vmul.f32 %v12625, %v12145
        %v12658 = vmul.f32 %v12626, %v12146
        %v12659 = vmul.f32 %v12627, %v12147
        %v12660 = vmul.f32 %v12628, %v12148
        %v12661 = vmul.f32 %v12629, %v12149
        %v12662 = vmul.f32 %v12630, %v12150
        %v12663 = vmul.f32 %v12631, %v12151
        %v12664 = vmul.f32 %v12632, %v12152
        %v12665 = vmul.f32 %v12633, %v12153
        %v12666 = vmul.f32 %v12634, %v12154
        %v12667 = vmul.f32 %v12635, %v12155
        %v12668 = vmul.f32 %v12636, %v12156
        %v12669 = vmul.f32 %v12637, %v12157
        %v12670 = vmul.f32 %v12638, %v12158
        %v12671 = vmul.f32 %v12639, %v12159
        %v12672 = vmul.f32 %v12640, %v12160
        %v12673 = vmul.f32 %v12641, %v12161
        %v12674 = vmul.f32 %v12642, %v12162
        %v12675 = vmul.f32 %v12643, %v12163
        %v12676 = vmul.f32 %v12644, %v12164
        %v12677 = vmul.f32 %v12645, %v12165
        %v12678 = vmul.f32 %v12646, %v12166
        %v12679 = vmul.f32 %v12647, %v12167
        %v12680 = vmul.f32 %v12648, %v12168
        %v12681 = vmul.f32 %v12649, %v12169
        %v12682 = vmul.f32 %v12650, %v12170
        %v12683 = vadd.f32 %v12651, -0.001682827
        %v12684 = vadd.f32 %v12652, -0.001682827
        %v12685 = vadd.f32 %v12653, -0.001682827
        %v12686 = vadd.f32 %v12654, -0.001682827
        %v12687 = vadd.f32 %v12655, -0.001682827
        %v12688 = vadd.f32 %v12656, -0.001682827
        %v12689 = vadd.f32 %v12657, -0.001682827
        %v12690 = vadd.f32 %v12658, -0.001682827
        %v12691 = vadd.f32 %v12659, -0.001682827
        %v12692 = vadd.f32 %v12660, -0.001682827
        %v12693 = vadd.f32 %v12661, -0.001682827
        %v12694 = vadd.f32 %v12662, -0.001682827
        %v12695 = vadd.f32 %v12663, -0.001682827
        %v12696 = vadd.f32 %v12664, -0.001682827
        %v12697 = vadd.f32 %v12665, -0.001682827
        %v12698 = vadd.f32 %v12666, -0.001682827
        %v12699 = vadd.f32 %v12667, -0.001682827
        %v12700 = vadd.f32 %v12668, -0.001682827
        %v12701 = vadd.f32 %v12669, -0.001682827
        %v12702 = vadd.f32 %v12670, -0.001682827
        %v12703 = vadd.f32 %v12671, -0.001682827
        %v12704 = vadd.f32 %v12672, -0.001682827
        %v12705 = vadd.f32 %v12673, -0.001682827
        %v12706 = vadd.f32 %v12674, -0.001682827
        %v12707 = vadd.f32 %v12675, -0.001682827
        %v12708 = vadd.f32 %v12676, -0.001682827
        %v12709 = vadd.f32 %v12677, -0.001682827
        %v12710 = vadd.f32 %v12678, -0.001682827
        %v12711 = vadd.f32 %v12679, -0.001682827
        %v12712 = vadd.f32 %v12680, -0.001682827
        %v12713 = vadd.f32 %v12681, -0.001682827
        %v12714 = vadd.f32 %v12682, -0.001682827
        %v12715 = vmul.f32 %v12683, %v12139
        %v12716 = vmul.f32 %v12684, %v12140
        %v12717 = vmul.f32 %v12685, %v12141
        %v12718 = vmul.f32 %v12686, %v12142
        %v12719 = vmul.f32 %v12687, %v12143
        %v12720 = vmul.f32 %v12688, %v12144
        %v12721 = vmul.f32 %v12689, %v12145
        %v12722 = vmul.f32 %v12690, %v12146
        %v12723 = vmul.f32 %v12691, %v12147
        %v12724 = vmul.f32 %v12692, %v12148
        %v12725 = vmul.f32 %v12693, %v12149
        %v12726 = vmul.f32 %v12694, %v12150
        %v12727 = vmul.f32 %v12695, %v12151
        %v12728 = vmul.f32 %v12696, %v12152
        %v12729 = vmul.f32 %v12697, %v12153
        %v12730 = vmul.f32 %v12698, %v12154
        %v12731 = vmul.f32 %v12699, %v12155
        %v12732 = vmul.f32 %v12700, %v12156
        %v12733 = vmul.f32 %v12701, %v12157
        %v12734 = vmul.f32 %v12702, %v12158
        %v12735 = vmul.f32 %v12703, %v12159
        %v12736 = vmul.f32 %v12704, %v12160
        %v12737 = vmul.f32 %v12705, %v12161
        %v12738 = vmul.f32 %v12706, %v12162
        %v12739 = vmul.f32 %v12707, %v12163
        %v12740 = vmul.f32 %v12708, %v12164
        %v12741 = vmul.f32 %v12709, %v12165
        %v12742 = vmul.f32 %v12710, %v12166
        %v12743 = vmul.f32 %v12711, %v12167
        %v12744 = vmul.f32 %v12712, %v12168
        %v12745 = vmul.f32 %v12713, %v12169
        %v12746 = vmul.f32 %v12714, %v12170
        %v12747 = vadd.f32 %v12715, -0.0073733293
        %v12748 = vadd.f32 %v12716, -0.0073733293
        %v12749 = vadd.f32 %v12717, -0.0073733293
        %v12750 = vadd.f32 %v12718, -0.0073733293
        %v12751 = vadd.f32 %v12719, -0.0073733293
        %v12752 = vadd.f32 %v12720, -0.0073733293
        %v12753 = vadd.f32 %v12721, -0.0073733293
        %v12754 = vadd.f32 %v12722, -0.0073733293
        %v12755 = vadd.f32 %v12723, -0.0073733293
        %v12756 = vadd.f32 %v12724, -0.0073733293
        %v12757 = vadd.f32 %v12725, -0.0073733293
        %v12758 = vadd.f32 %v12726, -0.0073733293
        %v12759 = vadd.f32 %v12727, -0.0073733293
        %v12760 = vadd.f32 %v12728, -0.0073733293
        %v12761 = vadd.f32 %v12729, -0.0073733293
        %v12762 = vadd.f32 %v12730, -0.0073733293
        %v12763 = vadd.f32 %v12731, -0.0073733293
        %v12764 = vadd.f32 %v12732, -0.0073733293
        %v12765 = vadd.f32 %v12733, -0.0073733293
        %v12766 = vadd.f32 %v12734, -0.0073733293
        %v12767 = vadd.f32 %v12735, -0.0073733293
        %v12768 = vadd.f32 %v12736, -0.0073733293
        %v12769 = vadd.f32 %v12737, -0.0073733293
        %v12770 = vadd.f32 %v12738, -0.0073733293
        %v12771 = vadd.f32 %v12739, -0.0073733293
        %v12772 = vadd.f32 %v12740, -0.0073733293
        %v12773 = vadd.f32 %v12741, -0.0073733293
        %v12774 = vadd.f32 %v12742, -0.0073733293
        %v12775 = vadd.f32 %v12743, -0.0073733293
        %v12776 = vadd.f32 %v12744, -0.0073733293
        %v12777 = vadd.f32 %v12745, -0.0073733293
        %v12778 = vadd.f32 %v12746, -0.0073733293
        %v12779 = vmul.f32 %v12747, %v12139
        %v12780 = vmul.f32 %v12748, %v12140
        %v12781 = vmul.f32 %v12749, %v12141
        %v12782 = vmul.f32 %v12750, %v12142
        %v12783 = vmul.f32 %v12751, %v12143
        %v12784 = vmul.f32 %v12752, %v12144
        %v12785 = vmul.f32 %v12753, %v12145
        %v12786 = vmul.f32 %v12754, %v12146
        %v12787 = vmul.f32 %v12755, %v12147
        %v12788 = vmul.f32 %v12756, %v12148
        %v12789 = vmul.f32 %v12757, %v12149
        %v12790 = vmul.f32 %v12758, %v12150
        %v12791 = vmul.f32 %v12759, %v12151
        %v12792 = vmul.f32 %v12760, %v12152
        %v12793 = vmul.f32 %v12761, %v12153
        %v12794 = vmul.f32 %v12762, %v12154
        %v12795 = vmul.f32 %v12763, %v12155
        %v12796 = vmul.f32 %v12764, %v12156
        %v12797 = vmul.f32 %v12765, %v12157
        %v12798 = vmul.f32 %v12766, %v12158
        %v12799 = vmul.f32 %v12767, %v12159
        %v12800 = vmul.f32 %v12768, %v12160
        %v12801 = vmul.f32 %v12769, %v12161
        %v12802 = vmul.f32 %v12770, %v12162
        %v12803 = vmul.f32 %v12771, %v12163
        %v12804 = vmul.f32 %v12772, %v12164
        %v12805 = vmul.f32 %v12773, %v12165
        %v12806 = vmul.f32 %v12774, %v12166
        %v12807 = vmul.f32 %v12775, %v12167
        %v12808 = vmul.f32 %v12776, %v12168
        %v12809 = vmul.f32 %v12777, %v12169
        %v12810 = vmul.f32 %v12778, %v12170
        %v12811 = vadd.f32 %v12779, -0.014264739
        %v12812 = vadd.f32 %v12780, -0.014264739
        %v12813 = vadd.f32 %v12781, -0.014264739
        %v12814 = vadd.f32 %v12782, -0.014264739
        %v12815 = vadd.f32 %v12783, -0.014264739
        %v12816 = vadd.f32 %v12784, -0.014264739
        %v12817 = vadd.f32 %v12785, -0.014264739
        %v12818 = vadd.f32 %v12786, -0.014264739
        %v12819 = vadd.f32 %v12787, -0.014264739
        %v12820 = vadd.f32 %v12788, -0.014264739
        %v12821 = vadd.f32 %v12789, -0.014264739
        %v12822 = vadd.f32 %v12790, -0.014264739
        %v12823 = vadd.f32 %v12791, -0.014264739
        %v12824 = vadd.f32 %v12792, -0.014264739
        %v12825 = vadd.f32 %v12793, -0.014264739
        %v12826 = vadd.f32 %v12794, -0.014264739
        %v12827 = vadd.f32 %v12795, -0.014264739
        %v12828 = vadd.f32 %v12796, -0.014264739
        %v12829 = vadd.f32 %v12797, -0.014264739
        %v12830 = vadd.f32 %v12798, -0.014264739
        %v12831 = vadd.f32 %v12799, -0.014264739
        %v12832 = vadd.f32 %v12800, -0.014264739
        %v12833 = vadd.f32 %v12801, -0.014264739
        %v12834 = vadd.f32 %v12802, -0.014264739
        %v12835 = vadd.f32 %v12803, -0.014264739
        %v12836 = vadd.f32 %v12804, -0.014264739
        %v12837 = vadd.f32 %v12805, -0.014264739
        %v12838 = vadd.f32 %v12806, -0.014264739
        %v12839 = vadd.f32 %v12807, -0.014264739
        %v12840 = vadd.f32 %v12808, -0.014264739
        %v12841 = vadd.f32 %v12809, -0.014264739
        %v12842 = vadd.f32 %v12810, -0.014264739
        %v12843 = vrcp.pop %v12811
        %v12844 = vrcp.pop %v12812
        %v12845 = vrcp.pop %v12813
        %v12846 = vrcp.pop %v12814
        %v12847 = vrcp.pop %v12815
        %v12848 = vrcp.pop %v12816
        %v12849 = vrcp.pop %v12817
        %v12850 = vrcp.pop %v12818
        %v12851 = vrcp.pop %v12819
        %v12852 = vrcp.pop %v12820
        %v12853 = vrcp.pop %v12821
        %v12854 = vrcp.pop %v12822
        %v12855 = vrcp.pop %v12823
        %v12856 = vrcp.pop %v12824
        %v12857 = vrcp.pop %v12825
        %v12858 = vrcp.pop %v12826
        %v12859 = vrcp.pop %v12827
        %v12860 = vrcp.pop %v12828
        %v12861 = vrcp.pop %v12829
        %v12862 = vrcp.pop %v12830
        %v12863 = vrcp.pop %v12831
        %v12864 = vrcp.pop %v12832
        %v12865 = vrcp.pop %v12833
        %v12866 = vrcp.pop %v12834
        %v12867 = vrcp.pop %v12835
        %v12868 = vrcp.pop %v12836
        %v12869 = vrcp.pop %v12837
        %v12870 = vrcp.pop %v12838
        %v12871 = vrcp.pop %v12839
        %v12872 = vrcp.pop %v12840
        %v12873 = vrcp.pop %v12841
        %v12874 = vrcp.pop %v12842
        %v12875 = vmul.f32 %v12555, %v12843
        %v12876 = vmul.f32 %v12556, %v12844
        %v12877 = vmul.f32 %v12557, %v12845
        %v12878 = vmul.f32 %v12558, %v12846
        %v12879 = vmul.f32 %v12559, %v12847
        %v12880 = vmul.f32 %v12560, %v12848
        %v12881 = vmul.f32 %v12561, %v12849
        %v12882 = vmul.f32 %v12562, %v12850
        %v12883 = vmul.f32 %v12563, %v12851
        %v12884 = vmul.f32 %v12564, %v12852
        %v12885 = vmul.f32 %v12565, %v12853
        %v12886 = vmul.f32 %v12566, %v12854
        %v12887 = vmul.f32 %v12567, %v12855
        %v12888 = vmul.f32 %v12568, %v12856
        %v12889 = vmul.f32 %v12569, %v12857
        %v12890 = vmul.f32 %v12570, %v12858
        %v12891 = vmul.f32 %v12571, %v12859
        %v12892 = vmul.f32 %v12572, %v12860
        %v12893 = vmul.f32 %v12573, %v12861
        %v12894 = vmul.f32 %v12574, %v12862
        %v12895 = vmul.f32 %v12575, %v12863
        %v12896 = vmul.f32 %v12576, %v12864
        %v12897 = vmul.f32 %v12577, %v12865
        %v12898 = vmul.f32 %v12578, %v12866
        %v12899 = vmul.f32 %v12579, %v12867
        %v12900 = vmul.f32 %v12580, %v12868
        %v12901 = vmul.f32 %v12581, %v12869
        %v12902 = vmul.f32 %v12582, %v12870
        %v12903 = vmul.f32 %v12583, %v12871
        %v12904 = vmul.f32 %v12584, %v12872
        %v12905 = vmul.f32 %v12585, %v12873
        %v12906 = vmul.f32 %v12586, %v12874
        %v12907 = vadd.f32 %v12875, 1.0
        %v12908 = vadd.f32 %v12876, 1.0
        %v12909 = vadd.f32 %v12877, 1.0
        %v12910 = vadd.f32 %v12878, 1.0
        %v12911 = vadd.f32 %v12879, 1.0
        %v12912 = vadd.f32 %v12880, 1.0
        %v12913 = vadd.f32 %v12881, 1.0
        %v12914 = vadd.f32 %v12882, 1.0
        %v12915 = vadd.f32 %v12883, 1.0
        %v12916 = vadd.f32 %v12884, 1.0
        %v12917 = vadd.f32 %v12885, 1.0
        %v12918 = vadd.f32 %v12886, 1.0
        %v12919 = vadd.f32 %v12887, 1.0
        %v12920 = vadd.f32 %v12888, 1.0
        %v12921 = vadd.f32 %v12889, 1.0
        %v12922 = vadd.f32 %v12890, 1.0
        %v12923 = vadd.f32 %v12891, 1.0
        %v12924 = vadd.f32 %v12892, 1.0
        %v12925 = vadd.f32 %v12893, 1.0
        %v12926 = vadd.f32 %v12894, 1.0
        %v12927 = vadd.f32 %v12895, 1.0
        %v12928 = vadd.f32 %v12896, 1.0
        %v12929 = vadd.f32 %v12897, 1.0
        %v12930 = vadd.f32 %v12898, 1.0
        %v12931 = vadd.f32 %v12899, 1.0
        %v12932 = vadd.f32 %v12900, 1.0
        %v12933 = vadd.f32 %v12901, 1.0
        %v12934 = vadd.f32 %v12902, 1.0
        %v12935 = vadd.f32 %v12903, 1.0
        %v12936 = vadd.f32 %v12904, 1.0
        %v12937 = vadd.f32 %v12905, 1.0
        %v12938 = vadd.f32 %v12906, 1.0
        %v12939 = vmul.f32 %v12011, %v12907
        %v12940 = vmul.f32 %v12012, %v12908
        %v12941 = vmul.f32 %v12013, %v12909
        %v12942 = vmul.f32 %v12014, %v12910
        %v12943 = vmul.f32 %v12015, %v12911
        %v12944 = vmul.f32 %v12016, %v12912
        %v12945 = vmul.f32 %v12017, %v12913
        %v12946 = vmul.f32 %v12018, %v12914
        %v12947 = vmul.f32 %v12019, %v12915
        %v12948 = vmul.f32 %v12020, %v12916
        %v12949 = vmul.f32 %v12021, %v12917
        %v12950 = vmul.f32 %v12022, %v12918
        %v12951 = vmul.f32 %v12023, %v12919
        %v12952 = vmul.f32 %v12024, %v12920
        %v12953 = vmul.f32 %v12025, %v12921
        %v12954 = vmul.f32 %v12026, %v12922
        %v12955 = vmul.f32 %v12027, %v12923
        %v12956 = vmul.f32 %v12028, %v12924
        %v12957 = vmul.f32 %v12029, %v12925
        %v12958 = vmul.f32 %v12030, %v12926
        %v12959 = vmul.f32 %v12031, %v12927
        %v12960 = vmul.f32 %v12032, %v12928
        %v12961 = vmul.f32 %v12033, %v12929
        %v12962 = vmul.f32 %v12034, %v12930
        %v12963 = vmul.f32 %v12035, %v12931
        %v12964 = vmul.f32 %v12036, %v12932
        %v12965 = vmul.f32 %v12037, %v12933
        %v12966 = vmul.f32 %v12038, %v12934
        %v12967 = vmul.f32 %v12039, %v12935
        %v12968 = vmul.f32 %v12040, %v12936
        %v12969 = vmul.f32 %v12041, %v12937
        %v12970 = vmul.f32 %v12042, %v12938
        %v12971 = vpack.c.bf16 %v12940, %v12939
        %v12972 = vpack.c.bf16 %v12942, %v12941
        %v12973 = vpack.c.bf16 %v12944, %v12943
        %v12974 = vpack.c.bf16 %v12946, %v12945
        %v12975 = vpack.c.bf16 %v12948, %v12947
        %v12976 = vpack.c.bf16 %v12950, %v12949
        %v12977 = vpack.c.bf16 %v12952, %v12951
        %v12978 = vpack.c.bf16 %v12954, %v12953
        %v12979 = vpack.c.bf16 %v12956, %v12955
        %v12980 = vpack.c.bf16 %v12958, %v12957
        %v12981 = vpack.c.bf16 %v12960, %v12959
        %v12982 = vpack.c.bf16 %v12962, %v12961
        %v12983 = vpack.c.bf16 %v12964, %v12963
        %v12984 = vpack.c.bf16 %v12966, %v12965
        %v12985 = vpack.c.bf16 %v12968, %v12967
        %v12986 = vpack.c.bf16 %v12970, %v12969
        %v12988 = vperm.slane %v11854, 0
        %v13006 = vunpack.c.l.b16 %v11837
        %v13007 = vunpack.c.l.b16 %v11838
        %v13008 = vunpack.c.l.b16 %v11839
        %v13009 = vunpack.c.l.b16 %v11840
        %v13010 = vunpack.c.l.b16 %v11841
        %v13011 = vunpack.c.l.b16 %v11842
        %v13012 = vunpack.c.l.b16 %v11843
        %v13013 = vunpack.c.l.b16 %v11844
        %v13014 = vunpack.c.l.b16 %v11845
        %v13015 = vunpack.c.l.b16 %v11846
        %v13016 = vunpack.c.l.b16 %v11847
        %v13017 = vunpack.c.l.b16 %v11848
        %v13018 = vunpack.c.l.b16 %v11849
        %v13019 = vunpack.c.l.b16 %v11850
        %v13020 = vunpack.c.l.b16 %v11851
        %v13021 = vunpack.c.l.b16 %v11852
        %v13022 = vpack.c.b16 %v13007, %v13006
        %v13023 = vpack.c.b16 %v13009, %v13008
        %v13024 = vpack.c.b16 %v13011, %v13010
        %v13025 = vpack.c.b16 %v13013, %v13012
        %v13026 = vpack.c.b16 %v13015, %v13014
        %v13027 = vpack.c.b16 %v13017, %v13016
        %v13028 = vpack.c.b16 %v13019, %v13018
        %v13029 = vpack.c.b16 %v13021, %v13020
        %13038 = vmatpush.bf16.msra.mxu0 %v13029
        %13039 = vmatpush.bf16.msra.mxu0 %v13028
        %13040 = vmatpush.bf16.msra.mxu0 %v13027
        %13041 = vmatpush.bf16.msra.mxu0 %v13026
        %13042 = vmatpush.bf16.msra.mxu0 %v13025
        %13043 = vmatpush.bf16.msra.mxu0 %v13024
        %13044 = vmatpush.bf16.msra.mxu0 %v13023
        %13045 = vmatpush.bf16.msra.mxu0 %v13022
        %13046 = vmatmul.bf16.gmra.mxu0 %v12971
        %v13047 = vpop.f32.mrf.mxu0
        %v13048 = vadd.f32 %v12988, %v13047
        %v13049 = vpop.f32.mrf.mxu0
        %v13050 = vadd.f32 %v12988, %v13049
        %13051 = vmatmul.bf16.gmra.mxu0 %v12972
        %v13052 = vpop.f32.mrf.mxu0
        %v13053 = vadd.f32 %v12988, %v13052
        %v13054 = vpop.f32.mrf.mxu0
        %v13055 = vadd.f32 %v12988, %v13054
        %13056 = vmatmul.bf16.gmra.mxu0 %v12973
        %v13057 = vpop.f32.mrf.mxu0
        %v13058 = vadd.f32 %v12988, %v13057
        %v13059 = vpop.f32.mrf.mxu0
        %v13060 = vadd.f32 %v12988, %v13059
        %13061 = vmatmul.bf16.gmra.mxu0 %v12974
        %v13062 = vpop.f32.mrf.mxu0
        %v13063 = vadd.f32 %v12988, %v13062
        %v13064 = vpop.f32.mrf.mxu0
        %v13065 = vadd.f32 %v12988, %v13064
        %13066 = vmatmul.bf16.gmra.mxu0 %v12975
        %v13067 = vpop.f32.mrf.mxu0
        %v13068 = vadd.f32 %v12988, %v13067
        %v13069 = vpop.f32.mrf.mxu0
        %v13070 = vadd.f32 %v12988, %v13069
        %13071 = vmatmul.bf16.gmra.mxu0 %v12976
        %v13072 = vpop.f32.mrf.mxu0
        %v13073 = vadd.f32 %v12988, %v13072
        %v13074 = vpop.f32.mrf.mxu0
        %v13075 = vadd.f32 %v12988, %v13074
        %13076 = vmatmul.bf16.gmra.mxu0 %v12977
        %v13077 = vpop.f32.mrf.mxu0
        %v13078 = vadd.f32 %v12988, %v13077
        %v13079 = vpop.f32.mrf.mxu0
        %v13080 = vadd.f32 %v12988, %v13079
        %13081 = vmatmul.bf16.gmra.mxu0 %v12978
        %v13082 = vpop.f32.mrf.mxu0
        %v13083 = vadd.f32 %v12988, %v13082
        %v13084 = vpop.f32.mrf.mxu0
        %v13085 = vadd.f32 %v12988, %v13084
        %13086 = vmatmul.bf16.gmra.mxu0 %v12979
        %v13087 = vpop.f32.mrf.mxu0
        %v13088 = vadd.f32 %v12988, %v13087
        %v13089 = vpop.f32.mrf.mxu0
        %v13090 = vadd.f32 %v12988, %v13089
        %13091 = vmatmul.bf16.gmra.mxu0 %v12980
        %v13092 = vpop.f32.mrf.mxu0
        %v13093 = vadd.f32 %v12988, %v13092
        %v13094 = vpop.f32.mrf.mxu0
        %v13095 = vadd.f32 %v12988, %v13094
        %13096 = vmatmul.bf16.gmra.mxu0 %v12981
        %v13097 = vpop.f32.mrf.mxu0
        %v13098 = vadd.f32 %v12988, %v13097
        %v13099 = vpop.f32.mrf.mxu0
        %v13100 = vadd.f32 %v12988, %v13099
        %13101 = vmatmul.bf16.gmra.mxu0 %v12982
        %v13102 = vpop.f32.mrf.mxu0
        %v13103 = vadd.f32 %v12988, %v13102
        %v13104 = vpop.f32.mrf.mxu0
        %v13105 = vadd.f32 %v12988, %v13104
        %13106 = vmatmul.bf16.gmra.mxu0 %v12983
        %v13107 = vpop.f32.mrf.mxu0
        %v13108 = vadd.f32 %v12988, %v13107
        %v13109 = vpop.f32.mrf.mxu0
        %v13110 = vadd.f32 %v12988, %v13109
        %13111 = vmatmul.bf16.gmra.mxu0 %v12984
        %v13112 = vpop.f32.mrf.mxu0
        %v13113 = vadd.f32 %v12988, %v13112
        %v13114 = vpop.f32.mrf.mxu0
        %v13115 = vadd.f32 %v12988, %v13114
        %13116 = vmatmul.bf16.gmra.mxu0 %v12985
        %v13117 = vpop.f32.mrf.mxu0
        %v13118 = vadd.f32 %v12988, %v13117
        %v13119 = vpop.f32.mrf.mxu0
        %v13120 = vadd.f32 %v12988, %v13119
        %13121 = vmatmul.bf16.gmra.mxu0 %v12986
        %v13122 = vpop.f32.mrf.mxu0
        %v13123 = vadd.f32 %v12988, %v13122
        %v13124 = vpop.f32.mrf.mxu0
        %v13125 = vadd.f32 %v12988, %v13124
        %13126 = vdwg.mxu0
        %v13175 = vrot.slane %v421, 3
        %v13176 = vrot.slane %v422, 3
        %v13177 = vsel %vm4417, %v13175, %v13176
        %v13178 = vrot.slane %v423, 3
        %v13179 = vsel %vm4417, %v13176, %v13178
        %v13180 = vrot.slane %v424, 3
        %v13181 = vrot.slane %v425, 3
        %v13182 = vsel %vm4417, %v13180, %v13181
        %v13183 = vrot.slane %v426, 3
        %v13184 = vsel %vm4417, %v13181, %v13183
        %v13185 = vrot.slane %v427, 3
        %v13186 = vrot.slane %v428, 3
        %v13187 = vsel %vm4417, %v13185, %v13186
        %v13188 = vrot.slane %v429, 3
        %v13189 = vsel %vm4417, %v13186, %v13188
        %v13190 = vrot.slane %v430, 3
        %v13191 = vrot.slane %v431, 3
        %v13192 = vsel %vm4417, %v13190, %v13191
        %v13193 = vrot.slane %v432, 3
        %v13194 = vsel %vm4417, %v13191, %v13193
        %v13195 = vrot.slane %v433, 3
        %v13196 = vrot.slane %v434, 3
        %v13197 = vsel %vm4417, %v13195, %v13196
        %v13198 = vrot.slane %v435, 3
        %v13199 = vsel %vm4417, %v13196, %v13198
        %v13200 = vrot.slane %v436, 3
        %v13201 = vrot.slane %v437, 3
        %v13202 = vsel %vm4417, %v13200, %v13201
        %v13203 = vrot.slane %v438, 3
        %v13204 = vsel %vm4417, %v13201, %v13203
        %v13205 = vrot.slane %v439, 3
        %v13206 = vrot.slane %v440, 3
        %v13207 = vsel %vm4417, %v13205, %v13206
        %v13208 = vrot.slane %v441, 3
        %v13209 = vsel %vm4417, %v13206, %v13208
        %v13210 = vrot.slane %v442, 3
        %v13211 = vrot.slane %v443, 3
        %v13212 = vsel %vm4417, %v13210, %v13211
        %v13213 = vrot.slane %v444, 3
        %v13214 = vsel %vm4417, %v13211, %v13213
        %v13215 = vrot.slane %v445, 3
        %v13216 = vrot.slane %v446, 3
        %v13217 = vsel %vm4417, %v13215, %v13216
        %v13218 = vrot.slane %v447, 3
        %v13219 = vsel %vm4417, %v13216, %v13218
        %v13220 = vrot.slane %v448, 3
        %v13221 = vrot.slane %v449, 3
        %v13222 = vsel %vm4417, %v13220, %v13221
        %v13223 = vrot.slane %v450, 3
        %v13224 = vsel %vm4417, %v13221, %v13223
        %v13225 = vrot.slane %v451, 3
        %v13226 = vrot.slane %v452, 3
        %v13227 = vsel %vm4417, %v13225, %v13226
        %v13228 = vrot.slane %v453, 3
        %v13229 = vsel %vm4417, %v13226, %v13228
        %v13230 = vrot.slane %v454, 3
        %v13231 = vrot.slane %v455, 3
        %v13232 = vsel %vm4417, %v13230, %v13231
        %v13233 = vrot.slane %v456, 3
        %v13234 = vsel %vm4417, %v13231, %v13233
        %v13235 = vrot.slane %v457, 3
        %v13236 = vrot.slane %v458, 3
        %v13237 = vsel %vm4417, %v13235, %v13236
        %v13238 = vrot.slane %v459, 3
        %v13239 = vsel %vm4417, %v13236, %v13238
        %v13240 = vrot.slane %v460, 3
        %v13241 = vrot.slane %v461, 3
        %v13242 = vsel %vm4417, %v13240, %v13241
        %v13243 = vrot.slane %v462, 3
        %v13244 = vsel %vm4417, %v13241, %v13243
        %v13245 = vrot.slane %v463, 3
        %v13246 = vrot.slane %v464, 3
        %v13247 = vsel %vm4417, %v13245, %v13246
        %v13248 = vrot.slane %v465, 3
        %v13249 = vsel %vm4417, %v13246, %v13248
        %v13250 = vrot.slane %v466, 3
        %v13251 = vrot.slane %v467, 3
        %v13252 = vsel %vm4417, %v13250, %v13251
        %v13253 = vrot.slane %v468, 3
        %v13254 = vsel %vm4417, %v13251, %v13253
        %v13287 = vadd.f32 %v13048, %v13177
        %v13288 = vadd.f32 %v13050, %v13179
        %v13289 = vadd.f32 %v13053, %v13182
        %v13290 = vadd.f32 %v13055, %v13184
        %v13291 = vadd.f32 %v13058, %v13187
        %v13292 = vadd.f32 %v13060, %v13189
        %v13293 = vadd.f32 %v13063, %v13192
        %v13294 = vadd.f32 %v13065, %v13194
        %v13295 = vadd.f32 %v13068, %v13197
        %v13296 = vadd.f32 %v13070, %v13199
        %v13297 = vadd.f32 %v13073, %v13202
        %v13298 = vadd.f32 %v13075, %v13204
        %v13299 = vadd.f32 %v13078, %v13207
        %v13300 = vadd.f32 %v13080, %v13209
        %v13301 = vadd.f32 %v13083, %v13212
        %v13302 = vadd.f32 %v13085, %v13214
        %v13303 = vadd.f32 %v13088, %v13217
        %v13304 = vadd.f32 %v13090, %v13219
        %v13305 = vadd.f32 %v13093, %v13222
        %v13306 = vadd.f32 %v13095, %v13224
        %v13307 = vadd.f32 %v13098, %v13227
        %v13308 = vadd.f32 %v13100, %v13229
        %v13309 = vadd.f32 %v13103, %v13232
        %v13310 = vadd.f32 %v13105, %v13234
        %v13311 = vadd.f32 %v13108, %v13237
        %v13312 = vadd.f32 %v13110, %v13239
        %v13313 = vadd.f32 %v13113, %v13242
        %v13314 = vadd.f32 %v13115, %v13244
        %v13315 = vadd.f32 %v13118, %v13247
        %v13316 = vadd.f32 %v13120, %v13249
        %v13317 = vadd.f32 %v13123, %v13252
        %v13318 = vadd.f32 %v13125, %v13254
        %13319 = vst [vmem:[%s348] sm:$0xff] %v13287
        %13320 = vst [vmem:[%s348 + $0x8] sm:$0xff] %v13288
        %13321 = vst [vmem:[%s348 + $0x10] sm:$0xff] %v13289
        %13322 = vst [vmem:[%s348 + $0x18] sm:$0xff] %v13290
        %13323 = vst [vmem:[%s348 + $0x20] sm:$0xff] %v13291
        %13324 = vst [vmem:[%s348 + $0x28] sm:$0xff] %v13292
        %13325 = vst [vmem:[%s348 + $0x30] sm:$0xff] %v13293
        %13326 = vst [vmem:[%s348 + $0x38] sm:$0xff] %v13294
        %13327 = vst [vmem:[%s348 + $0x40] sm:$0xff] %v13295
        %13328 = vst [vmem:[%s348 + $0x48] sm:$0xff] %v13296
        %13329 = vst [vmem:[%s348 + $0x50] sm:$0xff] %v13297
        %13330 = vst [vmem:[%s348 + $0x58] sm:$0xff] %v13298
        %13331 = vst [vmem:[%s348 + $0x60] sm:$0xff] %v13299
        %13332 = vst [vmem:[%s348 + $0x68] sm:$0xff] %v13300
        %13333 = vst [vmem:[%s348 + $0x70] sm:$0xff] %v13301
        %13334 = vst [vmem:[%s348 + $0x78] sm:$0xff] %v13302
        %13335 = vst [vmem:[%s348 + $0x80] sm:$0xff] %v13303
        %13336 = vst [vmem:[%s348 + $0x88] sm:$0xff] %v13304
        %13337 = vst [vmem:[%s348 + $0x90] sm:$0xff] %v13305
        %13338 = vst [vmem:[%s348 + $0x98] sm:$0xff] %v13306
        %13339 = vst [vmem:[%s348 + $0xa0] sm:$0xff] %v13307
        %13340 = vst [vmem:[%s348 + $0xa8] sm:$0xff] %v13308
        %13341 = vst [vmem:[%s348 + $0xb0] sm:$0xff] %v13309
        %13342 = vst [vmem:[%s348 + $0xb8] sm:$0xff] %v13310
        %13343 = vst [vmem:[%s348 + $0xc0] sm:$0xff] %v13311
        %13344 = vst [vmem:[%s348 + $0xc8] sm:$0xff] %v13312
        %13345 = vst [vmem:[%s348 + $0xd0] sm:$0xff] %v13313
        %13346 = vst [vmem:[%s348 + $0xd8] sm:$0xff] %v13314
        %13347 = vst [vmem:[%s348 + $0xe0] sm:$0xff] %v13315
        %13348 = vst [vmem:[%s348 + $0xe8] sm:$0xff] %v13316
        %13349 = vst [vmem:[%s348 + $0xf0] sm:$0xff] %v13317
        %13350 = vst [vmem:[%s348 + $0xf8] sm:$0xff] %v13318
        %s13351 = sand.u32 %s215, 1
        %s13352 = scalar_lea.sflag [#allocation6], %s13351
        %s13353 = sand.u32 %s215, 1
        %s13354 = smul.addr %s13353, 256
        %s13355 = scalar_lea.vmem [#allocation10], %s13354
        // Predicated region
        $region81: #{tpu_custom_call.1} parent=51 // pred_check
          %p13356 = pneg %p225
        $region82: #{tpu_custom_call.1} parent=51 // pred_check_branch
          %13358 = sbr.rel (%p13356) target = $region84
        $region83: #{tpu_custom_call.1} parent=51 // pred_region
          %s13359 = smul.u32 16, %s30
          %13361 = vsyncadd %s13352, 0
          %s13362 = smul.addr %s13359, 2
          %s13363 = smul.addr %s29, 32
          %s13364 = sadd.s32 %s13362, %s13363
          %s13365 = smul.addr %s13364, 8
          %s13366 = scalar_lea.hbm %s9, %s13365
          %s13367 = sshll.u32 %s13355, 4
          %s13368 = int_to_ptr.vmem [resolvable:$true] %s13367
          %s13369 = sshll.u32 %s13366, 4
          %s13370 = int_to_ptr.hbm [resolvable:$true] %s13369
          %13375 = dma.vmem_to_hbm [thread:$0]  %s13368, 4096, %s13370, %s13352, 128, 128, 8
        $region84: #{tpu_custom_call.1} parent=51 // pred_fallthru
          _
      $region52: #{tpu_custom_call.1} parent=5 // pred_fallthru
        _
      %p13376 = scmp.le.s32.totalorder 2, %s20
      // Predicated region
      $region85: #{tpu_custom_call.1} parent=5 // pred_check
        %p13377 = pneg %p13376
      $region86: #{tpu_custom_call.1} parent=5 // pred_check_branch
        %13379 = sbr.rel (%p13377) target = $region88
      $region87: #{tpu_custom_call.1} parent=5 // pred_region
        %s13380 = ssub.s32 %s20, 2
        // Predicated region
        $region89: #{tpu_custom_call.1} parent=87 // pred_check
          %p13381 = pneg %p231
        $region90: #{tpu_custom_call.1} parent=87 // pred_check_branch
          %13383 = sbr.rel (%p13381) target = $region92
        $region91: #{tpu_custom_call.1} parent=87 // pred_region
          %s13384 = sand.u32 %s216, 1
          %s13385 = scalar_lea.sflag [#allocation6], %s13384
          %s13386 = sand.u32 %s216, 1
          %s13387 = smul.addr %s13386, 256
          %s13388 = scalar_lea.vmem [#allocation10], %s13387
          %13390 = dma.done %s13385, 4096
        $region92: #{tpu_custom_call.1} parent=87 // pred_fallthru
          _
      $region88: #{tpu_custom_call.1} parent=5 // pred_fallthru
        _
    $region6: #{tpu_custom_call.1} parent=1 // loop_footer
      %s24 = sadd.s32 1, %s20
    $region7: #{tpu_custom_call.1} parent=1 // loop_footer_branch
      %19 = sbr.rel target = $region3
    $region8: #{tpu_custom_call.1} parent=1 // loop_exit
      _
    %13391 = vsyncpa [#allocation5], 1
    %s13392 = scalar_lea.sflag [#allocation5], 1
    %13393 = vsyncpa %s13392, 1
    %13394 = vsyncpa [#allocation8], 1
    %13395 = vsyncpa [#allocation6], 1
    %s13396 = scalar_lea.sflag [#allocation6], 1
    %13397 = vsyncpa %s13396, 1
  %13398 = vsyncmov [#allocation3]
  %s13399 = vpop.sfrf %13398
  %p13400 = scmp.eq.s32.totalorder %s13399, 0
  %p13401 = pneg %p13400
  %13403 = shalt.err (%p13401)
  %s13404 = scalar_lea.sflag [#allocation3], 1
  %13405 = vsyncmov %s13404
  %s13406 = vpop.sfrf %13405
  %p13407 = scmp.eq.s32.totalorder %s13406, 0
  %p13408 = pneg %p13407
  %13410 = shalt.err (%p13408)

</llo_original>
